<compile_context>
chip_gen: v7x
topology: tpu7x:2x2x1
jax: 0.10.0
libtpu: 0.0.40
codegen_flags: <defaults>
</compile_context>

<pallas_src>
import functools

import jax
import jax.numpy as jnp
from jax import lax
from jax.experimental import pallas as pl
from jax.experimental.pallas import tpu as pltpu

KSIZE = 5
PAD = 2
VMEM_LIMIT = 32 * 1024 * 1024   # stays inside v7x's 64 MiB with headroom


# ------------------- conv(5x5, pad=2) + ReLU + 2x2 max-pool -------------------
def _conv_relu_pool_kernel(x_ref, w_ref, b_ref, o_ref, pad_ref, hp_ref,
                           *, H, W, Cin, Cout):
    # x_ref  : (1, H, W, Cin)            one NHWC image
    # w_ref  : (KSIZE*KSIZE*Cin, Cout)   conv weight, rows in (kh, kw, cin) order
    # b_ref  : (1, Cout)
    # o_ref  : (1, H//2, W//2, Cout)
    # pad_ref: VMEM (H+4, W+4, Cin)      in-kernel zero padding (no HBM pad pass)
    # hp_ref : VMEM (H//2, W, Cout)      row-pooled activation (W-pool staging)
    Ho, Wo = H // 2, W // 2

    # Zero-pad the image into VMEM scratch.
    pad_ref[...] = jnp.zeros_like(pad_ref)
    pad_ref[PAD:PAD + H, PAD:PAD + W, :] = x_ref[0]

    # im2col: one (H*W, 25*Cin) patch matrix -> single MXU matmul (K=25*Cin).
    cols = []
    for kh in range(KSIZE):
        for kw in range(KSIZE):
            win = pad_ref[kh:kh + H, kw:kw + W, :]            # (H, W, Cin)
            cols.append(win.reshape(H * W, Cin))
    patches = jnp.concatenate(cols, axis=1)                   # (H*W, 25*Cin)

    acc = jnp.dot(patches, w_ref[...], preferred_element_type=jnp.float32)
    acc = jnp.maximum(acc + b_ref[...], 0.0)                  # bias + ReLU

    # 2x2 max-pool.  H-pairs are reduced in registers (leading-dim split);
    # W-pairs (a sublane-pair reduction) use a half-size scratch + two strided
    # reads, which is the proven lowering path.
    r = acc.reshape(Ho, 2, W, Cout)
    hp_ref[...] = jnp.maximum(r[:, 0], r[:, 1])               # (Ho, W, Cout)
    wp = jnp.maximum(hp_ref[:, pl.ds(0, Wo, 2), :],
                     hp_ref[:, pl.ds(1, Wo, 2), :])           # (Ho, Wo, Cout)
    # TODO(synk): a fully lane-dense (Ho, Wo*Cout) store needs a lane-merging
    # reshape; kept the proven (Ho, Wo, Cout) store for portability.
    o_ref[0] = wp.astype(o_ref.dtype)


def conv_relu_pool(x_nhwc, w_hwio, b):
    B, H, W, Cin = x_nhwc.shape
    assert H % 2 == 0 and W % 2 == 0, "MaxPool2d(2) assumes even H, W"
    Cout = w_hwio.shape[-1]
    Ho, Wo = H // 2, W // 2
    w_mat = w_hwio.reshape(KSIZE * KSIZE * Cin, Cout)   # (kh, kw, cin) rows
    kernel = functools.partial(_conv_relu_pool_kernel,
                               H=H, W=W, Cin=Cin, Cout=Cout)
    # TODO(synk): at the real 256x256 size add an H-tile grid axis so the
    # (H*W, 25*Cin) patch matrix stays well inside VMEM.
    return pl.pallas_call(
        kernel,
        out_shape=jax.ShapeDtypeStruct((B, Ho, Wo, Cout), jnp.float32),
        grid=(B,),
        in_specs=[
            pl.BlockSpec((1, H, W, Cin), lambda i: (i, 0, 0, 0)),
            pl.BlockSpec((KSIZE * KSIZE * Cin, Cout), lambda i: (0, 0)),
            pl.BlockSpec((1, Cout), lambda i: (0, 0)),
        ],
        out_specs=pl.BlockSpec((1, Ho, Wo, Cout), lambda i: (i, 0, 0, 0)),
        scratch_shapes=[
            pltpu.VMEM((H + 2 * PAD, W + 2 * PAD, Cin), jnp.float32),
            pltpu.VMEM((Ho, W, Cout), jnp.float32),
        ],
        compiler_params=pltpu.CompilerParams(
            dimension_semantics=("parallel",),   # images across TCs on v7x
            vmem_limit_bytes=VMEM_LIMIT),
    )(x_nhwc, w_mat, b.reshape(1, Cout))


# --------------------- fc1 (K-tiled, pipelined) -> fc2 fused -------------------
def _mlp_kernel(x_ref, w1_ref, b1_ref, w2_ref, b2_ref, o_ref, acc_ref):
    k = pl.program_id(0)

    @pl.when(k == 0)
    def _():
        acc_ref[...] = jnp.zeros_like(acc_ref)

    acc_ref[...] += jnp.dot(x_ref[...], w1_ref[...],
                            preferred_element_type=jnp.float32)

    @pl.when(k == pl.num_programs(0) - 1)
    def _():
        h = acc_ref[...] + b1_ref[...]           # fc1 bias (no activation in ref)
        o_ref[...] = (jnp.dot(h, w2_ref[...],
                              preferred_element_type=jnp.float32)
                      + b2_ref[...]).astype(o_ref.dtype)


def _pick_tk(K):
    # Largest K-tile <= 2048 that divides K and gives >= 2 pipeline steps.
    # At the real FLAT=65536 this keeps 2 double-buffered (2048, 900) f32
    # weight tiles (~15 MB) well inside the 32 MiB VMEM budget.
    for tk in (2048, 1024, 512, 256, 128):
        if K % tk == 0 and K // tk >= 2:
            return tk
    return K


def mlp(x, w1, b1, w2, b2):
    B, K = x.shape
    N1 = w1.shape[1]
    N2 = w2.shape[1]
    tk = _pick_tk(K)
    nk = K // tk
    # TODO(synk): for v7x, additionally split N1 (padded to 1024) across the
    # two TensorCores with a "parallel" grid axis.
    return pl.pallas_call(
        _mlp_kernel,
        out_shape=jax.ShapeDtypeStruct((B, N2), jnp.float32),
        grid=(nk,),
        in_specs=[
            pl.BlockSpec((B, tk), lambda k: (0, k)),
            pl.BlockSpec((tk, N1), lambda k: (k, 0)),
            pl.BlockSpec((1, N1), lambda k: (0, 0)),
            pl.BlockSpec((N1, N2), lambda k: (0, 0)),
            pl.BlockSpec((1, N2), lambda k: (0, 0)),
        ],
        out_specs=pl.BlockSpec((B, N2), lambda k: (0, 0)),
        scratch_shapes=[pltpu.VMEM((B, N1), jnp.float32)],
        compiler_params=pltpu.CompilerParams(
            dimension_semantics=("arbitrary",),   # K is a reduction axis
            vmem_limit_bytes=VMEM_LIMIT),
    )(x, w1, b1.reshape(1, N1), w2, b2.reshape(1, N2))


# --------------------------------- full forward --------------------------------
def cnn_forward(x_nchw, params):
    # NCHW -> NHWC for the conv kernels (smallest tensor in the pipeline).
    x = jnp.transpose(x_nchw, (0, 2, 3, 1)).astype(jnp.float32)
    x = conv_relu_pool(x, params["w_conv1"], params["b_conv1"])
    x = conv_relu_pool(x, params["w_conv2"], params["b_conv2"])
    # Flatten in PyTorch NCHW order: (B, C, H, W) -> (B, C*H*W); this tensor is
    # also the module's second return value.
    # TODO(synk): fold this transpose into the conv2 kernel's out_spec (write
    # (C, Ho*Wo) directly) to drop one small HBM pass.
    x_flat = jnp.transpose(x, (0, 3, 1, 2)).reshape(x.shape[0], -1)
    # nn.Dropout's output is discarded by the reference forward -> no-op here.
    out = mlp(x_flat, params["w_fc1"], params["b_fc1"],
              params["w_fc2"], params["b_fc2"])
    return out, x_flat


# ------------------------------ pure-JAX reference ------------------------------
def _reference_forward(x_nchw, params):
    hi = lax.Precision.HIGHEST

    def conv_block(x, w_hwio, b):
        y = lax.conv_general_dilated(
            x, w_hwio, window_strides=(1, 1),
            padding=((PAD, PAD), (PAD, PAD)),
            dimension_numbers=("NCHW", "HWIO", "NCHW"), precision=hi)
        y = jnp.maximum(y + b[None, :, None, None], 0.0)
        B, C, H, W = y.shape
        return y.reshape(B, C, H // 2, 2, W // 2, 2).max(axis=(3, 5))

    x = conv_block(x_nchw, params["w_conv1"], params["b_conv1"])
    x = conv_block(x, params["w_conv2"], params["b_conv2"])
    x_flat = x.reshape(x.shape[0], -1)
    h = jnp.dot(x_flat, params["w_fc1"], precision=hi) + params["b_fc1"]
    out = jnp.dot(h, params["w_fc2"], precision=hi) + params["b_fc2"]
    return out, x_flat


if __name__ == "__main__":
    # small shapes consistent with the module: W = H = 16 instead of 256
    B, Cin, H, W = 2, 4, 16, 16
    C1, C2 = 8, 16
    FLAT = C2 * (H // 4) * (W // 4)     # int(16 * W/4 * H/4) with W=H=16 -> 256
    HID, NCLASS = 900, 28

    key = jax.random.PRNGKey(0)
    ks = jax.random.split(key, 9)
    x = jax.random.normal(ks[0], (B, Cin, H, W), dtype=jnp.float32)

    params = {
        "w_conv1": 0.10 * jax.random.normal(ks[1], (KSIZE, KSIZE, Cin, C1), jnp.float32),
        "b_conv1": 0.10 * jax.random.normal(ks[2], (C1,), jnp.float32),
        "w_conv2": 0.10 * jax.random.normal(ks[3], (KSIZE, KSIZE, C1, C2), jnp.float32),
        "b_conv2": 0.10 * jax.random.normal(ks[4], (C2,), jnp.float32),
        "w_fc1": 0.05 * jax.random.normal(ks[5], (FLAT, HID), jnp.float32),
        "b_fc1": 0.05 * jax.random.normal(ks[6], (HID,), jnp.float32),
        "w_fc2": 0.05 * jax.random.normal(ks[7], (HID, NCLASS), jnp.float32),
        "b_fc2": 0.05 * jax.random.normal(ks[8], (NCLASS,), jnp.float32),
    }

    out, feat = jax.jit(cnn_forward)(x, params)
    jax.block_until_ready((out, feat))

    out_ref, feat_ref = _reference_forward(x, params)
    assert out.shape == (B, NCLASS), out.shape
    assert feat.shape == (B, FLAT), feat.shape
    assert bool(jnp.all(jnp.isfinite(out))) and bool(jnp.all(jnp.isfinite(feat)))
    assert bool(jnp.allclose(feat, feat_ref, rtol=2e-3, atol=2e-3)), \
        float(jnp.max(jnp.abs(feat - feat_ref)))
    assert bool(jnp.allclose(out, out_ref, rtol=2e-3, atol=2e-3)), \
        float(jnp.max(jnp.abs(out - out_ref)))
    print("KERNEL_OK")
</pallas_src>

<mosaic_0001>
module attributes {stable_mosaic.version = 11 : i64} {
  func.func @_conv_relu_pool_kernel(%arg0: i32, %arg1: memref<1x8x8x8xf32, #tpu.memory_space<vmem>>, %arg2: memref<200x16xf32, #tpu.memory_space<vmem>>, %arg3: memref<1x16xf32, #tpu.memory_space<vmem>>, %arg4: memref<1x4x4x16xf32, #tpu.memory_space<vmem>>, %arg5: memref<12x12x8xf32, #tpu.memory_space<vmem>>, %arg6: memref<4x8x16xf32, #tpu.memory_space<vmem>>) attributes {dimension_semantics = [#tpu.dimension_semantics<parallel>], iteration_bounds = array<i64: 2>, scalar_prefetch = 0 : i64, scratch_operands = 2 : i64, tpu.core_type = #tpu.core_type<tc>, window_params = [{transform_indices = @transform_0, window_bounds = array<i64: 1, 8, 8, 8>}, {pipeline_mode = #tpu.pipeline_mode<synchronous>, transform_indices = @transform_1, window_bounds = array<i64: 200, 16>}, {pipeline_mode = #tpu.pipeline_mode<synchronous>, transform_indices = @transform_2, window_bounds = array<i64: 1, 16>}, {transform_indices = @transform_3, window_bounds = array<i64: 1, 4, 4, 16>}]} {
    %cst = arith.constant 0.000000e+00 : f32
    %0 = vector.broadcast %cst : f32 to vector<12x12x8xf32>
    %c0 = arith.constant 0 : index
    %c0_0 = arith.constant 0 : index
    %c0_1 = arith.constant 0 : index
    %1 = vector.load %arg5[%c0, %c0_0, %c0_1] : memref<12x12x8xf32, #tpu.memory_space<vmem>>, vector<12x12x8xf32>
    tpu.vector_store %arg5[%c0, %c0_0, %c0_1], %0 {strides = array<i32>} : memref<12x12x8xf32, #tpu.memory_space<vmem>>, vector<12x12x8xf32>,
    %c0_2 = arith.constant 0 : index
    %c0_3 = arith.constant 0 : index
    %c0_4 = arith.constant 0 : index
    %c0_5 = arith.constant 0 : index
    %2 = vector.load %arg1[%c0_2, %c0_3, %c0_4, %c0_5] : memref<1x8x8x8xf32, #tpu.memory_space<vmem>>, vector<1x8x8x8xf32>
    %3 = vector.shape_cast %2 : vector<1x8x8x8xf32> to vector<8x8x8xf32>
    %c2 = arith.constant 2 : index
    %c2_6 = arith.constant 2 : index
    %c0_7 = arith.constant 0 : index
    %4 = vector.load %arg5[%c2, %c2_6, %c0_7] : memref<12x12x8xf32, #tpu.memory_space<vmem>>, vector<8x8x8xf32>
    tpu.vector_store %arg5[%c2, %c2_6, %c0_7], %3 {strides = array<i32>} : memref<12x12x8xf32, #tpu.memory_space<vmem>>, vector<8x8x8xf32>,
    %c0_8 = arith.constant 0 : index
    %c0_9 = arith.constant 0 : index
    %c0_10 = arith.constant 0 : index
    %5 = vector.load %arg5[%c0_8, %c0_9, %c0_10] : memref<12x12x8xf32, #tpu.memory_space<vmem>>, vector<8x8x8xf32>
    %6 = vector.shape_cast %5 : vector<8x8x8xf32> to vector<64x8xf32>
    %c0_11 = arith.constant 0 : index
    %c1 = arith.constant 1 : index
    %c0_12 = arith.constant 0 : index
    %7 = vector.load %arg5[%c0_11, %c1, %c0_12] : memref<12x12x8xf32, #tpu.memory_space<vmem>>, vector<8x8x8xf32>
    %8 = vector.shape_cast %7 : vector<8x8x8xf32> to vector<64x8xf32>
    %c0_13 = arith.constant 0 : index
    %c2_14 = arith.constant 2 : index
    %c0_15 = arith.constant 0 : index
    %9 = vector.load %arg5[%c0_13, %c2_14, %c0_15] : memref<12x12x8xf32, #tpu.memory_space<vmem>>, vector<8x8x8xf32>
    %10 = vector.shape_cast %9 : vector<8x8x8xf32> to vector<64x8xf32>
    %c0_16 = arith.constant 0 : index
    %c3 = arith.constant 3 : index
    %c0_17 = arith.constant 0 : index
    %11 = vector.load %arg5[%c0_16, %c3, %c0_17] : memref<12x12x8xf32, #tpu.memory_space<vmem>>, vector<8x8x8xf32>
    %12 = vector.shape_cast %11 : vector<8x8x8xf32> to vector<64x8xf32>
    %c0_18 = arith.constant 0 : index
    %c4 = arith.constant 4 : index
    %c0_19 = arith.constant 0 : index
    %13 = vector.load %arg5[%c0_18, %c4, %c0_19] : memref<12x12x8xf32, #tpu.memory_space<vmem>>, vector<8x8x8xf32>
    %14 = vector.shape_cast %13 : vector<8x8x8xf32> to vector<64x8xf32>
    %c1_20 = arith.constant 1 : index
    %c0_21 = arith.constant 0 : index
    %c0_22 = arith.constant 0 : index
    %15 = vector.load %arg5[%c1_20, %c0_21, %c0_22] : memref<12x12x8xf32, #tpu.memory_space<vmem>>, vector<8x8x8xf32>
    %16 = vector.shape_cast %15 : vector<8x8x8xf32> to vector<64x8xf32>
    %c1_23 = arith.constant 1 : index
    %c1_24 = arith.constant 1 : index
    %c0_25 = arith.constant 0 : index
    %17 = vector.load %arg5[%c1_23, %c1_24, %c0_25] : memref<12x12x8xf32, #tpu.memory_space<vmem>>, vector<8x8x8xf32>
    %18 = vector.shape_cast %17 : vector<8x8x8xf32> to vector<64x8xf32>
    %c1_26 = arith.constant 1 : index
    %c2_27 = arith.constant 2 : index
    %c0_28 = arith.constant 0 : index
    %19 = vector.load %arg5[%c1_26, %c2_27, %c0_28] : memref<12x12x8xf32, #tpu.memory_space<vmem>>, vector<8x8x8xf32>
    %20 = vector.shape_cast %19 : vector<8x8x8xf32> to vector<64x8xf32>
    %c1_29 = arith.constant 1 : index
    %c3_30 = arith.constant 3 : index
    %c0_31 = arith.constant 0 : index
    %21 = vector.load %arg5[%c1_29, %c3_30, %c0_31] : memref<12x12x8xf32, #tpu.memory_space<vmem>>, vector<8x8x8xf32>
    %22 = vector.shape_cast %21 : vector<8x8x8xf32> to vector<64x8xf32>
    %c1_32 = arith.constant 1 : index
    %c4_33 = arith.constant 4 : index
    %c0_34 = arith.constant 0 : index
    %23 = vector.load %arg5[%c1_32, %c4_33, %c0_34] : memref<12x12x8xf32, #tpu.memory_space<vmem>>, vector<8x8x8xf32>
    %24 = vector.shape_cast %23 : vector<8x8x8xf32> to vector<64x8xf32>
    %c2_35 = arith.constant 2 : index
    %c0_36 = arith.constant 0 : index
    %c0_37 = arith.constant 0 : index
    %25 = vector.load %arg5[%c2_35, %c0_36, %c0_37] : memref<12x12x8xf32, #tpu.memory_space<vmem>>, vector<8x8x8xf32>
    %26 = vector.shape_cast %25 : vector<8x8x8xf32> to vector<64x8xf32>
    %c2_38 = arith.constant 2 : index
    %c1_39 = arith.constant 1 : index
    %c0_40 = arith.constant 0 : index
    %27 = vector.load %arg5[%c2_38, %c1_39, %c0_40] : memref<12x12x8xf32, #tpu.memory_space<vmem>>, vector<8x8x8xf32>
    %28 = vector.shape_cast %27 : vector<8x8x8xf32> to vector<64x8xf32>
    %c2_41 = arith.constant 2 : index
    %c2_42 = arith.constant 2 : index
    %c0_43 = arith.constant 0 : index
    %29 = vector.load %arg5[%c2_41, %c2_42, %c0_43] : memref<12x12x8xf32, #tpu.memory_space<vmem>>, vector<8x8x8xf32>
    %30 = vector.shape_cast %29 : vector<8x8x8xf32> to vector<64x8xf32>
    %c2_44 = arith.constant 2 : index
    %c3_45 = arith.constant 3 : index
    %c0_46 = arith.constant 0 : index
    %31 = vector.load %arg5[%c2_44, %c3_45, %c0_46] : memref<12x12x8xf32, #tpu.memory_space<vmem>>, vector<8x8x8xf32>
    %32 = vector.shape_cast %31 : vector<8x8x8xf32> to vector<64x8xf32>
    %c2_47 = arith.constant 2 : index
    %c4_48 = arith.constant 4 : index
    %c0_49 = arith.constant 0 : index
    %33 = vector.load %arg5[%c2_47, %c4_48, %c0_49] : memref<12x12x8xf32, #tpu.memory_space<vmem>>, vector<8x8x8xf32>
    %34 = vector.shape_cast %33 : vector<8x8x8xf32> to vector<64x8xf32>
    %c3_50 = arith.constant 3 : index
    %c0_51 = arith.constant 0 : index
    %c0_52 = arith.constant 0 : index
    %35 = vector.load %arg5[%c3_50, %c0_51, %c0_52] : memref<12x12x8xf32, #tpu.memory_space<vmem>>, vector<8x8x8xf32>
    %36 = vector.shape_cast %35 : vector<8x8x8xf32> to vector<64x8xf32>
    %c3_53 = arith.constant 3 : index
    %c1_54 = arith.constant 1 : index
    %c0_55 = arith.constant 0 : index
    %37 = vector.load %arg5[%c3_53, %c1_54, %c0_55] : memref<12x12x8xf32, #tpu.memory_space<vmem>>, vector<8x8x8xf32>
    %38 = vector.shape_cast %37 : vector<8x8x8xf32> to vector<64x8xf32>
    %c3_56 = arith.constant 3 : index
    %c2_57 = arith.constant 2 : index
    %c0_58 = arith.constant 0 : index
    %39 = vector.load %arg5[%c3_56, %c2_57, %c0_58] : memref<12x12x8xf32, #tpu.memory_space<vmem>>, vector<8x8x8xf32>
    %40 = vector.shape_cast %39 : vector<8x8x8xf32> to vector<64x8xf32>
    %c3_59 = arith.constant 3 : index
    %c3_60 = arith.constant 3 : index
    %c0_61 = arith.constant 0 : index
    %41 = vector.load %arg5[%c3_59, %c3_60, %c0_61] : memref<12x12x8xf32, #tpu.memory_space<vmem>>, vector<8x8x8xf32>
    %42 = vector.shape_cast %41 : vector<8x8x8xf32> to vector<64x8xf32>
    %c3_62 = arith.constant 3 : index
    %c4_63 = arith.constant 4 : index
    %c0_64 = arith.constant 0 : index
    %43 = vector.load %arg5[%c3_62, %c4_63, %c0_64] : memref<12x12x8xf32, #tpu.memory_space<vmem>>, vector<8x8x8xf32>
    %44 = vector.shape_cast %43 : vector<8x8x8xf32> to vector<64x8xf32>
    %c4_65 = arith.constant 4 : index
    %c0_66 = arith.constant 0 : index
    %c0_67 = arith.constant 0 : index
    %45 = vector.load %arg5[%c4_65, %c0_66, %c0_67] : memref<12x12x8xf32, #tpu.memory_space<vmem>>, vector<8x8x8xf32>
    %46 = vector.shape_cast %45 : vector<8x8x8xf32> to vector<64x8xf32>
    %c4_68 = arith.constant 4 : index
    %c1_69 = arith.constant 1 : index
    %c0_70 = arith.constant 0 : index
    %47 = vector.load %arg5[%c4_68, %c1_69, %c0_70] : memref<12x12x8xf32, #tpu.memory_space<vmem>>, vector<8x8x8xf32>
    %48 = vector.shape_cast %47 : vector<8x8x8xf32> to vector<64x8xf32>
    %c4_71 = arith.constant 4 : index
    %c2_72 = arith.constant 2 : index
    %c0_73 = arith.constant 0 : index
    %49 = vector.load %arg5[%c4_71, %c2_72, %c0_73] : memref<12x12x8xf32, #tpu.memory_space<vmem>>, vector<8x8x8xf32>
    %50 = vector.shape_cast %49 : vector<8x8x8xf32> to vector<64x8xf32>
    %c4_74 = arith.constant 4 : index
    %c3_75 = arith.constant 3 : index
    %c0_76 = arith.constant 0 : index
    %51 = vector.load %arg5[%c4_74, %c3_75, %c0_76] : memref<12x12x8xf32, #tpu.memory_space<vmem>>, vector<8x8x8xf32>
    %52 = vector.shape_cast %51 : vector<8x8x8xf32> to vector<64x8xf32>
    %c4_77 = arith.constant 4 : index
    %c4_78 = arith.constant 4 : index
    %c0_79 = arith.constant 0 : index
    %53 = vector.load %arg5[%c4_77, %c4_78, %c0_79] : memref<12x12x8xf32, #tpu.memory_space<vmem>>, vector<8x8x8xf32>
    %54 = vector.shape_cast %53 : vector<8x8x8xf32> to vector<64x8xf32>
    %55 = tpu.concatenate %6, %8, %10, %12, %14, %16, %18, %20, %22, %24, %26, %28, %30, %32, %34, %36 in 1 : vector<64x8xf32>, vector<64x8xf32>, vector<64x8xf32>, vector<64x8xf32>, vector<64x8xf32>, vector<64x8xf32>, vector<64x8xf32>, vector<64x8xf32>, vector<64x8xf32>, vector<64x8xf32>, vector<64x8xf32>, vector<64x8xf32>, vector<64x8xf32>, vector<64x8xf32>, vector<64x8xf32>, vector<64x8xf32> -> vector<64x128xf32>
    %56 = tpu.concatenate %38, %40, %42, %44, %46, %48, %50, %52, %54 in 1 : vector<64x8xf32>, vector<64x8xf32>, vector<64x8xf32>, vector<64x8xf32>, vector<64x8xf32>, vector<64x8xf32>, vector<64x8xf32>, vector<64x8xf32>, vector<64x8xf32> -> vector<64x72xf32>
    %57 = tpu.concatenate %55, %56 in 1 : vector<64x128xf32>, vector<64x72xf32> -> vector<64x200xf32>
    %c0_80 = arith.constant 0 : index
    %c0_81 = arith.constant 0 : index
    %58 = vector.load %arg2[%c0_80, %c0_81] : memref<200x16xf32, #tpu.memory_space<vmem>>, vector<200x16xf32>
    %cst_82 = arith.constant dense<0.000000e+00> : vector<64x16xf32>
    %59 = tpu.matmul %57, %58, %cst_82 {dimension_numbers = #tpu.dot_dimension_numbers<[1], [0], [0], [1], [0, 0, 1, 1], [], []>} : vector<64x200xf32>, vector<200x16xf32>, vector<64x16xf32> -> vector<64x16xf32>
    %c0_83 = arith.constant 0 : index
    %c0_84 = arith.constant 0 : index
    %60 = vector.load %arg3[%c0_83, %c0_84] : memref<1x16xf32, #tpu.memory_space<vmem>>, vector<1x16xf32>
    %61 = vector.broadcast %60 : vector<1x16xf32> to vector<64x16xf32>
    %62 = arith.addf %59, %61 : vector<64x16xf32>
    %cst_85 = arith.constant 0.000000e+00 : f32
    %63 = vector.broadcast %cst_85 : f32 to vector<64x16xf32>
    %64 = arith.maximumf %62, %63 : vector<64x16xf32>
    %65 = vector.shape_cast %64 : vector<64x16xf32> to vector<4x2x8x16xf32>
    %66 = vector.extract_strided_slice %65 {offsets = [0, 0, 0, 0], sizes = [4, 1, 8, 16], strides = [1, 1, 1, 1]} : vector<4x2x8x16xf32> to vector<4x1x8x16xf32>
    %67 = vector.shape_cast %66 : vector<4x1x8x16xf32> to vector<4x8x16xf32>
    %68 = vector.extract_strided_slice %65 {offsets = [0, 1, 0, 0], sizes = [4, 1, 8, 16], strides = [1, 1, 1, 1]} : vector<4x2x8x16xf32> to vector<4x1x8x16xf32>
    %69 = vector.shape_cast %68 : vector<4x1x8x16xf32> to vector<4x8x16xf32>
    %70 = arith.maximumf %67, %69 : vector<4x8x16xf32>
    %c0_86 = arith.constant 0 : index
    %c0_87 = arith.constant 0 : index
    %c0_88 = arith.constant 0 : index
    %71 = vector.load %arg6[%c0_86, %c0_87, %c0_88] : memref<4x8x16xf32, #tpu.memory_space<vmem>>, vector<4x8x16xf32>
    tpu.vector_store %arg6[%c0_86, %c0_87, %c0_88], %70 {strides = array<i32>} : memref<4x8x16xf32, #tpu.memory_space<vmem>>, vector<4x8x16xf32>,
    %c0_89 = arith.constant 0 : index
    %c0_90 = arith.constant 0 : index
    %c0_91 = arith.constant 0 : index
    %72 = tpu.strided_load %arg6[%c0_89, %c0_90, %c0_91] {strides = array<i32: 1, 2, 1>} : memref<4x8x16xf32, #tpu.memory_space<vmem>>, vector<4x4x16xf32>
    %c0_92 = arith.constant 0 : index
    %c1_93 = arith.constant 1 : index
    %c0_94 = arith.constant 0 : index
    %73 = tpu.strided_load %arg6[%c0_92, %c1_93, %c0_94] {strides = array<i32: 1, 2, 1>} : memref<4x8x16xf32, #tpu.memory_space<vmem>>, vector<4x4x16xf32>
    %74 = arith.maximumf %72, %73 : vector<4x4x16xf32>
    %c0_95 = arith.constant 0 : index
    %c0_96 = arith.constant 0 : index
    %c0_97 = arith.constant 0 : index
    %c0_98 = arith.constant 0 : index
    %75 = vector.load %arg4[%c0_95, %c0_96, %c0_97, %c0_98] : memref<1x4x4x16xf32, #tpu.memory_space<vmem>>, vector<1x4x4x16xf32>
    %76 = vector.shape_cast %75 : vector<1x4x4x16xf32> to vector<4x4x16xf32>
    %77 = vector.shape_cast %74 : vector<4x4x16xf32> to vector<1x4x4x16xf32>
    tpu.vector_store %arg4[%c0_95, %c0_96, %c0_97, %c0_98], %77 {strides = array<i32>} : memref<1x4x4x16xf32, #tpu.memory_space<vmem>>, vector<1x4x4x16xf32>,
    return
  }
  func.func @transform_0(%arg0: i32) -> (i32, i32, i32, i32) {
    %c0_i32 = arith.constant 0 : i32
    %c0_i32_0 = arith.constant 0 : i32
    %c0_i32_1 = arith.constant 0 : i32
    %c0_i32_2 = arith.constant 0 : i32
    return %arg0, %c0_i32, %c0_i32_0, %c0_i32_1 : i32, i32, i32, i32
  }
  func.func @transform_1(%arg0: i32) -> (i32, i32) {
    %c0_i32 = arith.constant 0 : i32
    %c0_i32_0 = arith.constant 0 : i32
    %c0_i32_1 = arith.constant 0 : i32
    return %c0_i32, %c0_i32_0 : i32, i32
  }
  func.func @transform_2(%arg0: i32) -> (i32, i32) {
    %c0_i32 = arith.constant 0 : i32
    %c0_i32_0 = arith.constant 0 : i32
    %c0_i32_1 = arith.constant 0 : i32
    return %c0_i32, %c0_i32_0 : i32, i32
  }
  func.func @transform_3(%arg0: i32) -> (i32, i32, i32, i32) {
    %c0_i32 = arith.constant 0 : i32
    %c0_i32_0 = arith.constant 0 : i32
    %c0_i32_1 = arith.constant 0 : i32
    %c0_i32_2 = arith.constant 0 : i32
    return %arg0, %c0_i32, %c0_i32_0, %c0_i32_1 : i32, i32, i32, i32
  }
}

module attributes {stable_mosaic.version = 11 : i64} {
  func.func @_conv_relu_pool_kernel(%arg0: i32, %arg1: memref<1x16x16x4xf32, #tpu.memory_space<vmem>>, %arg2: memref<100x8xf32, #tpu.memory_space<vmem>>, %arg3: memref<1x8xf32, #tpu.memory_space<vmem>>, %arg4: memref<1x8x8x8xf32, #tpu.memory_space<vmem>>, %arg5: memref<20x20x4xf32, #tpu.memory_space<vmem>>, %arg6: memref<8x16x8xf32, #tpu.memory_space<vmem>>) attributes {dimension_semantics = [#tpu.dimension_semantics<parallel>], iteration_bounds = array<i64: 2>, scalar_prefetch = 0 : i64, scratch_operands = 2 : i64, tpu.core_type = #tpu.core_type<tc>, window_params = [{transform_indices = @transform_0, window_bounds = array<i64: 1, 16, 16, 4>}, {pipeline_mode = #tpu.pipeline_mode<synchronous>, transform_indices = @transform_1, window_bounds = array<i64: 100, 8>}, {pipeline_mode = #tpu.pipeline_mode<synchronous>, transform_indices = @transform_2, window_bounds = array<i64: 1, 8>}, {transform_indices = @transform_3, window_bounds = array<i64: 1, 8, 8, 8>}]} {
    %cst = arith.constant 0.000000e+00 : f32
    %0 = vector.broadcast %cst : f32 to vector<20x20x4xf32>
    %c0 = arith.constant 0 : index
    %c0_0 = arith.constant 0 : index
    %c0_1 = arith.constant 0 : index
    %1 = vector.load %arg5[%c0, %c0_0, %c0_1] : memref<20x20x4xf32, #tpu.memory_space<vmem>>, vector<20x20x4xf32>
    tpu.vector_store %arg5[%c0, %c0_0, %c0_1], %0 {strides = array<i32>} : memref<20x20x4xf32, #tpu.memory_space<vmem>>, vector<20x20x4xf32>,
    %c0_2 = arith.constant 0 : index
    %c0_3 = arith.constant 0 : index
    %c0_4 = arith.constant 0 : index
    %c0_5 = arith.constant 0 : index
    %2 = vector.load %arg1[%c0_2, %c0_3, %c0_4, %c0_5] : memref<1x16x16x4xf32, #tpu.memory_space<vmem>>, vector<1x16x16x4xf32>
    %3 = vector.shape_cast %2 : vector<1x16x16x4xf32> to vector<16x16x4xf32>
    %c2 = arith.constant 2 : index
    %c2_6 = arith.constant 2 : index
    %c0_7 = arith.constant 0 : index
    %4 = vector.load %arg5[%c2, %c2_6, %c0_7] : memref<20x20x4xf32, #tpu.memory_space<vmem>>, vector<16x16x4xf32>
    tpu.vector_store %arg5[%c2, %c2_6, %c0_7], %3 {strides = array<i32>} : memref<20x20x4xf32, #tpu.memory_space<vmem>>, vector<16x16x4xf32>,
    %c0_8 = arith.constant 0 : index
    %c0_9 = arith.constant 0 : index
    %c0_10 = arith.constant 0 : index
    %5 = vector.load %arg5[%c0_8, %c0_9, %c0_10] : memref<20x20x4xf32, #tpu.memory_space<vmem>>, vector<16x16x4xf32>
    %6 = vector.shape_cast %5 : vector<16x16x4xf32> to vector<256x4xf32>
    %c0_11 = arith.constant 0 : index
    %c1 = arith.constant 1 : index
    %c0_12 = arith.constant 0 : index
    %7 = vector.load %arg5[%c0_11, %c1, %c0_12] : memref<20x20x4xf32, #tpu.memory_space<vmem>>, vector<16x16x4xf32>
    %8 = vector.shape_cast %7 : vector<16x16x4xf32> to vector<256x4xf32>
    %c0_13 = arith.constant 0 : index
    %c2_14 = arith.constant 2 : index
    %c0_15 = arith.constant 0 : index
    %9 = vector.load %arg5[%c0_13, %c2_14, %c0_15] : memref<20x20x4xf32, #tpu.memory_space<vmem>>, vector<16x16x4xf32>
    %10 = vector.shape_cast %9 : vector<16x16x4xf32> to vector<256x4xf32>
    %c0_16 = arith.constant 0 : index
    %c3 = arith.constant 3 : index
    %c0_17 = arith.constant 0 : index
    %11 = vector.load %arg5[%c0_16, %c3, %c0_17] : memref<20x20x4xf32, #tpu.memory_space<vmem>>, vector<16x16x4xf32>
    %12 = vector.shape_cast %11 : vector<16x16x4xf32> to vector<256x4xf32>
    %c0_18 = arith.constant 0 : index
    %c4 = arith.constant 4 : index
    %c0_19 = arith.constant 0 : index
    %13 = vector.load %arg5[%c0_18, %c4, %c0_19] : memref<20x20x4xf32, #tpu.memory_space<vmem>>, vector<16x16x4xf32>
    %14 = vector.shape_cast %13 : vector<16x16x4xf32> to vector<256x4xf32>
    %c1_20 = arith.constant 1 : index
    %c0_21 = arith.constant 0 : index
    %c0_22 = arith.constant 0 : index
    %15 = vector.load %arg5[%c1_20, %c0_21, %c0_22] : memref<20x20x4xf32, #tpu.memory_space<vmem>>, vector<16x16x4xf32>
    %16 = vector.shape_cast %15 : vector<16x16x4xf32> to vector<256x4xf32>
    %c1_23 = arith.constant 1 : index
    %c1_24 = arith.constant 1 : index
    %c0_25 = arith.constant 0 : index
    %17 = vector.load %arg5[%c1_23, %c1_24, %c0_25] : memref<20x20x4xf32, #tpu.memory_space<vmem>>, vector<16x16x4xf32>
    %18 = vector.shape_cast %17 : vector<16x16x4xf32> to vector<256x4xf32>
    %c1_26 = arith.constant 1 : index
    %c2_27 = arith.constant 2 : index
    %c0_28 = arith.constant 0 : index
    %19 = vector.load %arg5[%c1_26, %c2_27, %c0_28] : memref<20x20x4xf32, #tpu.memory_space<vmem>>, vector<16x16x4xf32>
    %20 = vector.shape_cast %19 : vector<16x16x4xf32> to vector<256x4xf32>
    %c1_29 = arith.constant 1 : index
    %c3_30 = arith.constant 3 : index
    %c0_31 = arith.constant 0 : index
    %21 = vector.load %arg5[%c1_29, %c3_30, %c0_31] : memref<20x20x4xf32, #tpu.memory_space<vmem>>, vector<16x16x4xf32>
    %22 = vector.shape_cast %21 : vector<16x16x4xf32> to vector<256x4xf32>
    %c1_32 = arith.constant 1 : index
    %c4_33 = arith.constant 4 : index
    %c0_34 = arith.constant 0 : index
    %23 = vector.load %arg5[%c1_32, %c4_33, %c0_34] : memref<20x20x4xf32, #tpu.memory_space<vmem>>, vector<16x16x4xf32>
    %24 = vector.shape_cast %23 : vector<16x16x4xf32> to vector<256x4xf32>
    %c2_35 = arith.constant 2 : index
    %c0_36 = arith.constant 0 : index
    %c0_37 = arith.constant 0 : index
    %25 = vector.load %arg5[%c2_35, %c0_36, %c0_37] : memref<20x20x4xf32, #tpu.memory_space<vmem>>, vector<16x16x4xf32>
    %26 = vector.shape_cast %25 : vector<16x16x4xf32> to vector<256x4xf32>
    %c2_38 = arith.constant 2 : index
    %c1_39 = arith.constant 1 : index
    %c0_40 = arith.constant 0 : index
    %27 = vector.load %arg5[%c2_38, %c1_39, %c0_40] : memref<20x20x4xf32, #tpu.memory_space<vmem>>, vector<16x16x4xf32>
    %28 = vector.shape_cast %27 : vector<16x16x4xf32> to vector<256x4xf32>
    %c2_41 = arith.constant 2 : index
    %c2_42 = arith.constant 2 : index
    %c0_43 = arith.constant 0 : index
    %29 = vector.load %arg5[%c2_41, %c2_42, %c0_43] : memref<20x20x4xf32, #tpu.memory_space<vmem>>, vector<16x16x4xf32>
    %30 = vector.shape_cast %29 : vector<16x16x4xf32> to vector<256x4xf32>
    %c2_44 = arith.constant 2 : index
    %c3_45 = arith.constant 3 : index
    %c0_46 = arith.constant 0 : index
    %31 = vector.load %arg5[%c2_44, %c3_45, %c0_46] : memref<20x20x4xf32, #tpu.memory_space<vmem>>, vector<16x16x4xf32>
    %32 = vector.shape_cast %31 : vector<16x16x4xf32> to vector<256x4xf32>
    %c2_47 = arith.constant 2 : index
    %c4_48 = arith.constant 4 : index
    %c0_49 = arith.constant 0 : index
    %33 = vector.load %arg5[%c2_47, %c4_48, %c0_49] : memref<20x20x4xf32, #tpu.memory_space<vmem>>, vector<16x16x4xf32>
    %34 = vector.shape_cast %33 : vector<16x16x4xf32> to vector<256x4xf32>
    %c3_50 = arith.constant 3 : index
    %c0_51 = arith.constant 0 : index
    %c0_52 = arith.constant 0 : index
    %35 = vector.load %arg5[%c3_50, %c0_51, %c0_52] : memref<20x20x4xf32, #tpu.memory_space<vmem>>, vector<16x16x4xf32>
    %36 = vector.shape_cast %35 : vector<16x16x4xf32> to vector<256x4xf32>
    %c3_53 = arith.constant 3 : index
    %c1_54 = arith.constant 1 : index
    %c0_55 = arith.constant 0 : index
    %37 = vector.load %arg5[%c3_53, %c1_54, %c0_55] : memref<20x20x4xf32, #tpu.memory_space<vmem>>, vector<16x16x4xf32>
    %38 = vector.shape_cast %37 : vector<16x16x4xf32> to vector<256x4xf32>
    %c3_56 = arith.constant 3 : index
    %c2_57 = arith.constant 2 : index
    %c0_58 = arith.constant 0 : index
    %39 = vector.load %arg5[%c3_56, %c2_57, %c0_58] : memref<20x20x4xf32, #tpu.memory_space<vmem>>, vector<16x16x4xf32>
    %40 = vector.shape_cast %39 : vector<16x16x4xf32> to vector<256x4xf32>
    %c3_59 = arith.constant 3 : index
    %c3_60 = arith.constant 3 : index
    %c0_61 = arith.constant 0 : index
    %41 = vector.load %arg5[%c3_59, %c3_60, %c0_61] : memref<20x20x4xf32, #tpu.memory_space<vmem>>, vector<16x16x4xf32>
    %42 = vector.shape_cast %41 : vector<16x16x4xf32> to vector<256x4xf32>
    %c3_62 = arith.constant 3 : index
    %c4_63 = arith.constant 4 : index
    %c0_64 = arith.constant 0 : index
    %43 = vector.load %arg5[%c3_62, %c4_63, %c0_64] : memref<20x20x4xf32, #tpu.memory_space<vmem>>, vector<16x16x4xf32>
    %44 = vector.shape_cast %43 : vector<16x16x4xf32> to vector<256x4xf32>
    %c4_65 = arith.constant 4 : index
    %c0_66 = arith.constant 0 : index
    %c0_67 = arith.constant 0 : index
    %45 = vector.load %arg5[%c4_65, %c0_66, %c0_67] : memref<20x20x4xf32, #tpu.memory_space<vmem>>, vector<16x16x4xf32>
    %46 = vector.shape_cast %45 : vector<16x16x4xf32> to vector<256x4xf32>
    %c4_68 = arith.constant 4 : index
    %c1_69 = arith.constant 1 : index
    %c0_70 = arith.constant 0 : index
    %47 = vector.load %arg5[%c4_68, %c1_69, %c0_70] : memref<20x20x4xf32, #tpu.memory_space<vmem>>, vector<16x16x4xf32>
    %48 = vector.shape_cast %47 : vector<16x16x4xf32> to vector<256x4xf32>
    %c4_71 = arith.constant 4 : index
    %c2_72 = arith.constant 2 : index
    %c0_73 = arith.constant 0 : index
    %49 = vector.load %arg5[%c4_71, %c2_72, %c0_73] : memref<20x20x4xf32, #tpu.memory_space<vmem>>, vector<16x16x4xf32>
    %50 = vector.shape_cast %49 : vector<16x16x4xf32> to vector<256x4xf32>
    %c4_74 = arith.constant 4 : index
    %c3_75 = arith.constant 3 : index
    %c0_76 = arith.constant 0 : index
    %51 = vector.load %arg5[%c4_74, %c3_75, %c0_76] : memref<20x20x4xf32, #tpu.memory_space<vmem>>, vector<16x16x4xf32>
    %52 = vector.shape_cast %51 : vector<16x16x4xf32> to vector<256x4xf32>
    %c4_77 = arith.constant 4 : index
    %c4_78 = arith.constant 4 : index
    %c0_79 = arith.constant 0 : index
    %53 = vector.load %arg5[%c4_77, %c4_78, %c0_79] : memref<20x20x4xf32, #tpu.memory_space<vmem>>, vector<16x16x4xf32>
    %54 = vector.shape_cast %53 : vector<16x16x4xf32> to vector<256x4xf32>
    %55 = tpu.concatenate %6, %8, %10, %12, %14, %16, %18, %20, %22, %24, %26, %28, %30, %32, %34, %36 in 1 : vector<256x4xf32>, vector<256x4xf32>, vector<256x4xf32>, vector<256x4xf32>, vector<256x4xf32>, vector<256x4xf32>, vector<256x4xf32>, vector<256x4xf32>, vector<256x4xf32>, vector<256x4xf32>, vector<256x4xf32>, vector<256x4xf32>, vector<256x4xf32>, vector<256x4xf32>, vector<256x4xf32>, vector<256x4xf32> -> vector<256x64xf32>
    %56 = tpu.concatenate %38, %40, %42, %44, %46, %48, %50, %52, %54 in 1 : vector<256x4xf32>, vector<256x4xf32>, vector<256x4xf32>, vector<256x4xf32>, vector<256x4xf32>, vector<256x4xf32>, vector<256x4xf32>, vector<256x4xf32>, vector<256x4xf32> -> vector<256x36xf32>
    %57 = tpu.concatenate %55, %56 in 1 : vector<256x64xf32>, vector<256x36xf32> -> vector<256x100xf32>
    %c0_80 = arith.constant 0 : index
    %c0_81 = arith.constant 0 : index
    %58 = vector.load %arg2[%c0_80, %c0_81] : memref<100x8xf32, #tpu.memory_space<vmem>>, vector<100x8xf32>
    %cst_82 = arith.constant dense<0.000000e+00> : vector<256x8xf32>
    %59 = tpu.matmul %57, %58, %cst_82 {dimension_numbers = #tpu.dot_dimension_numbers<[1], [0], [0], [1], [0, 0, 1, 1], [], []>} : vector<256x100xf32>, vector<100x8xf32>, vector<256x8xf32> -> vector<256x8xf32>
    %c0_83 = arith.constant 0 : index
    %c0_84 = arith.constant 0 : index
    %60 = vector.load %arg3[%c0_83, %c0_84] : memref<1x8xf32, #tpu.memory_space<vmem>>, vector<1x8xf32>
    %61 = vector.broadcast %60 : vector<1x8xf32> to vector<256x8xf32>
    %62 = arith.addf %59, %61 : vector<256x8xf32>
    %cst_85 = arith.constant 0.000000e+00 : f32
    %63 = vector.broadcast %cst_85 : f32 to vector<256x8xf32>
    %64 = arith.maximumf %62, %63 : vector<256x8xf32>
    %65 = vector.shape_cast %64 : vector<256x8xf32> to vector<8x2x16x8xf32>
    %66 = vector.extract_strided_slice %65 {offsets = [0, 0, 0, 0], sizes = [8, 1, 16, 8], strides = [1, 1, 1, 1]} : vector<8x2x16x8xf32> to vector<8x1x16x8xf32>
    %67 = vector.shape_cast %66 : vector<8x1x16x8xf32> to vector<8x16x8xf32>
    %68 = vector.extract_strided_slice %65 {offsets = [0, 1, 0, 0], sizes = [8, 1, 16, 8], strides = [1, 1, 1, 1]} : vector<8x2x16x8xf32> to vector<8x1x16x8xf32>
    %69 = vector.shape_cast %68 : vector<8x1x16x8xf32> to vector<8x16x8xf32>
    %70 = arith.maximumf %67, %69 : vector<8x16x8xf32>
    %c0_86 = arith.constant 0 : index
    %c0_87 = arith.constant 0 : index
    %c0_88 = arith.constant 0 : index
    %71 = vector.load %arg6[%c0_86, %c0_87, %c0_88] : memref<8x16x8xf32, #tpu.memory_space<vmem>>, vector<8x16x8xf32>
    tpu.vector_store %arg6[%c0_86, %c0_87, %c0_88], %70 {strides = array<i32>} : memref<8x16x8xf32, #tpu.memory_space<vmem>>, vector<8x16x8xf32>,
    %c0_89 = arith.constant 0 : index
    %c0_90 = arith.constant 0 : index
    %c0_91 = arith.constant 0 : index
    %72 = tpu.strided_load %arg6[%c0_89, %c0_90, %c0_91] {strides = array<i32: 1, 2, 1>} : memref<8x16x8xf32, #tpu.memory_space<vmem>>, vector<8x8x8xf32>
    %c0_92 = arith.constant 0 : index
    %c1_93 = arith.constant 1 : index
    %c0_94 = arith.constant 0 : index
    %73 = tpu.strided_load %arg6[%c0_92, %c1_93, %c0_94] {strides = array<i32: 1, 2, 1>} : memref<8x16x8xf32, #tpu.memory_space<vmem>>, vector<8x8x8xf32>
    %74 = arith.maximumf %72, %73 : vector<8x8x8xf32>
    %c0_95 = arith.constant 0 : index
    %c0_96 = arith.constant 0 : index
    %c0_97 = arith.constant 0 : index
    %c0_98 = arith.constant 0 : index
    %75 = vector.load %arg4[%c0_95, %c0_96, %c0_97, %c0_98] : memref<1x8x8x8xf32, #tpu.memory_space<vmem>>, vector<1x8x8x8xf32>
    %76 = vector.shape_cast %75 : vector<1x8x8x8xf32> to vector<8x8x8xf32>
    %77 = vector.shape_cast %74 : vector<8x8x8xf32> to vector<1x8x8x8xf32>
    tpu.vector_store %arg4[%c0_95, %c0_96, %c0_97, %c0_98], %77 {strides = array<i32>} : memref<1x8x8x8xf32, #tpu.memory_space<vmem>>, vector<1x8x8x8xf32>,
    return
  }
  func.func @transform_0(%arg0: i32) -> (i32, i32, i32, i32) {
    %c0_i32 = arith.constant 0 : i32
    %c0_i32_0 = arith.constant 0 : i32
    %c0_i32_1 = arith.constant 0 : i32
    %c0_i32_2 = arith.constant 0 : i32
    return %arg0, %c0_i32, %c0_i32_0, %c0_i32_1 : i32, i32, i32, i32
  }
  func.func @transform_1(%arg0: i32) -> (i32, i32) {
    %c0_i32 = arith.constant 0 : i32
    %c0_i32_0 = arith.constant 0 : i32
    %c0_i32_1 = arith.constant 0 : i32
    return %c0_i32, %c0_i32_0 : i32, i32
  }
  func.func @transform_2(%arg0: i32) -> (i32, i32) {
    %c0_i32 = arith.constant 0 : i32
    %c0_i32_0 = arith.constant 0 : i32
    %c0_i32_1 = arith.constant 0 : i32
    return %c0_i32, %c0_i32_0 : i32, i32
  }
  func.func @transform_3(%arg0: i32) -> (i32, i32, i32, i32) {
    %c0_i32 = arith.constant 0 : i32
    %c0_i32_0 = arith.constant 0 : i32
    %c0_i32_1 = arith.constant 0 : i32
    %c0_i32_2 = arith.constant 0 : i32
    return %arg0, %c0_i32, %c0_i32_0, %c0_i32_1 : i32, i32, i32, i32
  }
}

module attributes {stable_mosaic.version = 11 : i64} {
  func.func @_mlp_kernel(%arg0: i32, %arg1: memref<2x128xf32, #tpu.memory_space<vmem>>, %arg2: memref<128x900xf32, #tpu.memory_space<vmem>>, %arg3: memref<1x900xf32, #tpu.memory_space<vmem>>, %arg4: memref<900x28xf32, #tpu.memory_space<vmem>>, %arg5: memref<1x28xf32, #tpu.memory_space<vmem>>, %arg6: memref<2x28xf32, #tpu.memory_space<vmem>>, %arg7: memref<2x900xf32, #tpu.memory_space<vmem>>) attributes {dimension_semantics = [#tpu.dimension_semantics<arbitrary>], iteration_bounds = array<i64: 2>, scalar_prefetch = 0 : i64, scratch_operands = 1 : i64, tpu.core_type = #tpu.core_type<tc>, window_params = [{transform_indices = @transform_0, window_bounds = array<i64: 2, 128>}, {transform_indices = @transform_1, window_bounds = array<i64: 128, 900>}, {pipeline_mode = #tpu.pipeline_mode<synchronous>, transform_indices = @transform_2, window_bounds = array<i64: 1, 900>}, {pipeline_mode = #tpu.pipeline_mode<synchronous>, transform_indices = @transform_3, window_bounds = array<i64: 900, 28>}, {pipeline_mode = #tpu.pipeline_mode<synchronous>, transform_indices = @transform_4, window_bounds = array<i64: 1, 28>}, {pipeline_mode = #tpu.pipeline_mode<synchronous>, transform_indices = @transform_5, window_bounds = array<i64: 2, 28>}]} {
    %c0_i32 = arith.constant 0 : i32
    %0 = arith.cmpi eq, %arg0, %c0_i32 : i32
    %1 = arith.extui %0 : i1 to i32
    %c0_i32_0 = arith.constant 0 : i32
    %2 = arith.cmpi ne, %1, %c0_i32_0 : i32
    scf.if %2 {
      %cst_9 = arith.constant 0.000000e+00 : f32
      %12 = vector.broadcast %cst_9 : f32 to vector<2x900xf32>
      %c0_10 = arith.constant 0 : index
      %c0_11 = arith.constant 0 : index
      %13 = vector.load %arg7[%c0_10, %c0_11] : memref<2x900xf32, #tpu.memory_space<vmem>>, vector<2x900xf32>
      tpu.vector_store %arg7[%c0_10, %c0_11], %12 {strides = array<i32>} : memref<2x900xf32, #tpu.memory_space<vmem>>, vector<2x900xf32>,
    } else {
    }
    %c0 = arith.constant 0 : index
    %c0_1 = arith.constant 0 : index
    %3 = vector.load %arg7[%c0, %c0_1] : memref<2x900xf32, #tpu.memory_space<vmem>>, vector<2x900xf32>
    %c0_2 = arith.constant 0 : index
    %c0_3 = arith.constant 0 : index
    %4 = vector.load %arg1[%c0_2, %c0_3] : memref<2x128xf32, #tpu.memory_space<vmem>>, vector<2x128xf32>
    %c0_4 = arith.constant 0 : index
    %c0_5 = arith.constant 0 : index
    %5 = vector.load %arg2[%c0_4, %c0_5] : memref<128x900xf32, #tpu.memory_space<vmem>>, vector<128x900xf32>
    %cst = arith.constant dense<0.000000e+00> : vector<2x900xf32>
    %6 = tpu.matmul %4, %5, %cst {dimension_numbers = #tpu.dot_dimension_numbers<[1], [0], [0], [1], [0, 0, 1, 1], [], []>} : vector<2x128xf32>, vector<128x900xf32>, vector<2x900xf32> -> vector<2x900xf32>
    %7 = arith.addf %3, %6 : vector<2x900xf32>
    %c0_6 = arith.constant 0 : index
    %c0_7 = arith.constant 0 : index
    %8 = vector.load %arg7[%c0_6, %c0_7] : memref<2x900xf32, #tpu.memory_space<vmem>>, vector<2x900xf32>
    tpu.vector_store %arg7[%c0_6, %c0_7], %7 {strides = array<i32>} : memref<2x900xf32, #tpu.memory_space<vmem>>, vector<2x900xf32>,
    %c1_i32 = arith.constant 1 : i32
    %9 = arith.cmpi eq, %arg0, %c1_i32 : i32
    %10 = arith.extui %9 : i1 to i32
    %c0_i32_8 = arith.constant 0 : i32
    %11 = arith.cmpi ne, %10, %c0_i32_8 : i32
    scf.if %11 {
      %c0_9 = arith.constant 0 : index
      %c0_10 = arith.constant 0 : index
      %12 = vector.load %arg7[%c0_9, %c0_10] : memref<2x900xf32, #tpu.memory_space<vmem>>, vector<2x900xf32>
      %c0_11 = arith.constant 0 : index
      %c0_12 = arith.constant 0 : index
      %13 = vector.load %arg3[%c0_11, %c0_12] : memref<1x900xf32, #tpu.memory_space<vmem>>, vector<1x900xf32>
      %14 = vector.broadcast %13 : vector<1x900xf32> to vector<2x900xf32>
      %15 = arith.addf %12, %14 : vector<2x900xf32>
      %c0_13 = arith.constant 0 : index
      %c0_14 = arith.constant 0 : index
      %16 = vector.load %arg4[%c0_13, %c0_14] : memref<900x28xf32, #tpu.memory_space<vmem>>, vector<900x28xf32>
      %cst_15 = arith.constant dense<0.000000e+00> : vector<2x28xf32>
      %17 = tpu.matmul %15, %16, %cst_15 {dimension_numbers = #tpu.dot_dimension_numbers<[1], [0], [0], [1], [0, 0, 1, 1], [], []>} : vector<2x900xf32>, vector<900x28xf32>, vector<2x28xf32> -> vector<2x28xf32>
      %c0_16 = arith.constant 0 : index
      %c0_17 = arith.constant 0 : index
      %18 = vector.load %arg5[%c0_16, %c0_17] : memref<1x28xf32, #tpu.memory_space<vmem>>, vector<1x28xf32>
      %19 = vector.broadcast %18 : vector<1x28xf32> to vector<2x28xf32>
      %20 = arith.addf %17, %19 : vector<2x28xf32>
      %c0_18 = arith.constant 0 : index
      %c0_19 = arith.constant 0 : index
      %21 = vector.load %arg6[%c0_18, %c0_19] : memref<2x28xf32, #tpu.memory_space<vmem>>, vector<2x28xf32>
      tpu.vector_store %arg6[%c0_18, %c0_19], %20 {strides = array<i32>} : memref<2x28xf32, #tpu.memory_space<vmem>>, vector<2x28xf32>,
    } else {
    }
    return
  }
  func.func @transform_0(%arg0: i32) -> (i32, i32) {
    %c0_i32 = arith.constant 0 : i32
    %c0_i32_0 = arith.constant 0 : i32
    return %c0_i32, %arg0 : i32, i32
  }
  func.func @transform_1(%arg0: i32) -> (i32, i32) {
    %c0_i32 = arith.constant 0 : i32
    %c0_i32_0 = arith.constant 0 : i32
    return %arg0, %c0_i32 : i32, i32
  }
  func.func @transform_2(%arg0: i32) -> (i32, i32) {
    %c0_i32 = arith.constant 0 : i32
    %c0_i32_0 = arith.constant 0 : i32
    %c0_i32_1 = arith.constant 0 : i32
    return %c0_i32, %c0_i32_0 : i32, i32
  }
  func.func @transform_3(%arg0: i32) -> (i32, i32) {
    %c0_i32 = arith.constant 0 : i32
    %c0_i32_0 = arith.constant 0 : i32
    %c0_i32_1 = arith.constant 0 : i32
    return %c0_i32, %c0_i32_0 : i32, i32
  }
  func.func @transform_4(%arg0: i32) -> (i32, i32) {
    %c0_i32 = arith.constant 0 : i32
    %c0_i32_0 = arith.constant 0 : i32
    %c0_i32_1 = arith.constant 0 : i32
    return %c0_i32, %c0_i32_0 : i32, i32
  }
  func.func @transform_5(%arg0: i32) -> (i32, i32) {
    %c0_i32 = arith.constant 0 : i32
    %c0_i32_0 = arith.constant 0 : i32
    %c0_i32_1 = arith.constant 0 : i32
    return %c0_i32, %c0_i32_0 : i32, i32
  }
}

</mosaic_0001>

<llo_original>
// kernel: cnn_forward.4
$region0: #{cnn_forward.4}
  #allocation0 [shape = 'u32[]', space=smem, size = 0x4, offset = 0x4, fixed_abs, tag = 'smem constant byte address 0x4 - core index']
  #allocation1 [shape = 'u32[144,128]{1,0:T(1,128)}', space=vmem, size = 0x12000, scoped, tag = 'internal scratch']
  #allocation2 [shape = 'f32[12,12,8]{2,1,0:T(8,128)}', space=vmem, size = 0x18000, scoped, tag = 'scratch operand']
  #allocation3 [shape = 'f32[4,8,16]{2,1,0:T(8,128)}', space=vmem, size = 0x4000, scoped, tag = 'scratch operand']
  %s0 = inlined_call_operand.vmem [shape: f32[2,8,8,8], index: 0, kind: input, shape index: {}]
  %s1 = inlined_call_operand.hbm [shape: f32[200,16], index: 1, kind: input, shape index: {}]
  %s2 = inlined_call_operand.hbm [shape: f32[1,16], index: 2, kind: input, shape index: {}]
  %s3 = inlined_call_operand.vmem [shape: f32[2,4,4,16], index: 3, kind: output, shape index: {}]
  %s4 = sld [smem:[#allocation0]]
  $region53: #{cnn_forward.4} parent=0
    _
  %s6 = ssub.s32 1, %s4
  %s7 = scalar_select 0, %s6, %s4
  $region1: #{cnn_forward.4} parent=0
    #allocation4 [shape = 'u8[102400]{0}', space=vmem, size = 0x19000, scoped, tag = 'input window, operand 1, single buffered']
    #allocation5 [shape = 's32[2]{0}', space=sflag, size = 0x8, scoped, tag = 'scoped memory for cnn_forward.4']
    #allocation6 [shape = 'u8[512]{0}', space=vmem, size = 0x400, scoped, tag = 'input window, operand 2, single buffered']
    #allocation7 [shape = 's32[1]{0}', space=sflag, size = 0x4, scoped, tag = 'scoped memory for cnn_forward.4']
    %8 = vsyncpa [#allocation5], 0
    %9 = vsyncpa [#allocation7], 0
    loop: start=0, step=1, limit=4
    $region2: #{cnn_forward.4} parent=1 // loop_pre_header
      _
    $region3: #{cnn_forward.4} parent=1 // loop_header
      %s11 = sphi 0, %s15
      %p12 = scmp.ge.s32.totalorder %s11, 4
      %s21 = sphi 0, %s23
      %s24 = sphi 0, %s21
      %s25 = sphi 0, %s24
      %s41 = sphi 0, %s25
      %s45 = sphi 0, %s45
      %s47 = sphi 0, %s45
      %s48 = sphi 0, %s47
      %s62 = sphi 0, %s48
      %s66 = sphi 0, %s66
      %s68 = sphi 0, %s66
      %s69 = sphi 0, %s68
      %s83 = sphi 0, %s69
      %s89 = sphi 0, %s91
      %s92 = sphi 0, %s89
      %s93 = sphi 0, %s92
      %s109 = sphi 0, %s93
    $region4: #{cnn_forward.4} parent=1 // loop_header_branch
      %14 = sbr.rel (%p12) target = $region8
    $region5: #{cnn_forward.4} parent=1 // loop_body
      %s16 = ssub.s32 %s11, 1
      %s17 = ssub.s32 %s11, 2
      %s18 = sadd.s32 %s11, 1
      %s19 = ssub.s32 %s11, %s18
      %p20 = scmp.eq.s32.totalorder %s19, 0
      %s22 = sadd.s32 %s21, 1
      %s23 = scalar_select %p20, %s21, %s22
      %p26 = pneg %p20
      %p27 = scmp.eq.s32.totalorder %s11, 1
      %p28 = por %p26, %p27
      %p29 = scmp.ne.s32.totalorder %s21, %s24
      %p30 = scmp.eq.s32.totalorder %s11, 0
      %p31 = por %p29, %p30
      %p32 = scmp.ne.s32.totalorder %s21, %s24
      %p33 = scmp.eq.s32.totalorder %s16, 1
      %p34 = por %p32, %p33
      %p35 = scmp.ne.s32.totalorder %s24, %s25
      %p36 = scmp.eq.s32.totalorder %s16, 0
      %p37 = por %p35, %p36
      %p38 = scmp.ne.s32.totalorder %s24, %s25
      %p39 = scmp.eq.s32.totalorder %s17, 1
      %p40 = por %p38, %p39
      %p42 = scmp.ne.s32.totalorder %s25, %s41
      %p43 = scmp.eq.s32.totalorder %s17, 0
      %p44 = por %p42, %p43
      %s46 = sadd.s32 %s45, 1
      %p49 = scmp.eq.s32.totalorder %s11, 1
      %p50 = scmp.ne.s32.totalorder %s45, %s47
      %p51 = scmp.eq.s32.totalorder %s11, 0
      %p52 = por %p50, %p51
      %p53 = scmp.ne.s32.totalorder %s45, %s47
      %p54 = scmp.eq.s32.totalorder %s16, 1
      %p55 = por %p53, %p54
      %p56 = scmp.ne.s32.totalorder %s47, %s48
      %p57 = scmp.eq.s32.totalorder %s16, 0
      %p58 = por %p56, %p57
      %p59 = scmp.ne.s32.totalorder %s47, %s48
      %p60 = scmp.eq.s32.totalorder %s17, 1
      %p61 = por %p59, %p60
      %p63 = scmp.ne.s32.totalorder %s48, %s62
      %p64 = scmp.eq.s32.totalorder %s17, 0
      %p65 = por %p63, %p64
      %s67 = sadd.s32 %s66, 1
      %p70 = scmp.eq.s32.totalorder %s11, 1
      %p71 = scmp.ne.s32.totalorder %s66, %s68
      %p72 = scmp.eq.s32.totalorder %s11, 0
      %p73 = por %p71, %p72
      %p74 = scmp.ne.s32.totalorder %s66, %s68
      %p75 = scmp.eq.s32.totalorder %s16, 1
      %p76 = por %p74, %p75
      %p77 = scmp.ne.s32.totalorder %s68, %s69
      %p78 = scmp.eq.s32.totalorder %s16, 0
      %p79 = por %p77, %p78
      %p80 = scmp.ne.s32.totalorder %s68, %s69
      %p81 = scmp.eq.s32.totalorder %s17, 1
      %p82 = por %p80, %p81
      %p84 = scmp.ne.s32.totalorder %s69, %s83
      %p85 = scmp.eq.s32.totalorder %s17, 0
      %p86 = por %p84, %p85
      %s87 = ssub.s32 %s11, %s18
      %p88 = scmp.eq.s32.totalorder %s87, 0
      %s90 = sadd.s32 %s89, 1
      %s91 = scalar_select %p88, %s89, %s90
      %p94 = pneg %p88
      %p95 = scmp.eq.s32.totalorder %s11, 1
      %p96 = por %p94, %p95
      %p97 = scmp.ne.s32.totalorder %s89, %s92
      %p98 = scmp.eq.s32.totalorder %s11, 0
      %p99 = por %p97, %p98
      %p100 = scmp.ne.s32.totalorder %s89, %s92
      %p101 = scmp.eq.s32.totalorder %s16, 1
      %p102 = por %p100, %p101
      %p103 = scmp.ne.s32.totalorder %s92, %s93
      %p104 = scmp.eq.s32.totalorder %s16, 0
      %p105 = por %p103, %p104
      %p106 = scmp.ne.s32.totalorder %s92, %s93
      %p107 = scmp.eq.s32.totalorder %s17, 1
      %p108 = por %p106, %p107
      %p110 = scmp.ne.s32.totalorder %s93, %s109
      %p111 = scmp.eq.s32.totalorder %s17, 0
      %p112 = por %p110, %p111
      %p113 = scmp.le.s32.totalorder 1, %s11
      %p114 = scmp.lt.s32.totalorder %s11, 3
      %p115 = pnand %p113, %p114
      %p116 = pneg %p115
      // Predicated region
      $region9: #{cnn_forward.4} parent=5 // pred_check
        _
      $region10: #{cnn_forward.4} parent=5 // pred_check_branch
        %118 = sbr.rel (%p115) target = $region12
      $region11: #{cnn_forward.4} parent=5 // pred_region
        %s119 = ssub.s32 %s11, 1
        // Predicated region
        $region13: #{cnn_forward.4} parent=11 // pred_check
          %p120 = pneg %p58
        $region14: #{cnn_forward.4} parent=11 // pred_check_branch
          %122 = sbr.rel (%p120) target = $region16
        $region15: #{cnn_forward.4} parent=11 // pred_region
          %s124 = ssub.s32 3200, 3200
          %125 = vsyncadd [#allocation5], %s124
          %s126 = sshll.u32 [#allocation4], 4
          %s127 = int_to_ptr.vmem [resolvable:$true] %s126
          %132 = dma.hbm_to_vmem [thread:$0]  %s1, 3200, %s127, [#allocation5], 128, 128, 8
        $region16: #{cnn_forward.4} parent=11 // pred_fallthru
          _
        // Predicated region
        $region17: #{cnn_forward.4} parent=11 // pred_check
          %p133 = pneg %p79
        $region18: #{cnn_forward.4} parent=11 // pred_check_branch
          %135 = sbr.rel (%p133) target = $region20
        $region19: #{cnn_forward.4} parent=11 // pred_region
          %s137 = ssub.s32 16, 16
          %138 = vsyncadd [#allocation7], %s137
          %s140 = sshll.u32 [#allocation6], 4
          %s141 = int_to_ptr.vmem [resolvable:$true] %s140
          %143 = dma.hbm_to_vmem [thread:$0]  %s2, 16, %s141, [#allocation7]
        $region20: #{cnn_forward.4} parent=11 // pred_fallthru
          _
      $region12: #{cnn_forward.4} parent=5 // pred_fallthru
        _
      %p144 = scmp.lt.s32.totalorder %s11, 2
      // Predicated region
      $region21: #{cnn_forward.4} parent=5 // pred_check
        %p145 = pneg %p144
      $region22: #{cnn_forward.4} parent=5 // pred_check_branch
        %147 = sbr.rel (%p145) target = $region24
      $region23: #{cnn_forward.4} parent=5 // pred_region
        // Predicated region
        $region25: #{cnn_forward.4} parent=23 // pred_check
          %p148 = pneg %p31
        $region26: #{cnn_forward.4} parent=23 // pred_check_branch
          %150 = sbr.rel (%p148) target = $region28
        $region27: #{cnn_forward.4} parent=23 // pred_region
          %p151 = scmp.lt.s32.totalorder %s11, 1
          %s152 = scalar_select %p151, %s11, 1
          %s153 = smul.addr %s152, 8
          %s154 = smul.addr %s153, 8
          %s155 = scalar_lea.vmem %s0, %s154
        $region28: #{cnn_forward.4} parent=23 // pred_fallthru
          _
      $region24: #{cnn_forward.4} parent=5 // pred_fallthru
        _
      %p156 = scmp.le.s32.totalorder 1, %s11
      %p157 = scmp.lt.s32.totalorder %s11, 3
      %p158 = pnand %p156, %p157
      %p159 = pneg %p158
      // Predicated region
      $region29: #{cnn_forward.4} parent=5 // pred_check
        _
      $region30: #{cnn_forward.4} parent=5 // pred_check_branch
        %161 = sbr.rel (%p158) target = $region32
      $region31: #{cnn_forward.4} parent=5 // pred_region
        %s162 = ssub.s32 %s11, 1
        // Predicated region
        $region33: #{cnn_forward.4} parent=31 // pred_check
          %p163 = pneg %p58
        $region34: #{cnn_forward.4} parent=31 // pred_check_branch
          %165 = sbr.rel (%p163) target = $region36
        $region35: #{cnn_forward.4} parent=31 // pred_region
          %166 = dma.done [#allocation5], 3200
        $region36: #{cnn_forward.4} parent=31 // pred_fallthru
          _
        // Predicated region
        $region37: #{cnn_forward.4} parent=31 // pred_check
          %p167 = pneg %p79
        $region38: #{cnn_forward.4} parent=31 // pred_check_branch
          %169 = sbr.rel (%p167) target = $region40
        $region39: #{cnn_forward.4} parent=31 // pred_region
          %170 = dma.done [#allocation7], 16
        $region40: #{cnn_forward.4} parent=31 // pred_fallthru
          _
        %p171 = scmp.lt.s32.totalorder %s16, 1
        %s172 = scalar_select %p171, %s16, 1
        %s173 = smul.addr %s172, 8
        %s174 = smul.addr %s173, 8
        %s175 = scalar_lea.vmem %s0, %s174
        %p176 = pneg %p37
        %p177 = pneg %p34
        %p178 = pneg %p58
        %p179 = pneg %p55
        %p180 = pneg %p79
        %p181 = pneg %p76
        %p182 = pneg %p105
        %p183 = pneg %p102
        %p184 = scmp.lt.s32.totalorder %s16, 1
        %s185 = scalar_select %p184, %s16, 1
        %s186 = smul.addr %s185, 4
        %s187 = smul.addr %s186, 4
        %s188 = scalar_lea.vmem %s3, %s187
        %p189 = scmp.lt.s32.totalorder %s16, 1
        %s190 = scalar_select %p189, %s16, 1
        %s191 = smul.addr %s190, 8
        %s192 = smul.addr %s191, 8
        %s193 = scalar_lea.vmem %s0, %s192
        %p194 = scmp.lt.s32.totalorder %s16, 1
        %s195 = scalar_select %p194, %s16, 1
        %s196 = smul.addr %s195, 4
        %s197 = smul.addr %s196, 4
        %s198 = scalar_lea.vmem %s3, %s197
        %vm199 = vcmask 64512
        %200 = vst.msk [vmem:[#allocation2] sm:$0xff] %vm199, 0.0
        %vm201 = vcmask 60416
        %202 = vst.msk [vmem:[#allocation2 + $0x8] sm:$0xf] %vm201, 0.0
        %203 = vst.msk [vmem:[#allocation2 + $0x10] sm:$0xff] %vm199, 0.0
        %204 = vst.msk [vmem:[#allocation2 + $0x18] sm:$0xf] %vm201, 0.0
        %205 = vst.msk [vmem:[#allocation2 + $0x20] sm:$0xff] %vm199, 0.0
        %206 = vst.msk [vmem:[#allocation2 + $0x28] sm:$0xf] %vm201, 0.0
        %207 = vst.msk [vmem:[#allocation2 + $0x30] sm:$0xff] %vm199, 0.0
        %208 = vst.msk [vmem:[#allocation2 + $0x38] sm:$0xf] %vm201, 0.0
        %209 = vst.msk [vmem:[#allocation2 + $0x40] sm:$0xff] %vm199, 0.0
        %210 = vst.msk [vmem:[#allocation2 + $0x48] sm:$0xf] %vm201, 0.0
        %211 = vst.msk [vmem:[#allocation2 + $0x50] sm:$0xff] %vm199, 0.0
        %212 = vst.msk [vmem:[#allocation2 + $0x58] sm:$0xf] %vm201, 0.0
        %213 = vst.msk [vmem:[#allocation2 + $0x60] sm:$0xff] %vm199, 0.0
        %214 = vst.msk [vmem:[#allocation2 + $0x68] sm:$0xf] %vm201, 0.0
        %215 = vst.msk [vmem:[#allocation2 + $0x70] sm:$0xff] %vm199, 0.0
        %216 = vst.msk [vmem:[#allocation2 + $0x78] sm:$0xf] %vm201, 0.0
        %217 = vst.msk [vmem:[#allocation2 + $0x80] sm:$0xff] %vm199, 0.0
        %218 = vst.msk [vmem:[#allocation2 + $0x88] sm:$0xf] %vm201, 0.0
        %219 = vst.msk [vmem:[#allocation2 + $0x90] sm:$0xff] %vm199, 0.0
        %220 = vst.msk [vmem:[#allocation2 + $0x98] sm:$0xf] %vm201, 0.0
        %221 = vst.msk [vmem:[#allocation2 + $0xa0] sm:$0xff] %vm199, 0.0
        %222 = vst.msk [vmem:[#allocation2 + $0xa8] sm:$0xf] %vm201, 0.0
        %223 = vst.msk [vmem:[#allocation2 + $0xb0] sm:$0xff] %vm199, 0.0
        %224 = vst.msk [vmem:[#allocation2 + $0xb8] sm:$0xf] %vm201, 0.0
        %v225 = vld [vmem:[%s193] sm:$0xff]
        %v226 = vld [vmem:[%s193 + $0x8] sm:$0xff]
        %v227 = vld [vmem:[%s193 + $0x10] sm:$0xff]
        %v228 = vld [vmem:[%s193 + $0x18] sm:$0xff]
        %v229 = vld [vmem:[%s193 + $0x20] sm:$0xff]
        %v230 = vld [vmem:[%s193 + $0x28] sm:$0xff]
        %v231 = vld [vmem:[%s193 + $0x30] sm:$0xff]
        %v232 = vld [vmem:[%s193 + $0x38] sm:$0xff]
        %s233 = scalar_lea.vmem [#allocation2], 32
        %234 = vst.msk [vmem:[%s233 + $0x2] sm:$0xff] %vm199, %v225
        %235 = vst.msk [vmem:[%s233 + $0x12] sm:$0xff] %vm199, %v226
        %236 = vst.msk [vmem:[%s233 + $0x22] sm:$0xff] %vm199, %v227
        %237 = vst.msk [vmem:[%s233 + $0x32] sm:$0xff] %vm199, %v228
        %238 = vst.msk [vmem:[%s233 + $0x42] sm:$0xff] %vm199, %v229
        %239 = vst.msk [vmem:[%s233 + $0x52] sm:$0xff] %vm199, %v230
        %240 = vst.msk [vmem:[%s233 + $0x62] sm:$0xff] %vm199, %v231
        %241 = vst.msk [vmem:[%s233 + $0x72] sm:$0xff] %vm199, %v232
        %v242 = vld [vmem:[#allocation2] sm:$0xff]
        %v243 = vld [vmem:[#allocation2 + $0x10] sm:$0xff]
        %v244 = vld [vmem:[#allocation2 + $0x20] sm:$0xff]
        %v245 = vld [vmem:[#allocation2 + $0x30] sm:$0xff]
        %v246 = vld [vmem:[#allocation2 + $0x40] sm:$0xff]
        %v247 = vld [vmem:[#allocation2 + $0x50] sm:$0xff]
        %v248 = vld [vmem:[#allocation2 + $0x60] sm:$0xff]
        %v249 = vld [vmem:[#allocation2 + $0x70] sm:$0xff]
        %v250 = vld [vmem:[#allocation2 + $0x1] sm:$0xff]
        %v251 = vld [vmem:[#allocation2 + $0x11] sm:$0xff]
        %v252 = vld [vmem:[#allocation2 + $0x21] sm:$0xff]
        %v253 = vld [vmem:[#allocation2 + $0x31] sm:$0xff]
        %v254 = vld [vmem:[#allocation2 + $0x41] sm:$0xff]
        %v255 = vld [vmem:[#allocation2 + $0x51] sm:$0xff]
        %v256 = vld [vmem:[#allocation2 + $0x61] sm:$0xff]
        %v257 = vld [vmem:[#allocation2 + $0x71] sm:$0xff]
        %v258 = vld [vmem:[#allocation2 + $0x2] sm:$0xff]
        %v259 = vld [vmem:[#allocation2 + $0x12] sm:$0xff]
        %v260 = vld [vmem:[#allocation2 + $0x22] sm:$0xff]
        %v261 = vld [vmem:[#allocation2 + $0x32] sm:$0xff]
        %v262 = vld [vmem:[#allocation2 + $0x42] sm:$0xff]
        %v263 = vld [vmem:[#allocation2 + $0x52] sm:$0xff]
        %v264 = vld [vmem:[#allocation2 + $0x62] sm:$0xff]
        %v265 = vld [vmem:[#allocation2 + $0x72] sm:$0xff]
        %v266 = vld [vmem:[#allocation2 + $0x3] sm:$0xff]
        %v267 = vld [vmem:[#allocation2 + $0x13] sm:$0xff]
        %v268 = vld [vmem:[#allocation2 + $0x23] sm:$0xff]
        %v269 = vld [vmem:[#allocation2 + $0x33] sm:$0xff]
        %v270 = vld [vmem:[#allocation2 + $0x43] sm:$0xff]
        %v271 = vld [vmem:[#allocation2 + $0x53] sm:$0xff]
        %v272 = vld [vmem:[#allocation2 + $0x63] sm:$0xff]
        %v273 = vld [vmem:[#allocation2 + $0x73] sm:$0xff]
        %v274 = vld [vmem:[#allocation2 + $0x4] sm:$0xff]
        %v275 = vld [vmem:[#allocation2 + $0x14] sm:$0xff]
        %v276 = vld [vmem:[#allocation2 + $0x24] sm:$0xff]
        %v277 = vld [vmem:[#allocation2 + $0x34] sm:$0xff]
        %v278 = vld [vmem:[#allocation2 + $0x44] sm:$0xff]
        %v279 = vld [vmem:[#allocation2 + $0x54] sm:$0xff]
        %v280 = vld [vmem:[#allocation2 + $0x64] sm:$0xff]
        %v281 = vld [vmem:[#allocation2 + $0x74] sm:$0xff]
        %s282 = scalar_lea.vmem [#allocation2], 16
        %v283 = vld [vmem:[%s282] sm:$0xff]
        %v284 = vld [vmem:[%s282 + $0x10] sm:$0xff]
        %v285 = vld [vmem:[%s282 + $0x20] sm:$0xff]
        %v286 = vld [vmem:[%s282 + $0x30] sm:$0xff]
        %v287 = vld [vmem:[%s282 + $0x40] sm:$0xff]
        %v288 = vld [vmem:[%s282 + $0x50] sm:$0xff]
        %v289 = vld [vmem:[%s282 + $0x60] sm:$0xff]
        %v290 = vld [vmem:[%s282 + $0x70] sm:$0xff]
        %v291 = vld [vmem:[%s282 + $0x1] sm:$0xff]
        %v292 = vld [vmem:[%s282 + $0x11] sm:$0xff]
        %v293 = vld [vmem:[%s282 + $0x21] sm:$0xff]
        %v294 = vld [vmem:[%s282 + $0x31] sm:$0xff]
        %v295 = vld [vmem:[%s282 + $0x41] sm:$0xff]
        %v296 = vld [vmem:[%s282 + $0x51] sm:$0xff]
        %v297 = vld [vmem:[%s282 + $0x61] sm:$0xff]
        %v298 = vld [vmem:[%s282 + $0x71] sm:$0xff]
        %v299 = vld [vmem:[%s282 + $0x2] sm:$0xff]
        %v300 = vld [vmem:[%s282 + $0x12] sm:$0xff]
        %v301 = vld [vmem:[%s282 + $0x22] sm:$0xff]
        %v302 = vld [vmem:[%s282 + $0x32] sm:$0xff]
        %v303 = vld [vmem:[%s282 + $0x42] sm:$0xff]
        %v304 = vld [vmem:[%s282 + $0x52] sm:$0xff]
        %v305 = vld [vmem:[%s282 + $0x62] sm:$0xff]
        %v306 = vld [vmem:[%s282 + $0x72] sm:$0xff]
        %v307 = vld [vmem:[%s282 + $0x3] sm:$0xff]
        %v308 = vld [vmem:[%s282 + $0x13] sm:$0xff]
        %v309 = vld [vmem:[%s282 + $0x23] sm:$0xff]
        %v310 = vld [vmem:[%s282 + $0x33] sm:$0xff]
        %v311 = vld [vmem:[%s282 + $0x43] sm:$0xff]
        %v312 = vld [vmem:[%s282 + $0x53] sm:$0xff]
        %v313 = vld [vmem:[%s282 + $0x63] sm:$0xff]
        %v314 = vld [vmem:[%s282 + $0x73] sm:$0xff]
        %v315 = vld [vmem:[%s282 + $0x4] sm:$0xff]
        %v316 = vld [vmem:[%s282 + $0x14] sm:$0xff]
        %v317 = vld [vmem:[%s282 + $0x24] sm:$0xff]
        %v318 = vld [vmem:[%s282 + $0x34] sm:$0xff]
        %v319 = vld [vmem:[%s282 + $0x44] sm:$0xff]
        %v320 = vld [vmem:[%s282 + $0x54] sm:$0xff]
        %v321 = vld [vmem:[%s282 + $0x64] sm:$0xff]
        %v322 = vld [vmem:[%s282 + $0x74] sm:$0xff]
        %v323 = vld [vmem:[%s233] sm:$0xff]
        %v324 = vld [vmem:[%s233 + $0x10] sm:$0xff]
        %v325 = vld [vmem:[%s233 + $0x20] sm:$0xff]
        %v326 = vld [vmem:[%s233 + $0x30] sm:$0xff]
        %v327 = vld [vmem:[%s233 + $0x40] sm:$0xff]
        %v328 = vld [vmem:[%s233 + $0x50] sm:$0xff]
        %v329 = vld [vmem:[%s233 + $0x60] sm:$0xff]
        %v330 = vld [vmem:[%s233 + $0x70] sm:$0xff]
        %v331 = vld [vmem:[%s233 + $0x1] sm:$0xff]
        %v332 = vld [vmem:[%s233 + $0x11] sm:$0xff]
        %v333 = vld [vmem:[%s233 + $0x21] sm:$0xff]
        %v334 = vld [vmem:[%s233 + $0x31] sm:$0xff]
        %v335 = vld [vmem:[%s233 + $0x41] sm:$0xff]
        %v336 = vld [vmem:[%s233 + $0x51] sm:$0xff]
        %v337 = vld [vmem:[%s233 + $0x61] sm:$0xff]
        %v338 = vld [vmem:[%s233 + $0x71] sm:$0xff]
        %v339 = vld [vmem:[%s233 + $0x2] sm:$0xff]
        %v340 = vld [vmem:[%s233 + $0x12] sm:$0xff]
        %v341 = vld [vmem:[%s233 + $0x22] sm:$0xff]
        %v342 = vld [vmem:[%s233 + $0x32] sm:$0xff]
        %v343 = vld [vmem:[%s233 + $0x42] sm:$0xff]
        %v344 = vld [vmem:[%s233 + $0x52] sm:$0xff]
        %v345 = vld [vmem:[%s233 + $0x62] sm:$0xff]
        %v346 = vld [vmem:[%s233 + $0x72] sm:$0xff]
        %v347 = vld [vmem:[%s233 + $0x3] sm:$0xff]
        %v348 = vld [vmem:[%s233 + $0x13] sm:$0xff]
        %v349 = vld [vmem:[%s233 + $0x23] sm:$0xff]
        %v350 = vld [vmem:[%s233 + $0x33] sm:$0xff]
        %v351 = vld [vmem:[%s233 + $0x43] sm:$0xff]
        %v352 = vld [vmem:[%s233 + $0x53] sm:$0xff]
        %v353 = vld [vmem:[%s233 + $0x63] sm:$0xff]
        %v354 = vld [vmem:[%s233 + $0x73] sm:$0xff]
        %v355 = vld [vmem:[%s233 + $0x4] sm:$0xff]
        %v356 = vld [vmem:[%s233 + $0x14] sm:$0xff]
        %v357 = vld [vmem:[%s233 + $0x24] sm:$0xff]
        %v358 = vld [vmem:[%s233 + $0x34] sm:$0xff]
        %v359 = vld [vmem:[%s233 + $0x44] sm:$0xff]
        %v360 = vld [vmem:[%s233 + $0x54] sm:$0xff]
        %v361 = vld [vmem:[%s233 + $0x64] sm:$0xff]
        %v362 = vld [vmem:[%s233 + $0x74] sm:$0xff]
        %s363 = scalar_lea.vmem [#allocation2], 48
        %v364 = vld [vmem:[%s363] sm:$0xff]
        %v365 = vld [vmem:[%s363 + $0x10] sm:$0xff]
        %v366 = vld [vmem:[%s363 + $0x20] sm:$0xff]
        %v367 = vld [vmem:[%s363 + $0x30] sm:$0xff]
        %v368 = vld [vmem:[%s363 + $0x40] sm:$0xff]
        %v369 = vld [vmem:[%s363 + $0x50] sm:$0xff]
        %v370 = vld [vmem:[%s363 + $0x60] sm:$0xff]
        %v371 = vld [vmem:[%s363 + $0x70] sm:$0xff]
        %v372 = vld [vmem:[%s363 + $0x1] sm:$0xff]
        %v373 = vld [vmem:[%s363 + $0x11] sm:$0xff]
        %v374 = vld [vmem:[%s363 + $0x21] sm:$0xff]
        %v375 = vld [vmem:[%s363 + $0x31] sm:$0xff]
        %v376 = vld [vmem:[%s363 + $0x41] sm:$0xff]
        %v377 = vld [vmem:[%s363 + $0x51] sm:$0xff]
        %v378 = vld [vmem:[%s363 + $0x61] sm:$0xff]
        %v379 = vld [vmem:[%s363 + $0x71] sm:$0xff]
        %v380 = vld [vmem:[%s363 + $0x2] sm:$0xff]
        %v381 = vld [vmem:[%s363 + $0x12] sm:$0xff]
        %v382 = vld [vmem:[%s363 + $0x22] sm:$0xff]
        %v383 = vld [vmem:[%s363 + $0x32] sm:$0xff]
        %v384 = vld [vmem:[%s363 + $0x42] sm:$0xff]
        %v385 = vld [vmem:[%s363 + $0x52] sm:$0xff]
        %v386 = vld [vmem:[%s363 + $0x62] sm:$0xff]
        %v387 = vld [vmem:[%s363 + $0x72] sm:$0xff]
        %v388 = vld [vmem:[%s363 + $0x3] sm:$0xff]
        %v389 = vld [vmem:[%s363 + $0x13] sm:$0xff]
        %v390 = vld [vmem:[%s363 + $0x23] sm:$0xff]
        %v391 = vld [vmem:[%s363 + $0x33] sm:$0xff]
        %v392 = vld [vmem:[%s363 + $0x43] sm:$0xff]
        %v393 = vld [vmem:[%s363 + $0x53] sm:$0xff]
        %v394 = vld [vmem:[%s363 + $0x63] sm:$0xff]
        %v395 = vld [vmem:[%s363 + $0x73] sm:$0xff]
        %v396 = vld [vmem:[%s363 + $0x4] sm:$0xff]
        %v397 = vld [vmem:[%s363 + $0x14] sm:$0xff]
        %v398 = vld [vmem:[%s363 + $0x24] sm:$0xff]
        %v399 = vld [vmem:[%s363 + $0x34] sm:$0xff]
        %v400 = vld [vmem:[%s363 + $0x44] sm:$0xff]
        %v401 = vld [vmem:[%s363 + $0x54] sm:$0xff]
        %v402 = vld [vmem:[%s363 + $0x64] sm:$0xff]
        %v403 = vld [vmem:[%s363 + $0x74] sm:$0xff]
        %s404 = scalar_lea.vmem [#allocation2], 64
        %v405 = vld [vmem:[%s404] sm:$0xff]
        %v406 = vld [vmem:[%s404 + $0x10] sm:$0xff]
        %v407 = vld [vmem:[%s404 + $0x20] sm:$0xff]
        %v408 = vld [vmem:[%s404 + $0x30] sm:$0xff]
        %v409 = vld [vmem:[%s404 + $0x40] sm:$0xff]
        %v410 = vld [vmem:[%s404 + $0x50] sm:$0xff]
        %v411 = vld [vmem:[%s404 + $0x60] sm:$0xff]
        %v412 = vld [vmem:[%s404 + $0x70] sm:$0xff]
        %v413 = vld [vmem:[%s404 + $0x1] sm:$0xff]
        %v414 = vld [vmem:[%s404 + $0x11] sm:$0xff]
        %v415 = vld [vmem:[%s404 + $0x21] sm:$0xff]
        %v416 = vld [vmem:[%s404 + $0x31] sm:$0xff]
        %v417 = vld [vmem:[%s404 + $0x41] sm:$0xff]
        %v418 = vld [vmem:[%s404 + $0x51] sm:$0xff]
        %v419 = vld [vmem:[%s404 + $0x61] sm:$0xff]
        %v420 = vld [vmem:[%s404 + $0x71] sm:$0xff]
        %v421 = vld [vmem:[%s404 + $0x2] sm:$0xff]
        %v422 = vld [vmem:[%s404 + $0x12] sm:$0xff]
        %v423 = vld [vmem:[%s404 + $0x22] sm:$0xff]
        %v424 = vld [vmem:[%s404 + $0x32] sm:$0xff]
        %v425 = vld [vmem:[%s404 + $0x42] sm:$0xff]
        %v426 = vld [vmem:[%s404 + $0x52] sm:$0xff]
        %v427 = vld [vmem:[%s404 + $0x62] sm:$0xff]
        %v428 = vld [vmem:[%s404 + $0x72] sm:$0xff]
        %v429 = vld [vmem:[%s404 + $0x3] sm:$0xff]
        %v430 = vld [vmem:[%s404 + $0x13] sm:$0xff]
        %v431 = vld [vmem:[%s404 + $0x23] sm:$0xff]
        %v432 = vld [vmem:[%s404 + $0x33] sm:$0xff]
        %v433 = vld [vmem:[%s404 + $0x43] sm:$0xff]
        %v434 = vld [vmem:[%s404 + $0x53] sm:$0xff]
        %v435 = vld [vmem:[%s404 + $0x63] sm:$0xff]
        %v436 = vld [vmem:[%s404 + $0x73] sm:$0xff]
        %v437 = vld [vmem:[%s404 + $0x4] sm:$0xff]
        %v438 = vld [vmem:[%s404 + $0x14] sm:$0xff]
        %v439 = vld [vmem:[%s404 + $0x24] sm:$0xff]
        %v440 = vld [vmem:[%s404 + $0x34] sm:$0xff]
        %v441 = vld [vmem:[%s404 + $0x44] sm:$0xff]
        %v442 = vld [vmem:[%s404 + $0x54] sm:$0xff]
        %v443 = vld [vmem:[%s404 + $0x64] sm:$0xff]
        %v444 = vld [vmem:[%s404 + $0x74] sm:$0xff]
        %453 = vrot.lane.b32.xlu0 %v250, 8
        %v454 = vpop.permute.xlu0 %453
        %455 = vrot.lane.b32.xlu0 %v251, 8
        %v456 = vpop.permute.xlu0 %455
        %457 = vrot.lane.b32.xlu0 %v252, 8
        %v458 = vpop.permute.xlu0 %457
        %459 = vrot.lane.b32.xlu0 %v253, 8
        %v460 = vpop.permute.xlu0 %459
        %461 = vrot.lane.b32.xlu0 %v254, 8
        %v462 = vpop.permute.xlu0 %461
        %463 = vrot.lane.b32.xlu0 %v255, 8
        %v464 = vpop.permute.xlu0 %463
        %465 = vrot.lane.b32.xlu0 %v256, 8
        %v466 = vpop.permute.xlu0 %465
        %467 = vrot.lane.b32.xlu0 %v257, 8
        %v468 = vpop.permute.xlu0 %467
        %485 = vrot.lane.b32.xlu0 %v258, 16
        %v486 = vpop.permute.xlu0 %485
        %487 = vrot.lane.b32.xlu0 %v259, 16
        %v488 = vpop.permute.xlu0 %487
        %489 = vrot.lane.b32.xlu0 %v260, 16
        %v490 = vpop.permute.xlu0 %489
        %491 = vrot.lane.b32.xlu0 %v261, 16
        %v492 = vpop.permute.xlu0 %491
        %493 = vrot.lane.b32.xlu0 %v262, 16
        %v494 = vpop.permute.xlu0 %493
        %495 = vrot.lane.b32.xlu0 %v263, 16
        %v496 = vpop.permute.xlu0 %495
        %497 = vrot.lane.b32.xlu0 %v264, 16
        %v498 = vpop.permute.xlu0 %497
        %499 = vrot.lane.b32.xlu0 %v265, 16
        %v500 = vpop.permute.xlu0 %499
        %517 = vrot.lane.b32.xlu0 %v266, 24
        %v518 = vpop.permute.xlu0 %517
        %519 = vrot.lane.b32.xlu0 %v267, 24
        %v520 = vpop.permute.xlu0 %519
        %521 = vrot.lane.b32.xlu0 %v268, 24
        %v522 = vpop.permute.xlu0 %521
        %523 = vrot.lane.b32.xlu0 %v269, 24
        %v524 = vpop.permute.xlu0 %523
        %525 = vrot.lane.b32.xlu0 %v270, 24
        %v526 = vpop.permute.xlu0 %525
        %527 = vrot.lane.b32.xlu0 %v271, 24
        %v528 = vpop.permute.xlu0 %527
        %529 = vrot.lane.b32.xlu0 %v272, 24
        %v530 = vpop.permute.xlu0 %529
        %531 = vrot.lane.b32.xlu0 %v273, 24
        %v532 = vpop.permute.xlu0 %531
        %549 = vrot.lane.b32.xlu0 %v274, 32
        %v550 = vpop.permute.xlu0 %549
        %551 = vrot.lane.b32.xlu0 %v275, 32
        %v552 = vpop.permute.xlu0 %551
        %553 = vrot.lane.b32.xlu0 %v276, 32
        %v554 = vpop.permute.xlu0 %553
        %555 = vrot.lane.b32.xlu0 %v277, 32
        %v556 = vpop.permute.xlu0 %555
        %557 = vrot.lane.b32.xlu0 %v278, 32
        %v558 = vpop.permute.xlu0 %557
        %559 = vrot.lane.b32.xlu0 %v279, 32
        %v560 = vpop.permute.xlu0 %559
        %561 = vrot.lane.b32.xlu0 %v280, 32
        %v562 = vpop.permute.xlu0 %561
        %563 = vrot.lane.b32.xlu0 %v281, 32
        %v564 = vpop.permute.xlu0 %563
        %581 = vrot.lane.b32.xlu0 %v283, 40
        %v582 = vpop.permute.xlu0 %581
        %583 = vrot.lane.b32.xlu0 %v284, 40
        %v584 = vpop.permute.xlu0 %583
        %585 = vrot.lane.b32.xlu0 %v285, 40
        %v586 = vpop.permute.xlu0 %585
        %587 = vrot.lane.b32.xlu0 %v286, 40
        %v588 = vpop.permute.xlu0 %587
        %589 = vrot.lane.b32.xlu0 %v287, 40
        %v590 = vpop.permute.xlu0 %589
        %591 = vrot.lane.b32.xlu0 %v288, 40
        %v592 = vpop.permute.xlu0 %591
        %593 = vrot.lane.b32.xlu0 %v289, 40
        %v594 = vpop.permute.xlu0 %593
        %595 = vrot.lane.b32.xlu0 %v290, 40
        %v596 = vpop.permute.xlu0 %595
        %613 = vrot.lane.b32.xlu0 %v291, 48
        %v614 = vpop.permute.xlu0 %613
        %615 = vrot.lane.b32.xlu0 %v292, 48
        %v616 = vpop.permute.xlu0 %615
        %617 = vrot.lane.b32.xlu0 %v293, 48
        %v618 = vpop.permute.xlu0 %617
        %619 = vrot.lane.b32.xlu0 %v294, 48
        %v620 = vpop.permute.xlu0 %619
        %621 = vrot.lane.b32.xlu0 %v295, 48
        %v622 = vpop.permute.xlu0 %621
        %623 = vrot.lane.b32.xlu0 %v296, 48
        %v624 = vpop.permute.xlu0 %623
        %625 = vrot.lane.b32.xlu0 %v297, 48
        %v626 = vpop.permute.xlu0 %625
        %627 = vrot.lane.b32.xlu0 %v298, 48
        %v628 = vpop.permute.xlu0 %627
        %645 = vrot.lane.b32.xlu0 %v299, 56
        %v646 = vpop.permute.xlu0 %645
        %647 = vrot.lane.b32.xlu0 %v300, 56
        %v648 = vpop.permute.xlu0 %647
        %649 = vrot.lane.b32.xlu0 %v301, 56
        %v650 = vpop.permute.xlu0 %649
        %651 = vrot.lane.b32.xlu0 %v302, 56
        %v652 = vpop.permute.xlu0 %651
        %653 = vrot.lane.b32.xlu0 %v303, 56
        %v654 = vpop.permute.xlu0 %653
        %655 = vrot.lane.b32.xlu0 %v304, 56
        %v656 = vpop.permute.xlu0 %655
        %657 = vrot.lane.b32.xlu0 %v305, 56
        %v658 = vpop.permute.xlu0 %657
        %659 = vrot.lane.b32.xlu0 %v306, 56
        %v660 = vpop.permute.xlu0 %659
        %677 = vrot.lane.b32.xlu0 %v307, 64
        %v678 = vpop.permute.xlu0 %677
        %679 = vrot.lane.b32.xlu0 %v308, 64
        %v680 = vpop.permute.xlu0 %679
        %681 = vrot.lane.b32.xlu0 %v309, 64
        %v682 = vpop.permute.xlu0 %681
        %683 = vrot.lane.b32.xlu0 %v310, 64
        %v684 = vpop.permute.xlu0 %683
        %685 = vrot.lane.b32.xlu0 %v311, 64
        %v686 = vpop.permute.xlu0 %685
        %687 = vrot.lane.b32.xlu0 %v312, 64
        %v688 = vpop.permute.xlu0 %687
        %689 = vrot.lane.b32.xlu0 %v313, 64
        %v690 = vpop.permute.xlu0 %689
        %691 = vrot.lane.b32.xlu0 %v314, 64
        %v692 = vpop.permute.xlu0 %691
        %709 = vrot.lane.b32.xlu0 %v315, 72
        %v710 = vpop.permute.xlu0 %709
        %711 = vrot.lane.b32.xlu0 %v316, 72
        %v712 = vpop.permute.xlu0 %711
        %713 = vrot.lane.b32.xlu0 %v317, 72
        %v714 = vpop.permute.xlu0 %713
        %715 = vrot.lane.b32.xlu0 %v318, 72
        %v716 = vpop.permute.xlu0 %715
        %717 = vrot.lane.b32.xlu0 %v319, 72
        %v718 = vpop.permute.xlu0 %717
        %719 = vrot.lane.b32.xlu0 %v320, 72
        %v720 = vpop.permute.xlu0 %719
        %721 = vrot.lane.b32.xlu0 %v321, 72
        %v722 = vpop.permute.xlu0 %721
        %723 = vrot.lane.b32.xlu0 %v322, 72
        %v724 = vpop.permute.xlu0 %723
        %741 = vrot.lane.b32.xlu0 %v323, 80
        %v742 = vpop.permute.xlu0 %741
        %743 = vrot.lane.b32.xlu0 %v324, 80
        %v744 = vpop.permute.xlu0 %743
        %745 = vrot.lane.b32.xlu0 %v325, 80
        %v746 = vpop.permute.xlu0 %745
        %747 = vrot.lane.b32.xlu0 %v326, 80
        %v748 = vpop.permute.xlu0 %747
        %749 = vrot.lane.b32.xlu0 %v327, 80
        %v750 = vpop.permute.xlu0 %749
        %751 = vrot.lane.b32.xlu0 %v328, 80
        %v752 = vpop.permute.xlu0 %751
        %753 = vrot.lane.b32.xlu0 %v329, 80
        %v754 = vpop.permute.xlu0 %753
        %755 = vrot.lane.b32.xlu0 %v330, 80
        %v756 = vpop.permute.xlu0 %755
        %773 = vrot.lane.b32.xlu0 %v331, 88
        %v774 = vpop.permute.xlu0 %773
        %775 = vrot.lane.b32.xlu0 %v332, 88
        %v776 = vpop.permute.xlu0 %775
        %777 = vrot.lane.b32.xlu0 %v333, 88
        %v778 = vpop.permute.xlu0 %777
        %779 = vrot.lane.b32.xlu0 %v334, 88
        %v780 = vpop.permute.xlu0 %779
        %781 = vrot.lane.b32.xlu0 %v335, 88
        %v782 = vpop.permute.xlu0 %781
        %783 = vrot.lane.b32.xlu0 %v336, 88
        %v784 = vpop.permute.xlu0 %783
        %785 = vrot.lane.b32.xlu0 %v337, 88
        %v786 = vpop.permute.xlu0 %785
        %787 = vrot.lane.b32.xlu0 %v338, 88
        %v788 = vpop.permute.xlu0 %787
        %805 = vrot.lane.b32.xlu0 %v339, 96
        %v806 = vpop.permute.xlu0 %805
        %807 = vrot.lane.b32.xlu0 %v340, 96
        %v808 = vpop.permute.xlu0 %807
        %809 = vrot.lane.b32.xlu0 %v341, 96
        %v810 = vpop.permute.xlu0 %809
        %811 = vrot.lane.b32.xlu0 %v342, 96
        %v812 = vpop.permute.xlu0 %811
        %813 = vrot.lane.b32.xlu0 %v343, 96
        %v814 = vpop.permute.xlu0 %813
        %815 = vrot.lane.b32.xlu0 %v344, 96
        %v816 = vpop.permute.xlu0 %815
        %817 = vrot.lane.b32.xlu0 %v345, 96
        %v818 = vpop.permute.xlu0 %817
        %819 = vrot.lane.b32.xlu0 %v346, 96
        %v820 = vpop.permute.xlu0 %819
        %837 = vrot.lane.b32.xlu0 %v347, 104
        %v838 = vpop.permute.xlu0 %837
        %839 = vrot.lane.b32.xlu0 %v348, 104
        %v840 = vpop.permute.xlu0 %839
        %841 = vrot.lane.b32.xlu0 %v349, 104
        %v842 = vpop.permute.xlu0 %841
        %843 = vrot.lane.b32.xlu0 %v350, 104
        %v844 = vpop.permute.xlu0 %843
        %845 = vrot.lane.b32.xlu0 %v351, 104
        %v846 = vpop.permute.xlu0 %845
        %847 = vrot.lane.b32.xlu0 %v352, 104
        %v848 = vpop.permute.xlu0 %847
        %849 = vrot.lane.b32.xlu0 %v353, 104
        %v850 = vpop.permute.xlu0 %849
        %851 = vrot.lane.b32.xlu0 %v354, 104
        %v852 = vpop.permute.xlu0 %851
        %869 = vrot.lane.b32.xlu0 %v355, 112
        %v870 = vpop.permute.xlu0 %869
        %871 = vrot.lane.b32.xlu0 %v356, 112
        %v872 = vpop.permute.xlu0 %871
        %873 = vrot.lane.b32.xlu0 %v357, 112
        %v874 = vpop.permute.xlu0 %873
        %875 = vrot.lane.b32.xlu0 %v358, 112
        %v876 = vpop.permute.xlu0 %875
        %877 = vrot.lane.b32.xlu0 %v359, 112
        %v878 = vpop.permute.xlu0 %877
        %879 = vrot.lane.b32.xlu0 %v360, 112
        %v880 = vpop.permute.xlu0 %879
        %881 = vrot.lane.b32.xlu0 %v361, 112
        %v882 = vpop.permute.xlu0 %881
        %883 = vrot.lane.b32.xlu0 %v362, 112
        %v884 = vpop.permute.xlu0 %883
        %901 = vrot.lane.b32.xlu0 %v364, 120
        %v902 = vpop.permute.xlu0 %901
        %903 = vrot.lane.b32.xlu0 %v365, 120
        %v904 = vpop.permute.xlu0 %903
        %905 = vrot.lane.b32.xlu0 %v366, 120
        %v906 = vpop.permute.xlu0 %905
        %907 = vrot.lane.b32.xlu0 %v367, 120
        %v908 = vpop.permute.xlu0 %907
        %909 = vrot.lane.b32.xlu0 %v368, 120
        %v910 = vpop.permute.xlu0 %909
        %911 = vrot.lane.b32.xlu0 %v369, 120
        %v912 = vpop.permute.xlu0 %911
        %913 = vrot.lane.b32.xlu0 %v370, 120
        %v914 = vpop.permute.xlu0 %913
        %915 = vrot.lane.b32.xlu0 %v371, 120
        %v916 = vpop.permute.xlu0 %915
        %v925 = vsel %vm199, %v242, %v454
        %v926 = vsel %vm199, %v243, %v456
        %v927 = vsel %vm199, %v244, %v458
        %v928 = vsel %vm199, %v245, %v460
        %v929 = vsel %vm199, %v246, %v462
        %v930 = vsel %vm199, %v247, %v464
        %v931 = vsel %vm199, %v248, %v466
        %v932 = vsel %vm199, %v249, %v468
        %vm933 = vcmask 130048
        %v934 = vsel %vm933, %v925, %v486
        %v935 = vsel %vm933, %v926, %v488
        %v936 = vsel %vm933, %v927, %v490
        %v937 = vsel %vm933, %v928, %v492
        %v938 = vsel %vm933, %v929, %v494
        %v939 = vsel %vm933, %v930, %v496
        %v940 = vsel %vm933, %v931, %v498
        %v941 = vsel %vm933, %v932, %v500
        %vm942 = vcmask 195584
        %v943 = vsel %vm942, %v934, %v518
        %v944 = vsel %vm942, %v935, %v520
        %v945 = vsel %vm942, %v936, %v522
        %v946 = vsel %vm942, %v937, %v524
        %v947 = vsel %vm942, %v938, %v526
        %v948 = vsel %vm942, %v939, %v528
        %v949 = vsel %vm942, %v940, %v530
        %v950 = vsel %vm942, %v941, %v532
        %vm951 = vcmask 261120
        %v952 = vsel %vm951, %v943, %v550
        %v953 = vsel %vm951, %v944, %v552
        %v954 = vsel %vm951, %v945, %v554
        %v955 = vsel %vm951, %v946, %v556
        %v956 = vsel %vm951, %v947, %v558
        %v957 = vsel %vm951, %v948, %v560
        %v958 = vsel %vm951, %v949, %v562
        %v959 = vsel %vm951, %v950, %v564
        %vm960 = vcmask 326656
        %v961 = vsel %vm960, %v952, %v582
        %v962 = vsel %vm960, %v953, %v584
        %v963 = vsel %vm960, %v954, %v586
        %v964 = vsel %vm960, %v955, %v588
        %v965 = vsel %vm960, %v956, %v590
        %v966 = vsel %vm960, %v957, %v592
        %v967 = vsel %vm960, %v958, %v594
        %v968 = vsel %vm960, %v959, %v596
        %vm969 = vcmask 392192
        %v970 = vsel %vm969, %v961, %v614
        %v971 = vsel %vm969, %v962, %v616
        %v972 = vsel %vm969, %v963, %v618
        %v973 = vsel %vm969, %v964, %v620
        %v974 = vsel %vm969, %v965, %v622
        %v975 = vsel %vm969, %v966, %v624
        %v976 = vsel %vm969, %v967, %v626
        %v977 = vsel %vm969, %v968, %v628
        %vm978 = vcmask 457728
        %v979 = vsel %vm978, %v970, %v646
        %v980 = vsel %vm978, %v971, %v648
        %v981 = vsel %vm978, %v972, %v650
        %v982 = vsel %vm978, %v973, %v652
        %v983 = vsel %vm978, %v974, %v654
        %v984 = vsel %vm978, %v975, %v656
        %v985 = vsel %vm978, %v976, %v658
        %v986 = vsel %vm978, %v977, %v660
        %vm987 = vcmask 523264
        %v988 = vsel %vm987, %v979, %v678
        %v989 = vsel %vm987, %v980, %v680
        %v990 = vsel %vm987, %v981, %v682
        %v991 = vsel %vm987, %v982, %v684
        %v992 = vsel %vm987, %v983, %v686
        %v993 = vsel %vm987, %v984, %v688
        %v994 = vsel %vm987, %v985, %v690
        %v995 = vsel %vm987, %v986, %v692
        %vm996 = vcmask 588800
        %v997 = vsel %vm996, %v988, %v710
        %v998 = vsel %vm996, %v989, %v712
        %v999 = vsel %vm996, %v990, %v714
        %v1000 = vsel %vm996, %v991, %v716
        %v1001 = vsel %vm996, %v992, %v718
        %v1002 = vsel %vm996, %v993, %v720
        %v1003 = vsel %vm996, %v994, %v722
        %v1004 = vsel %vm996, %v995, %v724
        %vm1005 = vcmask 654336
        %v1006 = vsel %vm1005, %v997, %v742
        %v1007 = vsel %vm1005, %v998, %v744
        %v1008 = vsel %vm1005, %v999, %v746
        %v1009 = vsel %vm1005, %v1000, %v748
        %v1010 = vsel %vm1005, %v1001, %v750
        %v1011 = vsel %vm1005, %v1002, %v752
        %v1012 = vsel %vm1005, %v1003, %v754
        %v1013 = vsel %vm1005, %v1004, %v756
        %vm1014 = vcmask 719872
        %v1015 = vsel %vm1014, %v1006, %v774
        %v1016 = vsel %vm1014, %v1007, %v776
        %v1017 = vsel %vm1014, %v1008, %v778
        %v1018 = vsel %vm1014, %v1009, %v780
        %v1019 = vsel %vm1014, %v1010, %v782
        %v1020 = vsel %vm1014, %v1011, %v784
        %v1021 = vsel %vm1014, %v1012, %v786
        %v1022 = vsel %vm1014, %v1013, %v788
        %vm1023 = vcmask 785408
        %v1024 = vsel %vm1023, %v1015, %v806
        %v1025 = vsel %vm1023, %v1016, %v808
        %v1026 = vsel %vm1023, %v1017, %v810
        %v1027 = vsel %vm1023, %v1018, %v812
        %v1028 = vsel %vm1023, %v1019, %v814
        %v1029 = vsel %vm1023, %v1020, %v816
        %v1030 = vsel %vm1023, %v1021, %v818
        %v1031 = vsel %vm1023, %v1022, %v820
        %vm1032 = vcmask 850944
        %v1033 = vsel %vm1032, %v1024, %v838
        %v1034 = vsel %vm1032, %v1025, %v840
        %v1035 = vsel %vm1032, %v1026, %v842
        %v1036 = vsel %vm1032, %v1027, %v844
        %v1037 = vsel %vm1032, %v1028, %v846
        %v1038 = vsel %vm1032, %v1029, %v848
        %v1039 = vsel %vm1032, %v1030, %v850
        %v1040 = vsel %vm1032, %v1031, %v852
        %vm1041 = vcmask 916480
        %v1042 = vsel %vm1041, %v1033, %v870
        %v1043 = vsel %vm1041, %v1034, %v872
        %v1044 = vsel %vm1041, %v1035, %v874
        %v1045 = vsel %vm1041, %v1036, %v876
        %v1046 = vsel %vm1041, %v1037, %v878
        %v1047 = vsel %vm1041, %v1038, %v880
        %v1048 = vsel %vm1041, %v1039, %v882
        %v1049 = vsel %vm1041, %v1040, %v884
        %vm1050 = vcmask 982016
        %v1051 = vsel %vm1050, %v1042, %v902
        %v1052 = vsel %vm1050, %v1043, %v904
        %v1053 = vsel %vm1050, %v1044, %v906
        %v1054 = vsel %vm1050, %v1045, %v908
        %v1055 = vsel %vm1050, %v1046, %v910
        %v1056 = vsel %vm1050, %v1047, %v912
        %v1057 = vsel %vm1050, %v1048, %v914
        %v1058 = vsel %vm1050, %v1049, %v916
        %1067 = vrot.lane.b32.xlu0 %v380, 8
        %v1068 = vpop.permute.xlu0 %1067
        %1069 = vrot.lane.b32.xlu0 %v381, 8
        %v1070 = vpop.permute.xlu0 %1069
        %1071 = vrot.lane.b32.xlu0 %v382, 8
        %v1072 = vpop.permute.xlu0 %1071
        %1073 = vrot.lane.b32.xlu0 %v383, 8
        %v1074 = vpop.permute.xlu0 %1073
        %1075 = vrot.lane.b32.xlu0 %v384, 8
        %v1076 = vpop.permute.xlu0 %1075
        %1077 = vrot.lane.b32.xlu0 %v385, 8
        %v1078 = vpop.permute.xlu0 %1077
        %1079 = vrot.lane.b32.xlu0 %v386, 8
        %v1080 = vpop.permute.xlu0 %1079
        %1081 = vrot.lane.b32.xlu0 %v387, 8
        %v1082 = vpop.permute.xlu0 %1081
        %1099 = vrot.lane.b32.xlu0 %v388, 16
        %v1100 = vpop.permute.xlu0 %1099
        %1101 = vrot.lane.b32.xlu0 %v389, 16
        %v1102 = vpop.permute.xlu0 %1101
        %1103 = vrot.lane.b32.xlu0 %v390, 16
        %v1104 = vpop.permute.xlu0 %1103
        %1105 = vrot.lane.b32.xlu0 %v391, 16
        %v1106 = vpop.permute.xlu0 %1105
        %1107 = vrot.lane.b32.xlu0 %v392, 16
        %v1108 = vpop.permute.xlu0 %1107
        %1109 = vrot.lane.b32.xlu0 %v393, 16
        %v1110 = vpop.permute.xlu0 %1109
        %1111 = vrot.lane.b32.xlu0 %v394, 16
        %v1112 = vpop.permute.xlu0 %1111
        %1113 = vrot.lane.b32.xlu0 %v395, 16
        %v1114 = vpop.permute.xlu0 %1113
        %1131 = vrot.lane.b32.xlu0 %v396, 24
        %v1132 = vpop.permute.xlu0 %1131
        %1133 = vrot.lane.b32.xlu0 %v397, 24
        %v1134 = vpop.permute.xlu0 %1133
        %1135 = vrot.lane.b32.xlu0 %v398, 24
        %v1136 = vpop.permute.xlu0 %1135
        %1137 = vrot.lane.b32.xlu0 %v399, 24
        %v1138 = vpop.permute.xlu0 %1137
        %1139 = vrot.lane.b32.xlu0 %v400, 24
        %v1140 = vpop.permute.xlu0 %1139
        %1141 = vrot.lane.b32.xlu0 %v401, 24
        %v1142 = vpop.permute.xlu0 %1141
        %1143 = vrot.lane.b32.xlu0 %v402, 24
        %v1144 = vpop.permute.xlu0 %1143
        %1145 = vrot.lane.b32.xlu0 %v403, 24
        %v1146 = vpop.permute.xlu0 %1145
        %1163 = vrot.lane.b32.xlu0 %v405, 32
        %v1164 = vpop.permute.xlu0 %1163
        %1165 = vrot.lane.b32.xlu0 %v406, 32
        %v1166 = vpop.permute.xlu0 %1165
        %1167 = vrot.lane.b32.xlu0 %v407, 32
        %v1168 = vpop.permute.xlu0 %1167
        %1169 = vrot.lane.b32.xlu0 %v408, 32
        %v1170 = vpop.permute.xlu0 %1169
        %1171 = vrot.lane.b32.xlu0 %v409, 32
        %v1172 = vpop.permute.xlu0 %1171
        %1173 = vrot.lane.b32.xlu0 %v410, 32
        %v1174 = vpop.permute.xlu0 %1173
        %1175 = vrot.lane.b32.xlu0 %v411, 32
        %v1176 = vpop.permute.xlu0 %1175
        %1177 = vrot.lane.b32.xlu0 %v412, 32
        %v1178 = vpop.permute.xlu0 %1177
        %1195 = vrot.lane.b32.xlu0 %v413, 40
        %v1196 = vpop.permute.xlu0 %1195
        %1197 = vrot.lane.b32.xlu0 %v414, 40
        %v1198 = vpop.permute.xlu0 %1197
        %1199 = vrot.lane.b32.xlu0 %v415, 40
        %v1200 = vpop.permute.xlu0 %1199
        %1201 = vrot.lane.b32.xlu0 %v416, 40
        %v1202 = vpop.permute.xlu0 %1201
        %1203 = vrot.lane.b32.xlu0 %v417, 40
        %v1204 = vpop.permute.xlu0 %1203
        %1205 = vrot.lane.b32.xlu0 %v418, 40
        %v1206 = vpop.permute.xlu0 %1205
        %1207 = vrot.lane.b32.xlu0 %v419, 40
        %v1208 = vpop.permute.xlu0 %1207
        %1209 = vrot.lane.b32.xlu0 %v420, 40
        %v1210 = vpop.permute.xlu0 %1209
        %1227 = vrot.lane.b32.xlu0 %v421, 48
        %v1228 = vpop.permute.xlu0 %1227
        %1229 = vrot.lane.b32.xlu0 %v422, 48
        %v1230 = vpop.permute.xlu0 %1229
        %1231 = vrot.lane.b32.xlu0 %v423, 48
        %v1232 = vpop.permute.xlu0 %1231
        %1233 = vrot.lane.b32.xlu0 %v424, 48
        %v1234 = vpop.permute.xlu0 %1233
        %1235 = vrot.lane.b32.xlu0 %v425, 48
        %v1236 = vpop.permute.xlu0 %1235
        %1237 = vrot.lane.b32.xlu0 %v426, 48
        %v1238 = vpop.permute.xlu0 %1237
        %1239 = vrot.lane.b32.xlu0 %v427, 48
        %v1240 = vpop.permute.xlu0 %1239
        %1241 = vrot.lane.b32.xlu0 %v428, 48
        %v1242 = vpop.permute.xlu0 %1241
        %1259 = vrot.lane.b32.xlu0 %v429, 56
        %v1260 = vpop.permute.xlu0 %1259
        %1261 = vrot.lane.b32.xlu0 %v430, 56
        %v1262 = vpop.permute.xlu0 %1261
        %1263 = vrot.lane.b32.xlu0 %v431, 56
        %v1264 = vpop.permute.xlu0 %1263
        %1265 = vrot.lane.b32.xlu0 %v432, 56
        %v1266 = vpop.permute.xlu0 %1265
        %1267 = vrot.lane.b32.xlu0 %v433, 56
        %v1268 = vpop.permute.xlu0 %1267
        %1269 = vrot.lane.b32.xlu0 %v434, 56
        %v1270 = vpop.permute.xlu0 %1269
        %1271 = vrot.lane.b32.xlu0 %v435, 56
        %v1272 = vpop.permute.xlu0 %1271
        %1273 = vrot.lane.b32.xlu0 %v436, 56
        %v1274 = vpop.permute.xlu0 %1273
        %1291 = vrot.lane.b32.xlu0 %v437, 64
        %v1292 = vpop.permute.xlu0 %1291
        %1293 = vrot.lane.b32.xlu0 %v438, 64
        %v1294 = vpop.permute.xlu0 %1293
        %1295 = vrot.lane.b32.xlu0 %v439, 64
        %v1296 = vpop.permute.xlu0 %1295
        %1297 = vrot.lane.b32.xlu0 %v440, 64
        %v1298 = vpop.permute.xlu0 %1297
        %1299 = vrot.lane.b32.xlu0 %v441, 64
        %v1300 = vpop.permute.xlu0 %1299
        %1301 = vrot.lane.b32.xlu0 %v442, 64
        %v1302 = vpop.permute.xlu0 %1301
        %1303 = vrot.lane.b32.xlu0 %v443, 64
        %v1304 = vpop.permute.xlu0 %1303
        %1305 = vrot.lane.b32.xlu0 %v444, 64
        %v1306 = vpop.permute.xlu0 %1305
        %v1315 = vsel %vm199, %v372, %v1068
        %v1316 = vsel %vm199, %v373, %v1070
        %v1317 = vsel %vm199, %v374, %v1072
        %v1318 = vsel %vm199, %v375, %v1074
        %v1319 = vsel %vm199, %v376, %v1076
        %v1320 = vsel %vm199, %v377, %v1078
        %v1321 = vsel %vm199, %v378, %v1080
        %v1322 = vsel %vm199, %v379, %v1082
        %v1323 = vsel %vm933, %v1315, %v1100
        %v1324 = vsel %vm933, %v1316, %v1102
        %v1325 = vsel %vm933, %v1317, %v1104
        %v1326 = vsel %vm933, %v1318, %v1106
        %v1327 = vsel %vm933, %v1319, %v1108
        %v1328 = vsel %vm933, %v1320, %v1110
        %v1329 = vsel %vm933, %v1321, %v1112
        %v1330 = vsel %vm933, %v1322, %v1114
        %v1331 = vsel %vm942, %v1323, %v1132
        %v1332 = vsel %vm942, %v1324, %v1134
        %v1333 = vsel %vm942, %v1325, %v1136
        %v1334 = vsel %vm942, %v1326, %v1138
        %v1335 = vsel %vm942, %v1327, %v1140
        %v1336 = vsel %vm942, %v1328, %v1142
        %v1337 = vsel %vm942, %v1329, %v1144
        %v1338 = vsel %vm942, %v1330, %v1146
        %v1339 = vsel %vm951, %v1331, %v1164
        %v1340 = vsel %vm951, %v1332, %v1166
        %v1341 = vsel %vm951, %v1333, %v1168
        %v1342 = vsel %vm951, %v1334, %v1170
        %v1343 = vsel %vm951, %v1335, %v1172
        %v1344 = vsel %vm951, %v1336, %v1174
        %v1345 = vsel %vm951, %v1337, %v1176
        %v1346 = vsel %vm951, %v1338, %v1178
        %v1347 = vsel %vm960, %v1339, %v1196
        %v1348 = vsel %vm960, %v1340, %v1198
        %v1349 = vsel %vm960, %v1341, %v1200
        %v1350 = vsel %vm960, %v1342, %v1202
        %v1351 = vsel %vm960, %v1343, %v1204
        %v1352 = vsel %vm960, %v1344, %v1206
        %v1353 = vsel %vm960, %v1345, %v1208
        %v1354 = vsel %vm960, %v1346, %v1210
        %v1355 = vsel %vm969, %v1347, %v1228
        %v1356 = vsel %vm969, %v1348, %v1230
        %v1357 = vsel %vm969, %v1349, %v1232
        %v1358 = vsel %vm969, %v1350, %v1234
        %v1359 = vsel %vm969, %v1351, %v1236
        %v1360 = vsel %vm969, %v1352, %v1238
        %v1361 = vsel %vm969, %v1353, %v1240
        %v1362 = vsel %vm969, %v1354, %v1242
        %v1363 = vsel %vm978, %v1355, %v1260
        %v1364 = vsel %vm978, %v1356, %v1262
        %v1365 = vsel %vm978, %v1357, %v1264
        %v1366 = vsel %vm978, %v1358, %v1266
        %v1367 = vsel %vm978, %v1359, %v1268
        %v1368 = vsel %vm978, %v1360, %v1270
        %v1369 = vsel %vm978, %v1361, %v1272
        %v1370 = vsel %vm978, %v1362, %v1274
        %v1371 = vsel %vm987, %v1363, %v1292
        %v1372 = vsel %vm987, %v1364, %v1294
        %v1373 = vsel %vm987, %v1365, %v1296
        %v1374 = vsel %vm987, %v1366, %v1298
        %v1375 = vsel %vm987, %v1367, %v1300
        %v1376 = vsel %vm987, %v1368, %v1302
        %v1377 = vsel %vm987, %v1369, %v1304
        %v1378 = vsel %vm987, %v1370, %v1306
        %v1379 = vld [vmem:[#allocation4] sm:$0xff]
        %v1380 = vld [vmem:[#allocation4 + $0x8] sm:$0xff]
        %v1381 = vld [vmem:[#allocation4 + $0x10] sm:$0xff]
        %v1382 = vld [vmem:[#allocation4 + $0x18] sm:$0xff]
        %v1383 = vld [vmem:[#allocation4 + $0x20] sm:$0xff]
        %v1384 = vld [vmem:[#allocation4 + $0x28] sm:$0xff]
        %v1385 = vld [vmem:[#allocation4 + $0x30] sm:$0xff]
        %v1386 = vld [vmem:[#allocation4 + $0x38] sm:$0xff]
        %v1387 = vld [vmem:[#allocation4 + $0x40] sm:$0xff]
        %v1388 = vld [vmem:[#allocation4 + $0x48] sm:$0xff]
        %v1389 = vld [vmem:[#allocation4 + $0x50] sm:$0xff]
        %v1390 = vld [vmem:[#allocation4 + $0x58] sm:$0xff]
        %v1391 = vld [vmem:[#allocation4 + $0x60] sm:$0xff]
        %v1392 = vld [vmem:[#allocation4 + $0x68] sm:$0xff]
        %v1393 = vld [vmem:[#allocation4 + $0x70] sm:$0xff]
        %v1394 = vld [vmem:[#allocation4 + $0x78] sm:$0xff]
        %v1395 = vld [vmem:[#allocation4 + $0x80] sm:$0xff]
        %v1396 = vld [vmem:[#allocation4 + $0x88] sm:$0xff]
        %v1397 = vld [vmem:[#allocation4 + $0x90] sm:$0xff]
        %v1398 = vld [vmem:[#allocation4 + $0x98] sm:$0xff]
        %v1399 = vld [vmem:[#allocation4 + $0xa0] sm:$0xff]
        %v1400 = vld [vmem:[#allocation4 + $0xa8] sm:$0xff]
        %v1401 = vld [vmem:[#allocation4 + $0xb0] sm:$0xff]
        %v1402 = vld [vmem:[#allocation4 + $0xb8] sm:$0xff]
        %v1403 = vld [vmem:[#allocation4 + $0xc0] sm:$0xff]
        %v1404 = vld [vmem:[#allocation6] sm:$0x1]
        %v1406 = vlaneseq
        %v1407 = vshrl.u32 %v1406, 7
        %v1408 = vsub.s32 0, %v1407
        %v1409 = vrot.slane %v1404, %v1408
        %v1412 = vsel %vm996, %v1371, 0
        %v1415 = vsel %vm996, %v1372, 0
        %v1418 = vsel %vm996, %v1373, 0
        %v1421 = vsel %vm996, %v1374, 0
        %v1424 = vsel %vm996, %v1375, 0
        %v1427 = vsel %vm996, %v1376, 0
        %v1430 = vsel %vm996, %v1377, 0
        %v1433 = vsel %vm996, %v1378, 0
        %1435 = vmatprep.subr.mxu0 0.0
        %1436 = vmatpush1.msra.mxu0 %v1379
        %1437 = vmatprep.subr.mxu0 0.0
        %1438 = vmatpush1.msra.mxu0 %v1380
        %1439 = vmatprep.subr.mxu0 0.0
        %1440 = vmatpush1.msra.mxu0 %v1381
        %1441 = vmatprep.subr.mxu0 0.0
        %1442 = vmatpush1.msra.mxu0 %v1382
        %1443 = vmatprep.subr.mxu0 0.0
        %1444 = vmatpush1.msra.mxu0 %v1383
        %1445 = vmatprep.subr.mxu0 0.0
        %1446 = vmatpush1.msra.mxu0 %v1384
        %1447 = vmatprep.subr.mxu0 0.0
        %1448 = vmatpush1.msra.mxu0 %v1385
        %1449 = vmatprep.subr.mxu0 0.0
        %1450 = vmatpush1.msra.mxu0 %v1386
        %1451 = vmatprep.subr.mxu0 0.0
        %1452 = vmatpush1.msra.mxu0 %v1387
        %1453 = vmatprep.subr.mxu0 0.0
        %1454 = vmatpush1.msra.mxu0 %v1388
        %1455 = vmatprep.subr.mxu0 0.0
        %1456 = vmatpush1.msra.mxu0 %v1389
        %1457 = vmatprep.subr.mxu0 0.0
        %1458 = vmatpush1.msra.mxu0 %v1390
        %1459 = vmatprep.subr.mxu0 0.0
        %1460 = vmatpush1.msra.mxu0 %v1391
        %1461 = vmatprep.subr.mxu0 0.0
        %1462 = vmatpush1.msra.mxu0 %v1392
        %1463 = vmatprep.subr.mxu0 0.0
        %1464 = vmatpush1.msra.mxu0 %v1393
        %1465 = vmatprep.subr.mxu0 0.0
        %1466 = vmatpush1.msra.mxu0 %v1394
        %1467 = vmatprep.subr.mxu0 0.0
        %1468 = vmatpush1.msra.mxu0 %v1395
        %1469 = vmatprep.subr.mxu0 0.0
        %1470 = vmatpush1.msra.mxu0 %v1396
        %1471 = vmatprep.subr.mxu0 0.0
        %1472 = vmatpush1.msra.mxu0 %v1397
        %1473 = vmatprep.subr.mxu0 0.0
        %1474 = vmatpush1.msra.mxu0 %v1398
        %1475 = vmatprep.subr.mxu0 0.0
        %1476 = vmatpush1.msra.mxu0 %v1399
        %1477 = vmatprep.subr.mxu0 0.0
        %1478 = vmatpush1.msra.mxu0 %v1400
        %1479 = vmatprep.subr.mxu0 0.0
        %1480 = vmatpush1.msra.mxu0 %v1401
        %1481 = vmatprep.subr.mxu0 0.0
        %1482 = vmatpush1.msra.mxu0 %v1402
        %1483 = vmatprep.subr.mxu0 0.0
        %1484 = vmatpush1.msra.mxu0 %v1403
        %1485 = vmatprep.subr.mxu0 0.0
        %1486 = vmatpush1.msra.mxu0 0.0
        %1487 = vmatprep.subr.mxu0 0.0
        %1488 = vmatpush1.msra.mxu0 0.0
        %1489 = vmatprep.subr.mxu0 0.0
        %1490 = vmatpush1.msra.mxu0 0.0
        %1491 = vmatprep.subr.mxu0 0.0
        %1492 = vmatpush1.msra.mxu0 0.0
        %1493 = vmatprep.subr.mxu0 0.0
        %1494 = vmatpush1.msra.mxu0 0.0
        %1495 = vmatprep.subr.mxu0 0.0
        %1496 = vmatpush1.msra.mxu0 0.0
        %1497 = vmatprep.subr.mxu0 0.0
        %1498 = vmatpush1.msra.mxu0 0.0
        %1499 = vmatprep.mubr.f32.mxu0 %v1412
        %1500 = vmatmul.mubr.f32.gmra.mrb[0].mxu0 %v1051
        %v1501 = vpop.f32.mrb[0].mxu0
        %v1502 = vadd.f32 %v1409, %v1501
        %v1503 = vpop.f32.mrb[0].mxu0
        %1504 = vmatprep.mubr.f32.mxu0 %v1415
        %1505 = vmatmul.mubr.f32.gmra.mrb[0].mxu0 %v1052
        %v1506 = vpop.f32.mrb[0].mxu0
        %v1507 = vadd.f32 %v1409, %v1506
        %v1508 = vpop.f32.mrb[0].mxu0
        %1509 = vmatprep.mubr.f32.mxu0 %v1418
        %1510 = vmatmul.mubr.f32.gmra.mrb[0].mxu0 %v1053
        %v1511 = vpop.f32.mrb[0].mxu0
        %v1512 = vadd.f32 %v1409, %v1511
        %v1513 = vpop.f32.mrb[0].mxu0
        %1514 = vmatprep.mubr.f32.mxu0 %v1421
        %1515 = vmatmul.mubr.f32.gmra.mrb[0].mxu0 %v1054
        %v1516 = vpop.f32.mrb[0].mxu0
        %v1517 = vadd.f32 %v1409, %v1516
        %v1518 = vpop.f32.mrb[0].mxu0
        %1519 = vmatprep.mubr.f32.mxu0 %v1424
        %1520 = vmatmul.mubr.f32.gmra.mrb[0].mxu0 %v1055
        %v1521 = vpop.f32.mrb[0].mxu0
        %v1522 = vadd.f32 %v1409, %v1521
        %v1523 = vpop.f32.mrb[0].mxu0
        %1524 = vmatprep.mubr.f32.mxu0 %v1427
        %1525 = vmatmul.mubr.f32.gmra.mrb[0].mxu0 %v1056
        %v1526 = vpop.f32.mrb[0].mxu0
        %v1527 = vadd.f32 %v1409, %v1526
        %v1528 = vpop.f32.mrb[0].mxu0
        %1529 = vmatprep.mubr.f32.mxu0 %v1430
        %1530 = vmatmul.mubr.f32.gmra.mrb[0].mxu0 %v1057
        %v1531 = vpop.f32.mrb[0].mxu0
        %v1532 = vadd.f32 %v1409, %v1531
        %v1533 = vpop.f32.mrb[0].mxu0
        %1534 = vmatprep.mubr.f32.mxu0 %v1433
        %1535 = vmatmul.mubr.f32.gmra.mrb[0].mxu0 %v1058
        %v1536 = vpop.f32.mrb[0].mxu0
        %v1537 = vadd.f32 %v1409, %v1536
        %v1538 = vpop.f32.mrb[0].mxu0
        %1539 = vdwg.mxu0
        %v1540 = vmax.f32 %v1502, 0.0
        %v1541 = vmax.f32 %v1507, 0.0
        %v1542 = vmax.f32 %v1512, 0.0
        %v1543 = vmax.f32 %v1517, 0.0
        %v1544 = vmax.f32 %v1522, 0.0
        %v1545 = vmax.f32 %v1527, 0.0
        %v1546 = vmax.f32 %v1532, 0.0
        %v1547 = vmax.f32 %v1537, 0.0
        %v1548 = vmax.f32 %v1540, %v1541
        %v1549 = vmax.f32 %v1542, %v1543
        %v1550 = vmax.f32 %v1544, %v1545
        %v1551 = vmax.f32 %v1546, %v1547
        %1552 = vst.msk [vmem:[#allocation3] sm:$0xff] %vm933, %v1548
        %1553 = vst.msk [vmem:[#allocation3 + $0x8] sm:$0xff] %vm933, %v1549
        %1554 = vst.msk [vmem:[#allocation3 + $0x10] sm:$0xff] %vm933, %v1550
        %1555 = vst.msk [vmem:[#allocation3 + $0x18] sm:$0xff] %vm933, %v1551
        %v1556 = vld [vmem:[#allocation3] ss:$2 sm:$0xf]
        %s1557 = scalar_lea.vmem [#allocation3], 8
        %v1558 = vld [vmem:[%s1557] ss:$2 sm:$0xf]
        %s1559 = scalar_lea.vmem [#allocation3], 16
        %v1560 = vld [vmem:[%s1559] ss:$2 sm:$0xf]
        %s1561 = scalar_lea.vmem [#allocation3], 24
        %v1562 = vld [vmem:[%s1561] ss:$2 sm:$0xf]
        %s1563 = scalar_lea.vmem [#allocation3], 1
        %v1564 = vld [vmem:[%s1563] ss:$2 sm:$0xf]
        %s1565 = scalar_lea.vmem [#allocation3], 9
        %v1566 = vld [vmem:[%s1565] ss:$2 sm:$0xf]
        %s1567 = scalar_lea.vmem [#allocation3], 17
        %v1568 = vld [vmem:[%s1567] ss:$2 sm:$0xf]
        %s1569 = scalar_lea.vmem [#allocation3], 25
        %v1570 = vld [vmem:[%s1569] ss:$2 sm:$0xf]
        %v1571 = vmax.f32 %v1556, %v1564
        %v1572 = vmax.f32 %v1558, %v1566
        %v1573 = vmax.f32 %v1560, %v1568
        %v1574 = vmax.f32 %v1562, %v1570
        %vm1575 = vcmask 125952
        %1576 = vst.msk [vmem:[%s198] sm:$0xf] %vm1575, %v1571
        %1577 = vst.msk [vmem:[%s198 + $0x4] sm:$0xf] %vm1575, %v1572
        %1578 = vst.msk [vmem:[%s198 + $0x8] sm:$0xf] %vm1575, %v1573
        %1579 = vst.msk [vmem:[%s198 + $0xc] sm:$0xf] %vm1575, %v1574
        %p1580 = scmp.lt.s32.totalorder %s16, 1
        %s1581 = scalar_select %p1580, %s16, 1
        %s1582 = smul.addr %s1581, 4
        %s1583 = smul.addr %s1582, 4
        %s1584 = scalar_lea.vmem %s3, %s1583
        // Predicated region
        $region41: #{cnn_forward.4} parent=31 // pred_check
          %p1585 = pneg %p102
        $region42: #{cnn_forward.4} parent=31 // pred_check_branch
          %1587 = sbr.rel (%p1585) target = $region44
        $region43: #{cnn_forward.4} parent=31 // pred_region
          _
        $region44: #{cnn_forward.4} parent=31 // pred_fallthru
          _
      $region32: #{cnn_forward.4} parent=5 // pred_fallthru
        _
      %p1588 = scmp.le.s32.totalorder 2, %s11
      // Predicated region
      $region45: #{cnn_forward.4} parent=5 // pred_check
        %p1589 = pneg %p1588
      $region46: #{cnn_forward.4} parent=5 // pred_check_branch
        %1591 = sbr.rel (%p1589) target = $region48
      $region47: #{cnn_forward.4} parent=5 // pred_region
        %s1592 = ssub.s32 %s11, 2
        // Predicated region
        $region49: #{cnn_forward.4} parent=47 // pred_check
          %p1593 = pneg %p108
        $region50: #{cnn_forward.4} parent=47 // pred_check_branch
          %1595 = sbr.rel (%p1593) target = $region52
        $region51: #{cnn_forward.4} parent=47 // pred_region
          %p1596 = scmp.lt.s32.totalorder %s17, 1
          %s1597 = scalar_select %p1596, %s17, 1
          %s1598 = smul.addr %s1597, 4
          %s1599 = smul.addr %s1598, 4
          %s1600 = scalar_lea.vmem %s3, %s1599
        $region52: #{cnn_forward.4} parent=47 // pred_fallthru
          _
      $region48: #{cnn_forward.4} parent=5 // pred_fallthru
        _
    $region6: #{cnn_forward.4} parent=1 // loop_footer
      %s15 = sadd.s32 1, %s11
    $region7: #{cnn_forward.4} parent=1 // loop_footer_branch
      %10 = sbr.rel target = $region3
    $region8: #{cnn_forward.4} parent=1 // loop_exit
      _
    %1601 = vsyncpa [#allocation5], 1
    %s1602 = scalar_lea.sflag [#allocation5], 1
    %1603 = vsyncpa %s1602, 1
    %1604 = vsyncpa [#allocation7], 1

// kernel: cnn_forward.5
$region0: #{cnn_forward.5}
  #allocation0 [shape = 'u32[]', space=smem, size = 0x4, offset = 0x4, fixed_abs, tag = 'smem constant byte address 0x4 - core index']
  #allocation1 [shape = 'u32[144,128]{1,0:T(1,128)}', space=vmem, size = 0x12000, scoped, tag = 'internal scratch']
  #allocation2 [shape = 'f32[2,900]{1,0:T(2,128)}', space=vmem, size = 0x2000, scoped, tag = 'scratch operand']
  %s0 = inlined_call_operand.vmem [shape: f32[2,256], index: 0, kind: input, shape index: {}]
  %s1 = inlined_call_operand.vmem [shape: f32[256,900], index: 1, kind: input, shape index: {}]
  %s2 = inlined_call_operand.vmem [shape: f32[1,900], index: 2, kind: input, shape index: {}]
  %s3 = inlined_call_operand.vmem [shape: f32[900,28], index: 3, kind: input, shape index: {}]
  %s4 = inlined_call_operand.vmem [shape: f32[1,28], index: 4, kind: input, shape index: {}]
  %s5 = inlined_call_operand.hbm [shape: f32[2,28], index: 5, kind: output, shape index: {}]
  %s6 = sld [smem:[#allocation0]]
  $region61: #{cnn_forward.5} parent=0
    _
  %s8 = ssub.s32 1, %s6
  %s9 = scalar_select 0, %s8, %s6
  $region1: #{cnn_forward.5} parent=0
    #allocation3 [shape = 'u8[1024]{0}', space=vmem, size = 0x400, scoped, tag = 'output window, operand 0, single buffered']
    #allocation4 [shape = 's32[2]{0}', space=sflag, size = 0x8, scoped, tag = 'scoped memory for cnn_forward.5']
    %10 = vsyncpa [#allocation4], 0
    loop: start=0, step=1, limit=4
    $region2: #{cnn_forward.5} parent=1 // loop_pre_header
      _
    $region3: #{cnn_forward.5} parent=1 // loop_header
      %s12 = sphi 0, %s16
      %p13 = scmp.ge.s32.totalorder %s12, 4
      %s22 = sphi 0, %s24
      %s25 = sphi 0, %s22
      %s26 = sphi 0, %s25
      %s42 = sphi 0, %s26
      %s48 = sphi 0, %s50
      %s51 = sphi 0, %s48
      %s52 = sphi 0, %s51
      %s68 = sphi 0, %s52
      %s72 = sphi 0, %s72
      %s74 = sphi 0, %s72
      %s75 = sphi 0, %s74
      %s89 = sphi 0, %s75
      %s93 = sphi 0, %s93
      %s95 = sphi 0, %s93
      %s96 = sphi 0, %s95
      %s110 = sphi 0, %s96
      %s114 = sphi 0, %s114
      %s116 = sphi 0, %s114
      %s117 = sphi 0, %s116
      %s131 = sphi 0, %s117
      %s135 = sphi 0, %s135
      %s137 = sphi 0, %s135
      %s138 = sphi 0, %s137
      %s152 = sphi 0, %s138
    $region4: #{cnn_forward.5} parent=1 // loop_header_branch
      %15 = sbr.rel (%p13) target = $region8
    $region5: #{cnn_forward.5} parent=1 // loop_body
      %s17 = ssub.s32 %s12, 1
      %s18 = ssub.s32 %s12, 2
      %s19 = sadd.s32 %s12, 1
      %s20 = ssub.s32 %s12, %s19
      %p21 = scmp.eq.s32.totalorder %s20, 0
      %s23 = sadd.s32 %s22, 1
      %s24 = scalar_select %p21, %s22, %s23
      %p27 = pneg %p21
      %p28 = scmp.eq.s32.totalorder %s12, 1
      %p29 = por %p27, %p28
      %p30 = scmp.ne.s32.totalorder %s22, %s25
      %p31 = scmp.eq.s32.totalorder %s12, 0
      %p32 = por %p30, %p31
      %p33 = scmp.ne.s32.totalorder %s22, %s25
      %p34 = scmp.eq.s32.totalorder %s17, 1
      %p35 = por %p33, %p34
      %p36 = scmp.ne.s32.totalorder %s25, %s26
      %p37 = scmp.eq.s32.totalorder %s17, 0
      %p38 = por %p36, %p37
      %p39 = scmp.ne.s32.totalorder %s25, %s26
      %p40 = scmp.eq.s32.totalorder %s18, 1
      %p41 = por %p39, %p40
      %p43 = scmp.ne.s32.totalorder %s26, %s42
      %p44 = scmp.eq.s32.totalorder %s18, 0
      %p45 = por %p43, %p44
      %s46 = ssub.s32 %s12, %s19
      %p47 = scmp.eq.s32.totalorder %s46, 0
      %s49 = sadd.s32 %s48, 1
      %s50 = scalar_select %p47, %s48, %s49
      %p53 = pneg %p47
      %p54 = scmp.eq.s32.totalorder %s12, 1
      %p55 = por %p53, %p54
      %p56 = scmp.ne.s32.totalorder %s48, %s51
      %p57 = scmp.eq.s32.totalorder %s12, 0
      %p58 = por %p56, %p57
      %p59 = scmp.ne.s32.totalorder %s48, %s51
      %p60 = scmp.eq.s32.totalorder %s17, 1
      %p61 = por %p59, %p60
      %p62 = scmp.ne.s32.totalorder %s51, %s52
      %p63 = scmp.eq.s32.totalorder %s17, 0
      %p64 = por %p62, %p63
      %p65 = scmp.ne.s32.totalorder %s51, %s52
      %p66 = scmp.eq.s32.totalorder %s18, 1
      %p67 = por %p65, %p66
      %p69 = scmp.ne.s32.totalorder %s52, %s68
      %p70 = scmp.eq.s32.totalorder %s18, 0
      %p71 = por %p69, %p70
      %s73 = sadd.s32 %s72, 1
      %p76 = scmp.eq.s32.totalorder %s12, 1
      %p77 = scmp.ne.s32.totalorder %s72, %s74
      %p78 = scmp.eq.s32.totalorder %s12, 0
      %p79 = por %p77, %p78
      %p80 = scmp.ne.s32.totalorder %s72, %s74
      %p81 = scmp.eq.s32.totalorder %s17, 1
      %p82 = por %p80, %p81
      %p83 = scmp.ne.s32.totalorder %s74, %s75
      %p84 = scmp.eq.s32.totalorder %s17, 0
      %p85 = por %p83, %p84
      %p86 = scmp.ne.s32.totalorder %s74, %s75
      %p87 = scmp.eq.s32.totalorder %s18, 1
      %p88 = por %p86, %p87
      %p90 = scmp.ne.s32.totalorder %s75, %s89
      %p91 = scmp.eq.s32.totalorder %s18, 0
      %p92 = por %p90, %p91
      %s94 = sadd.s32 %s93, 1
      %p97 = scmp.eq.s32.totalorder %s12, 1
      %p98 = scmp.ne.s32.totalorder %s93, %s95
      %p99 = scmp.eq.s32.totalorder %s12, 0
      %p100 = por %p98, %p99
      %p101 = scmp.ne.s32.totalorder %s93, %s95
      %p102 = scmp.eq.s32.totalorder %s17, 1
      %p103 = por %p101, %p102
      %p104 = scmp.ne.s32.totalorder %s95, %s96
      %p105 = scmp.eq.s32.totalorder %s17, 0
      %p106 = por %p104, %p105
      %p107 = scmp.ne.s32.totalorder %s95, %s96
      %p108 = scmp.eq.s32.totalorder %s18, 1
      %p109 = por %p107, %p108
      %p111 = scmp.ne.s32.totalorder %s96, %s110
      %p112 = scmp.eq.s32.totalorder %s18, 0
      %p113 = por %p111, %p112
      %s115 = sadd.s32 %s114, 1
      %p118 = scmp.eq.s32.totalorder %s12, 1
      %p119 = scmp.ne.s32.totalorder %s114, %s116
      %p120 = scmp.eq.s32.totalorder %s12, 0
      %p121 = por %p119, %p120
      %p122 = scmp.ne.s32.totalorder %s114, %s116
      %p123 = scmp.eq.s32.totalorder %s17, 1
      %p124 = por %p122, %p123
      %p125 = scmp.ne.s32.totalorder %s116, %s117
      %p126 = scmp.eq.s32.totalorder %s17, 0
      %p127 = por %p125, %p126
      %p128 = scmp.ne.s32.totalorder %s116, %s117
      %p129 = scmp.eq.s32.totalorder %s18, 1
      %p130 = por %p128, %p129
      %p132 = scmp.ne.s32.totalorder %s117, %s131
      %p133 = scmp.eq.s32.totalorder %s18, 0
      %p134 = por %p132, %p133
      %s136 = sadd.s32 %s135, 1
      %p139 = scmp.eq.s32.totalorder %s12, 1
      %p140 = scmp.ne.s32.totalorder %s135, %s137
      %p141 = scmp.eq.s32.totalorder %s12, 0
      %p142 = por %p140, %p141
      %p143 = scmp.ne.s32.totalorder %s135, %s137
      %p144 = scmp.eq.s32.totalorder %s17, 1
      %p145 = por %p143, %p144
      %p146 = scmp.ne.s32.totalorder %s137, %s138
      %p147 = scmp.eq.s32.totalorder %s17, 0
      %p148 = por %p146, %p147
      %p149 = scmp.ne.s32.totalorder %s137, %s138
      %p150 = scmp.eq.s32.totalorder %s18, 1
      %p151 = por %p149, %p150
      %p153 = scmp.ne.s32.totalorder %s138, %s152
      %p154 = scmp.eq.s32.totalorder %s18, 0
      %p155 = por %p153, %p154
      %p156 = scmp.le.s32.totalorder 1, %s12
      %p157 = scmp.lt.s32.totalorder %s12, 3
      %p158 = pnand %p156, %p157
      %p159 = pneg %p158
      // Predicated region
      $region9: #{cnn_forward.5} parent=5 // pred_check
        _
      $region10: #{cnn_forward.5} parent=5 // pred_check_branch
        %161 = sbr.rel (%p158) target = $region12
      $region11: #{cnn_forward.5} parent=5 // pred_region
        %s162 = ssub.s32 %s12, 1
        // Predicated region
        $region13: #{cnn_forward.5} parent=11 // pred_check
          %p163 = pneg %p85
        $region14: #{cnn_forward.5} parent=11 // pred_check_branch
          %165 = sbr.rel (%p163) target = $region16
        $region15: #{cnn_forward.5} parent=11 // pred_region
          _
        $region16: #{cnn_forward.5} parent=11 // pred_fallthru
          _
        // Predicated region
        $region17: #{cnn_forward.5} parent=11 // pred_check
          %p166 = pneg %p106
        $region18: #{cnn_forward.5} parent=11 // pred_check_branch
          %168 = sbr.rel (%p166) target = $region20
        $region19: #{cnn_forward.5} parent=11 // pred_region
          _
        $region20: #{cnn_forward.5} parent=11 // pred_fallthru
          _
        // Predicated region
        $region21: #{cnn_forward.5} parent=11 // pred_check
          %p169 = pneg %p127
        $region22: #{cnn_forward.5} parent=11 // pred_check_branch
          %171 = sbr.rel (%p169) target = $region24
        $region23: #{cnn_forward.5} parent=11 // pred_region
          _
        $region24: #{cnn_forward.5} parent=11 // pred_fallthru
          _
      $region12: #{cnn_forward.5} parent=5 // pred_fallthru
        _
      %p172 = scmp.lt.s32.totalorder %s12, 2
      // Predicated region
      $region25: #{cnn_forward.5} parent=5 // pred_check
        %p173 = pneg %p172
      $region26: #{cnn_forward.5} parent=5 // pred_check_branch
        %175 = sbr.rel (%p173) target = $region28
      $region27: #{cnn_forward.5} parent=5 // pred_region
        // Predicated region
        $region29: #{cnn_forward.5} parent=27 // pred_check
          %p176 = pneg %p32
        $region30: #{cnn_forward.5} parent=27 // pred_check_branch
          %178 = sbr.rel (%p176) target = $region32
        $region31: #{cnn_forward.5} parent=27 // pred_region
          %p179 = scmp.lt.s32.totalorder %s12, 1
          %s180 = scalar_select %p179, %s12, 1
          %s181 = smul.addr %s180, 2
          %s182 = scalar_lea.vmem %s0, %s181
        $region32: #{cnn_forward.5} parent=27 // pred_fallthru
          _
        // Predicated region
        $region33: #{cnn_forward.5} parent=27 // pred_check
          %p183 = pneg %p58
        $region34: #{cnn_forward.5} parent=27 // pred_check_branch
          %185 = sbr.rel (%p183) target = $region36
        $region35: #{cnn_forward.5} parent=27 // pred_region
          %s186 = smul.u32 16, %s12
          %p187 = scmp.lt.s32.totalorder %s186, 31
          %s188 = scalar_select %p187, %s186, 31
          %s189 = smul.addr %s188, 8
          %s190 = smul.addr %s189, 8
          %s191 = scalar_lea.vmem %s1, %s190
          %s192 = smul.u32 16, %s12
        $region36: #{cnn_forward.5} parent=27 // pred_fallthru
          _
      $region28: #{cnn_forward.5} parent=5 // pred_fallthru
        _
      %p193 = scmp.le.s32.totalorder 1, %s12
      %p194 = scmp.lt.s32.totalorder %s12, 3
      %p195 = pnand %p193, %p194
      %p196 = pneg %p195
      // Predicated region
      $region37: #{cnn_forward.5} parent=5 // pred_check
        _
      $region38: #{cnn_forward.5} parent=5 // pred_check_branch
        %198 = sbr.rel (%p195) target = $region40
      $region39: #{cnn_forward.5} parent=5 // pred_region
        %s199 = ssub.s32 %s12, 1
        %p200 = scmp.lt.s32.totalorder %s17, 1
        %s201 = scalar_select %p200, %s17, 1
        %s202 = smul.addr %s201, 2
        %s203 = scalar_lea.vmem %s0, %s202
        %p204 = pneg %p38
        %p205 = pneg %p35
        %s206 = smul.u32 16, %s17
        %p207 = scmp.lt.s32.totalorder %s206, 31
        %s208 = scalar_select %p207, %s206, 31
        %s209 = smul.addr %s208, 8
        %s210 = smul.addr %s209, 8
        %s211 = scalar_lea.vmem %s1, %s210
        %p212 = pneg %p64
        %p213 = pneg %p61
        %p214 = pneg %p85
        %p215 = pneg %p82
        %p216 = pneg %p106
        %p217 = pneg %p103
        %p218 = pneg %p127
        %p219 = pneg %p124
        %p220 = pneg %p148
        %p221 = pneg %p145
        %p222 = scmp.lt.s32.totalorder %s17, 1
        %s223 = scalar_select %p222, %s17, 1
        %s224 = smul.addr %s223, 2
        %s225 = scalar_lea.vmem %s0, %s224
        %s226 = smul.u32 16, %s17
        %p227 = scmp.lt.s32.totalorder %s226, 31
        %s228 = scalar_select %p227, %s226, 31
        %s229 = smul.addr %s228, 8
        %s230 = smul.addr %s229, 8
        %s231 = scalar_lea.vmem %s1, %s230
        %s232 = smul.u32 16, %s17
        %p233 = scmp.eq.s32.totalorder %s17, 0
        // Predicated region
        $region41: #{cnn_forward.5} parent=39 // pred_check
          %p234 = pneg %p233
        $region42: #{cnn_forward.5} parent=39 // pred_check_branch
          %236 = sbr.rel (%p234) target = $region44
        $region43: #{cnn_forward.5} parent=39 // pred_region
          %237 = vst [vmem:[#allocation2] sm:$0xff] 0.0
          %vm238 = vcmask 1041408
          %vm239 = vcmask 1043458
          %vm240 = vmor %vm239, %vm238
          %vm241 = vcmask 1045508
          %vm242 = vmor %vm241, %vm240
          %vm243 = vcmask 31750
          %vm244 = vmor %vm243, %vm242
          %245 = vst.msk [vmem:[#allocation2 + $0x8] sm:$0xff] %vm244, 0.0
        $region44: #{cnn_forward.5} parent=39 // pred_fallthru
          _
        %v246 = vld [vmem:[#allocation2] sm:$0xff]
        %v247 = vld [vmem:[#allocation2 + $0x8] sm:$0xff]
        %v248 = vld [vmem:[%s225] sm:$0x3]
        %v249 = vld [vmem:[%s231] sm:$0xff]
        %v250 = vld [vmem:[%s231 + $0x8] sm:$0xff]
        %v251 = vld [vmem:[%s231 + $0x10] sm:$0xff]
        %v252 = vld [vmem:[%s231 + $0x18] sm:$0xff]
        %v253 = vld [vmem:[%s231 + $0x20] sm:$0xff]
        %v254 = vld [vmem:[%s231 + $0x28] sm:$0xff]
        %v255 = vld [vmem:[%s231 + $0x30] sm:$0xff]
        %v256 = vld [vmem:[%s231 + $0x38] sm:$0xff]
        %v257 = vld [vmem:[%s231 + $0x40] sm:$0xff]
        %v258 = vld [vmem:[%s231 + $0x48] sm:$0xff]
        %v259 = vld [vmem:[%s231 + $0x50] sm:$0xff]
        %v260 = vld [vmem:[%s231 + $0x58] sm:$0xff]
        %v261 = vld [vmem:[%s231 + $0x60] sm:$0xff]
        %v262 = vld [vmem:[%s231 + $0x68] sm:$0xff]
        %v263 = vld [vmem:[%s231 + $0x70] sm:$0xff]
        %v264 = vld [vmem:[%s231 + $0x78] sm:$0xff]
        %v265 = vld [vmem:[%s231 + $0x80] sm:$0xff]
        %v266 = vld [vmem:[%s231 + $0x88] sm:$0xff]
        %v267 = vld [vmem:[%s231 + $0x90] sm:$0xff]
        %v268 = vld [vmem:[%s231 + $0x98] sm:$0xff]
        %v269 = vld [vmem:[%s231 + $0xa0] sm:$0xff]
        %v270 = vld [vmem:[%s231 + $0xa8] sm:$0xff]
        %v271 = vld [vmem:[%s231 + $0xb0] sm:$0xff]
        %v272 = vld [vmem:[%s231 + $0xb8] sm:$0xff]
        %v273 = vld [vmem:[%s231 + $0xc0] sm:$0xff]
        %v274 = vld [vmem:[%s231 + $0xc8] sm:$0xff]
        %v275 = vld [vmem:[%s231 + $0xd0] sm:$0xff]
        %v276 = vld [vmem:[%s231 + $0xd8] sm:$0xff]
        %v277 = vld [vmem:[%s231 + $0xe0] sm:$0xff]
        %v278 = vld [vmem:[%s231 + $0xe8] sm:$0xff]
        %v279 = vld [vmem:[%s231 + $0xf0] sm:$0xff]
        %v280 = vld [vmem:[%s231 + $0xf8] sm:$0xff]
        %v281 = vld [vmem:[%s231 + $0x100] sm:$0xff]
        %v282 = vld [vmem:[%s231 + $0x108] sm:$0xff]
        %v283 = vld [vmem:[%s231 + $0x110] sm:$0xff]
        %v284 = vld [vmem:[%s231 + $0x118] sm:$0xff]
        %v285 = vld [vmem:[%s231 + $0x120] sm:$0xff]
        %v286 = vld [vmem:[%s231 + $0x128] sm:$0xff]
        %v287 = vld [vmem:[%s231 + $0x130] sm:$0xff]
        %v288 = vld [vmem:[%s231 + $0x138] sm:$0xff]
        %v289 = vld [vmem:[%s231 + $0x140] sm:$0xff]
        %v290 = vld [vmem:[%s231 + $0x148] sm:$0xff]
        %v291 = vld [vmem:[%s231 + $0x150] sm:$0xff]
        %v292 = vld [vmem:[%s231 + $0x158] sm:$0xff]
        %v293 = vld [vmem:[%s231 + $0x160] sm:$0xff]
        %v294 = vld [vmem:[%s231 + $0x168] sm:$0xff]
        %v295 = vld [vmem:[%s231 + $0x170] sm:$0xff]
        %v296 = vld [vmem:[%s231 + $0x178] sm:$0xff]
        %v297 = vld [vmem:[%s231 + $0x180] sm:$0xff]
        %v298 = vld [vmem:[%s231 + $0x188] sm:$0xff]
        %v299 = vld [vmem:[%s231 + $0x190] sm:$0xff]
        %v300 = vld [vmem:[%s231 + $0x198] sm:$0xff]
        %v301 = vld [vmem:[%s231 + $0x1a0] sm:$0xff]
        %v302 = vld [vmem:[%s231 + $0x1a8] sm:$0xff]
        %v303 = vld [vmem:[%s231 + $0x1b0] sm:$0xff]
        %v304 = vld [vmem:[%s231 + $0x1b8] sm:$0xff]
        %v305 = vld [vmem:[%s231 + $0x1c0] sm:$0xff]
        %v306 = vld [vmem:[%s231 + $0x1c8] sm:$0xff]
        %v307 = vld [vmem:[%s231 + $0x1d0] sm:$0xff]
        %v308 = vld [vmem:[%s231 + $0x1d8] sm:$0xff]
        %v309 = vld [vmem:[%s231 + $0x1e0] sm:$0xff]
        %v310 = vld [vmem:[%s231 + $0x1e8] sm:$0xff]
        %v311 = vld [vmem:[%s231 + $0x1f0] sm:$0xff]
        %v312 = vld [vmem:[%s231 + $0x1f8] sm:$0xff]
        %v313 = vld [vmem:[%s231 + $0x200] sm:$0xff]
        %v314 = vld [vmem:[%s231 + $0x208] sm:$0xff]
        %v315 = vld [vmem:[%s231 + $0x210] sm:$0xff]
        %v316 = vld [vmem:[%s231 + $0x218] sm:$0xff]
        %v317 = vld [vmem:[%s231 + $0x220] sm:$0xff]
        %v318 = vld [vmem:[%s231 + $0x228] sm:$0xff]
        %v319 = vld [vmem:[%s231 + $0x230] sm:$0xff]
        %v320 = vld [vmem:[%s231 + $0x238] sm:$0xff]
        %v321 = vld [vmem:[%s231 + $0x240] sm:$0xff]
        %v322 = vld [vmem:[%s231 + $0x248] sm:$0xff]
        %v323 = vld [vmem:[%s231 + $0x250] sm:$0xff]
        %v324 = vld [vmem:[%s231 + $0x258] sm:$0xff]
        %v325 = vld [vmem:[%s231 + $0x260] sm:$0xff]
        %v326 = vld [vmem:[%s231 + $0x268] sm:$0xff]
        %v327 = vld [vmem:[%s231 + $0x270] sm:$0xff]
        %v328 = vld [vmem:[%s231 + $0x278] sm:$0xff]
        %v329 = vld [vmem:[%s231 + $0x280] sm:$0xff]
        %v330 = vld [vmem:[%s231 + $0x288] sm:$0xff]
        %v331 = vld [vmem:[%s231 + $0x290] sm:$0xff]
        %v332 = vld [vmem:[%s231 + $0x298] sm:$0xff]
        %v333 = vld [vmem:[%s231 + $0x2a0] sm:$0xff]
        %v334 = vld [vmem:[%s231 + $0x2a8] sm:$0xff]
        %v335 = vld [vmem:[%s231 + $0x2b0] sm:$0xff]
        %v336 = vld [vmem:[%s231 + $0x2b8] sm:$0xff]
        %v337 = vld [vmem:[%s231 + $0x2c0] sm:$0xff]
        %v338 = vld [vmem:[%s231 + $0x2c8] sm:$0xff]
        %v339 = vld [vmem:[%s231 + $0x2d0] sm:$0xff]
        %v340 = vld [vmem:[%s231 + $0x2d8] sm:$0xff]
        %v341 = vld [vmem:[%s231 + $0x2e0] sm:$0xff]
        %v342 = vld [vmem:[%s231 + $0x2e8] sm:$0xff]
        %v343 = vld [vmem:[%s231 + $0x2f0] sm:$0xff]
        %v344 = vld [vmem:[%s231 + $0x2f8] sm:$0xff]
        %v345 = vld [vmem:[%s231 + $0x300] sm:$0xff]
        %v346 = vld [vmem:[%s231 + $0x308] sm:$0xff]
        %v347 = vld [vmem:[%s231 + $0x310] sm:$0xff]
        %v348 = vld [vmem:[%s231 + $0x318] sm:$0xff]
        %v349 = vld [vmem:[%s231 + $0x320] sm:$0xff]
        %v350 = vld [vmem:[%s231 + $0x328] sm:$0xff]
        %v351 = vld [vmem:[%s231 + $0x330] sm:$0xff]
        %v352 = vld [vmem:[%s231 + $0x338] sm:$0xff]
        %v353 = vld [vmem:[%s231 + $0x340] sm:$0xff]
        %v354 = vld [vmem:[%s231 + $0x348] sm:$0xff]
        %v355 = vld [vmem:[%s231 + $0x350] sm:$0xff]
        %v356 = vld [vmem:[%s231 + $0x358] sm:$0xff]
        %v357 = vld [vmem:[%s231 + $0x360] sm:$0xff]
        %v358 = vld [vmem:[%s231 + $0x368] sm:$0xff]
        %v359 = vld [vmem:[%s231 + $0x370] sm:$0xff]
        %v360 = vld [vmem:[%s231 + $0x378] sm:$0xff]
        %v361 = vld [vmem:[%s231 + $0x380] sm:$0xff]
        %v362 = vld [vmem:[%s231 + $0x388] sm:$0xff]
        %v363 = vld [vmem:[%s231 + $0x390] sm:$0xff]
        %v364 = vld [vmem:[%s231 + $0x398] sm:$0xff]
        %v365 = vld [vmem:[%s231 + $0x3a0] sm:$0xff]
        %v366 = vld [vmem:[%s231 + $0x3a8] sm:$0xff]
        %v367 = vld [vmem:[%s231 + $0x3b0] sm:$0xff]
        %v368 = vld [vmem:[%s231 + $0x3b8] sm:$0xff]
        %v369 = vld [vmem:[%s231 + $0x3c0] sm:$0xff]
        %v370 = vld [vmem:[%s231 + $0x3c8] sm:$0xff]
        %v371 = vld [vmem:[%s231 + $0x3d0] sm:$0xff]
        %v372 = vld [vmem:[%s231 + $0x3d8] sm:$0xff]
        %v373 = vld [vmem:[%s231 + $0x3e0] sm:$0xff]
        %v374 = vld [vmem:[%s231 + $0x3e8] sm:$0xff]
        %v375 = vld [vmem:[%s231 + $0x3f0] sm:$0xff]
        %v376 = vld [vmem:[%s231 + $0x3f8] sm:$0xff]
        %377 = vmatprep.subr.mxu0 %v250
        %378 = vmatpush1.msra.mxu0 %v249
        %379 = vmatprep.subr.mxu0 %v258
        %380 = vmatpush1.msra.mxu0 %v257
        %381 = vmatprep.subr.mxu0 %v266
        %382 = vmatpush1.msra.mxu0 %v265
        %383 = vmatprep.subr.mxu0 %v274
        %384 = vmatpush1.msra.mxu0 %v273
        %385 = vmatprep.subr.mxu0 %v282
        %386 = vmatpush1.msra.mxu0 %v281
        %387 = vmatprep.subr.mxu0 %v290
        %388 = vmatpush1.msra.mxu0 %v289
        %389 = vmatprep.subr.mxu0 %v298
        %390 = vmatpush1.msra.mxu0 %v297
        %391 = vmatprep.subr.mxu0 %v306
        %392 = vmatpush1.msra.mxu0 %v305
        %393 = vmatprep.subr.mxu0 %v314
        %394 = vmatpush1.msra.mxu0 %v313
        %395 = vmatprep.subr.mxu0 %v322
        %396 = vmatpush1.msra.mxu0 %v321
        %397 = vmatprep.subr.mxu0 %v330
        %398 = vmatpush1.msra.mxu0 %v329
        %399 = vmatprep.subr.mxu0 %v338
        %400 = vmatpush1.msra.mxu0 %v337
        %401 = vmatprep.subr.mxu0 %v346
        %402 = vmatpush1.msra.mxu0 %v345
        %403 = vmatprep.subr.mxu0 %v354
        %404 = vmatpush1.msra.mxu0 %v353
        %405 = vmatprep.subr.mxu0 %v362
        %406 = vmatpush1.msra.mxu0 %v361
        %407 = vmatprep.subr.mxu0 %v370
        %408 = vmatpush1.msra.mxu0 %v369
        %409 = vmatprep.subr.mxu0 0.0
        %410 = vmatpush1.msra.mxu0 0.0
        %411 = vmatprep.subr.mxu0 0.0
        %412 = vmatpush1.msra.mxu0 0.0
        %413 = vmatprep.subr.mxu0 0.0
        %414 = vmatpush1.msra.mxu0 0.0
        %415 = vmatprep.subr.mxu0 0.0
        %416 = vmatpush1.msra.mxu0 0.0
        %417 = vmatprep.subr.mxu0 0.0
        %418 = vmatpush1.msra.mxu0 0.0
        %419 = vmatprep.subr.mxu0 0.0
        %420 = vmatpush1.msra.mxu0 0.0
        %421 = vmatprep.subr.mxu0 0.0
        %422 = vmatpush1.msra.mxu0 0.0
        %423 = vmatprep.subr.mxu0 0.0
        %424 = vmatpush1.msra.mxu0 0.0
        %425 = vmatprep.subr.mxu0 0.0
        %426 = vmatpush1.msra.mxu0 0.0
        %427 = vmatprep.subr.mxu0 0.0
        %428 = vmatpush1.msra.mxu0 0.0
        %429 = vmatprep.subr.mxu0 0.0
        %430 = vmatpush1.msra.mxu0 0.0
        %431 = vmatprep.subr.mxu0 0.0
        %432 = vmatpush1.msra.mxu0 0.0
        %433 = vmatprep.subr.mxu0 0.0
        %434 = vmatpush1.msra.mxu0 0.0
        %435 = vmatprep.subr.mxu0 0.0
        %436 = vmatpush1.msra.mxu0 0.0
        %437 = vmatprep.subr.mxu0 0.0
        %438 = vmatpush1.msra.mxu0 0.0
        %439 = vmatprep.subr.mxu0 0.0
        %440 = vmatpush1.msra.mxu0 0.0
        %441 = vmatprep.mubr.f32.mxu0 0.0
        %442 = vmatmul.mubr.f32.gmra.mrb[0].mxu0 %v248
        %v443 = vpop.f32.mrb[0].mxu0
        %v444 = vadd.f32 0.0, %v443
        %v445 = vpop.f32.mrb[0].mxu0
        %v446 = vadd.f32 0.0, %v445
        %447 = vdwg.mxu0
        %448 = vmatprep.subr.mxu0 %v252
        %449 = vmatpush1.msra.mxu0 %v251
        %450 = vmatprep.subr.mxu0 %v260
        %451 = vmatpush1.msra.mxu0 %v259
        %452 = vmatprep.subr.mxu0 %v268
        %453 = vmatpush1.msra.mxu0 %v267
        %454 = vmatprep.subr.mxu0 %v276
        %455 = vmatpush1.msra.mxu0 %v275
        %456 = vmatprep.subr.mxu0 %v284
        %457 = vmatpush1.msra.mxu0 %v283
        %458 = vmatprep.subr.mxu0 %v292
        %459 = vmatpush1.msra.mxu0 %v291
        %460 = vmatprep.subr.mxu0 %v300
        %461 = vmatpush1.msra.mxu0 %v299
        %462 = vmatprep.subr.mxu0 %v308
        %463 = vmatpush1.msra.mxu0 %v307
        %464 = vmatprep.subr.mxu0 %v316
        %465 = vmatpush1.msra.mxu0 %v315
        %466 = vmatprep.subr.mxu0 %v324
        %467 = vmatpush1.msra.mxu0 %v323
        %468 = vmatprep.subr.mxu0 %v332
        %469 = vmatpush1.msra.mxu0 %v331
        %470 = vmatprep.subr.mxu0 %v340
        %471 = vmatpush1.msra.mxu0 %v339
        %472 = vmatprep.subr.mxu0 %v348
        %473 = vmatpush1.msra.mxu0 %v347
        %474 = vmatprep.subr.mxu0 %v356
        %475 = vmatpush1.msra.mxu0 %v355
        %476 = vmatprep.subr.mxu0 %v364
        %477 = vmatpush1.msra.mxu0 %v363
        %478 = vmatprep.subr.mxu0 %v372
        %479 = vmatpush1.msra.mxu0 %v371
        %480 = vmatprep.subr.mxu0 0.0
        %481 = vmatpush1.msra.mxu0 0.0
        %482 = vmatprep.subr.mxu0 0.0
        %483 = vmatpush1.msra.mxu0 0.0
        %484 = vmatprep.subr.mxu0 0.0
        %485 = vmatpush1.msra.mxu0 0.0
        %486 = vmatprep.subr.mxu0 0.0
        %487 = vmatpush1.msra.mxu0 0.0
        %488 = vmatprep.subr.mxu0 0.0
        %489 = vmatpush1.msra.mxu0 0.0
        %490 = vmatprep.subr.mxu0 0.0
        %491 = vmatpush1.msra.mxu0 0.0
        %492 = vmatprep.subr.mxu0 0.0
        %493 = vmatpush1.msra.mxu0 0.0
        %494 = vmatprep.subr.mxu0 0.0
        %495 = vmatpush1.msra.mxu0 0.0
        %496 = vmatprep.subr.mxu0 0.0
        %497 = vmatpush1.msra.mxu0 0.0
        %498 = vmatprep.subr.mxu0 0.0
        %499 = vmatpush1.msra.mxu0 0.0
        %500 = vmatprep.subr.mxu0 0.0
        %501 = vmatpush1.msra.mxu0 0.0
        %502 = vmatprep.subr.mxu0 0.0
        %503 = vmatpush1.msra.mxu0 0.0
        %504 = vmatprep.subr.mxu0 0.0
        %505 = vmatpush1.msra.mxu0 0.0
        %506 = vmatprep.subr.mxu0 0.0
        %507 = vmatpush1.msra.mxu0 0.0
        %508 = vmatprep.subr.mxu0 0.0
        %509 = vmatpush1.msra.mxu0 0.0
        %510 = vmatprep.subr.mxu0 0.0
        %511 = vmatpush1.msra.mxu0 0.0
        %512 = vmatprep.mubr.f32.mxu0 0.0
        %513 = vmatmul.mubr.f32.gmra.mrb[0].mxu0 %v248
        %v514 = vpop.f32.mrb[0].mxu0
        %v515 = vadd.f32 0.0, %v514
        %v516 = vpop.f32.mrb[0].mxu0
        %v517 = vadd.f32 0.0, %v516
        %518 = vdwg.mxu0
        %519 = vmatprep.subr.mxu0 %v254
        %520 = vmatpush1.msra.mxu0 %v253
        %521 = vmatprep.subr.mxu0 %v262
        %522 = vmatpush1.msra.mxu0 %v261
        %523 = vmatprep.subr.mxu0 %v270
        %524 = vmatpush1.msra.mxu0 %v269
        %525 = vmatprep.subr.mxu0 %v278
        %526 = vmatpush1.msra.mxu0 %v277
        %527 = vmatprep.subr.mxu0 %v286
        %528 = vmatpush1.msra.mxu0 %v285
        %529 = vmatprep.subr.mxu0 %v294
        %530 = vmatpush1.msra.mxu0 %v293
        %531 = vmatprep.subr.mxu0 %v302
        %532 = vmatpush1.msra.mxu0 %v301
        %533 = vmatprep.subr.mxu0 %v310
        %534 = vmatpush1.msra.mxu0 %v309
        %535 = vmatprep.subr.mxu0 %v318
        %536 = vmatpush1.msra.mxu0 %v317
        %537 = vmatprep.subr.mxu0 %v326
        %538 = vmatpush1.msra.mxu0 %v325
        %539 = vmatprep.subr.mxu0 %v334
        %540 = vmatpush1.msra.mxu0 %v333
        %541 = vmatprep.subr.mxu0 %v342
        %542 = vmatpush1.msra.mxu0 %v341
        %543 = vmatprep.subr.mxu0 %v350
        %544 = vmatpush1.msra.mxu0 %v349
        %545 = vmatprep.subr.mxu0 %v358
        %546 = vmatpush1.msra.mxu0 %v357
        %547 = vmatprep.subr.mxu0 %v366
        %548 = vmatpush1.msra.mxu0 %v365
        %549 = vmatprep.subr.mxu0 %v374
        %550 = vmatpush1.msra.mxu0 %v373
        %551 = vmatprep.subr.mxu0 0.0
        %552 = vmatpush1.msra.mxu0 0.0
        %553 = vmatprep.subr.mxu0 0.0
        %554 = vmatpush1.msra.mxu0 0.0
        %555 = vmatprep.subr.mxu0 0.0
        %556 = vmatpush1.msra.mxu0 0.0
        %557 = vmatprep.subr.mxu0 0.0
        %558 = vmatpush1.msra.mxu0 0.0
        %559 = vmatprep.subr.mxu0 0.0
        %560 = vmatpush1.msra.mxu0 0.0
        %561 = vmatprep.subr.mxu0 0.0
        %562 = vmatpush1.msra.mxu0 0.0
        %563 = vmatprep.subr.mxu0 0.0
        %564 = vmatpush1.msra.mxu0 0.0
        %565 = vmatprep.subr.mxu0 0.0
        %566 = vmatpush1.msra.mxu0 0.0
        %567 = vmatprep.subr.mxu0 0.0
        %568 = vmatpush1.msra.mxu0 0.0
        %569 = vmatprep.subr.mxu0 0.0
        %570 = vmatpush1.msra.mxu0 0.0
        %571 = vmatprep.subr.mxu0 0.0
        %572 = vmatpush1.msra.mxu0 0.0
        %573 = vmatprep.subr.mxu0 0.0
        %574 = vmatpush1.msra.mxu0 0.0
        %575 = vmatprep.subr.mxu0 0.0
        %576 = vmatpush1.msra.mxu0 0.0
        %577 = vmatprep.subr.mxu0 0.0
        %578 = vmatpush1.msra.mxu0 0.0
        %579 = vmatprep.subr.mxu0 0.0
        %580 = vmatpush1.msra.mxu0 0.0
        %581 = vmatprep.subr.mxu0 0.0
        %582 = vmatpush1.msra.mxu0 0.0
        %583 = vmatprep.mubr.f32.mxu0 0.0
        %584 = vmatmul.mubr.f32.gmra.mrb[0].mxu0 %v248
        %v585 = vpop.f32.mrb[0].mxu0
        %v586 = vadd.f32 0.0, %v585
        %v587 = vpop.f32.mrb[0].mxu0
        %v588 = vadd.f32 0.0, %v587
        %589 = vdwg.mxu0
        %590 = vmatprep.subr.mxu0 %v256
        %591 = vmatpush1.msra.mxu0 %v255
        %592 = vmatprep.subr.mxu0 %v264
        %593 = vmatpush1.msra.mxu0 %v263
        %594 = vmatprep.subr.mxu0 %v272
        %595 = vmatpush1.msra.mxu0 %v271
        %596 = vmatprep.subr.mxu0 %v280
        %597 = vmatpush1.msra.mxu0 %v279
        %598 = vmatprep.subr.mxu0 %v288
        %599 = vmatpush1.msra.mxu0 %v287
        %600 = vmatprep.subr.mxu0 %v296
        %601 = vmatpush1.msra.mxu0 %v295
        %602 = vmatprep.subr.mxu0 %v304
        %603 = vmatpush1.msra.mxu0 %v303
        %604 = vmatprep.subr.mxu0 %v312
        %605 = vmatpush1.msra.mxu0 %v311
        %606 = vmatprep.subr.mxu0 %v320
        %607 = vmatpush1.msra.mxu0 %v319
        %608 = vmatprep.subr.mxu0 %v328
        %609 = vmatpush1.msra.mxu0 %v327
        %610 = vmatprep.subr.mxu0 %v336
        %611 = vmatpush1.msra.mxu0 %v335
        %612 = vmatprep.subr.mxu0 %v344
        %613 = vmatpush1.msra.mxu0 %v343
        %614 = vmatprep.subr.mxu0 %v352
        %615 = vmatpush1.msra.mxu0 %v351
        %616 = vmatprep.subr.mxu0 %v360
        %617 = vmatpush1.msra.mxu0 %v359
        %618 = vmatprep.subr.mxu0 %v368
        %619 = vmatpush1.msra.mxu0 %v367
        %620 = vmatprep.subr.mxu0 %v376
        %621 = vmatpush1.msra.mxu0 %v375
        %622 = vmatprep.subr.mxu0 0.0
        %623 = vmatpush1.msra.mxu0 0.0
        %624 = vmatprep.subr.mxu0 0.0
        %625 = vmatpush1.msra.mxu0 0.0
        %626 = vmatprep.subr.mxu0 0.0
        %627 = vmatpush1.msra.mxu0 0.0
        %628 = vmatprep.subr.mxu0 0.0
        %629 = vmatpush1.msra.mxu0 0.0
        %630 = vmatprep.subr.mxu0 0.0
        %631 = vmatpush1.msra.mxu0 0.0
        %632 = vmatprep.subr.mxu0 0.0
        %633 = vmatpush1.msra.mxu0 0.0
        %634 = vmatprep.subr.mxu0 0.0
        %635 = vmatpush1.msra.mxu0 0.0
        %636 = vmatprep.subr.mxu0 0.0
        %637 = vmatpush1.msra.mxu0 0.0
        %638 = vmatprep.subr.mxu0 0.0
        %639 = vmatpush1.msra.mxu0 0.0
        %640 = vmatprep.subr.mxu0 0.0
        %641 = vmatpush1.msra.mxu0 0.0
        %642 = vmatprep.subr.mxu0 0.0
        %643 = vmatpush1.msra.mxu0 0.0
        %644 = vmatprep.subr.mxu0 0.0
        %645 = vmatpush1.msra.mxu0 0.0
        %646 = vmatprep.subr.mxu0 0.0
        %647 = vmatpush1.msra.mxu0 0.0
        %648 = vmatprep.subr.mxu0 0.0
        %649 = vmatpush1.msra.mxu0 0.0
        %650 = vmatprep.subr.mxu0 0.0
        %651 = vmatpush1.msra.mxu0 0.0
        %652 = vmatprep.subr.mxu0 0.0
        %653 = vmatpush1.msra.mxu0 0.0
        %654 = vmatprep.mubr.f32.mxu0 0.0
        %655 = vmatmul.mubr.f32.gmra.mrb[0].mxu0 %v248
        %v656 = vpop.f32.mrb[0].mxu0
        %v657 = vadd.f32 0.0, %v656
        %v658 = vpop.f32.mrb[0].mxu0
        %v659 = vadd.f32 0.0, %v658
        %660 = vdwg.mxu0
        %v669 = vcombine.low %v444, %v446
        %v670 = vcombine.low %v515, %v517
        %v672 = vunpack.c.l.s4 1983009808
        %v673 = vunpack.c.0.s8 %v672
        %v674 = vlaneseq
        %v675 = vshrl.u32 %v674, 7
        %v676 = vsub.s32 %v673, %v675
        %v677 = vrot.slane %v669, %v676
        %v679 = vunpack.c.l.s4 1983009808
        %v680 = vunpack.c.0.s8 %v679
        %v681 = vlaneseq
        %v682 = vshrl.u32 %v681, 7
        %v683 = vsub.s32 %v680, %v682
        %v684 = vrot.slane %v670, %v683
        %v685 = vcombine.low %v677, %v684
        %v686 = vcombine.low %v586, %v588
        %v687 = vcombine.low %v657, %v659
        %v689 = vunpack.c.l.s4 1983009808
        %v690 = vunpack.c.0.s8 %v689
        %v691 = vlaneseq
        %v692 = vshrl.u32 %v691, 7
        %v693 = vsub.s32 %v690, %v692
        %v694 = vrot.slane %v686, %v693
        %v696 = vunpack.c.l.s4 1983009808
        %v697 = vunpack.c.0.s8 %v696
        %v698 = vlaneseq
        %v699 = vshrl.u32 %v698, 7
        %v700 = vsub.s32 %v697, %v699
        %v701 = vrot.slane %v687, %v700
        %v702 = vcombine.low %v694, %v701
        %v705 = vadd.f32 %v246, %v685
        %v706 = vadd.f32 %v247, %v702
        %707 = vst [vmem:[#allocation2] sm:$0xff] %v705
        %vm708 = vcmask 1041408
        %vm709 = vcmask 1043458
        %vm710 = vmor %vm709, %vm708
        %vm711 = vcmask 1045508
        %vm712 = vmor %vm711, %vm710
        %vm713 = vcmask 31750
        %vm714 = vmor %vm713, %vm712
        %715 = vst.msk [vmem:[#allocation2 + $0x8] sm:$0xff] %vm714, %v706
        %p716 = scmp.eq.s32.totalorder %s17, 1
        // Predicated region
        $region45: #{cnn_forward.5} parent=39 // pred_check
          %p717 = pneg %p716
        $region46: #{cnn_forward.5} parent=39 // pred_check_branch
          %719 = sbr.rel (%p717) target = $region48
        $region47: #{cnn_forward.5} parent=39 // pred_region
          %v720 = vld [vmem:[#allocation2] sm:$0xff]
          %v721 = vld [vmem:[#allocation2 + $0x8] sm:$0xff]
          %v722 = vld [vmem:[%s2] sm:$0xff]
          %v724 = vlaneseq
          %v725 = vshrl.u32 %v724, 7
          %v726 = vsub.s32 0, %v725
          %v727 = vrot.slane %v722, %v726
          %v728 = vlaneseq
          %v729 = vshrl.u32 %v728, 7
          %v730 = vsub.s32 1, %v729
          %v731 = vrot.slane %v722, %v730
          %v732 = vlaneseq
          %v733 = vshrl.u32 %v732, 7
          %v734 = vsub.s32 2, %v733
          %v735 = vrot.slane %v722, %v734
          %v736 = vlaneseq
          %v737 = vshrl.u32 %v736, 7
          %v738 = vsub.s32 3, %v737
          %v739 = vrot.slane %v722, %v738
          %v740 = vlaneseq
          %v741 = vshrl.u32 %v740, 7
          %v742 = vsub.s32 4, %v741
          %v743 = vrot.slane %v722, %v742
          %v744 = vlaneseq
          %v745 = vshrl.u32 %v744, 7
          %v746 = vsub.s32 5, %v745
          %v747 = vrot.slane %v722, %v746
          %v748 = vlaneseq
          %v749 = vshrl.u32 %v748, 7
          %v750 = vsub.s32 6, %v749
          %v751 = vrot.slane %v722, %v750
          %v752 = vlaneseq
          %v753 = vshrl.u32 %v752, 7
          %v754 = vsub.s32 7, %v753
          %v755 = vrot.slane %v722, %v754
          %v756 = vcombine.low %v727, %v731
          %v757 = vcombine.low %v735, %v739
          %v759 = vunpack.c.l.s4 1983009808
          %v760 = vunpack.c.0.s8 %v759
          %v761 = vlaneseq
          %v762 = vshrl.u32 %v761, 7
          %v763 = vsub.s32 %v760, %v762
          %v764 = vrot.slane %v756, %v763
          %v766 = vunpack.c.l.s4 1983009808
          %v767 = vunpack.c.0.s8 %v766
          %v768 = vlaneseq
          %v769 = vshrl.u32 %v768, 7
          %v770 = vsub.s32 %v767, %v769
          %v771 = vrot.slane %v757, %v770
          %v772 = vcombine.low %v764, %v771
          %v773 = vcombine.low %v743, %v747
          %v774 = vcombine.low %v751, %v755
          %v776 = vunpack.c.l.s4 1983009808
          %v777 = vunpack.c.0.s8 %v776
          %v778 = vlaneseq
          %v779 = vshrl.u32 %v778, 7
          %v780 = vsub.s32 %v777, %v779
          %v781 = vrot.slane %v773, %v780
          %v783 = vunpack.c.l.s4 1983009808
          %v784 = vunpack.c.0.s8 %v783
          %v785 = vlaneseq
          %v786 = vshrl.u32 %v785, 7
          %v787 = vsub.s32 %v784, %v786
          %v788 = vrot.slane %v774, %v787
          %v789 = vcombine.low %v781, %v788
          %v792 = vadd.f32 %v720, %v772
          %v793 = vadd.f32 %v721, %v789
          %v794 = vld [vmem:[%s3] sm:$0xff]
          %v795 = vld [vmem:[%s3 + $0x8] sm:$0xff]
          %v796 = vld [vmem:[%s3 + $0x10] sm:$0xff]
          %v797 = vld [vmem:[%s3 + $0x18] sm:$0xff]
          %v798 = vld [vmem:[%s3 + $0x20] sm:$0xff]
          %v799 = vld [vmem:[%s3 + $0x28] sm:$0xff]
          %v800 = vld [vmem:[%s3 + $0x30] sm:$0xff]
          %v801 = vld [vmem:[%s3 + $0x38] sm:$0xff]
          %v802 = vld [vmem:[%s3 + $0x40] sm:$0xff]
          %v803 = vld [vmem:[%s3 + $0x48] sm:$0xff]
          %v804 = vld [vmem:[%s3 + $0x50] sm:$0xff]
          %v805 = vld [vmem:[%s3 + $0x58] sm:$0xff]
          %v806 = vld [vmem:[%s3 + $0x60] sm:$0xff]
          %v807 = vld [vmem:[%s3 + $0x68] sm:$0xff]
          %v808 = vld [vmem:[%s3 + $0x70] sm:$0xff]
          %v809 = vld [vmem:[%s3 + $0x78] sm:$0xff]
          %v810 = vld [vmem:[%s3 + $0x80] sm:$0xff]
          %v811 = vld [vmem:[%s3 + $0x88] sm:$0xff]
          %v812 = vld [vmem:[%s3 + $0x90] sm:$0xff]
          %v813 = vld [vmem:[%s3 + $0x98] sm:$0xff]
          %v814 = vld [vmem:[%s3 + $0xa0] sm:$0xff]
          %v815 = vld [vmem:[%s3 + $0xa8] sm:$0xff]
          %v816 = vld [vmem:[%s3 + $0xb0] sm:$0xff]
          %v817 = vld [vmem:[%s3 + $0xb8] sm:$0xff]
          %v818 = vld [vmem:[%s3 + $0xc0] sm:$0xff]
          %v819 = vld [vmem:[%s3 + $0xc8] sm:$0xff]
          %v820 = vld [vmem:[%s3 + $0xd0] sm:$0xff]
          %v821 = vld [vmem:[%s3 + $0xd8] sm:$0xff]
          %v822 = vld [vmem:[%s3 + $0xe0] sm:$0xff]
          %v823 = vld [vmem:[%s3 + $0xe8] sm:$0xff]
          %v824 = vld [vmem:[%s3 + $0xf0] sm:$0xff]
          %v825 = vld [vmem:[%s3 + $0xf8] sm:$0xff]
          %v826 = vld [vmem:[%s3 + $0x100] sm:$0xff]
          %v827 = vld [vmem:[%s3 + $0x108] sm:$0xff]
          %v828 = vld [vmem:[%s3 + $0x110] sm:$0xff]
          %v829 = vld [vmem:[%s3 + $0x118] sm:$0xff]
          %v830 = vld [vmem:[%s3 + $0x120] sm:$0xff]
          %v831 = vld [vmem:[%s3 + $0x128] sm:$0xff]
          %v832 = vld [vmem:[%s3 + $0x130] sm:$0xff]
          %v833 = vld [vmem:[%s3 + $0x138] sm:$0xff]
          %v834 = vld [vmem:[%s3 + $0x140] sm:$0xff]
          %v835 = vld [vmem:[%s3 + $0x148] sm:$0xff]
          %v836 = vld [vmem:[%s3 + $0x150] sm:$0xff]
          %v837 = vld [vmem:[%s3 + $0x158] sm:$0xff]
          %v838 = vld [vmem:[%s3 + $0x160] sm:$0xff]
          %v839 = vld [vmem:[%s3 + $0x168] sm:$0xff]
          %v840 = vld [vmem:[%s3 + $0x170] sm:$0xff]
          %v841 = vld [vmem:[%s3 + $0x178] sm:$0xff]
          %v842 = vld [vmem:[%s3 + $0x180] sm:$0xff]
          %v843 = vld [vmem:[%s3 + $0x188] sm:$0xff]
          %v844 = vld [vmem:[%s3 + $0x190] sm:$0xff]
          %v845 = vld [vmem:[%s3 + $0x198] sm:$0xff]
          %v846 = vld [vmem:[%s3 + $0x1a0] sm:$0xff]
          %v847 = vld [vmem:[%s3 + $0x1a8] sm:$0xff]
          %v848 = vld [vmem:[%s3 + $0x1b0] sm:$0xff]
          %v849 = vld [vmem:[%s3 + $0x1b8] sm:$0xff]
          %v850 = vld [vmem:[%s3 + $0x1c0] sm:$0xff]
          %v851 = vld [vmem:[%s3 + $0x1c8] sm:$0xff]
          %v852 = vld [vmem:[%s3 + $0x1d0] sm:$0xff]
          %v853 = vld [vmem:[%s3 + $0x1d8] sm:$0xff]
          %v854 = vld [vmem:[%s3 + $0x1e0] sm:$0xff]
          %v855 = vld [vmem:[%s3 + $0x1e8] sm:$0xff]
          %v856 = vld [vmem:[%s3 + $0x1f0] sm:$0xff]
          %v857 = vld [vmem:[%s3 + $0x1f8] sm:$0xff]
          %v858 = vld [vmem:[%s3 + $0x200] sm:$0xff]
          %v859 = vld [vmem:[%s3 + $0x208] sm:$0xff]
          %v860 = vld [vmem:[%s3 + $0x210] sm:$0xff]
          %v861 = vld [vmem:[%s3 + $0x218] sm:$0xff]
          %v862 = vld [vmem:[%s3 + $0x220] sm:$0xff]
          %v863 = vld [vmem:[%s3 + $0x228] sm:$0xff]
          %v864 = vld [vmem:[%s3 + $0x230] sm:$0xff]
          %v865 = vld [vmem:[%s3 + $0x238] sm:$0xff]
          %v866 = vld [vmem:[%s3 + $0x240] sm:$0xff]
          %v867 = vld [vmem:[%s3 + $0x248] sm:$0xff]
          %v868 = vld [vmem:[%s3 + $0x250] sm:$0xff]
          %v869 = vld [vmem:[%s3 + $0x258] sm:$0xff]
          %v870 = vld [vmem:[%s3 + $0x260] sm:$0xff]
          %v871 = vld [vmem:[%s3 + $0x268] sm:$0xff]
          %v872 = vld [vmem:[%s3 + $0x270] sm:$0xff]
          %v873 = vld [vmem:[%s3 + $0x278] sm:$0xff]
          %v874 = vld [vmem:[%s3 + $0x280] sm:$0xff]
          %v875 = vld [vmem:[%s3 + $0x288] sm:$0xff]
          %v876 = vld [vmem:[%s3 + $0x290] sm:$0xff]
          %v877 = vld [vmem:[%s3 + $0x298] sm:$0xff]
          %v878 = vld [vmem:[%s3 + $0x2a0] sm:$0xff]
          %v879 = vld [vmem:[%s3 + $0x2a8] sm:$0xff]
          %v880 = vld [vmem:[%s3 + $0x2b0] sm:$0xff]
          %v881 = vld [vmem:[%s3 + $0x2b8] sm:$0xff]
          %v882 = vld [vmem:[%s3 + $0x2c0] sm:$0xff]
          %v883 = vld [vmem:[%s3 + $0x2c8] sm:$0xff]
          %v884 = vld [vmem:[%s3 + $0x2d0] sm:$0xff]
          %v885 = vld [vmem:[%s3 + $0x2d8] sm:$0xff]
          %v886 = vld [vmem:[%s3 + $0x2e0] sm:$0xff]
          %v887 = vld [vmem:[%s3 + $0x2e8] sm:$0xff]
          %v888 = vld [vmem:[%s3 + $0x2f0] sm:$0xff]
          %v889 = vld [vmem:[%s3 + $0x2f8] sm:$0xff]
          %v890 = vld [vmem:[%s3 + $0x300] sm:$0xff]
          %v891 = vld [vmem:[%s3 + $0x308] sm:$0xff]
          %v892 = vld [vmem:[%s3 + $0x310] sm:$0xff]
          %v893 = vld [vmem:[%s3 + $0x318] sm:$0xff]
          %v894 = vld [vmem:[%s3 + $0x320] sm:$0xff]
          %v895 = vld [vmem:[%s3 + $0x328] sm:$0xff]
          %v896 = vld [vmem:[%s3 + $0x330] sm:$0xff]
          %v897 = vld [vmem:[%s3 + $0x338] sm:$0xff]
          %v898 = vld [vmem:[%s3 + $0x340] sm:$0xff]
          %v899 = vld [vmem:[%s3 + $0x348] sm:$0xff]
          %v900 = vld [vmem:[%s3 + $0x350] sm:$0xff]
          %v901 = vld [vmem:[%s3 + $0x358] sm:$0xff]
          %v902 = vld [vmem:[%s3 + $0x360] sm:$0xff]
          %v903 = vld [vmem:[%s3 + $0x368] sm:$0xff]
          %v904 = vld [vmem:[%s3 + $0x370] sm:$0xff]
          %v905 = vld [vmem:[%s3 + $0x378] sm:$0xff]
          %v906 = vld [vmem:[%s3 + $0x380] sm:$0xf]
          %v907 = vld [vmem:[%s4] sm:$0x1]
          %v909 = vlaneseq
          %v910 = vshrl.u32 %v909, 7
          %v911 = vsub.s32 0, %v910
          %v912 = vrot.slane %v907, %v911
          %v916 = vcombine.high %v792, %v792
          %v918 = vunpack.c.l.s4 1983009808
          %v919 = vunpack.c.0.s8 %v918
          %v920 = vlaneseq
          %v921 = vshrl.u32 %v920, 7
          %v922 = vsub.s32 %v919, %v921
          %v923 = vrot.slane %v792, %v922
          %v925 = vunpack.c.l.s4 1983009808
          %v926 = vunpack.c.0.s8 %v925
          %v927 = vlaneseq
          %v928 = vshrl.u32 %v927, 7
          %v929 = vsub.s32 %v926, %v928
          %v930 = vrot.slane %v916, %v929
          %v931 = vcombine.high %v923, %v923
          %v932 = vcombine.high %v930, %v930
          %v933 = vcombine.high %v793, %v793
          %v935 = vunpack.c.l.s4 1983009808
          %v936 = vunpack.c.0.s8 %v935
          %v937 = vlaneseq
          %v938 = vshrl.u32 %v937, 7
          %v939 = vsub.s32 %v936, %v938
          %v940 = vrot.slane %v793, %v939
          %v942 = vunpack.c.l.s4 1983009808
          %v943 = vunpack.c.0.s8 %v942
          %v944 = vlaneseq
          %v945 = vshrl.u32 %v944, 7
          %v946 = vsub.s32 %v943, %v945
          %v947 = vrot.slane %v933, %v946
          %v948 = vcombine.high %v940, %v940
          %v949 = vcombine.high %v947, %v947
          %vm957 = vcmask 31744
          %v958 = vsel %vm957, %v949, 0
          %vm960 = vcmask 1043456
          %v962 = vsel %vm960, %v906, 0
          %964 = vmatprep.subr.mxu0 0.0
          %965 = vmatpush1.msra.mxu0 %v794
          %966 = vmatprep.subr.mxu0 0.0
          %967 = vmatpush1.msra.mxu0 %v795
          %968 = vmatprep.subr.mxu0 0.0
          %969 = vmatpush1.msra.mxu0 %v796
          %970 = vmatprep.subr.mxu0 0.0
          %971 = vmatpush1.msra.mxu0 %v797
          %972 = vmatprep.subr.mxu0 0.0
          %973 = vmatpush1.msra.mxu0 %v798
          %974 = vmatprep.subr.mxu0 0.0
          %975 = vmatpush1.msra.mxu0 %v799
          %976 = vmatprep.subr.mxu0 0.0
          %977 = vmatpush1.msra.mxu0 %v800
          %978 = vmatprep.subr.mxu0 0.0
          %979 = vmatpush1.msra.mxu0 %v801
          %980 = vmatprep.subr.mxu0 0.0
          %981 = vmatpush1.msra.mxu0 %v802
          %982 = vmatprep.subr.mxu0 0.0
          %983 = vmatpush1.msra.mxu0 %v803
          %984 = vmatprep.subr.mxu0 0.0
          %985 = vmatpush1.msra.mxu0 %v804
          %986 = vmatprep.subr.mxu0 0.0
          %987 = vmatpush1.msra.mxu0 %v805
          %988 = vmatprep.subr.mxu0 0.0
          %989 = vmatpush1.msra.mxu0 %v806
          %990 = vmatprep.subr.mxu0 0.0
          %991 = vmatpush1.msra.mxu0 %v807
          %992 = vmatprep.subr.mxu0 0.0
          %993 = vmatpush1.msra.mxu0 %v808
          %994 = vmatprep.subr.mxu0 0.0
          %995 = vmatpush1.msra.mxu0 %v809
          %996 = vmatprep.subr.mxu0 0.0
          %997 = vmatpush1.msra.mxu0 %v810
          %998 = vmatprep.subr.mxu0 0.0
          %999 = vmatpush1.msra.mxu0 %v811
          %1000 = vmatprep.subr.mxu0 0.0
          %1001 = vmatpush1.msra.mxu0 %v812
          %1002 = vmatprep.subr.mxu0 0.0
          %1003 = vmatpush1.msra.mxu0 %v813
          %1004 = vmatprep.subr.mxu0 0.0
          %1005 = vmatpush1.msra.mxu0 %v814
          %1006 = vmatprep.subr.mxu0 0.0
          %1007 = vmatpush1.msra.mxu0 %v815
          %1008 = vmatprep.subr.mxu0 0.0
          %1009 = vmatpush1.msra.mxu0 %v816
          %1010 = vmatprep.subr.mxu0 0.0
          %1011 = vmatpush1.msra.mxu0 %v817
          %1012 = vmatprep.subr.mxu0 0.0
          %1013 = vmatpush1.msra.mxu0 %v818
          %1014 = vmatprep.subr.mxu0 0.0
          %1015 = vmatpush1.msra.mxu0 %v819
          %1016 = vmatprep.subr.mxu0 0.0
          %1017 = vmatpush1.msra.mxu0 %v820
          %1018 = vmatprep.subr.mxu0 0.0
          %1019 = vmatpush1.msra.mxu0 %v821
          %1020 = vmatprep.subr.mxu0 0.0
          %1021 = vmatpush1.msra.mxu0 %v822
          %1022 = vmatprep.subr.mxu0 0.0
          %1023 = vmatpush1.msra.mxu0 %v823
          %1024 = vmatprep.subr.mxu0 0.0
          %1025 = vmatpush1.msra.mxu0 %v824
          %1026 = vmatprep.subr.mxu0 0.0
          %1027 = vmatpush1.msra.mxu0 %v825
          %1028 = vmatprep.mubr.f32.mxu0 %v931
          %1029 = vmatmul.mubr.f32.gmra.mrb[0].mxu0 %v923
          %v1030 = vpop.f32.mrb[0].mxu0
          %v1031 = vadd.f32 %v912, %v1030
          %v1032 = vpop.f32.mrb[0].mxu0
          %1033 = vdwg.mxu0
          %1034 = vmatprep.subr.mxu0 0.0
          %1035 = vmatpush1.msra.mxu0 %v826
          %1036 = vmatprep.subr.mxu0 0.0
          %1037 = vmatpush1.msra.mxu0 %v827
          %1038 = vmatprep.subr.mxu0 0.0
          %1039 = vmatpush1.msra.mxu0 %v828
          %1040 = vmatprep.subr.mxu0 0.0
          %1041 = vmatpush1.msra.mxu0 %v829
          %1042 = vmatprep.subr.mxu0 0.0
          %1043 = vmatpush1.msra.mxu0 %v830
          %1044 = vmatprep.subr.mxu0 0.0
          %1045 = vmatpush1.msra.mxu0 %v831
          %1046 = vmatprep.subr.mxu0 0.0
          %1047 = vmatpush1.msra.mxu0 %v832
          %1048 = vmatprep.subr.mxu0 0.0
          %1049 = vmatpush1.msra.mxu0 %v833
          %1050 = vmatprep.subr.mxu0 0.0
          %1051 = vmatpush1.msra.mxu0 %v834
          %1052 = vmatprep.subr.mxu0 0.0
          %1053 = vmatpush1.msra.mxu0 %v835
          %1054 = vmatprep.subr.mxu0 0.0
          %1055 = vmatpush1.msra.mxu0 %v836
          %1056 = vmatprep.subr.mxu0 0.0
          %1057 = vmatpush1.msra.mxu0 %v837
          %1058 = vmatprep.subr.mxu0 0.0
          %1059 = vmatpush1.msra.mxu0 %v838
          %1060 = vmatprep.subr.mxu0 0.0
          %1061 = vmatpush1.msra.mxu0 %v839
          %1062 = vmatprep.subr.mxu0 0.0
          %1063 = vmatpush1.msra.mxu0 %v840
          %1064 = vmatprep.subr.mxu0 0.0
          %1065 = vmatpush1.msra.mxu0 %v841
          %1066 = vmatprep.subr.mxu0 0.0
          %1067 = vmatpush1.msra.mxu0 %v842
          %1068 = vmatprep.subr.mxu0 0.0
          %1069 = vmatpush1.msra.mxu0 %v843
          %1070 = vmatprep.subr.mxu0 0.0
          %1071 = vmatpush1.msra.mxu0 %v844
          %1072 = vmatprep.subr.mxu0 0.0
          %1073 = vmatpush1.msra.mxu0 %v845
          %1074 = vmatprep.subr.mxu0 0.0
          %1075 = vmatpush1.msra.mxu0 %v846
          %1076 = vmatprep.subr.mxu0 0.0
          %1077 = vmatpush1.msra.mxu0 %v847
          %1078 = vmatprep.subr.mxu0 0.0
          %1079 = vmatpush1.msra.mxu0 %v848
          %1080 = vmatprep.subr.mxu0 0.0
          %1081 = vmatpush1.msra.mxu0 %v849
          %1082 = vmatprep.subr.mxu0 0.0
          %1083 = vmatpush1.msra.mxu0 %v850
          %1084 = vmatprep.subr.mxu0 0.0
          %1085 = vmatpush1.msra.mxu0 %v851
          %1086 = vmatprep.subr.mxu0 0.0
          %1087 = vmatpush1.msra.mxu0 %v852
          %1088 = vmatprep.subr.mxu0 0.0
          %1089 = vmatpush1.msra.mxu0 %v853
          %1090 = vmatprep.subr.mxu0 0.0
          %1091 = vmatpush1.msra.mxu0 %v854
          %1092 = vmatprep.subr.mxu0 0.0
          %1093 = vmatpush1.msra.mxu0 %v855
          %1094 = vmatprep.subr.mxu0 0.0
          %1095 = vmatpush1.msra.mxu0 %v856
          %1096 = vmatprep.subr.mxu0 0.0
          %1097 = vmatpush1.msra.mxu0 %v857
          %1098 = vmatprep.mubr.f32.mxu0 %v932
          %1099 = vmatmul.mubr.f32.gmra.mrb[0].mxu0 %v930
          %v1100 = vpop.f32.mrb[0].mxu0
          %v1101 = vadd.f32 %v1031, %v1100
          %v1102 = vpop.f32.mrb[0].mxu0
          %1103 = vdwg.mxu0
          %1104 = vmatprep.subr.mxu0 0.0
          %1105 = vmatpush1.msra.mxu0 %v858
          %1106 = vmatprep.subr.mxu0 0.0
          %1107 = vmatpush1.msra.mxu0 %v859
          %1108 = vmatprep.subr.mxu0 0.0
          %1109 = vmatpush1.msra.mxu0 %v860
          %1110 = vmatprep.subr.mxu0 0.0
          %1111 = vmatpush1.msra.mxu0 %v861
          %1112 = vmatprep.subr.mxu0 0.0
          %1113 = vmatpush1.msra.mxu0 %v862
          %1114 = vmatprep.subr.mxu0 0.0
          %1115 = vmatpush1.msra.mxu0 %v863
          %1116 = vmatprep.subr.mxu0 0.0
          %1117 = vmatpush1.msra.mxu0 %v864
          %1118 = vmatprep.subr.mxu0 0.0
          %1119 = vmatpush1.msra.mxu0 %v865
          %1120 = vmatprep.subr.mxu0 0.0
          %1121 = vmatpush1.msra.mxu0 %v866
          %1122 = vmatprep.subr.mxu0 0.0
          %1123 = vmatpush1.msra.mxu0 %v867
          %1124 = vmatprep.subr.mxu0 0.0
          %1125 = vmatpush1.msra.mxu0 %v868
          %1126 = vmatprep.subr.mxu0 0.0
          %1127 = vmatpush1.msra.mxu0 %v869
          %1128 = vmatprep.subr.mxu0 0.0
          %1129 = vmatpush1.msra.mxu0 %v870
          %1130 = vmatprep.subr.mxu0 0.0
          %1131 = vmatpush1.msra.mxu0 %v871
          %1132 = vmatprep.subr.mxu0 0.0
          %1133 = vmatpush1.msra.mxu0 %v872
          %1134 = vmatprep.subr.mxu0 0.0
          %1135 = vmatpush1.msra.mxu0 %v873
          %1136 = vmatprep.subr.mxu0 0.0
          %1137 = vmatpush1.msra.mxu0 %v874
          %1138 = vmatprep.subr.mxu0 0.0
          %1139 = vmatpush1.msra.mxu0 %v875
          %1140 = vmatprep.subr.mxu0 0.0
          %1141 = vmatpush1.msra.mxu0 %v876
          %1142 = vmatprep.subr.mxu0 0.0
          %1143 = vmatpush1.msra.mxu0 %v877
          %1144 = vmatprep.subr.mxu0 0.0
          %1145 = vmatpush1.msra.mxu0 %v878
          %1146 = vmatprep.subr.mxu0 0.0
          %1147 = vmatpush1.msra.mxu0 %v879
          %1148 = vmatprep.subr.mxu0 0.0
          %1149 = vmatpush1.msra.mxu0 %v880
          %1150 = vmatprep.subr.mxu0 0.0
          %1151 = vmatpush1.msra.mxu0 %v881
          %1152 = vmatprep.subr.mxu0 0.0
          %1153 = vmatpush1.msra.mxu0 %v882
          %1154 = vmatprep.subr.mxu0 0.0
          %1155 = vmatpush1.msra.mxu0 %v883
          %1156 = vmatprep.subr.mxu0 0.0
          %1157 = vmatpush1.msra.mxu0 %v884
          %1158 = vmatprep.subr.mxu0 0.0
          %1159 = vmatpush1.msra.mxu0 %v885
          %1160 = vmatprep.subr.mxu0 0.0
          %1161 = vmatpush1.msra.mxu0 %v886
          %1162 = vmatprep.subr.mxu0 0.0
          %1163 = vmatpush1.msra.mxu0 %v887
          %1164 = vmatprep.subr.mxu0 0.0
          %1165 = vmatpush1.msra.mxu0 %v888
          %1166 = vmatprep.subr.mxu0 0.0
          %1167 = vmatpush1.msra.mxu0 %v889
          %1168 = vmatprep.mubr.f32.mxu0 %v948
          %1169 = vmatmul.mubr.f32.gmra.mrb[0].mxu0 %v940
          %v1170 = vpop.f32.mrb[0].mxu0
          %v1171 = vadd.f32 %v1101, %v1170
          %v1172 = vpop.f32.mrb[0].mxu0
          %1173 = vdwg.mxu0
          %1174 = vmatprep.subr.mxu0 0.0
          %1175 = vmatpush1.msra.mxu0 %v890
          %1176 = vmatprep.subr.mxu0 0.0
          %1177 = vmatpush1.msra.mxu0 %v891
          %1178 = vmatprep.subr.mxu0 0.0
          %1179 = vmatpush1.msra.mxu0 %v892
          %1180 = vmatprep.subr.mxu0 0.0
          %1181 = vmatpush1.msra.mxu0 %v893
          %1182 = vmatprep.subr.mxu0 0.0
          %1183 = vmatpush1.msra.mxu0 %v894
          %1184 = vmatprep.subr.mxu0 0.0
          %1185 = vmatpush1.msra.mxu0 %v895
          %1186 = vmatprep.subr.mxu0 0.0
          %1187 = vmatpush1.msra.mxu0 %v896
          %1188 = vmatprep.subr.mxu0 0.0
          %1189 = vmatpush1.msra.mxu0 %v897
          %1190 = vmatprep.subr.mxu0 0.0
          %1191 = vmatpush1.msra.mxu0 %v898
          %1192 = vmatprep.subr.mxu0 0.0
          %1193 = vmatpush1.msra.mxu0 %v899
          %1194 = vmatprep.subr.mxu0 0.0
          %1195 = vmatpush1.msra.mxu0 %v900
          %1196 = vmatprep.subr.mxu0 0.0
          %1197 = vmatpush1.msra.mxu0 %v901
          %1198 = vmatprep.subr.mxu0 0.0
          %1199 = vmatpush1.msra.mxu0 %v902
          %1200 = vmatprep.subr.mxu0 0.0
          %1201 = vmatpush1.msra.mxu0 %v903
          %1202 = vmatprep.subr.mxu0 0.0
          %1203 = vmatpush1.msra.mxu0 %v904
          %1204 = vmatprep.subr.mxu0 0.0
          %1205 = vmatpush1.msra.mxu0 %v905
          %1206 = vmatprep.subr.mxu0 0.0
          %1207 = vmatpush1.msra.mxu0 %v962
          %1208 = vmatprep.subr.mxu0 0.0
          %1209 = vmatpush1.msra.mxu0 0.0
          %1210 = vmatprep.subr.mxu0 0.0
          %1211 = vmatpush1.msra.mxu0 0.0
          %1212 = vmatprep.subr.mxu0 0.0
          %1213 = vmatpush1.msra.mxu0 0.0
          %1214 = vmatprep.subr.mxu0 0.0
          %1215 = vmatpush1.msra.mxu0 0.0
          %1216 = vmatprep.subr.mxu0 0.0
          %1217 = vmatpush1.msra.mxu0 0.0
          %1218 = vmatprep.subr.mxu0 0.0
          %1219 = vmatpush1.msra.mxu0 0.0
          %1220 = vmatprep.subr.mxu0 0.0
          %1221 = vmatpush1.msra.mxu0 0.0
          %1222 = vmatprep.subr.mxu0 0.0
          %1223 = vmatpush1.msra.mxu0 0.0
          %1224 = vmatprep.subr.mxu0 0.0
          %1225 = vmatpush1.msra.mxu0 0.0
          %1226 = vmatprep.subr.mxu0 0.0
          %1227 = vmatpush1.msra.mxu0 0.0
          %1228 = vmatprep.subr.mxu0 0.0
          %1229 = vmatpush1.msra.mxu0 0.0
          %1230 = vmatprep.subr.mxu0 0.0
          %1231 = vmatpush1.msra.mxu0 0.0
          %1232 = vmatprep.subr.mxu0 0.0
          %1233 = vmatpush1.msra.mxu0 0.0
          %1234 = vmatprep.subr.mxu0 0.0
          %1235 = vmatpush1.msra.mxu0 0.0
          %1236 = vmatprep.subr.mxu0 0.0
          %1237 = vmatpush1.msra.mxu0 0.0
          %1238 = vmatprep.mubr.f32.mxu0 %v958
          %1239 = vmatmul.mubr.f32.gmra.mrb[0].mxu0 %v947
          %v1240 = vpop.f32.mrb[0].mxu0
          %v1241 = vadd.f32 %v1171, %v1240
          %v1242 = vpop.f32.mrb[0].mxu0
          %1243 = vdwg.mxu0
          %vm1244 = vcmask 222208
          %1245 = vst.msk [vmem:[#allocation3] sm:$0x3] %vm1244, %v1241
        $region48: #{cnn_forward.5} parent=39 // pred_fallthru
          _
        // Predicated region
        $region49: #{cnn_forward.5} parent=39 // pred_check
          %p1246 = pneg %p145
        $region50: #{cnn_forward.5} parent=39 // pred_check_branch
          %1248 = sbr.rel (%p1246) target = $region52
        $region51: #{cnn_forward.5} parent=39 // pred_region
          %s1250 = ssub.s32 32, 32
          %1251 = vsyncadd [#allocation4], %s1250
          %s1253 = sshll.u32 [#allocation3], 4
          %s1254 = int_to_ptr.vmem [resolvable:$true] %s1253
          %1256 = dma.vmem_to_hbm [thread:$0]  %s1254, 32, %s5, [#allocation4]
        $region52: #{cnn_forward.5} parent=39 // pred_fallthru
          _
        // Predicated region
        $region53: #{cnn_forward.5} parent=39 // pred_check
          %p1257 = pneg %p145
        $region54: #{cnn_forward.5} parent=39 // pred_check_branch
          %1259 = sbr.rel (%p1257) target = $region56
        $region55: #{cnn_forward.5} parent=39 // pred_region
          %1260 = dma.done [#allocation4], 32
        $region56: #{cnn_forward.5} parent=39 // pred_fallthru
          _
      $region40: #{cnn_forward.5} parent=5 // pred_fallthru
        _
      %p1261 = scmp.le.s32.totalorder 2, %s12
      // Predicated region
      $region57: #{cnn_forward.5} parent=5 // pred_check
        %p1262 = pneg %p1261
      $region58: #{cnn_forward.5} parent=5 // pred_check_branch
        %1264 = sbr.rel (%p1262) target = $region60
      $region59: #{cnn_forward.5} parent=5 // pred_region
        %s1265 = ssub.s32 %s12, 2
      $region60: #{cnn_forward.5} parent=5 // pred_fallthru
        _
    $region6: #{cnn_forward.5} parent=1 // loop_footer
      %s16 = sadd.s32 1, %s12
    $region7: #{cnn_forward.5} parent=1 // loop_footer_branch
      %11 = sbr.rel target = $region3
    $region8: #{cnn_forward.5} parent=1 // loop_exit
      _
    %1266 = vsyncpa [#allocation4], 1
    %s1267 = scalar_lea.sflag [#allocation4], 1
    %1268 = vsyncpa %s1267, 1

// kernel: cnn_forward.3
$region0: #{cnn_forward.3}
  #allocation0 [shape = 'u32[]', space=smem, size = 0x4, offset = 0x4, fixed_abs, tag = 'smem constant byte address 0x4 - core index']
  #allocation1 [shape = 'u32[144,128]{1,0:T(1,128)}', space=vmem, size = 0x12000, scoped, tag = 'internal scratch']
  #allocation2 [shape = 'f32[20,20,4]{2,1,0:T(8,128)}', space=vmem, size = 0x3c000, scoped, tag = 'scratch operand']
  #allocation3 [shape = 'f32[8,16,8]{2,1,0:T(8,128)}', space=vmem, size = 0x10000, scoped, tag = 'scratch operand']
  %s0 = inlined_call_operand.vmem [shape: f32[2,16,16,4], index: 0, kind: input, shape index: {}]
  %s1 = inlined_call_operand.vmem [shape: f32[100,8], index: 1, kind: input, shape index: {}]
  %s2 = inlined_call_operand.hbm [shape: f32[1,8], index: 2, kind: input, shape index: {}]
  %s3 = inlined_call_operand.vmem [shape: f32[2,8,8,8], index: 3, kind: output, shape index: {}]
  %s4 = sld [smem:[#allocation0]]
  $region49: #{cnn_forward.3} parent=0
    _
  %s6 = ssub.s32 1, %s4
  %s7 = scalar_select 0, %s6, %s4
  $region1: #{cnn_forward.3} parent=0
    #allocation4 [shape = 'u8[512]{0}', space=vmem, size = 0x400, scoped, tag = 'input window, operand 2, single buffered']
    #allocation5 [shape = 's32[2]{0}', space=sflag, size = 0x8, scoped, tag = 'scoped memory for cnn_forward.3']
    %8 = vsyncpa [#allocation5], 0
    loop: start=0, step=1, limit=4
    $region2: #{cnn_forward.3} parent=1 // loop_pre_header
      _
    $region3: #{cnn_forward.3} parent=1 // loop_header
      %s10 = sphi 0, %s14
      %p11 = scmp.ge.s32.totalorder %s10, 4
      %s20 = sphi 0, %s22
      %s23 = sphi 0, %s20
      %s24 = sphi 0, %s23
      %s40 = sphi 0, %s24
      %s44 = sphi 0, %s44
      %s46 = sphi 0, %s44
      %s47 = sphi 0, %s46
      %s61 = sphi 0, %s47
      %s65 = sphi 0, %s65
      %s67 = sphi 0, %s65
      %s68 = sphi 0, %s67
      %s82 = sphi 0, %s68
      %s88 = sphi 0, %s90
      %s91 = sphi 0, %s88
      %s92 = sphi 0, %s91
      %s108 = sphi 0, %s92
    $region4: #{cnn_forward.3} parent=1 // loop_header_branch
      %13 = sbr.rel (%p11) target = $region8
    $region5: #{cnn_forward.3} parent=1 // loop_body
      %s15 = ssub.s32 %s10, 1
      %s16 = ssub.s32 %s10, 2
      %s17 = sadd.s32 %s10, 1
      %s18 = ssub.s32 %s10, %s17
      %p19 = scmp.eq.s32.totalorder %s18, 0
      %s21 = sadd.s32 %s20, 1
      %s22 = scalar_select %p19, %s20, %s21
      %p25 = pneg %p19
      %p26 = scmp.eq.s32.totalorder %s10, 1
      %p27 = por %p25, %p26
      %p28 = scmp.ne.s32.totalorder %s20, %s23
      %p29 = scmp.eq.s32.totalorder %s10, 0
      %p30 = por %p28, %p29
      %p31 = scmp.ne.s32.totalorder %s20, %s23
      %p32 = scmp.eq.s32.totalorder %s15, 1
      %p33 = por %p31, %p32
      %p34 = scmp.ne.s32.totalorder %s23, %s24
      %p35 = scmp.eq.s32.totalorder %s15, 0
      %p36 = por %p34, %p35
      %p37 = scmp.ne.s32.totalorder %s23, %s24
      %p38 = scmp.eq.s32.totalorder %s16, 1
      %p39 = por %p37, %p38
      %p41 = scmp.ne.s32.totalorder %s24, %s40
      %p42 = scmp.eq.s32.totalorder %s16, 0
      %p43 = por %p41, %p42
      %s45 = sadd.s32 %s44, 1
      %p48 = scmp.eq.s32.totalorder %s10, 1
      %p49 = scmp.ne.s32.totalorder %s44, %s46
      %p50 = scmp.eq.s32.totalorder %s10, 0
      %p51 = por %p49, %p50
      %p52 = scmp.ne.s32.totalorder %s44, %s46
      %p53 = scmp.eq.s32.totalorder %s15, 1
      %p54 = por %p52, %p53
      %p55 = scmp.ne.s32.totalorder %s46, %s47
      %p56 = scmp.eq.s32.totalorder %s15, 0
      %p57 = por %p55, %p56
      %p58 = scmp.ne.s32.totalorder %s46, %s47
      %p59 = scmp.eq.s32.totalorder %s16, 1
      %p60 = por %p58, %p59
      %p62 = scmp.ne.s32.totalorder %s47, %s61
      %p63 = scmp.eq.s32.totalorder %s16, 0
      %p64 = por %p62, %p63
      %s66 = sadd.s32 %s65, 1
      %p69 = scmp.eq.s32.totalorder %s10, 1
      %p70 = scmp.ne.s32.totalorder %s65, %s67
      %p71 = scmp.eq.s32.totalorder %s10, 0
      %p72 = por %p70, %p71
      %p73 = scmp.ne.s32.totalorder %s65, %s67
      %p74 = scmp.eq.s32.totalorder %s15, 1
      %p75 = por %p73, %p74
      %p76 = scmp.ne.s32.totalorder %s67, %s68
      %p77 = scmp.eq.s32.totalorder %s15, 0
      %p78 = por %p76, %p77
      %p79 = scmp.ne.s32.totalorder %s67, %s68
      %p80 = scmp.eq.s32.totalorder %s16, 1
      %p81 = por %p79, %p80
      %p83 = scmp.ne.s32.totalorder %s68, %s82
      %p84 = scmp.eq.s32.totalorder %s16, 0
      %p85 = por %p83, %p84
      %s86 = ssub.s32 %s10, %s17
      %p87 = scmp.eq.s32.totalorder %s86, 0
      %s89 = sadd.s32 %s88, 1
      %s90 = scalar_select %p87, %s88, %s89
      %p93 = pneg %p87
      %p94 = scmp.eq.s32.totalorder %s10, 1
      %p95 = por %p93, %p94
      %p96 = scmp.ne.s32.totalorder %s88, %s91
      %p97 = scmp.eq.s32.totalorder %s10, 0
      %p98 = por %p96, %p97
      %p99 = scmp.ne.s32.totalorder %s88, %s91
      %p100 = scmp.eq.s32.totalorder %s15, 1
      %p101 = por %p99, %p100
      %p102 = scmp.ne.s32.totalorder %s91, %s92
      %p103 = scmp.eq.s32.totalorder %s15, 0
      %p104 = por %p102, %p103
      %p105 = scmp.ne.s32.totalorder %s91, %s92
      %p106 = scmp.eq.s32.totalorder %s16, 1
      %p107 = por %p105, %p106
      %p109 = scmp.ne.s32.totalorder %s92, %s108
      %p110 = scmp.eq.s32.totalorder %s16, 0
      %p111 = por %p109, %p110
      %p112 = scmp.le.s32.totalorder 1, %s10
      %p113 = scmp.lt.s32.totalorder %s10, 3
      %p114 = pnand %p112, %p113
      %p115 = pneg %p114
      // Predicated region
      $region9: #{cnn_forward.3} parent=5 // pred_check
        _
      $region10: #{cnn_forward.3} parent=5 // pred_check_branch
        %117 = sbr.rel (%p114) target = $region12
      $region11: #{cnn_forward.3} parent=5 // pred_region
        %s118 = ssub.s32 %s10, 1
        // Predicated region
        $region13: #{cnn_forward.3} parent=11 // pred_check
          %p119 = pneg %p57
        $region14: #{cnn_forward.3} parent=11 // pred_check_branch
          %121 = sbr.rel (%p119) target = $region16
        $region15: #{cnn_forward.3} parent=11 // pred_region
          _
        $region16: #{cnn_forward.3} parent=11 // pred_fallthru
          _
        // Predicated region
        $region17: #{cnn_forward.3} parent=11 // pred_check
          %p122 = pneg %p78
        $region18: #{cnn_forward.3} parent=11 // pred_check_branch
          %124 = sbr.rel (%p122) target = $region20
        $region19: #{cnn_forward.3} parent=11 // pred_region
          %s126 = ssub.s32 16, 16
          %127 = vsyncadd [#allocation5], %s126
          %s129 = sshll.u32 [#allocation4], 4
          %s130 = int_to_ptr.vmem [resolvable:$true] %s129
          %132 = dma.hbm_to_vmem [thread:$0]  %s2, 16, %s130, [#allocation5]
        $region20: #{cnn_forward.3} parent=11 // pred_fallthru
          _
      $region12: #{cnn_forward.3} parent=5 // pred_fallthru
        _
      %p133 = scmp.lt.s32.totalorder %s10, 2
      // Predicated region
      $region21: #{cnn_forward.3} parent=5 // pred_check
        %p134 = pneg %p133
      $region22: #{cnn_forward.3} parent=5 // pred_check_branch
        %136 = sbr.rel (%p134) target = $region24
      $region23: #{cnn_forward.3} parent=5 // pred_region
        // Predicated region
        $region25: #{cnn_forward.3} parent=23 // pred_check
          %p137 = pneg %p30
        $region26: #{cnn_forward.3} parent=23 // pred_check_branch
          %139 = sbr.rel (%p137) target = $region28
        $region27: #{cnn_forward.3} parent=23 // pred_region
          %p140 = scmp.lt.s32.totalorder %s10, 1
          %s141 = scalar_select %p140, %s10, 1
          %s142 = smul.addr %s141, 32
          %s143 = smul.addr %s142, 8
          %s144 = scalar_lea.vmem %s0, %s143
        $region28: #{cnn_forward.3} parent=23 // pred_fallthru
          _
      $region24: #{cnn_forward.3} parent=5 // pred_fallthru
        _
      %p145 = scmp.le.s32.totalorder 1, %s10
      %p146 = scmp.lt.s32.totalorder %s10, 3
      %p147 = pnand %p145, %p146
      %p148 = pneg %p147
      // Predicated region
      $region29: #{cnn_forward.3} parent=5 // pred_check
        _
      $region30: #{cnn_forward.3} parent=5 // pred_check_branch
        %150 = sbr.rel (%p147) target = $region32
      $region31: #{cnn_forward.3} parent=5 // pred_region
        %s151 = ssub.s32 %s10, 1
        // Predicated region
        $region33: #{cnn_forward.3} parent=31 // pred_check
          %p152 = pneg %p78
        $region34: #{cnn_forward.3} parent=31 // pred_check_branch
          %154 = sbr.rel (%p152) target = $region36
        $region35: #{cnn_forward.3} parent=31 // pred_region
          %155 = dma.done [#allocation5], 16
        $region36: #{cnn_forward.3} parent=31 // pred_fallthru
          _
        %p156 = scmp.lt.s32.totalorder %s15, 1
        %s157 = scalar_select %p156, %s15, 1
        %s158 = smul.addr %s157, 32
        %s159 = smul.addr %s158, 8
        %s160 = scalar_lea.vmem %s0, %s159
        %p161 = pneg %p36
        %p162 = pneg %p33
        %p163 = pneg %p57
        %p164 = pneg %p54
        %p165 = pneg %p78
        %p166 = pneg %p75
        %p167 = pneg %p104
        %p168 = pneg %p101
        %p169 = scmp.lt.s32.totalorder %s15, 1
        %s170 = scalar_select %p169, %s15, 1
        %s171 = smul.addr %s170, 8
        %s172 = smul.addr %s171, 8
        %s173 = scalar_lea.vmem %s3, %s172
        %p174 = scmp.lt.s32.totalorder %s15, 1
        %s175 = scalar_select %p174, %s15, 1
        %s176 = smul.addr %s175, 32
        %s177 = smul.addr %s176, 8
        %s178 = scalar_lea.vmem %s0, %s177
        %p179 = scmp.lt.s32.totalorder %s15, 1
        %s180 = scalar_select %p179, %s15, 1
        %s181 = smul.addr %s180, 8
        %s182 = smul.addr %s181, 8
        %s183 = scalar_lea.vmem %s3, %s182
        %vm184 = vcmask 31744
        %185 = vst.msk [vmem:[#allocation2] sm:$0xff] %vm184, 0.0
        %186 = vst.msk [vmem:[#allocation2 + $0x8] sm:$0xff] %vm184, 0.0
        %vm187 = vcmask 27648
        %188 = vst.msk [vmem:[#allocation2 + $0x10] sm:$0xf] %vm187, 0.0
        %189 = vst.msk [vmem:[#allocation2 + $0x18] sm:$0xff] %vm184, 0.0
        %190 = vst.msk [vmem:[#allocation2 + $0x20] sm:$0xff] %vm184, 0.0
        %191 = vst.msk [vmem:[#allocation2 + $0x28] sm:$0xf] %vm187, 0.0
        %192 = vst.msk [vmem:[#allocation2 + $0x30] sm:$0xff] %vm184, 0.0
        %193 = vst.msk [vmem:[#allocation2 + $0x38] sm:$0xff] %vm184, 0.0
        %194 = vst.msk [vmem:[#allocation2 + $0x40] sm:$0xf] %vm187, 0.0
        %195 = vst.msk [vmem:[#allocation2 + $0x48] sm:$0xff] %vm184, 0.0
        %196 = vst.msk [vmem:[#allocation2 + $0x50] sm:$0xff] %vm184, 0.0
        %197 = vst.msk [vmem:[#allocation2 + $0x58] sm:$0xf] %vm187, 0.0
        %198 = vst.msk [vmem:[#allocation2 + $0x60] sm:$0xff] %vm184, 0.0
        %199 = vst.msk [vmem:[#allocation2 + $0x68] sm:$0xff] %vm184, 0.0
        %200 = vst.msk [vmem:[#allocation2 + $0x70] sm:$0xf] %vm187, 0.0
        %201 = vst.msk [vmem:[#allocation2 + $0x78] sm:$0xff] %vm184, 0.0
        %202 = vst.msk [vmem:[#allocation2 + $0x80] sm:$0xff] %vm184, 0.0
        %203 = vst.msk [vmem:[#allocation2 + $0x88] sm:$0xf] %vm187, 0.0
        %204 = vst.msk [vmem:[#allocation2 + $0x90] sm:$0xff] %vm184, 0.0
        %205 = vst.msk [vmem:[#allocation2 + $0x98] sm:$0xff] %vm184, 0.0
        %206 = vst.msk [vmem:[#allocation2 + $0xa0] sm:$0xf] %vm187, 0.0
        %207 = vst.msk [vmem:[#allocation2 + $0xa8] sm:$0xff] %vm184, 0.0
        %208 = vst.msk [vmem:[#allocation2 + $0xb0] sm:$0xff] %vm184, 0.0
        %209 = vst.msk [vmem:[#allocation2 + $0xb8] sm:$0xf] %vm187, 0.0
        %210 = vst.msk [vmem:[#allocation2 + $0xc0] sm:$0xff] %vm184, 0.0
        %211 = vst.msk [vmem:[#allocation2 + $0xc8] sm:$0xff] %vm184, 0.0
        %212 = vst.msk [vmem:[#allocation2 + $0xd0] sm:$0xf] %vm187, 0.0
        %213 = vst.msk [vmem:[#allocation2 + $0xd8] sm:$0xff] %vm184, 0.0
        %214 = vst.msk [vmem:[#allocation2 + $0xe0] sm:$0xff] %vm184, 0.0
        %215 = vst.msk [vmem:[#allocation2 + $0xe8] sm:$0xf] %vm187, 0.0
        %216 = vst.msk [vmem:[#allocation2 + $0xf0] sm:$0xff] %vm184, 0.0
        %217 = vst.msk [vmem:[#allocation2 + $0xf8] sm:$0xff] %vm184, 0.0
        %218 = vst.msk [vmem:[#allocation2 + $0x100] sm:$0xf] %vm187, 0.0
        %219 = vst.msk [vmem:[#allocation2 + $0x108] sm:$0xff] %vm184, 0.0
        %220 = vst.msk [vmem:[#allocation2 + $0x110] sm:$0xff] %vm184, 0.0
        %221 = vst.msk [vmem:[#allocation2 + $0x118] sm:$0xf] %vm187, 0.0
        %222 = vst.msk [vmem:[#allocation2 + $0x120] sm:$0xff] %vm184, 0.0
        %223 = vst.msk [vmem:[#allocation2 + $0x128] sm:$0xff] %vm184, 0.0
        %224 = vst.msk [vmem:[#allocation2 + $0x130] sm:$0xf] %vm187, 0.0
        %225 = vst.msk [vmem:[#allocation2 + $0x138] sm:$0xff] %vm184, 0.0
        %226 = vst.msk [vmem:[#allocation2 + $0x140] sm:$0xff] %vm184, 0.0
        %227 = vst.msk [vmem:[#allocation2 + $0x148] sm:$0xf] %vm187, 0.0
        %228 = vst.msk [vmem:[#allocation2 + $0x150] sm:$0xff] %vm184, 0.0
        %229 = vst.msk [vmem:[#allocation2 + $0x158] sm:$0xff] %vm184, 0.0
        %230 = vst.msk [vmem:[#allocation2 + $0x160] sm:$0xf] %vm187, 0.0
        %231 = vst.msk [vmem:[#allocation2 + $0x168] sm:$0xff] %vm184, 0.0
        %232 = vst.msk [vmem:[#allocation2 + $0x170] sm:$0xff] %vm184, 0.0
        %233 = vst.msk [vmem:[#allocation2 + $0x178] sm:$0xf] %vm187, 0.0
        %234 = vst.msk [vmem:[#allocation2 + $0x180] sm:$0xff] %vm184, 0.0
        %235 = vst.msk [vmem:[#allocation2 + $0x188] sm:$0xff] %vm184, 0.0
        %236 = vst.msk [vmem:[#allocation2 + $0x190] sm:$0xf] %vm187, 0.0
        %237 = vst.msk [vmem:[#allocation2 + $0x198] sm:$0xff] %vm184, 0.0
        %238 = vst.msk [vmem:[#allocation2 + $0x1a0] sm:$0xff] %vm184, 0.0
        %239 = vst.msk [vmem:[#allocation2 + $0x1a8] sm:$0xf] %vm187, 0.0
        %240 = vst.msk [vmem:[#allocation2 + $0x1b0] sm:$0xff] %vm184, 0.0
        %241 = vst.msk [vmem:[#allocation2 + $0x1b8] sm:$0xff] %vm184, 0.0
        %242 = vst.msk [vmem:[#allocation2 + $0x1c0] sm:$0xf] %vm187, 0.0
        %243 = vst.msk [vmem:[#allocation2 + $0x1c8] sm:$0xff] %vm184, 0.0
        %244 = vst.msk [vmem:[#allocation2 + $0x1d0] sm:$0xff] %vm184, 0.0
        %245 = vst.msk [vmem:[#allocation2 + $0x1d8] sm:$0xf] %vm187, 0.0
        %v246 = vld [vmem:[%s178] sm:$0xff]
        %v247 = vld [vmem:[%s178 + $0x8] sm:$0xff]
        %v248 = vld [vmem:[%s178 + $0x10] sm:$0xff]
        %v249 = vld [vmem:[%s178 + $0x18] sm:$0xff]
        %v250 = vld [vmem:[%s178 + $0x20] sm:$0xff]
        %v251 = vld [vmem:[%s178 + $0x28] sm:$0xff]
        %v252 = vld [vmem:[%s178 + $0x30] sm:$0xff]
        %v253 = vld [vmem:[%s178 + $0x38] sm:$0xff]
        %v254 = vld [vmem:[%s178 + $0x40] sm:$0xff]
        %v255 = vld [vmem:[%s178 + $0x48] sm:$0xff]
        %v256 = vld [vmem:[%s178 + $0x50] sm:$0xff]
        %v257 = vld [vmem:[%s178 + $0x58] sm:$0xff]
        %v258 = vld [vmem:[%s178 + $0x60] sm:$0xff]
        %v259 = vld [vmem:[%s178 + $0x68] sm:$0xff]
        %v260 = vld [vmem:[%s178 + $0x70] sm:$0xff]
        %v261 = vld [vmem:[%s178 + $0x78] sm:$0xff]
        %v262 = vld [vmem:[%s178 + $0x80] sm:$0xff]
        %v263 = vld [vmem:[%s178 + $0x88] sm:$0xff]
        %v264 = vld [vmem:[%s178 + $0x90] sm:$0xff]
        %v265 = vld [vmem:[%s178 + $0x98] sm:$0xff]
        %v266 = vld [vmem:[%s178 + $0xa0] sm:$0xff]
        %v267 = vld [vmem:[%s178 + $0xa8] sm:$0xff]
        %v268 = vld [vmem:[%s178 + $0xb0] sm:$0xff]
        %v269 = vld [vmem:[%s178 + $0xb8] sm:$0xff]
        %v270 = vld [vmem:[%s178 + $0xc0] sm:$0xff]
        %v271 = vld [vmem:[%s178 + $0xc8] sm:$0xff]
        %v272 = vld [vmem:[%s178 + $0xd0] sm:$0xff]
        %v273 = vld [vmem:[%s178 + $0xd8] sm:$0xff]
        %v274 = vld [vmem:[%s178 + $0xe0] sm:$0xff]
        %v275 = vld [vmem:[%s178 + $0xe8] sm:$0xff]
        %v276 = vld [vmem:[%s178 + $0xf0] sm:$0xff]
        %v277 = vld [vmem:[%s178 + $0xf8] sm:$0xff]
        %s278 = scalar_lea.vmem [#allocation2], 48
        %279 = vst.msk [vmem:[%s278 + $0x2] sm:$0xff] %vm184, %v246
        %280 = vst.msk [vmem:[%s278 + $0xa] sm:$0xff] %vm184, %v247
        %281 = vst.msk [vmem:[%s278 + $0x1a] sm:$0xff] %vm184, %v248
        %282 = vst.msk [vmem:[%s278 + $0x22] sm:$0xff] %vm184, %v249
        %283 = vst.msk [vmem:[%s278 + $0x32] sm:$0xff] %vm184, %v250
        %284 = vst.msk [vmem:[%s278 + $0x3a] sm:$0xff] %vm184, %v251
        %285 = vst.msk [vmem:[%s278 + $0x4a] sm:$0xff] %vm184, %v252
        %286 = vst.msk [vmem:[%s278 + $0x52] sm:$0xff] %vm184, %v253
        %287 = vst.msk [vmem:[%s278 + $0x62] sm:$0xff] %vm184, %v254
        %288 = vst.msk [vmem:[%s278 + $0x6a] sm:$0xff] %vm184, %v255
        %289 = vst.msk [vmem:[%s278 + $0x7a] sm:$0xff] %vm184, %v256
        %290 = vst.msk [vmem:[%s278 + $0x82] sm:$0xff] %vm184, %v257
        %291 = vst.msk [vmem:[%s278 + $0x92] sm:$0xff] %vm184, %v258
        %292 = vst.msk [vmem:[%s278 + $0x9a] sm:$0xff] %vm184, %v259
        %293 = vst.msk [vmem:[%s278 + $0xaa] sm:$0xff] %vm184, %v260
        %294 = vst.msk [vmem:[%s278 + $0xb2] sm:$0xff] %vm184, %v261
        %295 = vst.msk [vmem:[%s278 + $0xc2] sm:$0xff] %vm184, %v262
        %296 = vst.msk [vmem:[%s278 + $0xca] sm:$0xff] %vm184, %v263
        %297 = vst.msk [vmem:[%s278 + $0xda] sm:$0xff] %vm184, %v264
        %298 = vst.msk [vmem:[%s278 + $0xe2] sm:$0xff] %vm184, %v265
        %299 = vst.msk [vmem:[%s278 + $0xf2] sm:$0xff] %vm184, %v266
        %300 = vst.msk [vmem:[%s278 + $0xfa] sm:$0xff] %vm184, %v267
        %301 = vst.msk [vmem:[%s278 + $0x10a] sm:$0xff] %vm184, %v268
        %302 = vst.msk [vmem:[%s278 + $0x112] sm:$0xff] %vm184, %v269
        %303 = vst.msk [vmem:[%s278 + $0x122] sm:$0xff] %vm184, %v270
        %304 = vst.msk [vmem:[%s278 + $0x12a] sm:$0xff] %vm184, %v271
        %305 = vst.msk [vmem:[%s278 + $0x13a] sm:$0xff] %vm184, %v272
        %306 = vst.msk [vmem:[%s278 + $0x142] sm:$0xff] %vm184, %v273
        %307 = vst.msk [vmem:[%s278 + $0x152] sm:$0xff] %vm184, %v274
        %308 = vst.msk [vmem:[%s278 + $0x15a] sm:$0xff] %vm184, %v275
        %309 = vst.msk [vmem:[%s278 + $0x16a] sm:$0xff] %vm184, %v276
        %310 = vst.msk [vmem:[%s278 + $0x172] sm:$0xff] %vm184, %v277
        %v311 = vld [vmem:[#allocation2] sm:$0xff]
        %v312 = vld [vmem:[#allocation2 + $0x8] sm:$0xff]
        %v313 = vld [vmem:[#allocation2 + $0x18] sm:$0xff]
        %v314 = vld [vmem:[#allocation2 + $0x20] sm:$0xff]
        %v315 = vld [vmem:[#allocation2 + $0x30] sm:$0xff]
        %v316 = vld [vmem:[#allocation2 + $0x38] sm:$0xff]
        %v317 = vld [vmem:[#allocation2 + $0x48] sm:$0xff]
        %v318 = vld [vmem:[#allocation2 + $0x50] sm:$0xff]
        %v319 = vld [vmem:[#allocation2 + $0x60] sm:$0xff]
        %v320 = vld [vmem:[#allocation2 + $0x68] sm:$0xff]
        %v321 = vld [vmem:[#allocation2 + $0x78] sm:$0xff]
        %v322 = vld [vmem:[#allocation2 + $0x80] sm:$0xff]
        %v323 = vld [vmem:[#allocation2 + $0x90] sm:$0xff]
        %v324 = vld [vmem:[#allocation2 + $0x98] sm:$0xff]
        %v325 = vld [vmem:[#allocation2 + $0xa8] sm:$0xff]
        %v326 = vld [vmem:[#allocation2 + $0xb0] sm:$0xff]
        %v327 = vld [vmem:[#allocation2 + $0xc0] sm:$0xff]
        %v328 = vld [vmem:[#allocation2 + $0xc8] sm:$0xff]
        %v329 = vld [vmem:[#allocation2 + $0xd8] sm:$0xff]
        %v330 = vld [vmem:[#allocation2 + $0xe0] sm:$0xff]
        %v331 = vld [vmem:[#allocation2 + $0xf0] sm:$0xff]
        %v332 = vld [vmem:[#allocation2 + $0xf8] sm:$0xff]
        %v333 = vld [vmem:[#allocation2 + $0x108] sm:$0xff]
        %v334 = vld [vmem:[#allocation2 + $0x110] sm:$0xff]
        %v335 = vld [vmem:[#allocation2 + $0x120] sm:$0xff]
        %v336 = vld [vmem:[#allocation2 + $0x128] sm:$0xff]
        %v337 = vld [vmem:[#allocation2 + $0x138] sm:$0xff]
        %v338 = vld [vmem:[#allocation2 + $0x140] sm:$0xff]
        %v339 = vld [vmem:[#allocation2 + $0x150] sm:$0xff]
        %v340 = vld [vmem:[#allocation2 + $0x158] sm:$0xff]
        %v341 = vld [vmem:[#allocation2 + $0x168] sm:$0xff]
        %v342 = vld [vmem:[#allocation2 + $0x170] sm:$0xff]
        %v343 = vld [vmem:[#allocation2 + $0x1] sm:$0xff]
        %v344 = vld [vmem:[#allocation2 + $0x9] sm:$0xff]
        %v345 = vld [vmem:[#allocation2 + $0x19] sm:$0xff]
        %v346 = vld [vmem:[#allocation2 + $0x21] sm:$0xff]
        %v347 = vld [vmem:[#allocation2 + $0x31] sm:$0xff]
        %v348 = vld [vmem:[#allocation2 + $0x39] sm:$0xff]
        %v349 = vld [vmem:[#allocation2 + $0x49] sm:$0xff]
        %v350 = vld [vmem:[#allocation2 + $0x51] sm:$0xff]
        %v351 = vld [vmem:[#allocation2 + $0x61] sm:$0xff]
        %v352 = vld [vmem:[#allocation2 + $0x69] sm:$0xff]
        %v353 = vld [vmem:[#allocation2 + $0x79] sm:$0xff]
        %v354 = vld [vmem:[#allocation2 + $0x81] sm:$0xff]
        %v355 = vld [vmem:[#allocation2 + $0x91] sm:$0xff]
        %v356 = vld [vmem:[#allocation2 + $0x99] sm:$0xff]
        %v357 = vld [vmem:[#allocation2 + $0xa9] sm:$0xff]
        %v358 = vld [vmem:[#allocation2 + $0xb1] sm:$0xff]
        %v359 = vld [vmem:[#allocation2 + $0xc1] sm:$0xff]
        %v360 = vld [vmem:[#allocation2 + $0xc9] sm:$0xff]
        %v361 = vld [vmem:[#allocation2 + $0xd9] sm:$0xff]
        %v362 = vld [vmem:[#allocation2 + $0xe1] sm:$0xff]
        %v363 = vld [vmem:[#allocation2 + $0xf1] sm:$0xff]
        %v364 = vld [vmem:[#allocation2 + $0xf9] sm:$0xff]
        %v365 = vld [vmem:[#allocation2 + $0x109] sm:$0xff]
        %v366 = vld [vmem:[#allocation2 + $0x111] sm:$0xff]
        %v367 = vld [vmem:[#allocation2 + $0x121] sm:$0xff]
        %v368 = vld [vmem:[#allocation2 + $0x129] sm:$0xff]
        %v369 = vld [vmem:[#allocation2 + $0x139] sm:$0xff]
        %v370 = vld [vmem:[#allocation2 + $0x141] sm:$0xff]
        %v371 = vld [vmem:[#allocation2 + $0x151] sm:$0xff]
        %v372 = vld [vmem:[#allocation2 + $0x159] sm:$0xff]
        %v373 = vld [vmem:[#allocation2 + $0x169] sm:$0xff]
        %v374 = vld [vmem:[#allocation2 + $0x171] sm:$0xff]
        %v375 = vld [vmem:[#allocation2 + $0x2] sm:$0xff]
        %v376 = vld [vmem:[#allocation2 + $0xa] sm:$0xff]
        %v377 = vld [vmem:[#allocation2 + $0x1a] sm:$0xff]
        %v378 = vld [vmem:[#allocation2 + $0x22] sm:$0xff]
        %v379 = vld [vmem:[#allocation2 + $0x32] sm:$0xff]
        %v380 = vld [vmem:[#allocation2 + $0x3a] sm:$0xff]
        %v381 = vld [vmem:[#allocation2 + $0x4a] sm:$0xff]
        %v382 = vld [vmem:[#allocation2 + $0x52] sm:$0xff]
        %v383 = vld [vmem:[#allocation2 + $0x62] sm:$0xff]
        %v384 = vld [vmem:[#allocation2 + $0x6a] sm:$0xff]
        %v385 = vld [vmem:[#allocation2 + $0x7a] sm:$0xff]
        %v386 = vld [vmem:[#allocation2 + $0x82] sm:$0xff]
        %v387 = vld [vmem:[#allocation2 + $0x92] sm:$0xff]
        %v388 = vld [vmem:[#allocation2 + $0x9a] sm:$0xff]
        %v389 = vld [vmem:[#allocation2 + $0xaa] sm:$0xff]
        %v390 = vld [vmem:[#allocation2 + $0xb2] sm:$0xff]
        %v391 = vld [vmem:[#allocation2 + $0xc2] sm:$0xff]
        %v392 = vld [vmem:[#allocation2 + $0xca] sm:$0xff]
        %v393 = vld [vmem:[#allocation2 + $0xda] sm:$0xff]
        %v394 = vld [vmem:[#allocation2 + $0xe2] sm:$0xff]
        %v395 = vld [vmem:[#allocation2 + $0xf2] sm:$0xff]
        %v396 = vld [vmem:[#allocation2 + $0xfa] sm:$0xff]
        %v397 = vld [vmem:[#allocation2 + $0x10a] sm:$0xff]
        %v398 = vld [vmem:[#allocation2 + $0x112] sm:$0xff]
        %v399 = vld [vmem:[#allocation2 + $0x122] sm:$0xff]
        %v400 = vld [vmem:[#allocation2 + $0x12a] sm:$0xff]
        %v401 = vld [vmem:[#allocation2 + $0x13a] sm:$0xff]
        %v402 = vld [vmem:[#allocation2 + $0x142] sm:$0xff]
        %v403 = vld [vmem:[#allocation2 + $0x152] sm:$0xff]
        %v404 = vld [vmem:[#allocation2 + $0x15a] sm:$0xff]
        %v405 = vld [vmem:[#allocation2 + $0x16a] sm:$0xff]
        %v406 = vld [vmem:[#allocation2 + $0x172] sm:$0xff]
        %v407 = vld [vmem:[#allocation2 + $0x3] sm:$0xff]
        %v408 = vld [vmem:[#allocation2 + $0xb] sm:$0xff]
        %v409 = vld [vmem:[#allocation2 + $0x1b] sm:$0xff]
        %v410 = vld [vmem:[#allocation2 + $0x23] sm:$0xff]
        %v411 = vld [vmem:[#allocation2 + $0x33] sm:$0xff]
        %v412 = vld [vmem:[#allocation2 + $0x3b] sm:$0xff]
        %v413 = vld [vmem:[#allocation2 + $0x4b] sm:$0xff]
        %v414 = vld [vmem:[#allocation2 + $0x53] sm:$0xff]
        %v415 = vld [vmem:[#allocation2 + $0x63] sm:$0xff]
        %v416 = vld [vmem:[#allocation2 + $0x6b] sm:$0xff]
        %v417 = vld [vmem:[#allocation2 + $0x7b] sm:$0xff]
        %v418 = vld [vmem:[#allocation2 + $0x83] sm:$0xff]
        %v419 = vld [vmem:[#allocation2 + $0x93] sm:$0xff]
        %v420 = vld [vmem:[#allocation2 + $0x9b] sm:$0xff]
        %v421 = vld [vmem:[#allocation2 + $0xab] sm:$0xff]
        %v422 = vld [vmem:[#allocation2 + $0xb3] sm:$0xff]
        %v423 = vld [vmem:[#allocation2 + $0xc3] sm:$0xff]
        %v424 = vld [vmem:[#allocation2 + $0xcb] sm:$0xff]
        %v425 = vld [vmem:[#allocation2 + $0xdb] sm:$0xff]
        %v426 = vld [vmem:[#allocation2 + $0xe3] sm:$0xff]
        %v427 = vld [vmem:[#allocation2 + $0xf3] sm:$0xff]
        %v428 = vld [vmem:[#allocation2 + $0xfb] sm:$0xff]
        %v429 = vld [vmem:[#allocation2 + $0x10b] sm:$0xff]
        %v430 = vld [vmem:[#allocation2 + $0x113] sm:$0xff]
        %v431 = vld [vmem:[#allocation2 + $0x123] sm:$0xff]
        %v432 = vld [vmem:[#allocation2 + $0x12b] sm:$0xff]
        %v433 = vld [vmem:[#allocation2 + $0x13b] sm:$0xff]
        %v434 = vld [vmem:[#allocation2 + $0x143] sm:$0xff]
        %v435 = vld [vmem:[#allocation2 + $0x153] sm:$0xff]
        %v436 = vld [vmem:[#allocation2 + $0x15b] sm:$0xff]
        %v437 = vld [vmem:[#allocation2 + $0x16b] sm:$0xff]
        %v438 = vld [vmem:[#allocation2 + $0x173] sm:$0xff]
        %v439 = vld [vmem:[#allocation2 + $0x4] sm:$0xff]
        %v440 = vld [vmem:[#allocation2 + $0xc] sm:$0xff]
        %v441 = vld [vmem:[#allocation2 + $0x1c] sm:$0xff]
        %v442 = vld [vmem:[#allocation2 + $0x24] sm:$0xff]
        %v443 = vld [vmem:[#allocation2 + $0x34] sm:$0xff]
        %v444 = vld [vmem:[#allocation2 + $0x3c] sm:$0xff]
        %v445 = vld [vmem:[#allocation2 + $0x4c] sm:$0xff]
        %v446 = vld [vmem:[#allocation2 + $0x54] sm:$0xff]
        %v447 = vld [vmem:[#allocation2 + $0x64] sm:$0xff]
        %v448 = vld [vmem:[#allocation2 + $0x6c] sm:$0xff]
        %v449 = vld [vmem:[#allocation2 + $0x7c] sm:$0xff]
        %v450 = vld [vmem:[#allocation2 + $0x84] sm:$0xff]
        %v451 = vld [vmem:[#allocation2 + $0x94] sm:$0xff]
        %v452 = vld [vmem:[#allocation2 + $0x9c] sm:$0xff]
        %v453 = vld [vmem:[#allocation2 + $0xac] sm:$0xff]
        %v454 = vld [vmem:[#allocation2 + $0xb4] sm:$0xff]
        %v455 = vld [vmem:[#allocation2 + $0xc4] sm:$0xff]
        %v456 = vld [vmem:[#allocation2 + $0xcc] sm:$0xff]
        %v457 = vld [vmem:[#allocation2 + $0xdc] sm:$0xff]
        %v458 = vld [vmem:[#allocation2 + $0xe4] sm:$0xff]
        %v459 = vld [vmem:[#allocation2 + $0xf4] sm:$0xff]
        %v460 = vld [vmem:[#allocation2 + $0xfc] sm:$0xff]
        %v461 = vld [vmem:[#allocation2 + $0x10c] sm:$0xff]
        %v462 = vld [vmem:[#allocation2 + $0x114] sm:$0xff]
        %v463 = vld [vmem:[#allocation2 + $0x124] sm:$0xff]
        %v464 = vld [vmem:[#allocation2 + $0x12c] sm:$0xff]
        %v465 = vld [vmem:[#allocation2 + $0x13c] sm:$0xff]
        %v466 = vld [vmem:[#allocation2 + $0x144] sm:$0xff]
        %v467 = vld [vmem:[#allocation2 + $0x154] sm:$0xff]
        %v468 = vld [vmem:[#allocation2 + $0x15c] sm:$0xff]
        %v469 = vld [vmem:[#allocation2 + $0x16c] sm:$0xff]
        %v470 = vld [vmem:[#allocation2 + $0x174] sm:$0xff]
        %s471 = scalar_lea.vmem [#allocation2], 24
        %v472 = vld [vmem:[%s471] sm:$0xff]
        %v473 = vld [vmem:[%s471 + $0x8] sm:$0xff]
        %v474 = vld [vmem:[%s471 + $0x18] sm:$0xff]
        %v475 = vld [vmem:[%s471 + $0x20] sm:$0xff]
        %v476 = vld [vmem:[%s471 + $0x30] sm:$0xff]
        %v477 = vld [vmem:[%s471 + $0x38] sm:$0xff]
        %v478 = vld [vmem:[%s471 + $0x48] sm:$0xff]
        %v479 = vld [vmem:[%s471 + $0x50] sm:$0xff]
        %v480 = vld [vmem:[%s471 + $0x60] sm:$0xff]
        %v481 = vld [vmem:[%s471 + $0x68] sm:$0xff]
        %v482 = vld [vmem:[%s471 + $0x78] sm:$0xff]
        %v483 = vld [vmem:[%s471 + $0x80] sm:$0xff]
        %v484 = vld [vmem:[%s471 + $0x90] sm:$0xff]
        %v485 = vld [vmem:[%s471 + $0x98] sm:$0xff]
        %v486 = vld [vmem:[%s471 + $0xa8] sm:$0xff]
        %v487 = vld [vmem:[%s471 + $0xb0] sm:$0xff]
        %v488 = vld [vmem:[%s471 + $0xc0] sm:$0xff]
        %v489 = vld [vmem:[%s471 + $0xc8] sm:$0xff]
        %v490 = vld [vmem:[%s471 + $0xd8] sm:$0xff]
        %v491 = vld [vmem:[%s471 + $0xe0] sm:$0xff]
        %v492 = vld [vmem:[%s471 + $0xf0] sm:$0xff]
        %v493 = vld [vmem:[%s471 + $0xf8] sm:$0xff]
        %v494 = vld [vmem:[%s471 + $0x108] sm:$0xff]
        %v495 = vld [vmem:[%s471 + $0x110] sm:$0xff]
        %v496 = vld [vmem:[%s471 + $0x120] sm:$0xff]
        %v497 = vld [vmem:[%s471 + $0x128] sm:$0xff]
        %v498 = vld [vmem:[%s471 + $0x138] sm:$0xff]
        %v499 = vld [vmem:[%s471 + $0x140] sm:$0xff]
        %v500 = vld [vmem:[%s471 + $0x150] sm:$0xff]
        %v501 = vld [vmem:[%s471 + $0x158] sm:$0xff]
        %v502 = vld [vmem:[%s471 + $0x168] sm:$0xff]
        %v503 = vld [vmem:[%s471 + $0x170] sm:$0xff]
        %v504 = vld [vmem:[%s471 + $0x1] sm:$0xff]
        %v505 = vld [vmem:[%s471 + $0x9] sm:$0xff]
        %v506 = vld [vmem:[%s471 + $0x19] sm:$0xff]
        %v507 = vld [vmem:[%s471 + $0x21] sm:$0xff]
        %v508 = vld [vmem:[%s471 + $0x31] sm:$0xff]
        %v509 = vld [vmem:[%s471 + $0x39] sm:$0xff]
        %v510 = vld [vmem:[%s471 + $0x49] sm:$0xff]
        %v511 = vld [vmem:[%s471 + $0x51] sm:$0xff]
        %v512 = vld [vmem:[%s471 + $0x61] sm:$0xff]
        %v513 = vld [vmem:[%s471 + $0x69] sm:$0xff]
        %v514 = vld [vmem:[%s471 + $0x79] sm:$0xff]
        %v515 = vld [vmem:[%s471 + $0x81] sm:$0xff]
        %v516 = vld [vmem:[%s471 + $0x91] sm:$0xff]
        %v517 = vld [vmem:[%s471 + $0x99] sm:$0xff]
        %v518 = vld [vmem:[%s471 + $0xa9] sm:$0xff]
        %v519 = vld [vmem:[%s471 + $0xb1] sm:$0xff]
        %v520 = vld [vmem:[%s471 + $0xc1] sm:$0xff]
        %v521 = vld [vmem:[%s471 + $0xc9] sm:$0xff]
        %v522 = vld [vmem:[%s471 + $0xd9] sm:$0xff]
        %v523 = vld [vmem:[%s471 + $0xe1] sm:$0xff]
        %v524 = vld [vmem:[%s471 + $0xf1] sm:$0xff]
        %v525 = vld [vmem:[%s471 + $0xf9] sm:$0xff]
        %v526 = vld [vmem:[%s471 + $0x109] sm:$0xff]
        %v527 = vld [vmem:[%s471 + $0x111] sm:$0xff]
        %v528 = vld [vmem:[%s471 + $0x121] sm:$0xff]
        %v529 = vld [vmem:[%s471 + $0x129] sm:$0xff]
        %v530 = vld [vmem:[%s471 + $0x139] sm:$0xff]
        %v531 = vld [vmem:[%s471 + $0x141] sm:$0xff]
        %v532 = vld [vmem:[%s471 + $0x151] sm:$0xff]
        %v533 = vld [vmem:[%s471 + $0x159] sm:$0xff]
        %v534 = vld [vmem:[%s471 + $0x169] sm:$0xff]
        %v535 = vld [vmem:[%s471 + $0x171] sm:$0xff]
        %v536 = vld [vmem:[%s471 + $0x2] sm:$0xff]
        %v537 = vld [vmem:[%s471 + $0xa] sm:$0xff]
        %v538 = vld [vmem:[%s471 + $0x1a] sm:$0xff]
        %v539 = vld [vmem:[%s471 + $0x22] sm:$0xff]
        %v540 = vld [vmem:[%s471 + $0x32] sm:$0xff]
        %v541 = vld [vmem:[%s471 + $0x3a] sm:$0xff]
        %v542 = vld [vmem:[%s471 + $0x4a] sm:$0xff]
        %v543 = vld [vmem:[%s471 + $0x52] sm:$0xff]
        %v544 = vld [vmem:[%s471 + $0x62] sm:$0xff]
        %v545 = vld [vmem:[%s471 + $0x6a] sm:$0xff]
        %v546 = vld [vmem:[%s471 + $0x7a] sm:$0xff]
        %v547 = vld [vmem:[%s471 + $0x82] sm:$0xff]
        %v548 = vld [vmem:[%s471 + $0x92] sm:$0xff]
        %v549 = vld [vmem:[%s471 + $0x9a] sm:$0xff]
        %v550 = vld [vmem:[%s471 + $0xaa] sm:$0xff]
        %v551 = vld [vmem:[%s471 + $0xb2] sm:$0xff]
        %v552 = vld [vmem:[%s471 + $0xc2] sm:$0xff]
        %v553 = vld [vmem:[%s471 + $0xca] sm:$0xff]
        %v554 = vld [vmem:[%s471 + $0xda] sm:$0xff]
        %v555 = vld [vmem:[%s471 + $0xe2] sm:$0xff]
        %v556 = vld [vmem:[%s471 + $0xf2] sm:$0xff]
        %v557 = vld [vmem:[%s471 + $0xfa] sm:$0xff]
        %v558 = vld [vmem:[%s471 + $0x10a] sm:$0xff]
        %v559 = vld [vmem:[%s471 + $0x112] sm:$0xff]
        %v560 = vld [vmem:[%s471 + $0x122] sm:$0xff]
        %v561 = vld [vmem:[%s471 + $0x12a] sm:$0xff]
        %v562 = vld [vmem:[%s471 + $0x13a] sm:$0xff]
        %v563 = vld [vmem:[%s471 + $0x142] sm:$0xff]
        %v564 = vld [vmem:[%s471 + $0x152] sm:$0xff]
        %v565 = vld [vmem:[%s471 + $0x15a] sm:$0xff]
        %v566 = vld [vmem:[%s471 + $0x16a] sm:$0xff]
        %v567 = vld [vmem:[%s471 + $0x172] sm:$0xff]
        %v568 = vld [vmem:[%s471 + $0x3] sm:$0xff]
        %v569 = vld [vmem:[%s471 + $0xb] sm:$0xff]
        %v570 = vld [vmem:[%s471 + $0x1b] sm:$0xff]
        %v571 = vld [vmem:[%s471 + $0x23] sm:$0xff]
        %v572 = vld [vmem:[%s471 + $0x33] sm:$0xff]
        %v573 = vld [vmem:[%s471 + $0x3b] sm:$0xff]
        %v574 = vld [vmem:[%s471 + $0x4b] sm:$0xff]
        %v575 = vld [vmem:[%s471 + $0x53] sm:$0xff]
        %v576 = vld [vmem:[%s471 + $0x63] sm:$0xff]
        %v577 = vld [vmem:[%s471 + $0x6b] sm:$0xff]
        %v578 = vld [vmem:[%s471 + $0x7b] sm:$0xff]
        %v579 = vld [vmem:[%s471 + $0x83] sm:$0xff]
        %v580 = vld [vmem:[%s471 + $0x93] sm:$0xff]
        %v581 = vld [vmem:[%s471 + $0x9b] sm:$0xff]
        %v582 = vld [vmem:[%s471 + $0xab] sm:$0xff]
        %v583 = vld [vmem:[%s471 + $0xb3] sm:$0xff]
        %v584 = vld [vmem:[%s471 + $0xc3] sm:$0xff]
        %v585 = vld [vmem:[%s471 + $0xcb] sm:$0xff]
        %v586 = vld [vmem:[%s471 + $0xdb] sm:$0xff]
        %v587 = vld [vmem:[%s471 + $0xe3] sm:$0xff]
        %v588 = vld [vmem:[%s471 + $0xf3] sm:$0xff]
        %v589 = vld [vmem:[%s471 + $0xfb] sm:$0xff]
        %v590 = vld [vmem:[%s471 + $0x10b] sm:$0xff]
        %v591 = vld [vmem:[%s471 + $0x113] sm:$0xff]
        %v592 = vld [vmem:[%s471 + $0x123] sm:$0xff]
        %v593 = vld [vmem:[%s471 + $0x12b] sm:$0xff]
        %v594 = vld [vmem:[%s471 + $0x13b] sm:$0xff]
        %v595 = vld [vmem:[%s471 + $0x143] sm:$0xff]
        %v596 = vld [vmem:[%s471 + $0x153] sm:$0xff]
        %v597 = vld [vmem:[%s471 + $0x15b] sm:$0xff]
        %v598 = vld [vmem:[%s471 + $0x16b] sm:$0xff]
        %v599 = vld [vmem:[%s471 + $0x173] sm:$0xff]
        %v600 = vld [vmem:[%s471 + $0x4] sm:$0xff]
        %v601 = vld [vmem:[%s471 + $0xc] sm:$0xff]
        %v602 = vld [vmem:[%s471 + $0x1c] sm:$0xff]
        %v603 = vld [vmem:[%s471 + $0x24] sm:$0xff]
        %v604 = vld [vmem:[%s471 + $0x34] sm:$0xff]
        %v605 = vld [vmem:[%s471 + $0x3c] sm:$0xff]
        %v606 = vld [vmem:[%s471 + $0x4c] sm:$0xff]
        %v607 = vld [vmem:[%s471 + $0x54] sm:$0xff]
        %v608 = vld [vmem:[%s471 + $0x64] sm:$0xff]
        %v609 = vld [vmem:[%s471 + $0x6c] sm:$0xff]
        %v610 = vld [vmem:[%s471 + $0x7c] sm:$0xff]
        %v611 = vld [vmem:[%s471 + $0x84] sm:$0xff]
        %v612 = vld [vmem:[%s471 + $0x94] sm:$0xff]
        %v613 = vld [vmem:[%s471 + $0x9c] sm:$0xff]
        %v614 = vld [vmem:[%s471 + $0xac] sm:$0xff]
        %v615 = vld [vmem:[%s471 + $0xb4] sm:$0xff]
        %v616 = vld [vmem:[%s471 + $0xc4] sm:$0xff]
        %v617 = vld [vmem:[%s471 + $0xcc] sm:$0xff]
        %v618 = vld [vmem:[%s471 + $0xdc] sm:$0xff]
        %v619 = vld [vmem:[%s471 + $0xe4] sm:$0xff]
        %v620 = vld [vmem:[%s471 + $0xf4] sm:$0xff]
        %v621 = vld [vmem:[%s471 + $0xfc] sm:$0xff]
        %v622 = vld [vmem:[%s471 + $0x10c] sm:$0xff]
        %v623 = vld [vmem:[%s471 + $0x114] sm:$0xff]
        %v624 = vld [vmem:[%s471 + $0x124] sm:$0xff]
        %v625 = vld [vmem:[%s471 + $0x12c] sm:$0xff]
        %v626 = vld [vmem:[%s471 + $0x13c] sm:$0xff]
        %v627 = vld [vmem:[%s471 + $0x144] sm:$0xff]
        %v628 = vld [vmem:[%s471 + $0x154] sm:$0xff]
        %v629 = vld [vmem:[%s471 + $0x15c] sm:$0xff]
        %v630 = vld [vmem:[%s471 + $0x16c] sm:$0xff]
        %v631 = vld [vmem:[%s471 + $0x174] sm:$0xff]
        %v632 = vld [vmem:[%s278] sm:$0xff]
        %v633 = vld [vmem:[%s278 + $0x8] sm:$0xff]
        %v634 = vld [vmem:[%s278 + $0x18] sm:$0xff]
        %v635 = vld [vmem:[%s278 + $0x20] sm:$0xff]
        %v636 = vld [vmem:[%s278 + $0x30] sm:$0xff]
        %v637 = vld [vmem:[%s278 + $0x38] sm:$0xff]
        %v638 = vld [vmem:[%s278 + $0x48] sm:$0xff]
        %v639 = vld [vmem:[%s278 + $0x50] sm:$0xff]
        %v640 = vld [vmem:[%s278 + $0x60] sm:$0xff]
        %v641 = vld [vmem:[%s278 + $0x68] sm:$0xff]
        %v642 = vld [vmem:[%s278 + $0x78] sm:$0xff]
        %v643 = vld [vmem:[%s278 + $0x80] sm:$0xff]
        %v644 = vld [vmem:[%s278 + $0x90] sm:$0xff]
        %v645 = vld [vmem:[%s278 + $0x98] sm:$0xff]
        %v646 = vld [vmem:[%s278 + $0xa8] sm:$0xff]
        %v647 = vld [vmem:[%s278 + $0xb0] sm:$0xff]
        %v648 = vld [vmem:[%s278 + $0xc0] sm:$0xff]
        %v649 = vld [vmem:[%s278 + $0xc8] sm:$0xff]
        %v650 = vld [vmem:[%s278 + $0xd8] sm:$0xff]
        %v651 = vld [vmem:[%s278 + $0xe0] sm:$0xff]
        %v652 = vld [vmem:[%s278 + $0xf0] sm:$0xff]
        %v653 = vld [vmem:[%s278 + $0xf8] sm:$0xff]
        %v654 = vld [vmem:[%s278 + $0x108] sm:$0xff]
        %v655 = vld [vmem:[%s278 + $0x110] sm:$0xff]
        %v656 = vld [vmem:[%s278 + $0x120] sm:$0xff]
        %v657 = vld [vmem:[%s278 + $0x128] sm:$0xff]
        %v658 = vld [vmem:[%s278 + $0x138] sm:$0xff]
        %v659 = vld [vmem:[%s278 + $0x140] sm:$0xff]
        %v660 = vld [vmem:[%s278 + $0x150] sm:$0xff]
        %v661 = vld [vmem:[%s278 + $0x158] sm:$0xff]
        %v662 = vld [vmem:[%s278 + $0x168] sm:$0xff]
        %v663 = vld [vmem:[%s278 + $0x170] sm:$0xff]
        %v664 = vld [vmem:[%s278 + $0x1] sm:$0xff]
        %v665 = vld [vmem:[%s278 + $0x9] sm:$0xff]
        %v666 = vld [vmem:[%s278 + $0x19] sm:$0xff]
        %v667 = vld [vmem:[%s278 + $0x21] sm:$0xff]
        %v668 = vld [vmem:[%s278 + $0x31] sm:$0xff]
        %v669 = vld [vmem:[%s278 + $0x39] sm:$0xff]
        %v670 = vld [vmem:[%s278 + $0x49] sm:$0xff]
        %v671 = vld [vmem:[%s278 + $0x51] sm:$0xff]
        %v672 = vld [vmem:[%s278 + $0x61] sm:$0xff]
        %v673 = vld [vmem:[%s278 + $0x69] sm:$0xff]
        %v674 = vld [vmem:[%s278 + $0x79] sm:$0xff]
        %v675 = vld [vmem:[%s278 + $0x81] sm:$0xff]
        %v676 = vld [vmem:[%s278 + $0x91] sm:$0xff]
        %v677 = vld [vmem:[%s278 + $0x99] sm:$0xff]
        %v678 = vld [vmem:[%s278 + $0xa9] sm:$0xff]
        %v679 = vld [vmem:[%s278 + $0xb1] sm:$0xff]
        %v680 = vld [vmem:[%s278 + $0xc1] sm:$0xff]
        %v681 = vld [vmem:[%s278 + $0xc9] sm:$0xff]
        %v682 = vld [vmem:[%s278 + $0xd9] sm:$0xff]
        %v683 = vld [vmem:[%s278 + $0xe1] sm:$0xff]
        %v684 = vld [vmem:[%s278 + $0xf1] sm:$0xff]
        %v685 = vld [vmem:[%s278 + $0xf9] sm:$0xff]
        %v686 = vld [vmem:[%s278 + $0x109] sm:$0xff]
        %v687 = vld [vmem:[%s278 + $0x111] sm:$0xff]
        %v688 = vld [vmem:[%s278 + $0x121] sm:$0xff]
        %v689 = vld [vmem:[%s278 + $0x129] sm:$0xff]
        %v690 = vld [vmem:[%s278 + $0x139] sm:$0xff]
        %v691 = vld [vmem:[%s278 + $0x141] sm:$0xff]
        %v692 = vld [vmem:[%s278 + $0x151] sm:$0xff]
        %v693 = vld [vmem:[%s278 + $0x159] sm:$0xff]
        %v694 = vld [vmem:[%s278 + $0x169] sm:$0xff]
        %v695 = vld [vmem:[%s278 + $0x171] sm:$0xff]
        %v696 = vld [vmem:[%s278 + $0x2] sm:$0xff]
        %v697 = vld [vmem:[%s278 + $0xa] sm:$0xff]
        %v698 = vld [vmem:[%s278 + $0x1a] sm:$0xff]
        %v699 = vld [vmem:[%s278 + $0x22] sm:$0xff]
        %v700 = vld [vmem:[%s278 + $0x32] sm:$0xff]
        %v701 = vld [vmem:[%s278 + $0x3a] sm:$0xff]
        %v702 = vld [vmem:[%s278 + $0x4a] sm:$0xff]
        %v703 = vld [vmem:[%s278 + $0x52] sm:$0xff]
        %v704 = vld [vmem:[%s278 + $0x62] sm:$0xff]
        %v705 = vld [vmem:[%s278 + $0x6a] sm:$0xff]
        %v706 = vld [vmem:[%s278 + $0x7a] sm:$0xff]
        %v707 = vld [vmem:[%s278 + $0x82] sm:$0xff]
        %v708 = vld [vmem:[%s278 + $0x92] sm:$0xff]
        %v709 = vld [vmem:[%s278 + $0x9a] sm:$0xff]
        %v710 = vld [vmem:[%s278 + $0xaa] sm:$0xff]
        %v711 = vld [vmem:[%s278 + $0xb2] sm:$0xff]
        %v712 = vld [vmem:[%s278 + $0xc2] sm:$0xff]
        %v713 = vld [vmem:[%s278 + $0xca] sm:$0xff]
        %v714 = vld [vmem:[%s278 + $0xda] sm:$0xff]
        %v715 = vld [vmem:[%s278 + $0xe2] sm:$0xff]
        %v716 = vld [vmem:[%s278 + $0xf2] sm:$0xff]
        %v717 = vld [vmem:[%s278 + $0xfa] sm:$0xff]
        %v718 = vld [vmem:[%s278 + $0x10a] sm:$0xff]
        %v719 = vld [vmem:[%s278 + $0x112] sm:$0xff]
        %v720 = vld [vmem:[%s278 + $0x122] sm:$0xff]
        %v721 = vld [vmem:[%s278 + $0x12a] sm:$0xff]
        %v722 = vld [vmem:[%s278 + $0x13a] sm:$0xff]
        %v723 = vld [vmem:[%s278 + $0x142] sm:$0xff]
        %v724 = vld [vmem:[%s278 + $0x152] sm:$0xff]
        %v725 = vld [vmem:[%s278 + $0x15a] sm:$0xff]
        %v726 = vld [vmem:[%s278 + $0x16a] sm:$0xff]
        %v727 = vld [vmem:[%s278 + $0x172] sm:$0xff]
        %v728 = vld [vmem:[%s278 + $0x3] sm:$0xff]
        %v729 = vld [vmem:[%s278 + $0xb] sm:$0xff]
        %v730 = vld [vmem:[%s278 + $0x1b] sm:$0xff]
        %v731 = vld [vmem:[%s278 + $0x23] sm:$0xff]
        %v732 = vld [vmem:[%s278 + $0x33] sm:$0xff]
        %v733 = vld [vmem:[%s278 + $0x3b] sm:$0xff]
        %v734 = vld [vmem:[%s278 + $0x4b] sm:$0xff]
        %v735 = vld [vmem:[%s278 + $0x53] sm:$0xff]
        %v736 = vld [vmem:[%s278 + $0x63] sm:$0xff]
        %v737 = vld [vmem:[%s278 + $0x6b] sm:$0xff]
        %v738 = vld [vmem:[%s278 + $0x7b] sm:$0xff]
        %v739 = vld [vmem:[%s278 + $0x83] sm:$0xff]
        %v740 = vld [vmem:[%s278 + $0x93] sm:$0xff]
        %v741 = vld [vmem:[%s278 + $0x9b] sm:$0xff]
        %v742 = vld [vmem:[%s278 + $0xab] sm:$0xff]
        %v743 = vld [vmem:[%s278 + $0xb3] sm:$0xff]
        %v744 = vld [vmem:[%s278 + $0xc3] sm:$0xff]
        %v745 = vld [vmem:[%s278 + $0xcb] sm:$0xff]
        %v746 = vld [vmem:[%s278 + $0xdb] sm:$0xff]
        %v747 = vld [vmem:[%s278 + $0xe3] sm:$0xff]
        %v748 = vld [vmem:[%s278 + $0xf3] sm:$0xff]
        %v749 = vld [vmem:[%s278 + $0xfb] sm:$0xff]
        %v750 = vld [vmem:[%s278 + $0x10b] sm:$0xff]
        %v751 = vld [vmem:[%s278 + $0x113] sm:$0xff]
        %v752 = vld [vmem:[%s278 + $0x123] sm:$0xff]
        %v753 = vld [vmem:[%s278 + $0x12b] sm:$0xff]
        %v754 = vld [vmem:[%s278 + $0x13b] sm:$0xff]
        %v755 = vld [vmem:[%s278 + $0x143] sm:$0xff]
        %v756 = vld [vmem:[%s278 + $0x153] sm:$0xff]
        %v757 = vld [vmem:[%s278 + $0x15b] sm:$0xff]
        %v758 = vld [vmem:[%s278 + $0x16b] sm:$0xff]
        %v759 = vld [vmem:[%s278 + $0x173] sm:$0xff]
        %v760 = vld [vmem:[%s278 + $0x4] sm:$0xff]
        %v761 = vld [vmem:[%s278 + $0xc] sm:$0xff]
        %v762 = vld [vmem:[%s278 + $0x1c] sm:$0xff]
        %v763 = vld [vmem:[%s278 + $0x24] sm:$0xff]
        %v764 = vld [vmem:[%s278 + $0x34] sm:$0xff]
        %v765 = vld [vmem:[%s278 + $0x3c] sm:$0xff]
        %v766 = vld [vmem:[%s278 + $0x4c] sm:$0xff]
        %v767 = vld [vmem:[%s278 + $0x54] sm:$0xff]
        %v768 = vld [vmem:[%s278 + $0x64] sm:$0xff]
        %v769 = vld [vmem:[%s278 + $0x6c] sm:$0xff]
        %v770 = vld [vmem:[%s278 + $0x7c] sm:$0xff]
        %v771 = vld [vmem:[%s278 + $0x84] sm:$0xff]
        %v772 = vld [vmem:[%s278 + $0x94] sm:$0xff]
        %v773 = vld [vmem:[%s278 + $0x9c] sm:$0xff]
        %v774 = vld [vmem:[%s278 + $0xac] sm:$0xff]
        %v775 = vld [vmem:[%s278 + $0xb4] sm:$0xff]
        %v776 = vld [vmem:[%s278 + $0xc4] sm:$0xff]
        %v777 = vld [vmem:[%s278 + $0xcc] sm:$0xff]
        %v778 = vld [vmem:[%s278 + $0xdc] sm:$0xff]
        %v779 = vld [vmem:[%s278 + $0xe4] sm:$0xff]
        %v780 = vld [vmem:[%s278 + $0xf4] sm:$0xff]
        %v781 = vld [vmem:[%s278 + $0xfc] sm:$0xff]
        %v782 = vld [vmem:[%s278 + $0x10c] sm:$0xff]
        %v783 = vld [vmem:[%s278 + $0x114] sm:$0xff]
        %v784 = vld [vmem:[%s278 + $0x124] sm:$0xff]
        %v785 = vld [vmem:[%s278 + $0x12c] sm:$0xff]
        %v786 = vld [vmem:[%s278 + $0x13c] sm:$0xff]
        %v787 = vld [vmem:[%s278 + $0x144] sm:$0xff]
        %v788 = vld [vmem:[%s278 + $0x154] sm:$0xff]
        %v789 = vld [vmem:[%s278 + $0x15c] sm:$0xff]
        %v790 = vld [vmem:[%s278 + $0x16c] sm:$0xff]
        %v791 = vld [vmem:[%s278 + $0x174] sm:$0xff]
        %s792 = scalar_lea.vmem [#allocation2], 72
        %v793 = vld [vmem:[%s792] sm:$0xff]
        %v794 = vld [vmem:[%s792 + $0x8] sm:$0xff]
        %v795 = vld [vmem:[%s792 + $0x18] sm:$0xff]
        %v796 = vld [vmem:[%s792 + $0x20] sm:$0xff]
        %v797 = vld [vmem:[%s792 + $0x30] sm:$0xff]
        %v798 = vld [vmem:[%s792 + $0x38] sm:$0xff]
        %v799 = vld [vmem:[%s792 + $0x48] sm:$0xff]
        %v800 = vld [vmem:[%s792 + $0x50] sm:$0xff]
        %v801 = vld [vmem:[%s792 + $0x60] sm:$0xff]
        %v802 = vld [vmem:[%s792 + $0x68] sm:$0xff]
        %v803 = vld [vmem:[%s792 + $0x78] sm:$0xff]
        %v804 = vld [vmem:[%s792 + $0x80] sm:$0xff]
        %v805 = vld [vmem:[%s792 + $0x90] sm:$0xff]
        %v806 = vld [vmem:[%s792 + $0x98] sm:$0xff]
        %v807 = vld [vmem:[%s792 + $0xa8] sm:$0xff]
        %v808 = vld [vmem:[%s792 + $0xb0] sm:$0xff]
        %v809 = vld [vmem:[%s792 + $0xc0] sm:$0xff]
        %v810 = vld [vmem:[%s792 + $0xc8] sm:$0xff]
        %v811 = vld [vmem:[%s792 + $0xd8] sm:$0xff]
        %v812 = vld [vmem:[%s792 + $0xe0] sm:$0xff]
        %v813 = vld [vmem:[%s792 + $0xf0] sm:$0xff]
        %v814 = vld [vmem:[%s792 + $0xf8] sm:$0xff]
        %v815 = vld [vmem:[%s792 + $0x108] sm:$0xff]
        %v816 = vld [vmem:[%s792 + $0x110] sm:$0xff]
        %v817 = vld [vmem:[%s792 + $0x120] sm:$0xff]
        %v818 = vld [vmem:[%s792 + $0x128] sm:$0xff]
        %v819 = vld [vmem:[%s792 + $0x138] sm:$0xff]
        %v820 = vld [vmem:[%s792 + $0x140] sm:$0xff]
        %v821 = vld [vmem:[%s792 + $0x150] sm:$0xff]
        %v822 = vld [vmem:[%s792 + $0x158] sm:$0xff]
        %v823 = vld [vmem:[%s792 + $0x168] sm:$0xff]
        %v824 = vld [vmem:[%s792 + $0x170] sm:$0xff]
        %v825 = vld [vmem:[%s792 + $0x1] sm:$0xff]
        %v826 = vld [vmem:[%s792 + $0x9] sm:$0xff]
        %v827 = vld [vmem:[%s792 + $0x19] sm:$0xff]
        %v828 = vld [vmem:[%s792 + $0x21] sm:$0xff]
        %v829 = vld [vmem:[%s792 + $0x31] sm:$0xff]
        %v830 = vld [vmem:[%s792 + $0x39] sm:$0xff]
        %v831 = vld [vmem:[%s792 + $0x49] sm:$0xff]
        %v832 = vld [vmem:[%s792 + $0x51] sm:$0xff]
        %v833 = vld [vmem:[%s792 + $0x61] sm:$0xff]
        %v834 = vld [vmem:[%s792 + $0x69] sm:$0xff]
        %v835 = vld [vmem:[%s792 + $0x79] sm:$0xff]
        %v836 = vld [vmem:[%s792 + $0x81] sm:$0xff]
        %v837 = vld [vmem:[%s792 + $0x91] sm:$0xff]
        %v838 = vld [vmem:[%s792 + $0x99] sm:$0xff]
        %v839 = vld [vmem:[%s792 + $0xa9] sm:$0xff]
        %v840 = vld [vmem:[%s792 + $0xb1] sm:$0xff]
        %v841 = vld [vmem:[%s792 + $0xc1] sm:$0xff]
        %v842 = vld [vmem:[%s792 + $0xc9] sm:$0xff]
        %v843 = vld [vmem:[%s792 + $0xd9] sm:$0xff]
        %v844 = vld [vmem:[%s792 + $0xe1] sm:$0xff]
        %v845 = vld [vmem:[%s792 + $0xf1] sm:$0xff]
        %v846 = vld [vmem:[%s792 + $0xf9] sm:$0xff]
        %v847 = vld [vmem:[%s792 + $0x109] sm:$0xff]
        %v848 = vld [vmem:[%s792 + $0x111] sm:$0xff]
        %v849 = vld [vmem:[%s792 + $0x121] sm:$0xff]
        %v850 = vld [vmem:[%s792 + $0x129] sm:$0xff]
        %v851 = vld [vmem:[%s792 + $0x139] sm:$0xff]
        %v852 = vld [vmem:[%s792 + $0x141] sm:$0xff]
        %v853 = vld [vmem:[%s792 + $0x151] sm:$0xff]
        %v854 = vld [vmem:[%s792 + $0x159] sm:$0xff]
        %v855 = vld [vmem:[%s792 + $0x169] sm:$0xff]
        %v856 = vld [vmem:[%s792 + $0x171] sm:$0xff]
        %v857 = vld [vmem:[%s792 + $0x2] sm:$0xff]
        %v858 = vld [vmem:[%s792 + $0xa] sm:$0xff]
        %v859 = vld [vmem:[%s792 + $0x1a] sm:$0xff]
        %v860 = vld [vmem:[%s792 + $0x22] sm:$0xff]
        %v861 = vld [vmem:[%s792 + $0x32] sm:$0xff]
        %v862 = vld [vmem:[%s792 + $0x3a] sm:$0xff]
        %v863 = vld [vmem:[%s792 + $0x4a] sm:$0xff]
        %v864 = vld [vmem:[%s792 + $0x52] sm:$0xff]
        %v865 = vld [vmem:[%s792 + $0x62] sm:$0xff]
        %v866 = vld [vmem:[%s792 + $0x6a] sm:$0xff]
        %v867 = vld [vmem:[%s792 + $0x7a] sm:$0xff]
        %v868 = vld [vmem:[%s792 + $0x82] sm:$0xff]
        %v869 = vld [vmem:[%s792 + $0x92] sm:$0xff]
        %v870 = vld [vmem:[%s792 + $0x9a] sm:$0xff]
        %v871 = vld [vmem:[%s792 + $0xaa] sm:$0xff]
        %v872 = vld [vmem:[%s792 + $0xb2] sm:$0xff]
        %v873 = vld [vmem:[%s792 + $0xc2] sm:$0xff]
        %v874 = vld [vmem:[%s792 + $0xca] sm:$0xff]
        %v875 = vld [vmem:[%s792 + $0xda] sm:$0xff]
        %v876 = vld [vmem:[%s792 + $0xe2] sm:$0xff]
        %v877 = vld [vmem:[%s792 + $0xf2] sm:$0xff]
        %v878 = vld [vmem:[%s792 + $0xfa] sm:$0xff]
        %v879 = vld [vmem:[%s792 + $0x10a] sm:$0xff]
        %v880 = vld [vmem:[%s792 + $0x112] sm:$0xff]
        %v881 = vld [vmem:[%s792 + $0x122] sm:$0xff]
        %v882 = vld [vmem:[%s792 + $0x12a] sm:$0xff]
        %v883 = vld [vmem:[%s792 + $0x13a] sm:$0xff]
        %v884 = vld [vmem:[%s792 + $0x142] sm:$0xff]
        %v885 = vld [vmem:[%s792 + $0x152] sm:$0xff]
        %v886 = vld [vmem:[%s792 + $0x15a] sm:$0xff]
        %v887 = vld [vmem:[%s792 + $0x16a] sm:$0xff]
        %v888 = vld [vmem:[%s792 + $0x172] sm:$0xff]
        %v889 = vld [vmem:[%s792 + $0x3] sm:$0xff]
        %v890 = vld [vmem:[%s792 + $0xb] sm:$0xff]
        %v891 = vld [vmem:[%s792 + $0x1b] sm:$0xff]
        %v892 = vld [vmem:[%s792 + $0x23] sm:$0xff]
        %v893 = vld [vmem:[%s792 + $0x33] sm:$0xff]
        %v894 = vld [vmem:[%s792 + $0x3b] sm:$0xff]
        %v895 = vld [vmem:[%s792 + $0x4b] sm:$0xff]
        %v896 = vld [vmem:[%s792 + $0x53] sm:$0xff]
        %v897 = vld [vmem:[%s792 + $0x63] sm:$0xff]
        %v898 = vld [vmem:[%s792 + $0x6b] sm:$0xff]
        %v899 = vld [vmem:[%s792 + $0x7b] sm:$0xff]
        %v900 = vld [vmem:[%s792 + $0x83] sm:$0xff]
        %v901 = vld [vmem:[%s792 + $0x93] sm:$0xff]
        %v902 = vld [vmem:[%s792 + $0x9b] sm:$0xff]
        %v903 = vld [vmem:[%s792 + $0xab] sm:$0xff]
        %v904 = vld [vmem:[%s792 + $0xb3] sm:$0xff]
        %v905 = vld [vmem:[%s792 + $0xc3] sm:$0xff]
        %v906 = vld [vmem:[%s792 + $0xcb] sm:$0xff]
        %v907 = vld [vmem:[%s792 + $0xdb] sm:$0xff]
        %v908 = vld [vmem:[%s792 + $0xe3] sm:$0xff]
        %v909 = vld [vmem:[%s792 + $0xf3] sm:$0xff]
        %v910 = vld [vmem:[%s792 + $0xfb] sm:$0xff]
        %v911 = vld [vmem:[%s792 + $0x10b] sm:$0xff]
        %v912 = vld [vmem:[%s792 + $0x113] sm:$0xff]
        %v913 = vld [vmem:[%s792 + $0x123] sm:$0xff]
        %v914 = vld [vmem:[%s792 + $0x12b] sm:$0xff]
        %v915 = vld [vmem:[%s792 + $0x13b] sm:$0xff]
        %v916 = vld [vmem:[%s792 + $0x143] sm:$0xff]
        %v917 = vld [vmem:[%s792 + $0x153] sm:$0xff]
        %v918 = vld [vmem:[%s792 + $0x15b] sm:$0xff]
        %v919 = vld [vmem:[%s792 + $0x16b] sm:$0xff]
        %v920 = vld [vmem:[%s792 + $0x173] sm:$0xff]
        %v921 = vld [vmem:[%s792 + $0x4] sm:$0xff]
        %v922 = vld [vmem:[%s792 + $0xc] sm:$0xff]
        %v923 = vld [vmem:[%s792 + $0x1c] sm:$0xff]
        %v924 = vld [vmem:[%s792 + $0x24] sm:$0xff]
        %v925 = vld [vmem:[%s792 + $0x34] sm:$0xff]
        %v926 = vld [vmem:[%s792 + $0x3c] sm:$0xff]
        %v927 = vld [vmem:[%s792 + $0x4c] sm:$0xff]
        %v928 = vld [vmem:[%s792 + $0x54] sm:$0xff]
        %v929 = vld [vmem:[%s792 + $0x64] sm:$0xff]
        %v930 = vld [vmem:[%s792 + $0x6c] sm:$0xff]
        %v931 = vld [vmem:[%s792 + $0x7c] sm:$0xff]
        %v932 = vld [vmem:[%s792 + $0x84] sm:$0xff]
        %v933 = vld [vmem:[%s792 + $0x94] sm:$0xff]
        %v934 = vld [vmem:[%s792 + $0x9c] sm:$0xff]
        %v935 = vld [vmem:[%s792 + $0xac] sm:$0xff]
        %v936 = vld [vmem:[%s792 + $0xb4] sm:$0xff]
        %v937 = vld [vmem:[%s792 + $0xc4] sm:$0xff]
        %v938 = vld [vmem:[%s792 + $0xcc] sm:$0xff]
        %v939 = vld [vmem:[%s792 + $0xdc] sm:$0xff]
        %v940 = vld [vmem:[%s792 + $0xe4] sm:$0xff]
        %v941 = vld [vmem:[%s792 + $0xf4] sm:$0xff]
        %v942 = vld [vmem:[%s792 + $0xfc] sm:$0xff]
        %v943 = vld [vmem:[%s792 + $0x10c] sm:$0xff]
        %v944 = vld [vmem:[%s792 + $0x114] sm:$0xff]
        %v945 = vld [vmem:[%s792 + $0x124] sm:$0xff]
        %v946 = vld [vmem:[%s792 + $0x12c] sm:$0xff]
        %v947 = vld [vmem:[%s792 + $0x13c] sm:$0xff]
        %v948 = vld [vmem:[%s792 + $0x144] sm:$0xff]
        %v949 = vld [vmem:[%s792 + $0x154] sm:$0xff]
        %v950 = vld [vmem:[%s792 + $0x15c] sm:$0xff]
        %v951 = vld [vmem:[%s792 + $0x16c] sm:$0xff]
        %v952 = vld [vmem:[%s792 + $0x174] sm:$0xff]
        %s953 = scalar_lea.vmem [#allocation2], 96
        %v954 = vld [vmem:[%s953] sm:$0xff]
        %v955 = vld [vmem:[%s953 + $0x8] sm:$0xff]
        %v956 = vld [vmem:[%s953 + $0x18] sm:$0xff]
        %v957 = vld [vmem:[%s953 + $0x20] sm:$0xff]
        %v958 = vld [vmem:[%s953 + $0x30] sm:$0xff]
        %v959 = vld [vmem:[%s953 + $0x38] sm:$0xff]
        %v960 = vld [vmem:[%s953 + $0x48] sm:$0xff]
        %v961 = vld [vmem:[%s953 + $0x50] sm:$0xff]
        %v962 = vld [vmem:[%s953 + $0x60] sm:$0xff]
        %v963 = vld [vmem:[%s953 + $0x68] sm:$0xff]
        %v964 = vld [vmem:[%s953 + $0x78] sm:$0xff]
        %v965 = vld [vmem:[%s953 + $0x80] sm:$0xff]
        %v966 = vld [vmem:[%s953 + $0x90] sm:$0xff]
        %v967 = vld [vmem:[%s953 + $0x98] sm:$0xff]
        %v968 = vld [vmem:[%s953 + $0xa8] sm:$0xff]
        %v969 = vld [vmem:[%s953 + $0xb0] sm:$0xff]
        %v970 = vld [vmem:[%s953 + $0xc0] sm:$0xff]
        %v971 = vld [vmem:[%s953 + $0xc8] sm:$0xff]
        %v972 = vld [vmem:[%s953 + $0xd8] sm:$0xff]
        %v973 = vld [vmem:[%s953 + $0xe0] sm:$0xff]
        %v974 = vld [vmem:[%s953 + $0xf0] sm:$0xff]
        %v975 = vld [vmem:[%s953 + $0xf8] sm:$0xff]
        %v976 = vld [vmem:[%s953 + $0x108] sm:$0xff]
        %v977 = vld [vmem:[%s953 + $0x110] sm:$0xff]
        %v978 = vld [vmem:[%s953 + $0x120] sm:$0xff]
        %v979 = vld [vmem:[%s953 + $0x128] sm:$0xff]
        %v980 = vld [vmem:[%s953 + $0x138] sm:$0xff]
        %v981 = vld [vmem:[%s953 + $0x140] sm:$0xff]
        %v982 = vld [vmem:[%s953 + $0x150] sm:$0xff]
        %v983 = vld [vmem:[%s953 + $0x158] sm:$0xff]
        %v984 = vld [vmem:[%s953 + $0x168] sm:$0xff]
        %v985 = vld [vmem:[%s953 + $0x170] sm:$0xff]
        %v986 = vld [vmem:[%s953 + $0x1] sm:$0xff]
        %v987 = vld [vmem:[%s953 + $0x9] sm:$0xff]
        %v988 = vld [vmem:[%s953 + $0x19] sm:$0xff]
        %v989 = vld [vmem:[%s953 + $0x21] sm:$0xff]
        %v990 = vld [vmem:[%s953 + $0x31] sm:$0xff]
        %v991 = vld [vmem:[%s953 + $0x39] sm:$0xff]
        %v992 = vld [vmem:[%s953 + $0x49] sm:$0xff]
        %v993 = vld [vmem:[%s953 + $0x51] sm:$0xff]
        %v994 = vld [vmem:[%s953 + $0x61] sm:$0xff]
        %v995 = vld [vmem:[%s953 + $0x69] sm:$0xff]
        %v996 = vld [vmem:[%s953 + $0x79] sm:$0xff]
        %v997 = vld [vmem:[%s953 + $0x81] sm:$0xff]
        %v998 = vld [vmem:[%s953 + $0x91] sm:$0xff]
        %v999 = vld [vmem:[%s953 + $0x99] sm:$0xff]
        %v1000 = vld [vmem:[%s953 + $0xa9] sm:$0xff]
        %v1001 = vld [vmem:[%s953 + $0xb1] sm:$0xff]
        %v1002 = vld [vmem:[%s953 + $0xc1] sm:$0xff]
        %v1003 = vld [vmem:[%s953 + $0xc9] sm:$0xff]
        %v1004 = vld [vmem:[%s953 + $0xd9] sm:$0xff]
        %v1005 = vld [vmem:[%s953 + $0xe1] sm:$0xff]
        %v1006 = vld [vmem:[%s953 + $0xf1] sm:$0xff]
        %v1007 = vld [vmem:[%s953 + $0xf9] sm:$0xff]
        %v1008 = vld [vmem:[%s953 + $0x109] sm:$0xff]
        %v1009 = vld [vmem:[%s953 + $0x111] sm:$0xff]
        %v1010 = vld [vmem:[%s953 + $0x121] sm:$0xff]
        %v1011 = vld [vmem:[%s953 + $0x129] sm:$0xff]
        %v1012 = vld [vmem:[%s953 + $0x139] sm:$0xff]
        %v1013 = vld [vmem:[%s953 + $0x141] sm:$0xff]
        %v1014 = vld [vmem:[%s953 + $0x151] sm:$0xff]
        %v1015 = vld [vmem:[%s953 + $0x159] sm:$0xff]
        %v1016 = vld [vmem:[%s953 + $0x169] sm:$0xff]
        %v1017 = vld [vmem:[%s953 + $0x171] sm:$0xff]
        %v1018 = vld [vmem:[%s953 + $0x2] sm:$0xff]
        %v1019 = vld [vmem:[%s953 + $0xa] sm:$0xff]
        %v1020 = vld [vmem:[%s953 + $0x1a] sm:$0xff]
        %v1021 = vld [vmem:[%s953 + $0x22] sm:$0xff]
        %v1022 = vld [vmem:[%s953 + $0x32] sm:$0xff]
        %v1023 = vld [vmem:[%s953 + $0x3a] sm:$0xff]
        %v1024 = vld [vmem:[%s953 + $0x4a] sm:$0xff]
        %v1025 = vld [vmem:[%s953 + $0x52] sm:$0xff]
        %v1026 = vld [vmem:[%s953 + $0x62] sm:$0xff]
        %v1027 = vld [vmem:[%s953 + $0x6a] sm:$0xff]
        %v1028 = vld [vmem:[%s953 + $0x7a] sm:$0xff]
        %v1029 = vld [vmem:[%s953 + $0x82] sm:$0xff]
        %v1030 = vld [vmem:[%s953 + $0x92] sm:$0xff]
        %v1031 = vld [vmem:[%s953 + $0x9a] sm:$0xff]
        %v1032 = vld [vmem:[%s953 + $0xaa] sm:$0xff]
        %v1033 = vld [vmem:[%s953 + $0xb2] sm:$0xff]
        %v1034 = vld [vmem:[%s953 + $0xc2] sm:$0xff]
        %v1035 = vld [vmem:[%s953 + $0xca] sm:$0xff]
        %v1036 = vld [vmem:[%s953 + $0xda] sm:$0xff]
        %v1037 = vld [vmem:[%s953 + $0xe2] sm:$0xff]
        %v1038 = vld [vmem:[%s953 + $0xf2] sm:$0xff]
        %v1039 = vld [vmem:[%s953 + $0xfa] sm:$0xff]
        %v1040 = vld [vmem:[%s953 + $0x10a] sm:$0xff]
        %v1041 = vld [vmem:[%s953 + $0x112] sm:$0xff]
        %v1042 = vld [vmem:[%s953 + $0x122] sm:$0xff]
        %v1043 = vld [vmem:[%s953 + $0x12a] sm:$0xff]
        %v1044 = vld [vmem:[%s953 + $0x13a] sm:$0xff]
        %v1045 = vld [vmem:[%s953 + $0x142] sm:$0xff]
        %v1046 = vld [vmem:[%s953 + $0x152] sm:$0xff]
        %v1047 = vld [vmem:[%s953 + $0x15a] sm:$0xff]
        %v1048 = vld [vmem:[%s953 + $0x16a] sm:$0xff]
        %v1049 = vld [vmem:[%s953 + $0x172] sm:$0xff]
        %v1050 = vld [vmem:[%s953 + $0x3] sm:$0xff]
        %v1051 = vld [vmem:[%s953 + $0xb] sm:$0xff]
        %v1052 = vld [vmem:[%s953 + $0x1b] sm:$0xff]
        %v1053 = vld [vmem:[%s953 + $0x23] sm:$0xff]
        %v1054 = vld [vmem:[%s953 + $0x33] sm:$0xff]
        %v1055 = vld [vmem:[%s953 + $0x3b] sm:$0xff]
        %v1056 = vld [vmem:[%s953 + $0x4b] sm:$0xff]
        %v1057 = vld [vmem:[%s953 + $0x53] sm:$0xff]
        %v1058 = vld [vmem:[%s953 + $0x63] sm:$0xff]
        %v1059 = vld [vmem:[%s953 + $0x6b] sm:$0xff]
        %v1060 = vld [vmem:[%s953 + $0x7b] sm:$0xff]
        %v1061 = vld [vmem:[%s953 + $0x83] sm:$0xff]
        %v1062 = vld [vmem:[%s953 + $0x93] sm:$0xff]
        %v1063 = vld [vmem:[%s953 + $0x9b] sm:$0xff]
        %v1064 = vld [vmem:[%s953 + $0xab] sm:$0xff]
        %v1065 = vld [vmem:[%s953 + $0xb3] sm:$0xff]
        %v1066 = vld [vmem:[%s953 + $0xc3] sm:$0xff]
        %v1067 = vld [vmem:[%s953 + $0xcb] sm:$0xff]
        %v1068 = vld [vmem:[%s953 + $0xdb] sm:$0xff]
        %v1069 = vld [vmem:[%s953 + $0xe3] sm:$0xff]
        %v1070 = vld [vmem:[%s953 + $0xf3] sm:$0xff]
        %v1071 = vld [vmem:[%s953 + $0xfb] sm:$0xff]
        %v1072 = vld [vmem:[%s953 + $0x10b] sm:$0xff]
        %v1073 = vld [vmem:[%s953 + $0x113] sm:$0xff]
        %v1074 = vld [vmem:[%s953 + $0x123] sm:$0xff]
        %v1075 = vld [vmem:[%s953 + $0x12b] sm:$0xff]
        %v1076 = vld [vmem:[%s953 + $0x13b] sm:$0xff]
        %v1077 = vld [vmem:[%s953 + $0x143] sm:$0xff]
        %v1078 = vld [vmem:[%s953 + $0x153] sm:$0xff]
        %v1079 = vld [vmem:[%s953 + $0x15b] sm:$0xff]
        %v1080 = vld [vmem:[%s953 + $0x16b] sm:$0xff]
        %v1081 = vld [vmem:[%s953 + $0x173] sm:$0xff]
        %v1082 = vld [vmem:[%s953 + $0x4] sm:$0xff]
        %v1083 = vld [vmem:[%s953 + $0xc] sm:$0xff]
        %v1084 = vld [vmem:[%s953 + $0x1c] sm:$0xff]
        %v1085 = vld [vmem:[%s953 + $0x24] sm:$0xff]
        %v1086 = vld [vmem:[%s953 + $0x34] sm:$0xff]
        %v1087 = vld [vmem:[%s953 + $0x3c] sm:$0xff]
        %v1088 = vld [vmem:[%s953 + $0x4c] sm:$0xff]
        %v1089 = vld [vmem:[%s953 + $0x54] sm:$0xff]
        %v1090 = vld [vmem:[%s953 + $0x64] sm:$0xff]
        %v1091 = vld [vmem:[%s953 + $0x6c] sm:$0xff]
        %v1092 = vld [vmem:[%s953 + $0x7c] sm:$0xff]
        %v1093 = vld [vmem:[%s953 + $0x84] sm:$0xff]
        %v1094 = vld [vmem:[%s953 + $0x94] sm:$0xff]
        %v1095 = vld [vmem:[%s953 + $0x9c] sm:$0xff]
        %v1096 = vld [vmem:[%s953 + $0xac] sm:$0xff]
        %v1097 = vld [vmem:[%s953 + $0xb4] sm:$0xff]
        %v1098 = vld [vmem:[%s953 + $0xc4] sm:$0xff]
        %v1099 = vld [vmem:[%s953 + $0xcc] sm:$0xff]
        %v1100 = vld [vmem:[%s953 + $0xdc] sm:$0xff]
        %v1101 = vld [vmem:[%s953 + $0xe4] sm:$0xff]
        %v1102 = vld [vmem:[%s953 + $0xf4] sm:$0xff]
        %v1103 = vld [vmem:[%s953 + $0xfc] sm:$0xff]
        %v1104 = vld [vmem:[%s953 + $0x10c] sm:$0xff]
        %v1105 = vld [vmem:[%s953 + $0x114] sm:$0xff]
        %v1106 = vld [vmem:[%s953 + $0x124] sm:$0xff]
        %v1107 = vld [vmem:[%s953 + $0x12c] sm:$0xff]
        %v1108 = vld [vmem:[%s953 + $0x13c] sm:$0xff]
        %v1109 = vld [vmem:[%s953 + $0x144] sm:$0xff]
        %v1110 = vld [vmem:[%s953 + $0x154] sm:$0xff]
        %v1111 = vld [vmem:[%s953 + $0x15c] sm:$0xff]
        %v1112 = vld [vmem:[%s953 + $0x16c] sm:$0xff]
        %v1113 = vld [vmem:[%s953 + $0x174] sm:$0xff]
        %1146 = vrot.lane.b32.xlu0 %v343, 4
        %v1147 = vpop.permute.xlu0 %1146
        %1148 = vrot.lane.b32.xlu0 %v344, 4
        %v1149 = vpop.permute.xlu0 %1148
        %1150 = vrot.lane.b32.xlu0 %v345, 4
        %v1151 = vpop.permute.xlu0 %1150
        %1152 = vrot.lane.b32.xlu0 %v346, 4
        %v1153 = vpop.permute.xlu0 %1152
        %1154 = vrot.lane.b32.xlu0 %v347, 4
        %v1155 = vpop.permute.xlu0 %1154
        %1156 = vrot.lane.b32.xlu0 %v348, 4
        %v1157 = vpop.permute.xlu0 %1156
        %1158 = vrot.lane.b32.xlu0 %v349, 4
        %v1159 = vpop.permute.xlu0 %1158
        %1160 = vrot.lane.b32.xlu0 %v350, 4
        %v1161 = vpop.permute.xlu0 %1160
        %1162 = vrot.lane.b32.xlu0 %v351, 4
        %v1163 = vpop.permute.xlu0 %1162
        %1164 = vrot.lane.b32.xlu0 %v352, 4
        %v1165 = vpop.permute.xlu0 %1164
        %1166 = vrot.lane.b32.xlu0 %v353, 4
        %v1167 = vpop.permute.xlu0 %1166
        %1168 = vrot.lane.b32.xlu0 %v354, 4
        %v1169 = vpop.permute.xlu0 %1168
        %1170 = vrot.lane.b32.xlu0 %v355, 4
        %v1171 = vpop.permute.xlu0 %1170
        %1172 = vrot.lane.b32.xlu0 %v356, 4
        %v1173 = vpop.permute.xlu0 %1172
        %1174 = vrot.lane.b32.xlu0 %v357, 4
        %v1175 = vpop.permute.xlu0 %1174
        %1176 = vrot.lane.b32.xlu0 %v358, 4
        %v1177 = vpop.permute.xlu0 %1176
        %1178 = vrot.lane.b32.xlu0 %v359, 4
        %v1179 = vpop.permute.xlu0 %1178
        %1180 = vrot.lane.b32.xlu0 %v360, 4
        %v1181 = vpop.permute.xlu0 %1180
        %1182 = vrot.lane.b32.xlu0 %v361, 4
        %v1183 = vpop.permute.xlu0 %1182
        %1184 = vrot.lane.b32.xlu0 %v362, 4
        %v1185 = vpop.permute.xlu0 %1184
        %1186 = vrot.lane.b32.xlu0 %v363, 4
        %v1187 = vpop.permute.xlu0 %1186
        %1188 = vrot.lane.b32.xlu0 %v364, 4
        %v1189 = vpop.permute.xlu0 %1188
        %1190 = vrot.lane.b32.xlu0 %v365, 4
        %v1191 = vpop.permute.xlu0 %1190
        %1192 = vrot.lane.b32.xlu0 %v366, 4
        %v1193 = vpop.permute.xlu0 %1192
        %1194 = vrot.lane.b32.xlu0 %v367, 4
        %v1195 = vpop.permute.xlu0 %1194
        %1196 = vrot.lane.b32.xlu0 %v368, 4
        %v1197 = vpop.permute.xlu0 %1196
        %1198 = vrot.lane.b32.xlu0 %v369, 4
        %v1199 = vpop.permute.xlu0 %1198
        %1200 = vrot.lane.b32.xlu0 %v370, 4
        %v1201 = vpop.permute.xlu0 %1200
        %1202 = vrot.lane.b32.xlu0 %v371, 4
        %v1203 = vpop.permute.xlu0 %1202
        %1204 = vrot.lane.b32.xlu0 %v372, 4
        %v1205 = vpop.permute.xlu0 %1204
        %1206 = vrot.lane.b32.xlu0 %v373, 4
        %v1207 = vpop.permute.xlu0 %1206
        %1208 = vrot.lane.b32.xlu0 %v374, 4
        %v1209 = vpop.permute.xlu0 %1208
        %1274 = vrot.lane.b32.xlu0 %v375, 8
        %v1275 = vpop.permute.xlu0 %1274
        %1276 = vrot.lane.b32.xlu0 %v376, 8
        %v1277 = vpop.permute.xlu0 %1276
        %1278 = vrot.lane.b32.xlu0 %v377, 8
        %v1279 = vpop.permute.xlu0 %1278
        %1280 = vrot.lane.b32.xlu0 %v378, 8
        %v1281 = vpop.permute.xlu0 %1280
        %1282 = vrot.lane.b32.xlu0 %v379, 8
        %v1283 = vpop.permute.xlu0 %1282
        %1284 = vrot.lane.b32.xlu0 %v380, 8
        %v1285 = vpop.permute.xlu0 %1284
        %1286 = vrot.lane.b32.xlu0 %v381, 8
        %v1287 = vpop.permute.xlu0 %1286
        %1288 = vrot.lane.b32.xlu0 %v382, 8
        %v1289 = vpop.permute.xlu0 %1288
        %1290 = vrot.lane.b32.xlu0 %v383, 8
        %v1291 = vpop.permute.xlu0 %1290
        %1292 = vrot.lane.b32.xlu0 %v384, 8
        %v1293 = vpop.permute.xlu0 %1292
        %1294 = vrot.lane.b32.xlu0 %v385, 8
        %v1295 = vpop.permute.xlu0 %1294
        %1296 = vrot.lane.b32.xlu0 %v386, 8
        %v1297 = vpop.permute.xlu0 %1296
        %1298 = vrot.lane.b32.xlu0 %v387, 8
        %v1299 = vpop.permute.xlu0 %1298
        %1300 = vrot.lane.b32.xlu0 %v388, 8
        %v1301 = vpop.permute.xlu0 %1300
        %1302 = vrot.lane.b32.xlu0 %v389, 8
        %v1303 = vpop.permute.xlu0 %1302
        %1304 = vrot.lane.b32.xlu0 %v390, 8
        %v1305 = vpop.permute.xlu0 %1304
        %1306 = vrot.lane.b32.xlu0 %v391, 8
        %v1307 = vpop.permute.xlu0 %1306
        %1308 = vrot.lane.b32.xlu0 %v392, 8
        %v1309 = vpop.permute.xlu0 %1308
        %1310 = vrot.lane.b32.xlu0 %v393, 8
        %v1311 = vpop.permute.xlu0 %1310
        %1312 = vrot.lane.b32.xlu0 %v394, 8
        %v1313 = vpop.permute.xlu0 %1312
        %1314 = vrot.lane.b32.xlu0 %v395, 8
        %v1315 = vpop.permute.xlu0 %1314
        %1316 = vrot.lane.b32.xlu0 %v396, 8
        %v1317 = vpop.permute.xlu0 %1316
        %1318 = vrot.lane.b32.xlu0 %v397, 8
        %v1319 = vpop.permute.xlu0 %1318
        %1320 = vrot.lane.b32.xlu0 %v398, 8
        %v1321 = vpop.permute.xlu0 %1320
        %1322 = vrot.lane.b32.xlu0 %v399, 8
        %v1323 = vpop.permute.xlu0 %1322
        %1324 = vrot.lane.b32.xlu0 %v400, 8
        %v1325 = vpop.permute.xlu0 %1324
        %1326 = vrot.lane.b32.xlu0 %v401, 8
        %v1327 = vpop.permute.xlu0 %1326
        %1328 = vrot.lane.b32.xlu0 %v402, 8
        %v1329 = vpop.permute.xlu0 %1328
        %1330 = vrot.lane.b32.xlu0 %v403, 8
        %v1331 = vpop.permute.xlu0 %1330
        %1332 = vrot.lane.b32.xlu0 %v404, 8
        %v1333 = vpop.permute.xlu0 %1332
        %1334 = vrot.lane.b32.xlu0 %v405, 8
        %v1335 = vpop.permute.xlu0 %1334
        %1336 = vrot.lane.b32.xlu0 %v406, 8
        %v1337 = vpop.permute.xlu0 %1336
        %1402 = vrot.lane.b32.xlu0 %v407, 12
        %v1403 = vpop.permute.xlu0 %1402
        %1404 = vrot.lane.b32.xlu0 %v408, 12
        %v1405 = vpop.permute.xlu0 %1404
        %1406 = vrot.lane.b32.xlu0 %v409, 12
        %v1407 = vpop.permute.xlu0 %1406
        %1408 = vrot.lane.b32.xlu0 %v410, 12
        %v1409 = vpop.permute.xlu0 %1408
        %1410 = vrot.lane.b32.xlu0 %v411, 12
        %v1411 = vpop.permute.xlu0 %1410
        %1412 = vrot.lane.b32.xlu0 %v412, 12
        %v1413 = vpop.permute.xlu0 %1412
        %1414 = vrot.lane.b32.xlu0 %v413, 12
        %v1415 = vpop.permute.xlu0 %1414
        %1416 = vrot.lane.b32.xlu0 %v414, 12
        %v1417 = vpop.permute.xlu0 %1416
        %1418 = vrot.lane.b32.xlu0 %v415, 12
        %v1419 = vpop.permute.xlu0 %1418
        %1420 = vrot.lane.b32.xlu0 %v416, 12
        %v1421 = vpop.permute.xlu0 %1420
        %1422 = vrot.lane.b32.xlu0 %v417, 12
        %v1423 = vpop.permute.xlu0 %1422
        %1424 = vrot.lane.b32.xlu0 %v418, 12
        %v1425 = vpop.permute.xlu0 %1424
        %1426 = vrot.lane.b32.xlu0 %v419, 12
        %v1427 = vpop.permute.xlu0 %1426
        %1428 = vrot.lane.b32.xlu0 %v420, 12
        %v1429 = vpop.permute.xlu0 %1428
        %1430 = vrot.lane.b32.xlu0 %v421, 12
        %v1431 = vpop.permute.xlu0 %1430
        %1432 = vrot.lane.b32.xlu0 %v422, 12
        %v1433 = vpop.permute.xlu0 %1432
        %1434 = vrot.lane.b32.xlu0 %v423, 12
        %v1435 = vpop.permute.xlu0 %1434
        %1436 = vrot.lane.b32.xlu0 %v424, 12
        %v1437 = vpop.permute.xlu0 %1436
        %1438 = vrot.lane.b32.xlu0 %v425, 12
        %v1439 = vpop.permute.xlu0 %1438
        %1440 = vrot.lane.b32.xlu0 %v426, 12
        %v1441 = vpop.permute.xlu0 %1440
        %1442 = vrot.lane.b32.xlu0 %v427, 12
        %v1443 = vpop.permute.xlu0 %1442
        %1444 = vrot.lane.b32.xlu0 %v428, 12
        %v1445 = vpop.permute.xlu0 %1444
        %1446 = vrot.lane.b32.xlu0 %v429, 12
        %v1447 = vpop.permute.xlu0 %1446
        %1448 = vrot.lane.b32.xlu0 %v430, 12
        %v1449 = vpop.permute.xlu0 %1448
        %1450 = vrot.lane.b32.xlu0 %v431, 12
        %v1451 = vpop.permute.xlu0 %1450
        %1452 = vrot.lane.b32.xlu0 %v432, 12
        %v1453 = vpop.permute.xlu0 %1452
        %1454 = vrot.lane.b32.xlu0 %v433, 12
        %v1455 = vpop.permute.xlu0 %1454
        %1456 = vrot.lane.b32.xlu0 %v434, 12
        %v1457 = vpop.permute.xlu0 %1456
        %1458 = vrot.lane.b32.xlu0 %v435, 12
        %v1459 = vpop.permute.xlu0 %1458
        %1460 = vrot.lane.b32.xlu0 %v436, 12
        %v1461 = vpop.permute.xlu0 %1460
        %1462 = vrot.lane.b32.xlu0 %v437, 12
        %v1463 = vpop.permute.xlu0 %1462
        %1464 = vrot.lane.b32.xlu0 %v438, 12
        %v1465 = vpop.permute.xlu0 %1464
        %1530 = vrot.lane.b32.xlu0 %v439, 16
        %v1531 = vpop.permute.xlu0 %1530
        %1532 = vrot.lane.b32.xlu0 %v440, 16
        %v1533 = vpop.permute.xlu0 %1532
        %1534 = vrot.lane.b32.xlu0 %v441, 16
        %v1535 = vpop.permute.xlu0 %1534
        %1536 = vrot.lane.b32.xlu0 %v442, 16
        %v1537 = vpop.permute.xlu0 %1536
        %1538 = vrot.lane.b32.xlu0 %v443, 16
        %v1539 = vpop.permute.xlu0 %1538
        %1540 = vrot.lane.b32.xlu0 %v444, 16
        %v1541 = vpop.permute.xlu0 %1540
        %1542 = vrot.lane.b32.xlu0 %v445, 16
        %v1543 = vpop.permute.xlu0 %1542
        %1544 = vrot.lane.b32.xlu0 %v446, 16
        %v1545 = vpop.permute.xlu0 %1544
        %1546 = vrot.lane.b32.xlu0 %v447, 16
        %v1547 = vpop.permute.xlu0 %1546
        %1548 = vrot.lane.b32.xlu0 %v448, 16
        %v1549 = vpop.permute.xlu0 %1548
        %1550 = vrot.lane.b32.xlu0 %v449, 16
        %v1551 = vpop.permute.xlu0 %1550
        %1552 = vrot.lane.b32.xlu0 %v450, 16
        %v1553 = vpop.permute.xlu0 %1552
        %1554 = vrot.lane.b32.xlu0 %v451, 16
        %v1555 = vpop.permute.xlu0 %1554
        %1556 = vrot.lane.b32.xlu0 %v452, 16
        %v1557 = vpop.permute.xlu0 %1556
        %1558 = vrot.lane.b32.xlu0 %v453, 16
        %v1559 = vpop.permute.xlu0 %1558
        %1560 = vrot.lane.b32.xlu0 %v454, 16
        %v1561 = vpop.permute.xlu0 %1560
        %1562 = vrot.lane.b32.xlu0 %v455, 16
        %v1563 = vpop.permute.xlu0 %1562
        %1564 = vrot.lane.b32.xlu0 %v456, 16
        %v1565 = vpop.permute.xlu0 %1564
        %1566 = vrot.lane.b32.xlu0 %v457, 16
        %v1567 = vpop.permute.xlu0 %1566
        %1568 = vrot.lane.b32.xlu0 %v458, 16
        %v1569 = vpop.permute.xlu0 %1568
        %1570 = vrot.lane.b32.xlu0 %v459, 16
        %v1571 = vpop.permute.xlu0 %1570
        %1572 = vrot.lane.b32.xlu0 %v460, 16
        %v1573 = vpop.permute.xlu0 %1572
        %1574 = vrot.lane.b32.xlu0 %v461, 16
        %v1575 = vpop.permute.xlu0 %1574
        %1576 = vrot.lane.b32.xlu0 %v462, 16
        %v1577 = vpop.permute.xlu0 %1576
        %1578 = vrot.lane.b32.xlu0 %v463, 16
        %v1579 = vpop.permute.xlu0 %1578
        %1580 = vrot.lane.b32.xlu0 %v464, 16
        %v1581 = vpop.permute.xlu0 %1580
        %1582 = vrot.lane.b32.xlu0 %v465, 16
        %v1583 = vpop.permute.xlu0 %1582
        %1584 = vrot.lane.b32.xlu0 %v466, 16
        %v1585 = vpop.permute.xlu0 %1584
        %1586 = vrot.lane.b32.xlu0 %v467, 16
        %v1587 = vpop.permute.xlu0 %1586
        %1588 = vrot.lane.b32.xlu0 %v468, 16
        %v1589 = vpop.permute.xlu0 %1588
        %1590 = vrot.lane.b32.xlu0 %v469, 16
        %v1591 = vpop.permute.xlu0 %1590
        %1592 = vrot.lane.b32.xlu0 %v470, 16
        %v1593 = vpop.permute.xlu0 %1592
        %1658 = vrot.lane.b32.xlu0 %v472, 20
        %v1659 = vpop.permute.xlu0 %1658
        %1660 = vrot.lane.b32.xlu0 %v473, 20
        %v1661 = vpop.permute.xlu0 %1660
        %1662 = vrot.lane.b32.xlu0 %v474, 20
        %v1663 = vpop.permute.xlu0 %1662
        %1664 = vrot.lane.b32.xlu0 %v475, 20
        %v1665 = vpop.permute.xlu0 %1664
        %1666 = vrot.lane.b32.xlu0 %v476, 20
        %v1667 = vpop.permute.xlu0 %1666
        %1668 = vrot.lane.b32.xlu0 %v477, 20
        %v1669 = vpop.permute.xlu0 %1668
        %1670 = vrot.lane.b32.xlu0 %v478, 20
        %v1671 = vpop.permute.xlu0 %1670
        %1672 = vrot.lane.b32.xlu0 %v479, 20
        %v1673 = vpop.permute.xlu0 %1672
        %1674 = vrot.lane.b32.xlu0 %v480, 20
        %v1675 = vpop.permute.xlu0 %1674
        %1676 = vrot.lane.b32.xlu0 %v481, 20
        %v1677 = vpop.permute.xlu0 %1676
        %1678 = vrot.lane.b32.xlu0 %v482, 20
        %v1679 = vpop.permute.xlu0 %1678
        %1680 = vrot.lane.b32.xlu0 %v483, 20
        %v1681 = vpop.permute.xlu0 %1680
        %1682 = vrot.lane.b32.xlu0 %v484, 20
        %v1683 = vpop.permute.xlu0 %1682
        %1684 = vrot.lane.b32.xlu0 %v485, 20
        %v1685 = vpop.permute.xlu0 %1684
        %1686 = vrot.lane.b32.xlu0 %v486, 20
        %v1687 = vpop.permute.xlu0 %1686
        %1688 = vrot.lane.b32.xlu0 %v487, 20
        %v1689 = vpop.permute.xlu0 %1688
        %1690 = vrot.lane.b32.xlu0 %v488, 20
        %v1691 = vpop.permute.xlu0 %1690
        %1692 = vrot.lane.b32.xlu0 %v489, 20
        %v1693 = vpop.permute.xlu0 %1692
        %1694 = vrot.lane.b32.xlu0 %v490, 20
        %v1695 = vpop.permute.xlu0 %1694
        %1696 = vrot.lane.b32.xlu0 %v491, 20
        %v1697 = vpop.permute.xlu0 %1696
        %1698 = vrot.lane.b32.xlu0 %v492, 20
        %v1699 = vpop.permute.xlu0 %1698
        %1700 = vrot.lane.b32.xlu0 %v493, 20
        %v1701 = vpop.permute.xlu0 %1700
        %1702 = vrot.lane.b32.xlu0 %v494, 20
        %v1703 = vpop.permute.xlu0 %1702
        %1704 = vrot.lane.b32.xlu0 %v495, 20
        %v1705 = vpop.permute.xlu0 %1704
        %1706 = vrot.lane.b32.xlu0 %v496, 20
        %v1707 = vpop.permute.xlu0 %1706
        %1708 = vrot.lane.b32.xlu0 %v497, 20
        %v1709 = vpop.permute.xlu0 %1708
        %1710 = vrot.lane.b32.xlu0 %v498, 20
        %v1711 = vpop.permute.xlu0 %1710
        %1712 = vrot.lane.b32.xlu0 %v499, 20
        %v1713 = vpop.permute.xlu0 %1712
        %1714 = vrot.lane.b32.xlu0 %v500, 20
        %v1715 = vpop.permute.xlu0 %1714
        %1716 = vrot.lane.b32.xlu0 %v501, 20
        %v1717 = vpop.permute.xlu0 %1716
        %1718 = vrot.lane.b32.xlu0 %v502, 20
        %v1719 = vpop.permute.xlu0 %1718
        %1720 = vrot.lane.b32.xlu0 %v503, 20
        %v1721 = vpop.permute.xlu0 %1720
        %1786 = vrot.lane.b32.xlu0 %v504, 24
        %v1787 = vpop.permute.xlu0 %1786
        %1788 = vrot.lane.b32.xlu0 %v505, 24
        %v1789 = vpop.permute.xlu0 %1788
        %1790 = vrot.lane.b32.xlu0 %v506, 24
        %v1791 = vpop.permute.xlu0 %1790
        %1792 = vrot.lane.b32.xlu0 %v507, 24
        %v1793 = vpop.permute.xlu0 %1792
        %1794 = vrot.lane.b32.xlu0 %v508, 24
        %v1795 = vpop.permute.xlu0 %1794
        %1796 = vrot.lane.b32.xlu0 %v509, 24
        %v1797 = vpop.permute.xlu0 %1796
        %1798 = vrot.lane.b32.xlu0 %v510, 24
        %v1799 = vpop.permute.xlu0 %1798
        %1800 = vrot.lane.b32.xlu0 %v511, 24
        %v1801 = vpop.permute.xlu0 %1800
        %1802 = vrot.lane.b32.xlu0 %v512, 24
        %v1803 = vpop.permute.xlu0 %1802
        %1804 = vrot.lane.b32.xlu0 %v513, 24
        %v1805 = vpop.permute.xlu0 %1804
        %1806 = vrot.lane.b32.xlu0 %v514, 24
        %v1807 = vpop.permute.xlu0 %1806
        %1808 = vrot.lane.b32.xlu0 %v515, 24
        %v1809 = vpop.permute.xlu0 %1808
        %1810 = vrot.lane.b32.xlu0 %v516, 24
        %v1811 = vpop.permute.xlu0 %1810
        %1812 = vrot.lane.b32.xlu0 %v517, 24
        %v1813 = vpop.permute.xlu0 %1812
        %1814 = vrot.lane.b32.xlu0 %v518, 24
        %v1815 = vpop.permute.xlu0 %1814
        %1816 = vrot.lane.b32.xlu0 %v519, 24
        %v1817 = vpop.permute.xlu0 %1816
        %1818 = vrot.lane.b32.xlu0 %v520, 24
        %v1819 = vpop.permute.xlu0 %1818
        %1820 = vrot.lane.b32.xlu0 %v521, 24
        %v1821 = vpop.permute.xlu0 %1820
        %1822 = vrot.lane.b32.xlu0 %v522, 24
        %v1823 = vpop.permute.xlu0 %1822
        %1824 = vrot.lane.b32.xlu0 %v523, 24
        %v1825 = vpop.permute.xlu0 %1824
        %1826 = vrot.lane.b32.xlu0 %v524, 24
        %v1827 = vpop.permute.xlu0 %1826
        %1828 = vrot.lane.b32.xlu0 %v525, 24
        %v1829 = vpop.permute.xlu0 %1828
        %1830 = vrot.lane.b32.xlu0 %v526, 24
        %v1831 = vpop.permute.xlu0 %1830
        %1832 = vrot.lane.b32.xlu0 %v527, 24
        %v1833 = vpop.permute.xlu0 %1832
        %1834 = vrot.lane.b32.xlu0 %v528, 24
        %v1835 = vpop.permute.xlu0 %1834
        %1836 = vrot.lane.b32.xlu0 %v529, 24
        %v1837 = vpop.permute.xlu0 %1836
        %1838 = vrot.lane.b32.xlu0 %v530, 24
        %v1839 = vpop.permute.xlu0 %1838
        %1840 = vrot.lane.b32.xlu0 %v531, 24
        %v1841 = vpop.permute.xlu0 %1840
        %1842 = vrot.lane.b32.xlu0 %v532, 24
        %v1843 = vpop.permute.xlu0 %1842
        %1844 = vrot.lane.b32.xlu0 %v533, 24
        %v1845 = vpop.permute.xlu0 %1844
        %1846 = vrot.lane.b32.xlu0 %v534, 24
        %v1847 = vpop.permute.xlu0 %1846
        %1848 = vrot.lane.b32.xlu0 %v535, 24
        %v1849 = vpop.permute.xlu0 %1848
        %1914 = vrot.lane.b32.xlu0 %v536, 28
        %v1915 = vpop.permute.xlu0 %1914
        %1916 = vrot.lane.b32.xlu0 %v537, 28
        %v1917 = vpop.permute.xlu0 %1916
        %1918 = vrot.lane.b32.xlu0 %v538, 28
        %v1919 = vpop.permute.xlu0 %1918
        %1920 = vrot.lane.b32.xlu0 %v539, 28
        %v1921 = vpop.permute.xlu0 %1920
        %1922 = vrot.lane.b32.xlu0 %v540, 28
        %v1923 = vpop.permute.xlu0 %1922
        %1924 = vrot.lane.b32.xlu0 %v541, 28
        %v1925 = vpop.permute.xlu0 %1924
        %1926 = vrot.lane.b32.xlu0 %v542, 28
        %v1927 = vpop.permute.xlu0 %1926
        %1928 = vrot.lane.b32.xlu0 %v543, 28
        %v1929 = vpop.permute.xlu0 %1928
        %1930 = vrot.lane.b32.xlu0 %v544, 28
        %v1931 = vpop.permute.xlu0 %1930
        %1932 = vrot.lane.b32.xlu0 %v545, 28
        %v1933 = vpop.permute.xlu0 %1932
        %1934 = vrot.lane.b32.xlu0 %v546, 28
        %v1935 = vpop.permute.xlu0 %1934
        %1936 = vrot.lane.b32.xlu0 %v547, 28
        %v1937 = vpop.permute.xlu0 %1936
        %1938 = vrot.lane.b32.xlu0 %v548, 28
        %v1939 = vpop.permute.xlu0 %1938
        %1940 = vrot.lane.b32.xlu0 %v549, 28
        %v1941 = vpop.permute.xlu0 %1940
        %1942 = vrot.lane.b32.xlu0 %v550, 28
        %v1943 = vpop.permute.xlu0 %1942
        %1944 = vrot.lane.b32.xlu0 %v551, 28
        %v1945 = vpop.permute.xlu0 %1944
        %1946 = vrot.lane.b32.xlu0 %v552, 28
        %v1947 = vpop.permute.xlu0 %1946
        %1948 = vrot.lane.b32.xlu0 %v553, 28
        %v1949 = vpop.permute.xlu0 %1948
        %1950 = vrot.lane.b32.xlu0 %v554, 28
        %v1951 = vpop.permute.xlu0 %1950
        %1952 = vrot.lane.b32.xlu0 %v555, 28
        %v1953 = vpop.permute.xlu0 %1952
        %1954 = vrot.lane.b32.xlu0 %v556, 28
        %v1955 = vpop.permute.xlu0 %1954
        %1956 = vrot.lane.b32.xlu0 %v557, 28
        %v1957 = vpop.permute.xlu0 %1956
        %1958 = vrot.lane.b32.xlu0 %v558, 28
        %v1959 = vpop.permute.xlu0 %1958
        %1960 = vrot.lane.b32.xlu0 %v559, 28
        %v1961 = vpop.permute.xlu0 %1960
        %1962 = vrot.lane.b32.xlu0 %v560, 28
        %v1963 = vpop.permute.xlu0 %1962
        %1964 = vrot.lane.b32.xlu0 %v561, 28
        %v1965 = vpop.permute.xlu0 %1964
        %1966 = vrot.lane.b32.xlu0 %v562, 28
        %v1967 = vpop.permute.xlu0 %1966
        %1968 = vrot.lane.b32.xlu0 %v563, 28
        %v1969 = vpop.permute.xlu0 %1968
        %1970 = vrot.lane.b32.xlu0 %v564, 28
        %v1971 = vpop.permute.xlu0 %1970
        %1972 = vrot.lane.b32.xlu0 %v565, 28
        %v1973 = vpop.permute.xlu0 %1972
        %1974 = vrot.lane.b32.xlu0 %v566, 28
        %v1975 = vpop.permute.xlu0 %1974
        %1976 = vrot.lane.b32.xlu0 %v567, 28
        %v1977 = vpop.permute.xlu0 %1976
        %2042 = vrot.lane.b32.xlu0 %v568, 32
        %v2043 = vpop.permute.xlu0 %2042
        %2044 = vrot.lane.b32.xlu0 %v569, 32
        %v2045 = vpop.permute.xlu0 %2044
        %2046 = vrot.lane.b32.xlu0 %v570, 32
        %v2047 = vpop.permute.xlu0 %2046
        %2048 = vrot.lane.b32.xlu0 %v571, 32
        %v2049 = vpop.permute.xlu0 %2048
        %2050 = vrot.lane.b32.xlu0 %v572, 32
        %v2051 = vpop.permute.xlu0 %2050
        %2052 = vrot.lane.b32.xlu0 %v573, 32
        %v2053 = vpop.permute.xlu0 %2052
        %2054 = vrot.lane.b32.xlu0 %v574, 32
        %v2055 = vpop.permute.xlu0 %2054
        %2056 = vrot.lane.b32.xlu0 %v575, 32
        %v2057 = vpop.permute.xlu0 %2056
        %2058 = vrot.lane.b32.xlu0 %v576, 32
        %v2059 = vpop.permute.xlu0 %2058
        %2060 = vrot.lane.b32.xlu0 %v577, 32
        %v2061 = vpop.permute.xlu0 %2060
        %2062 = vrot.lane.b32.xlu0 %v578, 32
        %v2063 = vpop.permute.xlu0 %2062
        %2064 = vrot.lane.b32.xlu0 %v579, 32
        %v2065 = vpop.permute.xlu0 %2064
        %2066 = vrot.lane.b32.xlu0 %v580, 32
        %v2067 = vpop.permute.xlu0 %2066
        %2068 = vrot.lane.b32.xlu0 %v581, 32
        %v2069 = vpop.permute.xlu0 %2068
        %2070 = vrot.lane.b32.xlu0 %v582, 32
        %v2071 = vpop.permute.xlu0 %2070
        %2072 = vrot.lane.b32.xlu0 %v583, 32
        %v2073 = vpop.permute.xlu0 %2072
        %2074 = vrot.lane.b32.xlu0 %v584, 32
        %v2075 = vpop.permute.xlu0 %2074
        %2076 = vrot.lane.b32.xlu0 %v585, 32
        %v2077 = vpop.permute.xlu0 %2076
        %2078 = vrot.lane.b32.xlu0 %v586, 32
        %v2079 = vpop.permute.xlu0 %2078
        %2080 = vrot.lane.b32.xlu0 %v587, 32
        %v2081 = vpop.permute.xlu0 %2080
        %2082 = vrot.lane.b32.xlu0 %v588, 32
        %v2083 = vpop.permute.xlu0 %2082
        %2084 = vrot.lane.b32.xlu0 %v589, 32
        %v2085 = vpop.permute.xlu0 %2084
        %2086 = vrot.lane.b32.xlu0 %v590, 32
        %v2087 = vpop.permute.xlu0 %2086
        %2088 = vrot.lane.b32.xlu0 %v591, 32
        %v2089 = vpop.permute.xlu0 %2088
        %2090 = vrot.lane.b32.xlu0 %v592, 32
        %v2091 = vpop.permute.xlu0 %2090
        %2092 = vrot.lane.b32.xlu0 %v593, 32
        %v2093 = vpop.permute.xlu0 %2092
        %2094 = vrot.lane.b32.xlu0 %v594, 32
        %v2095 = vpop.permute.xlu0 %2094
        %2096 = vrot.lane.b32.xlu0 %v595, 32
        %v2097 = vpop.permute.xlu0 %2096
        %2098 = vrot.lane.b32.xlu0 %v596, 32
        %v2099 = vpop.permute.xlu0 %2098
        %2100 = vrot.lane.b32.xlu0 %v597, 32
        %v2101 = vpop.permute.xlu0 %2100
        %2102 = vrot.lane.b32.xlu0 %v598, 32
        %v2103 = vpop.permute.xlu0 %2102
        %2104 = vrot.lane.b32.xlu0 %v599, 32
        %v2105 = vpop.permute.xlu0 %2104
        %2170 = vrot.lane.b32.xlu0 %v600, 36
        %v2171 = vpop.permute.xlu0 %2170
        %2172 = vrot.lane.b32.xlu0 %v601, 36
        %v2173 = vpop.permute.xlu0 %2172
        %2174 = vrot.lane.b32.xlu0 %v602, 36
        %v2175 = vpop.permute.xlu0 %2174
        %2176 = vrot.lane.b32.xlu0 %v603, 36
        %v2177 = vpop.permute.xlu0 %2176
        %2178 = vrot.lane.b32.xlu0 %v604, 36
        %v2179 = vpop.permute.xlu0 %2178
        %2180 = vrot.lane.b32.xlu0 %v605, 36
        %v2181 = vpop.permute.xlu0 %2180
        %2182 = vrot.lane.b32.xlu0 %v606, 36
        %v2183 = vpop.permute.xlu0 %2182
        %2184 = vrot.lane.b32.xlu0 %v607, 36
        %v2185 = vpop.permute.xlu0 %2184
        %2186 = vrot.lane.b32.xlu0 %v608, 36
        %v2187 = vpop.permute.xlu0 %2186
        %2188 = vrot.lane.b32.xlu0 %v609, 36
        %v2189 = vpop.permute.xlu0 %2188
        %2190 = vrot.lane.b32.xlu0 %v610, 36
        %v2191 = vpop.permute.xlu0 %2190
        %2192 = vrot.lane.b32.xlu0 %v611, 36
        %v2193 = vpop.permute.xlu0 %2192
        %2194 = vrot.lane.b32.xlu0 %v612, 36
        %v2195 = vpop.permute.xlu0 %2194
        %2196 = vrot.lane.b32.xlu0 %v613, 36
        %v2197 = vpop.permute.xlu0 %2196
        %2198 = vrot.lane.b32.xlu0 %v614, 36
        %v2199 = vpop.permute.xlu0 %2198
        %2200 = vrot.lane.b32.xlu0 %v615, 36
        %v2201 = vpop.permute.xlu0 %2200
        %2202 = vrot.lane.b32.xlu0 %v616, 36
        %v2203 = vpop.permute.xlu0 %2202
        %2204 = vrot.lane.b32.xlu0 %v617, 36
        %v2205 = vpop.permute.xlu0 %2204
        %2206 = vrot.lane.b32.xlu0 %v618, 36
        %v2207 = vpop.permute.xlu0 %2206
        %2208 = vrot.lane.b32.xlu0 %v619, 36
        %v2209 = vpop.permute.xlu0 %2208
        %2210 = vrot.lane.b32.xlu0 %v620, 36
        %v2211 = vpop.permute.xlu0 %2210
        %2212 = vrot.lane.b32.xlu0 %v621, 36
        %v2213 = vpop.permute.xlu0 %2212
        %2214 = vrot.lane.b32.xlu0 %v622, 36
        %v2215 = vpop.permute.xlu0 %2214
        %2216 = vrot.lane.b32.xlu0 %v623, 36
        %v2217 = vpop.permute.xlu0 %2216
        %2218 = vrot.lane.b32.xlu0 %v624, 36
        %v2219 = vpop.permute.xlu0 %2218
        %2220 = vrot.lane.b32.xlu0 %v625, 36
        %v2221 = vpop.permute.xlu0 %2220
        %2222 = vrot.lane.b32.xlu0 %v626, 36
        %v2223 = vpop.permute.xlu0 %2222
        %2224 = vrot.lane.b32.xlu0 %v627, 36
        %v2225 = vpop.permute.xlu0 %2224
        %2226 = vrot.lane.b32.xlu0 %v628, 36
        %v2227 = vpop.permute.xlu0 %2226
        %2228 = vrot.lane.b32.xlu0 %v629, 36
        %v2229 = vpop.permute.xlu0 %2228
        %2230 = vrot.lane.b32.xlu0 %v630, 36
        %v2231 = vpop.permute.xlu0 %2230
        %2232 = vrot.lane.b32.xlu0 %v631, 36
        %v2233 = vpop.permute.xlu0 %2232
        %2298 = vrot.lane.b32.xlu0 %v632, 40
        %v2299 = vpop.permute.xlu0 %2298
        %2300 = vrot.lane.b32.xlu0 %v633, 40
        %v2301 = vpop.permute.xlu0 %2300
        %2302 = vrot.lane.b32.xlu0 %v634, 40
        %v2303 = vpop.permute.xlu0 %2302
        %2304 = vrot.lane.b32.xlu0 %v635, 40
        %v2305 = vpop.permute.xlu0 %2304
        %2306 = vrot.lane.b32.xlu0 %v636, 40
        %v2307 = vpop.permute.xlu0 %2306
        %2308 = vrot.lane.b32.xlu0 %v637, 40
        %v2309 = vpop.permute.xlu0 %2308
        %2310 = vrot.lane.b32.xlu0 %v638, 40
        %v2311 = vpop.permute.xlu0 %2310
        %2312 = vrot.lane.b32.xlu0 %v639, 40
        %v2313 = vpop.permute.xlu0 %2312
        %2314 = vrot.lane.b32.xlu0 %v640, 40
        %v2315 = vpop.permute.xlu0 %2314
        %2316 = vrot.lane.b32.xlu0 %v641, 40
        %v2317 = vpop.permute.xlu0 %2316
        %2318 = vrot.lane.b32.xlu0 %v642, 40
        %v2319 = vpop.permute.xlu0 %2318
        %2320 = vrot.lane.b32.xlu0 %v643, 40
        %v2321 = vpop.permute.xlu0 %2320
        %2322 = vrot.lane.b32.xlu0 %v644, 40
        %v2323 = vpop.permute.xlu0 %2322
        %2324 = vrot.lane.b32.xlu0 %v645, 40
        %v2325 = vpop.permute.xlu0 %2324
        %2326 = vrot.lane.b32.xlu0 %v646, 40
        %v2327 = vpop.permute.xlu0 %2326
        %2328 = vrot.lane.b32.xlu0 %v647, 40
        %v2329 = vpop.permute.xlu0 %2328
        %2330 = vrot.lane.b32.xlu0 %v648, 40
        %v2331 = vpop.permute.xlu0 %2330
        %2332 = vrot.lane.b32.xlu0 %v649, 40
        %v2333 = vpop.permute.xlu0 %2332
        %2334 = vrot.lane.b32.xlu0 %v650, 40
        %v2335 = vpop.permute.xlu0 %2334
        %2336 = vrot.lane.b32.xlu0 %v651, 40
        %v2337 = vpop.permute.xlu0 %2336
        %2338 = vrot.lane.b32.xlu0 %v652, 40
        %v2339 = vpop.permute.xlu0 %2338
        %2340 = vrot.lane.b32.xlu0 %v653, 40
        %v2341 = vpop.permute.xlu0 %2340
        %2342 = vrot.lane.b32.xlu0 %v654, 40
        %v2343 = vpop.permute.xlu0 %2342
        %2344 = vrot.lane.b32.xlu0 %v655, 40
        %v2345 = vpop.permute.xlu0 %2344
        %2346 = vrot.lane.b32.xlu0 %v656, 40
        %v2347 = vpop.permute.xlu0 %2346
        %2348 = vrot.lane.b32.xlu0 %v657, 40
        %v2349 = vpop.permute.xlu0 %2348
        %2350 = vrot.lane.b32.xlu0 %v658, 40
        %v2351 = vpop.permute.xlu0 %2350
        %2352 = vrot.lane.b32.xlu0 %v659, 40
        %v2353 = vpop.permute.xlu0 %2352
        %2354 = vrot.lane.b32.xlu0 %v660, 40
        %v2355 = vpop.permute.xlu0 %2354
        %2356 = vrot.lane.b32.xlu0 %v661, 40
        %v2357 = vpop.permute.xlu0 %2356
        %2358 = vrot.lane.b32.xlu0 %v662, 40
        %v2359 = vpop.permute.xlu0 %2358
        %2360 = vrot.lane.b32.xlu0 %v663, 40
        %v2361 = vpop.permute.xlu0 %2360
        %2426 = vrot.lane.b32.xlu0 %v664, 44
        %v2427 = vpop.permute.xlu0 %2426
        %2428 = vrot.lane.b32.xlu0 %v665, 44
        %v2429 = vpop.permute.xlu0 %2428
        %2430 = vrot.lane.b32.xlu0 %v666, 44
        %v2431 = vpop.permute.xlu0 %2430
        %2432 = vrot.lane.b32.xlu0 %v667, 44
        %v2433 = vpop.permute.xlu0 %2432
        %2434 = vrot.lane.b32.xlu0 %v668, 44
        %v2435 = vpop.permute.xlu0 %2434
        %2436 = vrot.lane.b32.xlu0 %v669, 44
        %v2437 = vpop.permute.xlu0 %2436
        %2438 = vrot.lane.b32.xlu0 %v670, 44
        %v2439 = vpop.permute.xlu0 %2438
        %2440 = vrot.lane.b32.xlu0 %v671, 44
        %v2441 = vpop.permute.xlu0 %2440
        %2442 = vrot.lane.b32.xlu0 %v672, 44
        %v2443 = vpop.permute.xlu0 %2442
        %2444 = vrot.lane.b32.xlu0 %v673, 44
        %v2445 = vpop.permute.xlu0 %2444
        %2446 = vrot.lane.b32.xlu0 %v674, 44
        %v2447 = vpop.permute.xlu0 %2446
        %2448 = vrot.lane.b32.xlu0 %v675, 44
        %v2449 = vpop.permute.xlu0 %2448
        %2450 = vrot.lane.b32.xlu0 %v676, 44
        %v2451 = vpop.permute.xlu0 %2450
        %2452 = vrot.lane.b32.xlu0 %v677, 44
        %v2453 = vpop.permute.xlu0 %2452
        %2454 = vrot.lane.b32.xlu0 %v678, 44
        %v2455 = vpop.permute.xlu0 %2454
        %2456 = vrot.lane.b32.xlu0 %v679, 44
        %v2457 = vpop.permute.xlu0 %2456
        %2458 = vrot.lane.b32.xlu0 %v680, 44
        %v2459 = vpop.permute.xlu0 %2458
        %2460 = vrot.lane.b32.xlu0 %v681, 44
        %v2461 = vpop.permute.xlu0 %2460
        %2462 = vrot.lane.b32.xlu0 %v682, 44
        %v2463 = vpop.permute.xlu0 %2462
        %2464 = vrot.lane.b32.xlu0 %v683, 44
        %v2465 = vpop.permute.xlu0 %2464
        %2466 = vrot.lane.b32.xlu0 %v684, 44
        %v2467 = vpop.permute.xlu0 %2466
        %2468 = vrot.lane.b32.xlu0 %v685, 44
        %v2469 = vpop.permute.xlu0 %2468
        %2470 = vrot.lane.b32.xlu0 %v686, 44
        %v2471 = vpop.permute.xlu0 %2470
        %2472 = vrot.lane.b32.xlu0 %v687, 44
        %v2473 = vpop.permute.xlu0 %2472
        %2474 = vrot.lane.b32.xlu0 %v688, 44
        %v2475 = vpop.permute.xlu0 %2474
        %2476 = vrot.lane.b32.xlu0 %v689, 44
        %v2477 = vpop.permute.xlu0 %2476
        %2478 = vrot.lane.b32.xlu0 %v690, 44
        %v2479 = vpop.permute.xlu0 %2478
        %2480 = vrot.lane.b32.xlu0 %v691, 44
        %v2481 = vpop.permute.xlu0 %2480
        %2482 = vrot.lane.b32.xlu0 %v692, 44
        %v2483 = vpop.permute.xlu0 %2482
        %2484 = vrot.lane.b32.xlu0 %v693, 44
        %v2485 = vpop.permute.xlu0 %2484
        %2486 = vrot.lane.b32.xlu0 %v694, 44
        %v2487 = vpop.permute.xlu0 %2486
        %2488 = vrot.lane.b32.xlu0 %v695, 44
        %v2489 = vpop.permute.xlu0 %2488
        %2554 = vrot.lane.b32.xlu0 %v696, 48
        %v2555 = vpop.permute.xlu0 %2554
        %2556 = vrot.lane.b32.xlu0 %v697, 48
        %v2557 = vpop.permute.xlu0 %2556
        %2558 = vrot.lane.b32.xlu0 %v698, 48
        %v2559 = vpop.permute.xlu0 %2558
        %2560 = vrot.lane.b32.xlu0 %v699, 48
        %v2561 = vpop.permute.xlu0 %2560
        %2562 = vrot.lane.b32.xlu0 %v700, 48
        %v2563 = vpop.permute.xlu0 %2562
        %2564 = vrot.lane.b32.xlu0 %v701, 48
        %v2565 = vpop.permute.xlu0 %2564
        %2566 = vrot.lane.b32.xlu0 %v702, 48
        %v2567 = vpop.permute.xlu0 %2566
        %2568 = vrot.lane.b32.xlu0 %v703, 48
        %v2569 = vpop.permute.xlu0 %2568
        %2570 = vrot.lane.b32.xlu0 %v704, 48
        %v2571 = vpop.permute.xlu0 %2570
        %2572 = vrot.lane.b32.xlu0 %v705, 48
        %v2573 = vpop.permute.xlu0 %2572
        %2574 = vrot.lane.b32.xlu0 %v706, 48
        %v2575 = vpop.permute.xlu0 %2574
        %2576 = vrot.lane.b32.xlu0 %v707, 48
        %v2577 = vpop.permute.xlu0 %2576
        %2578 = vrot.lane.b32.xlu0 %v708, 48
        %v2579 = vpop.permute.xlu0 %2578
        %2580 = vrot.lane.b32.xlu0 %v709, 48
        %v2581 = vpop.permute.xlu0 %2580
        %2582 = vrot.lane.b32.xlu0 %v710, 48
        %v2583 = vpop.permute.xlu0 %2582
        %2584 = vrot.lane.b32.xlu0 %v711, 48
        %v2585 = vpop.permute.xlu0 %2584
        %2586 = vrot.lane.b32.xlu0 %v712, 48
        %v2587 = vpop.permute.xlu0 %2586
        %2588 = vrot.lane.b32.xlu0 %v713, 48
        %v2589 = vpop.permute.xlu0 %2588
        %2590 = vrot.lane.b32.xlu0 %v714, 48
        %v2591 = vpop.permute.xlu0 %2590
        %2592 = vrot.lane.b32.xlu0 %v715, 48
        %v2593 = vpop.permute.xlu0 %2592
        %2594 = vrot.lane.b32.xlu0 %v716, 48
        %v2595 = vpop.permute.xlu0 %2594
        %2596 = vrot.lane.b32.xlu0 %v717, 48
        %v2597 = vpop.permute.xlu0 %2596
        %2598 = vrot.lane.b32.xlu0 %v718, 48
        %v2599 = vpop.permute.xlu0 %2598
        %2600 = vrot.lane.b32.xlu0 %v719, 48
        %v2601 = vpop.permute.xlu0 %2600
        %2602 = vrot.lane.b32.xlu0 %v720, 48
        %v2603 = vpop.permute.xlu0 %2602
        %2604 = vrot.lane.b32.xlu0 %v721, 48
        %v2605 = vpop.permute.xlu0 %2604
        %2606 = vrot.lane.b32.xlu0 %v722, 48
        %v2607 = vpop.permute.xlu0 %2606
        %2608 = vrot.lane.b32.xlu0 %v723, 48
        %v2609 = vpop.permute.xlu0 %2608
        %2610 = vrot.lane.b32.xlu0 %v724, 48
        %v2611 = vpop.permute.xlu0 %2610
        %2612 = vrot.lane.b32.xlu0 %v725, 48
        %v2613 = vpop.permute.xlu0 %2612
        %2614 = vrot.lane.b32.xlu0 %v726, 48
        %v2615 = vpop.permute.xlu0 %2614
        %2616 = vrot.lane.b32.xlu0 %v727, 48
        %v2617 = vpop.permute.xlu0 %2616
        %2682 = vrot.lane.b32.xlu0 %v728, 52
        %v2683 = vpop.permute.xlu0 %2682
        %2684 = vrot.lane.b32.xlu0 %v729, 52
        %v2685 = vpop.permute.xlu0 %2684
        %2686 = vrot.lane.b32.xlu0 %v730, 52
        %v2687 = vpop.permute.xlu0 %2686
        %2688 = vrot.lane.b32.xlu0 %v731, 52
        %v2689 = vpop.permute.xlu0 %2688
        %2690 = vrot.lane.b32.xlu0 %v732, 52
        %v2691 = vpop.permute.xlu0 %2690
        %2692 = vrot.lane.b32.xlu0 %v733, 52
        %v2693 = vpop.permute.xlu0 %2692
        %2694 = vrot.lane.b32.xlu0 %v734, 52
        %v2695 = vpop.permute.xlu0 %2694
        %2696 = vrot.lane.b32.xlu0 %v735, 52
        %v2697 = vpop.permute.xlu0 %2696
        %2698 = vrot.lane.b32.xlu0 %v736, 52
        %v2699 = vpop.permute.xlu0 %2698
        %2700 = vrot.lane.b32.xlu0 %v737, 52
        %v2701 = vpop.permute.xlu0 %2700
        %2702 = vrot.lane.b32.xlu0 %v738, 52
        %v2703 = vpop.permute.xlu0 %2702
        %2704 = vrot.lane.b32.xlu0 %v739, 52
        %v2705 = vpop.permute.xlu0 %2704
        %2706 = vrot.lane.b32.xlu0 %v740, 52
        %v2707 = vpop.permute.xlu0 %2706
        %2708 = vrot.lane.b32.xlu0 %v741, 52
        %v2709 = vpop.permute.xlu0 %2708
        %2710 = vrot.lane.b32.xlu0 %v742, 52
        %v2711 = vpop.permute.xlu0 %2710
        %2712 = vrot.lane.b32.xlu0 %v743, 52
        %v2713 = vpop.permute.xlu0 %2712
        %2714 = vrot.lane.b32.xlu0 %v744, 52
        %v2715 = vpop.permute.xlu0 %2714
        %2716 = vrot.lane.b32.xlu0 %v745, 52
        %v2717 = vpop.permute.xlu0 %2716
        %2718 = vrot.lane.b32.xlu0 %v746, 52
        %v2719 = vpop.permute.xlu0 %2718
        %2720 = vrot.lane.b32.xlu0 %v747, 52
        %v2721 = vpop.permute.xlu0 %2720
        %2722 = vrot.lane.b32.xlu0 %v748, 52
        %v2723 = vpop.permute.xlu0 %2722
        %2724 = vrot.lane.b32.xlu0 %v749, 52
        %v2725 = vpop.permute.xlu0 %2724
        %2726 = vrot.lane.b32.xlu0 %v750, 52
        %v2727 = vpop.permute.xlu0 %2726
        %2728 = vrot.lane.b32.xlu0 %v751, 52
        %v2729 = vpop.permute.xlu0 %2728
        %2730 = vrot.lane.b32.xlu0 %v752, 52
        %v2731 = vpop.permute.xlu0 %2730
        %2732 = vrot.lane.b32.xlu0 %v753, 52
        %v2733 = vpop.permute.xlu0 %2732
        %2734 = vrot.lane.b32.xlu0 %v754, 52
        %v2735 = vpop.permute.xlu0 %2734
        %2736 = vrot.lane.b32.xlu0 %v755, 52
        %v2737 = vpop.permute.xlu0 %2736
        %2738 = vrot.lane.b32.xlu0 %v756, 52
        %v2739 = vpop.permute.xlu0 %2738
        %2740 = vrot.lane.b32.xlu0 %v757, 52
        %v2741 = vpop.permute.xlu0 %2740
        %2742 = vrot.lane.b32.xlu0 %v758, 52
        %v2743 = vpop.permute.xlu0 %2742
        %2744 = vrot.lane.b32.xlu0 %v759, 52
        %v2745 = vpop.permute.xlu0 %2744
        %2810 = vrot.lane.b32.xlu0 %v760, 56
        %v2811 = vpop.permute.xlu0 %2810
        %2812 = vrot.lane.b32.xlu0 %v761, 56
        %v2813 = vpop.permute.xlu0 %2812
        %2814 = vrot.lane.b32.xlu0 %v762, 56
        %v2815 = vpop.permute.xlu0 %2814
        %2816 = vrot.lane.b32.xlu0 %v763, 56
        %v2817 = vpop.permute.xlu0 %2816
        %2818 = vrot.lane.b32.xlu0 %v764, 56
        %v2819 = vpop.permute.xlu0 %2818
        %2820 = vrot.lane.b32.xlu0 %v765, 56
        %v2821 = vpop.permute.xlu0 %2820
        %2822 = vrot.lane.b32.xlu0 %v766, 56
        %v2823 = vpop.permute.xlu0 %2822
        %2824 = vrot.lane.b32.xlu0 %v767, 56
        %v2825 = vpop.permute.xlu0 %2824
        %2826 = vrot.lane.b32.xlu0 %v768, 56
        %v2827 = vpop.permute.xlu0 %2826
        %2828 = vrot.lane.b32.xlu0 %v769, 56
        %v2829 = vpop.permute.xlu0 %2828
        %2830 = vrot.lane.b32.xlu0 %v770, 56
        %v2831 = vpop.permute.xlu0 %2830
        %2832 = vrot.lane.b32.xlu0 %v771, 56
        %v2833 = vpop.permute.xlu0 %2832
        %2834 = vrot.lane.b32.xlu0 %v772, 56
        %v2835 = vpop.permute.xlu0 %2834
        %2836 = vrot.lane.b32.xlu0 %v773, 56
        %v2837 = vpop.permute.xlu0 %2836
        %2838 = vrot.lane.b32.xlu0 %v774, 56
        %v2839 = vpop.permute.xlu0 %2838
        %2840 = vrot.lane.b32.xlu0 %v775, 56
        %v2841 = vpop.permute.xlu0 %2840
        %2842 = vrot.lane.b32.xlu0 %v776, 56
        %v2843 = vpop.permute.xlu0 %2842
        %2844 = vrot.lane.b32.xlu0 %v777, 56
        %v2845 = vpop.permute.xlu0 %2844
        %2846 = vrot.lane.b32.xlu0 %v778, 56
        %v2847 = vpop.permute.xlu0 %2846
        %2848 = vrot.lane.b32.xlu0 %v779, 56
        %v2849 = vpop.permute.xlu0 %2848
        %2850 = vrot.lane.b32.xlu0 %v780, 56
        %v2851 = vpop.permute.xlu0 %2850
        %2852 = vrot.lane.b32.xlu0 %v781, 56
        %v2853 = vpop.permute.xlu0 %2852
        %2854 = vrot.lane.b32.xlu0 %v782, 56
        %v2855 = vpop.permute.xlu0 %2854
        %2856 = vrot.lane.b32.xlu0 %v783, 56
        %v2857 = vpop.permute.xlu0 %2856
        %2858 = vrot.lane.b32.xlu0 %v784, 56
        %v2859 = vpop.permute.xlu0 %2858
        %2860 = vrot.lane.b32.xlu0 %v785, 56
        %v2861 = vpop.permute.xlu0 %2860
        %2862 = vrot.lane.b32.xlu0 %v786, 56
        %v2863 = vpop.permute.xlu0 %2862
        %2864 = vrot.lane.b32.xlu0 %v787, 56
        %v2865 = vpop.permute.xlu0 %2864
        %2866 = vrot.lane.b32.xlu0 %v788, 56
        %v2867 = vpop.permute.xlu0 %2866
        %2868 = vrot.lane.b32.xlu0 %v789, 56
        %v2869 = vpop.permute.xlu0 %2868
        %2870 = vrot.lane.b32.xlu0 %v790, 56
        %v2871 = vpop.permute.xlu0 %2870
        %2872 = vrot.lane.b32.xlu0 %v791, 56
        %v2873 = vpop.permute.xlu0 %2872
        %2938 = vrot.lane.b32.xlu0 %v793, 60
        %v2939 = vpop.permute.xlu0 %2938
        %2940 = vrot.lane.b32.xlu0 %v794, 60
        %v2941 = vpop.permute.xlu0 %2940
        %2942 = vrot.lane.b32.xlu0 %v795, 60
        %v2943 = vpop.permute.xlu0 %2942
        %2944 = vrot.lane.b32.xlu0 %v796, 60
        %v2945 = vpop.permute.xlu0 %2944
        %2946 = vrot.lane.b32.xlu0 %v797, 60
        %v2947 = vpop.permute.xlu0 %2946
        %2948 = vrot.lane.b32.xlu0 %v798, 60
        %v2949 = vpop.permute.xlu0 %2948
        %2950 = vrot.lane.b32.xlu0 %v799, 60
        %v2951 = vpop.permute.xlu0 %2950
        %2952 = vrot.lane.b32.xlu0 %v800, 60
        %v2953 = vpop.permute.xlu0 %2952
        %2954 = vrot.lane.b32.xlu0 %v801, 60
        %v2955 = vpop.permute.xlu0 %2954
        %2956 = vrot.lane.b32.xlu0 %v802, 60
        %v2957 = vpop.permute.xlu0 %2956
        %2958 = vrot.lane.b32.xlu0 %v803, 60
        %v2959 = vpop.permute.xlu0 %2958
        %2960 = vrot.lane.b32.xlu0 %v804, 60
        %v2961 = vpop.permute.xlu0 %2960
        %2962 = vrot.lane.b32.xlu0 %v805, 60
        %v2963 = vpop.permute.xlu0 %2962
        %2964 = vrot.lane.b32.xlu0 %v806, 60
        %v2965 = vpop.permute.xlu0 %2964
        %2966 = vrot.lane.b32.xlu0 %v807, 60
        %v2967 = vpop.permute.xlu0 %2966
        %2968 = vrot.lane.b32.xlu0 %v808, 60
        %v2969 = vpop.permute.xlu0 %2968
        %2970 = vrot.lane.b32.xlu0 %v809, 60
        %v2971 = vpop.permute.xlu0 %2970
        %2972 = vrot.lane.b32.xlu0 %v810, 60
        %v2973 = vpop.permute.xlu0 %2972
        %2974 = vrot.lane.b32.xlu0 %v811, 60
        %v2975 = vpop.permute.xlu0 %2974
        %2976 = vrot.lane.b32.xlu0 %v812, 60
        %v2977 = vpop.permute.xlu0 %2976
        %2978 = vrot.lane.b32.xlu0 %v813, 60
        %v2979 = vpop.permute.xlu0 %2978
        %2980 = vrot.lane.b32.xlu0 %v814, 60
        %v2981 = vpop.permute.xlu0 %2980
        %2982 = vrot.lane.b32.xlu0 %v815, 60
        %v2983 = vpop.permute.xlu0 %2982
        %2984 = vrot.lane.b32.xlu0 %v816, 60
        %v2985 = vpop.permute.xlu0 %2984
        %2986 = vrot.lane.b32.xlu0 %v817, 60
        %v2987 = vpop.permute.xlu0 %2986
        %2988 = vrot.lane.b32.xlu0 %v818, 60
        %v2989 = vpop.permute.xlu0 %2988
        %2990 = vrot.lane.b32.xlu0 %v819, 60
        %v2991 = vpop.permute.xlu0 %2990
        %2992 = vrot.lane.b32.xlu0 %v820, 60
        %v2993 = vpop.permute.xlu0 %2992
        %2994 = vrot.lane.b32.xlu0 %v821, 60
        %v2995 = vpop.permute.xlu0 %2994
        %2996 = vrot.lane.b32.xlu0 %v822, 60
        %v2997 = vpop.permute.xlu0 %2996
        %2998 = vrot.lane.b32.xlu0 %v823, 60
        %v2999 = vpop.permute.xlu0 %2998
        %3000 = vrot.lane.b32.xlu0 %v824, 60
        %v3001 = vpop.permute.xlu0 %3000
        %v3034 = vsel %vm184, %v311, %v1147
        %v3035 = vsel %vm184, %v312, %v1149
        %v3036 = vsel %vm184, %v313, %v1151
        %v3037 = vsel %vm184, %v314, %v1153
        %v3038 = vsel %vm184, %v315, %v1155
        %v3039 = vsel %vm184, %v316, %v1157
        %v3040 = vsel %vm184, %v317, %v1159
        %v3041 = vsel %vm184, %v318, %v1161
        %v3042 = vsel %vm184, %v319, %v1163
        %v3043 = vsel %vm184, %v320, %v1165
        %v3044 = vsel %vm184, %v321, %v1167
        %v3045 = vsel %vm184, %v322, %v1169
        %v3046 = vsel %vm184, %v323, %v1171
        %v3047 = vsel %vm184, %v324, %v1173
        %v3048 = vsel %vm184, %v325, %v1175
        %v3049 = vsel %vm184, %v326, %v1177
        %v3050 = vsel %vm184, %v327, %v1179
        %v3051 = vsel %vm184, %v328, %v1181
        %v3052 = vsel %vm184, %v329, %v1183
        %v3053 = vsel %vm184, %v330, %v1185
        %v3054 = vsel %vm184, %v331, %v1187
        %v3055 = vsel %vm184, %v332, %v1189
        %v3056 = vsel %vm184, %v333, %v1191
        %v3057 = vsel %vm184, %v334, %v1193
        %v3058 = vsel %vm184, %v335, %v1195
        %v3059 = vsel %vm184, %v336, %v1197
        %v3060 = vsel %vm184, %v337, %v1199
        %v3061 = vsel %vm184, %v338, %v1201
        %v3062 = vsel %vm184, %v339, %v1203
        %v3063 = vsel %vm184, %v340, %v1205
        %v3064 = vsel %vm184, %v341, %v1207
        %v3065 = vsel %vm184, %v342, %v1209
        %vm3066 = vcmask 64512
        %v3067 = vsel %vm3066, %v3034, %v1275
        %v3068 = vsel %vm3066, %v3035, %v1277
        %v3069 = vsel %vm3066, %v3036, %v1279
        %v3070 = vsel %vm3066, %v3037, %v1281
        %v3071 = vsel %vm3066, %v3038, %v1283
        %v3072 = vsel %vm3066, %v3039, %v1285
        %v3073 = vsel %vm3066, %v3040, %v1287
        %v3074 = vsel %vm3066, %v3041, %v1289
        %v3075 = vsel %vm3066, %v3042, %v1291
        %v3076 = vsel %vm3066, %v3043, %v1293
        %v3077 = vsel %vm3066, %v3044, %v1295
        %v3078 = vsel %vm3066, %v3045, %v1297
        %v3079 = vsel %vm3066, %v3046, %v1299
        %v3080 = vsel %vm3066, %v3047, %v1301
        %v3081 = vsel %vm3066, %v3048, %v1303
        %v3082 = vsel %vm3066, %v3049, %v1305
        %v3083 = vsel %vm3066, %v3050, %v1307
        %v3084 = vsel %vm3066, %v3051, %v1309
        %v3085 = vsel %vm3066, %v3052, %v1311
        %v3086 = vsel %vm3066, %v3053, %v1313
        %v3087 = vsel %vm3066, %v3054, %v1315
        %v3088 = vsel %vm3066, %v3055, %v1317
        %v3089 = vsel %vm3066, %v3056, %v1319
        %v3090 = vsel %vm3066, %v3057, %v1321
        %v3091 = vsel %vm3066, %v3058, %v1323
        %v3092 = vsel %vm3066, %v3059, %v1325
        %v3093 = vsel %vm3066, %v3060, %v1327
        %v3094 = vsel %vm3066, %v3061, %v1329
        %v3095 = vsel %vm3066, %v3062, %v1331
        %v3096 = vsel %vm3066, %v3063, %v1333
        %v3097 = vsel %vm3066, %v3064, %v1335
        %v3098 = vsel %vm3066, %v3065, %v1337
        %vm3099 = vcmask 97280
        %v3100 = vsel %vm3099, %v3067, %v1403
        %v3101 = vsel %vm3099, %v3068, %v1405
        %v3102 = vsel %vm3099, %v3069, %v1407
        %v3103 = vsel %vm3099, %v3070, %v1409
        %v3104 = vsel %vm3099, %v3071, %v1411
        %v3105 = vsel %vm3099, %v3072, %v1413
        %v3106 = vsel %vm3099, %v3073, %v1415
        %v3107 = vsel %vm3099, %v3074, %v1417
        %v3108 = vsel %vm3099, %v3075, %v1419
        %v3109 = vsel %vm3099, %v3076, %v1421
        %v3110 = vsel %vm3099, %v3077, %v1423
        %v3111 = vsel %vm3099, %v3078, %v1425
        %v3112 = vsel %vm3099, %v3079, %v1427
        %v3113 = vsel %vm3099, %v3080, %v1429
        %v3114 = vsel %vm3099, %v3081, %v1431
        %v3115 = vsel %vm3099, %v3082, %v1433
        %v3116 = vsel %vm3099, %v3083, %v1435
        %v3117 = vsel %vm3099, %v3084, %v1437
        %v3118 = vsel %vm3099, %v3085, %v1439
        %v3119 = vsel %vm3099, %v3086, %v1441
        %v3120 = vsel %vm3099, %v3087, %v1443
        %v3121 = vsel %vm3099, %v3088, %v1445
        %v3122 = vsel %vm3099, %v3089, %v1447
        %v3123 = vsel %vm3099, %v3090, %v1449
        %v3124 = vsel %vm3099, %v3091, %v1451
        %v3125 = vsel %vm3099, %v3092, %v1453
        %v3126 = vsel %vm3099, %v3093, %v1455
        %v3127 = vsel %vm3099, %v3094, %v1457
        %v3128 = vsel %vm3099, %v3095, %v1459
        %v3129 = vsel %vm3099, %v3096, %v1461
        %v3130 = vsel %vm3099, %v3097, %v1463
        %v3131 = vsel %vm3099, %v3098, %v1465
        %vm3132 = vcmask 130048
        %v3133 = vsel %vm3132, %v3100, %v1531
        %v3134 = vsel %vm3132, %v3101, %v1533
        %v3135 = vsel %vm3132, %v3102, %v1535
        %v3136 = vsel %vm3132, %v3103, %v1537
        %v3137 = vsel %vm3132, %v3104, %v1539
        %v3138 = vsel %vm3132, %v3105, %v1541
        %v3139 = vsel %vm3132, %v3106, %v1543
        %v3140 = vsel %vm3132, %v3107, %v1545
        %v3141 = vsel %vm3132, %v3108, %v1547
        %v3142 = vsel %vm3132, %v3109, %v1549
        %v3143 = vsel %vm3132, %v3110, %v1551
        %v3144 = vsel %vm3132, %v3111, %v1553
        %v3145 = vsel %vm3132, %v3112, %v1555
        %v3146 = vsel %vm3132, %v3113, %v1557
        %v3147 = vsel %vm3132, %v3114, %v1559
        %v3148 = vsel %vm3132, %v3115, %v1561
        %v3149 = vsel %vm3132, %v3116, %v1563
        %v3150 = vsel %vm3132, %v3117, %v1565
        %v3151 = vsel %vm3132, %v3118, %v1567
        %v3152 = vsel %vm3132, %v3119, %v1569
        %v3153 = vsel %vm3132, %v3120, %v1571
        %v3154 = vsel %vm3132, %v3121, %v1573
        %v3155 = vsel %vm3132, %v3122, %v1575
        %v3156 = vsel %vm3132, %v3123, %v1577
        %v3157 = vsel %vm3132, %v3124, %v1579
        %v3158 = vsel %vm3132, %v3125, %v1581
        %v3159 = vsel %vm3132, %v3126, %v1583
        %v3160 = vsel %vm3132, %v3127, %v1585
        %v3161 = vsel %vm3132, %v3128, %v1587
        %v3162 = vsel %vm3132, %v3129, %v1589
        %v3163 = vsel %vm3132, %v3130, %v1591
        %v3164 = vsel %vm3132, %v3131, %v1593
        %vm3165 = vcmask 162816
        %v3166 = vsel %vm3165, %v3133, %v1659
        %v3167 = vsel %vm3165, %v3134, %v1661
        %v3168 = vsel %vm3165, %v3135, %v1663
        %v3169 = vsel %vm3165, %v3136, %v1665
        %v3170 = vsel %vm3165, %v3137, %v1667
        %v3171 = vsel %vm3165, %v3138, %v1669
        %v3172 = vsel %vm3165, %v3139, %v1671
        %v3173 = vsel %vm3165, %v3140, %v1673
        %v3174 = vsel %vm3165, %v3141, %v1675
        %v3175 = vsel %vm3165, %v3142, %v1677
        %v3176 = vsel %vm3165, %v3143, %v1679
        %v3177 = vsel %vm3165, %v3144, %v1681
        %v3178 = vsel %vm3165, %v3145, %v1683
        %v3179 = vsel %vm3165, %v3146, %v1685
        %v3180 = vsel %vm3165, %v3147, %v1687
        %v3181 = vsel %vm3165, %v3148, %v1689
        %v3182 = vsel %vm3165, %v3149, %v1691
        %v3183 = vsel %vm3165, %v3150, %v1693
        %v3184 = vsel %vm3165, %v3151, %v1695
        %v3185 = vsel %vm3165, %v3152, %v1697
        %v3186 = vsel %vm3165, %v3153, %v1699
        %v3187 = vsel %vm3165, %v3154, %v1701
        %v3188 = vsel %vm3165, %v3155, %v1703
        %v3189 = vsel %vm3165, %v3156, %v1705
        %v3190 = vsel %vm3165, %v3157, %v1707
        %v3191 = vsel %vm3165, %v3158, %v1709
        %v3192 = vsel %vm3165, %v3159, %v1711
        %v3193 = vsel %vm3165, %v3160, %v1713
        %v3194 = vsel %vm3165, %v3161, %v1715
        %v3195 = vsel %vm3165, %v3162, %v1717
        %v3196 = vsel %vm3165, %v3163, %v1719
        %v3197 = vsel %vm3165, %v3164, %v1721
        %vm3198 = vcmask 195584
        %v3199 = vsel %vm3198, %v3166, %v1787
        %v3200 = vsel %vm3198, %v3167, %v1789
        %v3201 = vsel %vm3198, %v3168, %v1791
        %v3202 = vsel %vm3198, %v3169, %v1793
        %v3203 = vsel %vm3198, %v3170, %v1795
        %v3204 = vsel %vm3198, %v3171, %v1797
        %v3205 = vsel %vm3198, %v3172, %v1799
        %v3206 = vsel %vm3198, %v3173, %v1801
        %v3207 = vsel %vm3198, %v3174, %v1803
        %v3208 = vsel %vm3198, %v3175, %v1805
        %v3209 = vsel %vm3198, %v3176, %v1807
        %v3210 = vsel %vm3198, %v3177, %v1809
        %v3211 = vsel %vm3198, %v3178, %v1811
        %v3212 = vsel %vm3198, %v3179, %v1813
        %v3213 = vsel %vm3198, %v3180, %v1815
        %v3214 = vsel %vm3198, %v3181, %v1817
        %v3215 = vsel %vm3198, %v3182, %v1819
        %v3216 = vsel %vm3198, %v3183, %v1821
        %v3217 = vsel %vm3198, %v3184, %v1823
        %v3218 = vsel %vm3198, %v3185, %v1825
        %v3219 = vsel %vm3198, %v3186, %v1827
        %v3220 = vsel %vm3198, %v3187, %v1829
        %v3221 = vsel %vm3198, %v3188, %v1831
        %v3222 = vsel %vm3198, %v3189, %v1833
        %v3223 = vsel %vm3198, %v3190, %v1835
        %v3224 = vsel %vm3198, %v3191, %v1837
        %v3225 = vsel %vm3198, %v3192, %v1839
        %v3226 = vsel %vm3198, %v3193, %v1841
        %v3227 = vsel %vm3198, %v3194, %v1843
        %v3228 = vsel %vm3198, %v3195, %v1845
        %v3229 = vsel %vm3198, %v3196, %v1847
        %v3230 = vsel %vm3198, %v3197, %v1849
        %vm3231 = vcmask 228352
        %v3232 = vsel %vm3231, %v3199, %v1915
        %v3233 = vsel %vm3231, %v3200, %v1917
        %v3234 = vsel %vm3231, %v3201, %v1919
        %v3235 = vsel %vm3231, %v3202, %v1921
        %v3236 = vsel %vm3231, %v3203, %v1923
        %v3237 = vsel %vm3231, %v3204, %v1925
        %v3238 = vsel %vm3231, %v3205, %v1927
        %v3239 = vsel %vm3231, %v3206, %v1929
        %v3240 = vsel %vm3231, %v3207, %v1931
        %v3241 = vsel %vm3231, %v3208, %v1933
        %v3242 = vsel %vm3231, %v3209, %v1935
        %v3243 = vsel %vm3231, %v3210, %v1937
        %v3244 = vsel %vm3231, %v3211, %v1939
        %v3245 = vsel %vm3231, %v3212, %v1941
        %v3246 = vsel %vm3231, %v3213, %v1943
        %v3247 = vsel %vm3231, %v3214, %v1945
        %v3248 = vsel %vm3231, %v3215, %v1947
        %v3249 = vsel %vm3231, %v3216, %v1949
        %v3250 = vsel %vm3231, %v3217, %v1951
        %v3251 = vsel %vm3231, %v3218, %v1953
        %v3252 = vsel %vm3231, %v3219, %v1955
        %v3253 = vsel %vm3231, %v3220, %v1957
        %v3254 = vsel %vm3231, %v3221, %v1959
        %v3255 = vsel %vm3231, %v3222, %v1961
        %v3256 = vsel %vm3231, %v3223, %v1963
        %v3257 = vsel %vm3231, %v3224, %v1965
        %v3258 = vsel %vm3231, %v3225, %v1967
        %v3259 = vsel %vm3231, %v3226, %v1969
        %v3260 = vsel %vm3231, %v3227, %v1971
        %v3261 = vsel %vm3231, %v3228, %v1973
        %v3262 = vsel %vm3231, %v3229, %v1975
        %v3263 = vsel %vm3231, %v3230, %v1977
        %vm3264 = vcmask 261120
        %v3265 = vsel %vm3264, %v3232, %v2043
        %v3266 = vsel %vm3264, %v3233, %v2045
        %v3267 = vsel %vm3264, %v3234, %v2047
        %v3268 = vsel %vm3264, %v3235, %v2049
        %v3269 = vsel %vm3264, %v3236, %v2051
        %v3270 = vsel %vm3264, %v3237, %v2053
        %v3271 = vsel %vm3264, %v3238, %v2055
        %v3272 = vsel %vm3264, %v3239, %v2057
        %v3273 = vsel %vm3264, %v3240, %v2059
        %v3274 = vsel %vm3264, %v3241, %v2061
        %v3275 = vsel %vm3264, %v3242, %v2063
        %v3276 = vsel %vm3264, %v3243, %v2065
        %v3277 = vsel %vm3264, %v3244, %v2067
        %v3278 = vsel %vm3264, %v3245, %v2069
        %v3279 = vsel %vm3264, %v3246, %v2071
        %v3280 = vsel %vm3264, %v3247, %v2073
        %v3281 = vsel %vm3264, %v3248, %v2075
        %v3282 = vsel %vm3264, %v3249, %v2077
        %v3283 = vsel %vm3264, %v3250, %v2079
        %v3284 = vsel %vm3264, %v3251, %v2081
        %v3285 = vsel %vm3264, %v3252, %v2083
        %v3286 = vsel %vm3264, %v3253, %v2085
        %v3287 = vsel %vm3264, %v3254, %v2087
        %v3288 = vsel %vm3264, %v3255, %v2089
        %v3289 = vsel %vm3264, %v3256, %v2091
        %v3290 = vsel %vm3264, %v3257, %v2093
        %v3291 = vsel %vm3264, %v3258, %v2095
        %v3292 = vsel %vm3264, %v3259, %v2097
        %v3293 = vsel %vm3264, %v3260, %v2099
        %v3294 = vsel %vm3264, %v3261, %v2101
        %v3295 = vsel %vm3264, %v3262, %v2103
        %v3296 = vsel %vm3264, %v3263, %v2105
        %vm3297 = vcmask 293888
        %v3298 = vsel %vm3297, %v3265, %v2171
        %v3299 = vsel %vm3297, %v3266, %v2173
        %v3300 = vsel %vm3297, %v3267, %v2175
        %v3301 = vsel %vm3297, %v3268, %v2177
        %v3302 = vsel %vm3297, %v3269, %v2179
        %v3303 = vsel %vm3297, %v3270, %v2181
        %v3304 = vsel %vm3297, %v3271, %v2183
        %v3305 = vsel %vm3297, %v3272, %v2185
        %v3306 = vsel %vm3297, %v3273, %v2187
        %v3307 = vsel %vm3297, %v3274, %v2189
        %v3308 = vsel %vm3297, %v3275, %v2191
        %v3309 = vsel %vm3297, %v3276, %v2193
        %v3310 = vsel %vm3297, %v3277, %v2195
        %v3311 = vsel %vm3297, %v3278, %v2197
        %v3312 = vsel %vm3297, %v3279, %v2199
        %v3313 = vsel %vm3297, %v3280, %v2201
        %v3314 = vsel %vm3297, %v3281, %v2203
        %v3315 = vsel %vm3297, %v3282, %v2205
        %v3316 = vsel %vm3297, %v3283, %v2207
        %v3317 = vsel %vm3297, %v3284, %v2209
        %v3318 = vsel %vm3297, %v3285, %v2211
        %v3319 = vsel %vm3297, %v3286, %v2213
        %v3320 = vsel %vm3297, %v3287, %v2215
        %v3321 = vsel %vm3297, %v3288, %v2217
        %v3322 = vsel %vm3297, %v3289, %v2219
        %v3323 = vsel %vm3297, %v3290, %v2221
        %v3324 = vsel %vm3297, %v3291, %v2223
        %v3325 = vsel %vm3297, %v3292, %v2225
        %v3326 = vsel %vm3297, %v3293, %v2227
        %v3327 = vsel %vm3297, %v3294, %v2229
        %v3328 = vsel %vm3297, %v3295, %v2231
        %v3329 = vsel %vm3297, %v3296, %v2233
        %vm3330 = vcmask 326656
        %v3331 = vsel %vm3330, %v3298, %v2299
        %v3332 = vsel %vm3330, %v3299, %v2301
        %v3333 = vsel %vm3330, %v3300, %v2303
        %v3334 = vsel %vm3330, %v3301, %v2305
        %v3335 = vsel %vm3330, %v3302, %v2307
        %v3336 = vsel %vm3330, %v3303, %v2309
        %v3337 = vsel %vm3330, %v3304, %v2311
        %v3338 = vsel %vm3330, %v3305, %v2313
        %v3339 = vsel %vm3330, %v3306, %v2315
        %v3340 = vsel %vm3330, %v3307, %v2317
        %v3341 = vsel %vm3330, %v3308, %v2319
        %v3342 = vsel %vm3330, %v3309, %v2321
        %v3343 = vsel %vm3330, %v3310, %v2323
        %v3344 = vsel %vm3330, %v3311, %v2325
        %v3345 = vsel %vm3330, %v3312, %v2327
        %v3346 = vsel %vm3330, %v3313, %v2329
        %v3347 = vsel %vm3330, %v3314, %v2331
        %v3348 = vsel %vm3330, %v3315, %v2333
        %v3349 = vsel %vm3330, %v3316, %v2335
        %v3350 = vsel %vm3330, %v3317, %v2337
        %v3351 = vsel %vm3330, %v3318, %v2339
        %v3352 = vsel %vm3330, %v3319, %v2341
        %v3353 = vsel %vm3330, %v3320, %v2343
        %v3354 = vsel %vm3330, %v3321, %v2345
        %v3355 = vsel %vm3330, %v3322, %v2347
        %v3356 = vsel %vm3330, %v3323, %v2349
        %v3357 = vsel %vm3330, %v3324, %v2351
        %v3358 = vsel %vm3330, %v3325, %v2353
        %v3359 = vsel %vm3330, %v3326, %v2355
        %v3360 = vsel %vm3330, %v3327, %v2357
        %v3361 = vsel %vm3330, %v3328, %v2359
        %v3362 = vsel %vm3330, %v3329, %v2361
        %vm3363 = vcmask 359424
        %v3364 = vsel %vm3363, %v3331, %v2427
        %v3365 = vsel %vm3363, %v3332, %v2429
        %v3366 = vsel %vm3363, %v3333, %v2431
        %v3367 = vsel %vm3363, %v3334, %v2433
        %v3368 = vsel %vm3363, %v3335, %v2435
        %v3369 = vsel %vm3363, %v3336, %v2437
        %v3370 = vsel %vm3363, %v3337, %v2439
        %v3371 = vsel %vm3363, %v3338, %v2441
        %v3372 = vsel %vm3363, %v3339, %v2443
        %v3373 = vsel %vm3363, %v3340, %v2445
        %v3374 = vsel %vm3363, %v3341, %v2447
        %v3375 = vsel %vm3363, %v3342, %v2449
        %v3376 = vsel %vm3363, %v3343, %v2451
        %v3377 = vsel %vm3363, %v3344, %v2453
        %v3378 = vsel %vm3363, %v3345, %v2455
        %v3379 = vsel %vm3363, %v3346, %v2457
        %v3380 = vsel %vm3363, %v3347, %v2459
        %v3381 = vsel %vm3363, %v3348, %v2461
        %v3382 = vsel %vm3363, %v3349, %v2463
        %v3383 = vsel %vm3363, %v3350, %v2465
        %v3384 = vsel %vm3363, %v3351, %v2467
        %v3385 = vsel %vm3363, %v3352, %v2469
        %v3386 = vsel %vm3363, %v3353, %v2471
        %v3387 = vsel %vm3363, %v3354, %v2473
        %v3388 = vsel %vm3363, %v3355, %v2475
        %v3389 = vsel %vm3363, %v3356, %v2477
        %v3390 = vsel %vm3363, %v3357, %v2479
        %v3391 = vsel %vm3363, %v3358, %v2481
        %v3392 = vsel %vm3363, %v3359, %v2483
        %v3393 = vsel %vm3363, %v3360, %v2485
        %v3394 = vsel %vm3363, %v3361, %v2487
        %v3395 = vsel %vm3363, %v3362, %v2489
        %vm3396 = vcmask 392192
        %v3397 = vsel %vm3396, %v3364, %v2555
        %v3398 = vsel %vm3396, %v3365, %v2557
        %v3399 = vsel %vm3396, %v3366, %v2559
        %v3400 = vsel %vm3396, %v3367, %v2561
        %v3401 = vsel %vm3396, %v3368, %v2563
        %v3402 = vsel %vm3396, %v3369, %v2565
        %v3403 = vsel %vm3396, %v3370, %v2567
        %v3404 = vsel %vm3396, %v3371, %v2569
        %v3405 = vsel %vm3396, %v3372, %v2571
        %v3406 = vsel %vm3396, %v3373, %v2573
        %v3407 = vsel %vm3396, %v3374, %v2575
        %v3408 = vsel %vm3396, %v3375, %v2577
        %v3409 = vsel %vm3396, %v3376, %v2579
        %v3410 = vsel %vm3396, %v3377, %v2581
        %v3411 = vsel %vm3396, %v3378, %v2583
        %v3412 = vsel %vm3396, %v3379, %v2585
        %v3413 = vsel %vm3396, %v3380, %v2587
        %v3414 = vsel %vm3396, %v3381, %v2589
        %v3415 = vsel %vm3396, %v3382, %v2591
        %v3416 = vsel %vm3396, %v3383, %v2593
        %v3417 = vsel %vm3396, %v3384, %v2595
        %v3418 = vsel %vm3396, %v3385, %v2597
        %v3419 = vsel %vm3396, %v3386, %v2599
        %v3420 = vsel %vm3396, %v3387, %v2601
        %v3421 = vsel %vm3396, %v3388, %v2603
        %v3422 = vsel %vm3396, %v3389, %v2605
        %v3423 = vsel %vm3396, %v3390, %v2607
        %v3424 = vsel %vm3396, %v3391, %v2609
        %v3425 = vsel %vm3396, %v3392, %v2611
        %v3426 = vsel %vm3396, %v3393, %v2613
        %v3427 = vsel %vm3396, %v3394, %v2615
        %v3428 = vsel %vm3396, %v3395, %v2617
        %vm3429 = vcmask 424960
        %v3430 = vsel %vm3429, %v3397, %v2683
        %v3431 = vsel %vm3429, %v3398, %v2685
        %v3432 = vsel %vm3429, %v3399, %v2687
        %v3433 = vsel %vm3429, %v3400, %v2689
        %v3434 = vsel %vm3429, %v3401, %v2691
        %v3435 = vsel %vm3429, %v3402, %v2693
        %v3436 = vsel %vm3429, %v3403, %v2695
        %v3437 = vsel %vm3429, %v3404, %v2697
        %v3438 = vsel %vm3429, %v3405, %v2699
        %v3439 = vsel %vm3429, %v3406, %v2701
        %v3440 = vsel %vm3429, %v3407, %v2703
        %v3441 = vsel %vm3429, %v3408, %v2705
        %v3442 = vsel %vm3429, %v3409, %v2707
        %v3443 = vsel %vm3429, %v3410, %v2709
        %v3444 = vsel %vm3429, %v3411, %v2711
        %v3445 = vsel %vm3429, %v3412, %v2713
        %v3446 = vsel %vm3429, %v3413, %v2715
        %v3447 = vsel %vm3429, %v3414, %v2717
        %v3448 = vsel %vm3429, %v3415, %v2719
        %v3449 = vsel %vm3429, %v3416, %v2721
        %v3450 = vsel %vm3429, %v3417, %v2723
        %v3451 = vsel %vm3429, %v3418, %v2725
        %v3452 = vsel %vm3429, %v3419, %v2727
        %v3453 = vsel %vm3429, %v3420, %v2729
        %v3454 = vsel %vm3429, %v3421, %v2731
        %v3455 = vsel %vm3429, %v3422, %v2733
        %v3456 = vsel %vm3429, %v3423, %v2735
        %v3457 = vsel %vm3429, %v3424, %v2737
        %v3458 = vsel %vm3429, %v3425, %v2739
        %v3459 = vsel %vm3429, %v3426, %v2741
        %v3460 = vsel %vm3429, %v3427, %v2743
        %v3461 = vsel %vm3429, %v3428, %v2745
        %vm3462 = vcmask 457728
        %v3463 = vsel %vm3462, %v3430, %v2811
        %v3464 = vsel %vm3462, %v3431, %v2813
        %v3465 = vsel %vm3462, %v3432, %v2815
        %v3466 = vsel %vm3462, %v3433, %v2817
        %v3467 = vsel %vm3462, %v3434, %v2819
        %v3468 = vsel %vm3462, %v3435, %v2821
        %v3469 = vsel %vm3462, %v3436, %v2823
        %v3470 = vsel %vm3462, %v3437, %v2825
        %v3471 = vsel %vm3462, %v3438, %v2827
        %v3472 = vsel %vm3462, %v3439, %v2829
        %v3473 = vsel %vm3462, %v3440, %v2831
        %v3474 = vsel %vm3462, %v3441, %v2833
        %v3475 = vsel %vm3462, %v3442, %v2835
        %v3476 = vsel %vm3462, %v3443, %v2837
        %v3477 = vsel %vm3462, %v3444, %v2839
        %v3478 = vsel %vm3462, %v3445, %v2841
        %v3479 = vsel %vm3462, %v3446, %v2843
        %v3480 = vsel %vm3462, %v3447, %v2845
        %v3481 = vsel %vm3462, %v3448, %v2847
        %v3482 = vsel %vm3462, %v3449, %v2849
        %v3483 = vsel %vm3462, %v3450, %v2851
        %v3484 = vsel %vm3462, %v3451, %v2853
        %v3485 = vsel %vm3462, %v3452, %v2855
        %v3486 = vsel %vm3462, %v3453, %v2857
        %v3487 = vsel %vm3462, %v3454, %v2859
        %v3488 = vsel %vm3462, %v3455, %v2861
        %v3489 = vsel %vm3462, %v3456, %v2863
        %v3490 = vsel %vm3462, %v3457, %v2865
        %v3491 = vsel %vm3462, %v3458, %v2867
        %v3492 = vsel %vm3462, %v3459, %v2869
        %v3493 = vsel %vm3462, %v3460, %v2871
        %v3494 = vsel %vm3462, %v3461, %v2873
        %vm3495 = vcmask 490496
        %v3496 = vsel %vm3495, %v3463, %v2939
        %v3497 = vsel %vm3495, %v3464, %v2941
        %v3498 = vsel %vm3495, %v3465, %v2943
        %v3499 = vsel %vm3495, %v3466, %v2945
        %v3500 = vsel %vm3495, %v3467, %v2947
        %v3501 = vsel %vm3495, %v3468, %v2949
        %v3502 = vsel %vm3495, %v3469, %v2951
        %v3503 = vsel %vm3495, %v3470, %v2953
        %v3504 = vsel %vm3495, %v3471, %v2955
        %v3505 = vsel %vm3495, %v3472, %v2957
        %v3506 = vsel %vm3495, %v3473, %v2959
        %v3507 = vsel %vm3495, %v3474, %v2961
        %v3508 = vsel %vm3495, %v3475, %v2963
        %v3509 = vsel %vm3495, %v3476, %v2965
        %v3510 = vsel %vm3495, %v3477, %v2967
        %v3511 = vsel %vm3495, %v3478, %v2969
        %v3512 = vsel %vm3495, %v3479, %v2971
        %v3513 = vsel %vm3495, %v3480, %v2973
        %v3514 = vsel %vm3495, %v3481, %v2975
        %v3515 = vsel %vm3495, %v3482, %v2977
        %v3516 = vsel %vm3495, %v3483, %v2979
        %v3517 = vsel %vm3495, %v3484, %v2981
        %v3518 = vsel %vm3495, %v3485, %v2983
        %v3519 = vsel %vm3495, %v3486, %v2985
        %v3520 = vsel %vm3495, %v3487, %v2987
        %v3521 = vsel %vm3495, %v3488, %v2989
        %v3522 = vsel %vm3495, %v3489, %v2991
        %v3523 = vsel %vm3495, %v3490, %v2993
        %v3524 = vsel %vm3495, %v3491, %v2995
        %v3525 = vsel %vm3495, %v3492, %v2997
        %v3526 = vsel %vm3495, %v3493, %v2999
        %v3527 = vsel %vm3495, %v3494, %v3001
        %3560 = vrot.lane.b32.xlu0 %v857, 4
        %v3561 = vpop.permute.xlu0 %3560
        %3562 = vrot.lane.b32.xlu0 %v858, 4
        %v3563 = vpop.permute.xlu0 %3562
        %3564 = vrot.lane.b32.xlu0 %v859, 4
        %v3565 = vpop.permute.xlu0 %3564
        %3566 = vrot.lane.b32.xlu0 %v860, 4
        %v3567 = vpop.permute.xlu0 %3566
        %3568 = vrot.lane.b32.xlu0 %v861, 4
        %v3569 = vpop.permute.xlu0 %3568
        %3570 = vrot.lane.b32.xlu0 %v862, 4
        %v3571 = vpop.permute.xlu0 %3570
        %3572 = vrot.lane.b32.xlu0 %v863, 4
        %v3573 = vpop.permute.xlu0 %3572
        %3574 = vrot.lane.b32.xlu0 %v864, 4
        %v3575 = vpop.permute.xlu0 %3574
        %3576 = vrot.lane.b32.xlu0 %v865, 4
        %v3577 = vpop.permute.xlu0 %3576
        %3578 = vrot.lane.b32.xlu0 %v866, 4
        %v3579 = vpop.permute.xlu0 %3578
        %3580 = vrot.lane.b32.xlu0 %v867, 4
        %v3581 = vpop.permute.xlu0 %3580
        %3582 = vrot.lane.b32.xlu0 %v868, 4
        %v3583 = vpop.permute.xlu0 %3582
        %3584 = vrot.lane.b32.xlu0 %v869, 4
        %v3585 = vpop.permute.xlu0 %3584
        %3586 = vrot.lane.b32.xlu0 %v870, 4
        %v3587 = vpop.permute.xlu0 %3586
        %3588 = vrot.lane.b32.xlu0 %v871, 4
        %v3589 = vpop.permute.xlu0 %3588
        %3590 = vrot.lane.b32.xlu0 %v872, 4
        %v3591 = vpop.permute.xlu0 %3590
        %3592 = vrot.lane.b32.xlu0 %v873, 4
        %v3593 = vpop.permute.xlu0 %3592
        %3594 = vrot.lane.b32.xlu0 %v874, 4
        %v3595 = vpop.permute.xlu0 %3594
        %3596 = vrot.lane.b32.xlu0 %v875, 4
        %v3597 = vpop.permute.xlu0 %3596
        %3598 = vrot.lane.b32.xlu0 %v876, 4
        %v3599 = vpop.permute.xlu0 %3598
        %3600 = vrot.lane.b32.xlu0 %v877, 4
        %v3601 = vpop.permute.xlu0 %3600
        %3602 = vrot.lane.b32.xlu0 %v878, 4
        %v3603 = vpop.permute.xlu0 %3602
        %3604 = vrot.lane.b32.xlu0 %v879, 4
        %v3605 = vpop.permute.xlu0 %3604
        %3606 = vrot.lane.b32.xlu0 %v880, 4
        %v3607 = vpop.permute.xlu0 %3606
        %3608 = vrot.lane.b32.xlu0 %v881, 4
        %v3609 = vpop.permute.xlu0 %3608
        %3610 = vrot.lane.b32.xlu0 %v882, 4
        %v3611 = vpop.permute.xlu0 %3610
        %3612 = vrot.lane.b32.xlu0 %v883, 4
        %v3613 = vpop.permute.xlu0 %3612
        %3614 = vrot.lane.b32.xlu0 %v884, 4
        %v3615 = vpop.permute.xlu0 %3614
        %3616 = vrot.lane.b32.xlu0 %v885, 4
        %v3617 = vpop.permute.xlu0 %3616
        %3618 = vrot.lane.b32.xlu0 %v886, 4
        %v3619 = vpop.permute.xlu0 %3618
        %3620 = vrot.lane.b32.xlu0 %v887, 4
        %v3621 = vpop.permute.xlu0 %3620
        %3622 = vrot.lane.b32.xlu0 %v888, 4
        %v3623 = vpop.permute.xlu0 %3622
        %3688 = vrot.lane.b32.xlu0 %v889, 8
        %v3689 = vpop.permute.xlu0 %3688
        %3690 = vrot.lane.b32.xlu0 %v890, 8
        %v3691 = vpop.permute.xlu0 %3690
        %3692 = vrot.lane.b32.xlu0 %v891, 8
        %v3693 = vpop.permute.xlu0 %3692
        %3694 = vrot.lane.b32.xlu0 %v892, 8
        %v3695 = vpop.permute.xlu0 %3694
        %3696 = vrot.lane.b32.xlu0 %v893, 8
        %v3697 = vpop.permute.xlu0 %3696
        %3698 = vrot.lane.b32.xlu0 %v894, 8
        %v3699 = vpop.permute.xlu0 %3698
        %3700 = vrot.lane.b32.xlu0 %v895, 8
        %v3701 = vpop.permute.xlu0 %3700
        %3702 = vrot.lane.b32.xlu0 %v896, 8
        %v3703 = vpop.permute.xlu0 %3702
        %3704 = vrot.lane.b32.xlu0 %v897, 8
        %v3705 = vpop.permute.xlu0 %3704
        %3706 = vrot.lane.b32.xlu0 %v898, 8
        %v3707 = vpop.permute.xlu0 %3706
        %3708 = vrot.lane.b32.xlu0 %v899, 8
        %v3709 = vpop.permute.xlu0 %3708
        %3710 = vrot.lane.b32.xlu0 %v900, 8
        %v3711 = vpop.permute.xlu0 %3710
        %3712 = vrot.lane.b32.xlu0 %v901, 8
        %v3713 = vpop.permute.xlu0 %3712
        %3714 = vrot.lane.b32.xlu0 %v902, 8
        %v3715 = vpop.permute.xlu0 %3714
        %3716 = vrot.lane.b32.xlu0 %v903, 8
        %v3717 = vpop.permute.xlu0 %3716
        %3718 = vrot.lane.b32.xlu0 %v904, 8
        %v3719 = vpop.permute.xlu0 %3718
        %3720 = vrot.lane.b32.xlu0 %v905, 8
        %v3721 = vpop.permute.xlu0 %3720
        %3722 = vrot.lane.b32.xlu0 %v906, 8
        %v3723 = vpop.permute.xlu0 %3722
        %3724 = vrot.lane.b32.xlu0 %v907, 8
        %v3725 = vpop.permute.xlu0 %3724
        %3726 = vrot.lane.b32.xlu0 %v908, 8
        %v3727 = vpop.permute.xlu0 %3726
        %3728 = vrot.lane.b32.xlu0 %v909, 8
        %v3729 = vpop.permute.xlu0 %3728
        %3730 = vrot.lane.b32.xlu0 %v910, 8
        %v3731 = vpop.permute.xlu0 %3730
        %3732 = vrot.lane.b32.xlu0 %v911, 8
        %v3733 = vpop.permute.xlu0 %3732
        %3734 = vrot.lane.b32.xlu0 %v912, 8
        %v3735 = vpop.permute.xlu0 %3734
        %3736 = vrot.lane.b32.xlu0 %v913, 8
        %v3737 = vpop.permute.xlu0 %3736
        %3738 = vrot.lane.b32.xlu0 %v914, 8
        %v3739 = vpop.permute.xlu0 %3738
        %3740 = vrot.lane.b32.xlu0 %v915, 8
        %v3741 = vpop.permute.xlu0 %3740
        %3742 = vrot.lane.b32.xlu0 %v916, 8
        %v3743 = vpop.permute.xlu0 %3742
        %3744 = vrot.lane.b32.xlu0 %v917, 8
        %v3745 = vpop.permute.xlu0 %3744
        %3746 = vrot.lane.b32.xlu0 %v918, 8
        %v3747 = vpop.permute.xlu0 %3746
        %3748 = vrot.lane.b32.xlu0 %v919, 8
        %v3749 = vpop.permute.xlu0 %3748
        %3750 = vrot.lane.b32.xlu0 %v920, 8
        %v3751 = vpop.permute.xlu0 %3750
        %3816 = vrot.lane.b32.xlu0 %v921, 12
        %v3817 = vpop.permute.xlu0 %3816
        %3818 = vrot.lane.b32.xlu0 %v922, 12
        %v3819 = vpop.permute.xlu0 %3818
        %3820 = vrot.lane.b32.xlu0 %v923, 12
        %v3821 = vpop.permute.xlu0 %3820
        %3822 = vrot.lane.b32.xlu0 %v924, 12
        %v3823 = vpop.permute.xlu0 %3822
        %3824 = vrot.lane.b32.xlu0 %v925, 12
        %v3825 = vpop.permute.xlu0 %3824
        %3826 = vrot.lane.b32.xlu0 %v926, 12
        %v3827 = vpop.permute.xlu0 %3826
        %3828 = vrot.lane.b32.xlu0 %v927, 12
        %v3829 = vpop.permute.xlu0 %3828
        %3830 = vrot.lane.b32.xlu0 %v928, 12
        %v3831 = vpop.permute.xlu0 %3830
        %3832 = vrot.lane.b32.xlu0 %v929, 12
        %v3833 = vpop.permute.xlu0 %3832
        %3834 = vrot.lane.b32.xlu0 %v930, 12
        %v3835 = vpop.permute.xlu0 %3834
        %3836 = vrot.lane.b32.xlu0 %v931, 12
        %v3837 = vpop.permute.xlu0 %3836
        %3838 = vrot.lane.b32.xlu0 %v932, 12
        %v3839 = vpop.permute.xlu0 %3838
        %3840 = vrot.lane.b32.xlu0 %v933, 12
        %v3841 = vpop.permute.xlu0 %3840
        %3842 = vrot.lane.b32.xlu0 %v934, 12
        %v3843 = vpop.permute.xlu0 %3842
        %3844 = vrot.lane.b32.xlu0 %v935, 12
        %v3845 = vpop.permute.xlu0 %3844
        %3846 = vrot.lane.b32.xlu0 %v936, 12
        %v3847 = vpop.permute.xlu0 %3846
        %3848 = vrot.lane.b32.xlu0 %v937, 12
        %v3849 = vpop.permute.xlu0 %3848
        %3850 = vrot.lane.b32.xlu0 %v938, 12
        %v3851 = vpop.permute.xlu0 %3850
        %3852 = vrot.lane.b32.xlu0 %v939, 12
        %v3853 = vpop.permute.xlu0 %3852
        %3854 = vrot.lane.b32.xlu0 %v940, 12
        %v3855 = vpop.permute.xlu0 %3854
        %3856 = vrot.lane.b32.xlu0 %v941, 12
        %v3857 = vpop.permute.xlu0 %3856
        %3858 = vrot.lane.b32.xlu0 %v942, 12
        %v3859 = vpop.permute.xlu0 %3858
        %3860 = vrot.lane.b32.xlu0 %v943, 12
        %v3861 = vpop.permute.xlu0 %3860
        %3862 = vrot.lane.b32.xlu0 %v944, 12
        %v3863 = vpop.permute.xlu0 %3862
        %3864 = vrot.lane.b32.xlu0 %v945, 12
        %v3865 = vpop.permute.xlu0 %3864
        %3866 = vrot.lane.b32.xlu0 %v946, 12
        %v3867 = vpop.permute.xlu0 %3866
        %3868 = vrot.lane.b32.xlu0 %v947, 12
        %v3869 = vpop.permute.xlu0 %3868
        %3870 = vrot.lane.b32.xlu0 %v948, 12
        %v3871 = vpop.permute.xlu0 %3870
        %3872 = vrot.lane.b32.xlu0 %v949, 12
        %v3873 = vpop.permute.xlu0 %3872
        %3874 = vrot.lane.b32.xlu0 %v950, 12
        %v3875 = vpop.permute.xlu0 %3874
        %3876 = vrot.lane.b32.xlu0 %v951, 12
        %v3877 = vpop.permute.xlu0 %3876
        %3878 = vrot.lane.b32.xlu0 %v952, 12
        %v3879 = vpop.permute.xlu0 %3878
        %3944 = vrot.lane.b32.xlu0 %v954, 16
        %v3945 = vpop.permute.xlu0 %3944
        %3946 = vrot.lane.b32.xlu0 %v955, 16
        %v3947 = vpop.permute.xlu0 %3946
        %3948 = vrot.lane.b32.xlu0 %v956, 16
        %v3949 = vpop.permute.xlu0 %3948
        %3950 = vrot.lane.b32.xlu0 %v957, 16
        %v3951 = vpop.permute.xlu0 %3950
        %3952 = vrot.lane.b32.xlu0 %v958, 16
        %v3953 = vpop.permute.xlu0 %3952
        %3954 = vrot.lane.b32.xlu0 %v959, 16
        %v3955 = vpop.permute.xlu0 %3954
        %3956 = vrot.lane.b32.xlu0 %v960, 16
        %v3957 = vpop.permute.xlu0 %3956
        %3958 = vrot.lane.b32.xlu0 %v961, 16
        %v3959 = vpop.permute.xlu0 %3958
        %3960 = vrot.lane.b32.xlu0 %v962, 16
        %v3961 = vpop.permute.xlu0 %3960
        %3962 = vrot.lane.b32.xlu0 %v963, 16
        %v3963 = vpop.permute.xlu0 %3962
        %3964 = vrot.lane.b32.xlu0 %v964, 16
        %v3965 = vpop.permute.xlu0 %3964
        %3966 = vrot.lane.b32.xlu0 %v965, 16
        %v3967 = vpop.permute.xlu0 %3966
        %3968 = vrot.lane.b32.xlu0 %v966, 16
        %v3969 = vpop.permute.xlu0 %3968
        %3970 = vrot.lane.b32.xlu0 %v967, 16
        %v3971 = vpop.permute.xlu0 %3970
        %3972 = vrot.lane.b32.xlu0 %v968, 16
        %v3973 = vpop.permute.xlu0 %3972
        %3974 = vrot.lane.b32.xlu0 %v969, 16
        %v3975 = vpop.permute.xlu0 %3974
        %3976 = vrot.lane.b32.xlu0 %v970, 16
        %v3977 = vpop.permute.xlu0 %3976
        %3978 = vrot.lane.b32.xlu0 %v971, 16
        %v3979 = vpop.permute.xlu0 %3978
        %3980 = vrot.lane.b32.xlu0 %v972, 16
        %v3981 = vpop.permute.xlu0 %3980
        %3982 = vrot.lane.b32.xlu0 %v973, 16
        %v3983 = vpop.permute.xlu0 %3982
        %3984 = vrot.lane.b32.xlu0 %v974, 16
        %v3985 = vpop.permute.xlu0 %3984
        %3986 = vrot.lane.b32.xlu0 %v975, 16
        %v3987 = vpop.permute.xlu0 %3986
        %3988 = vrot.lane.b32.xlu0 %v976, 16
        %v3989 = vpop.permute.xlu0 %3988
        %3990 = vrot.lane.b32.xlu0 %v977, 16
        %v3991 = vpop.permute.xlu0 %3990
        %3992 = vrot.lane.b32.xlu0 %v978, 16
        %v3993 = vpop.permute.xlu0 %3992
        %3994 = vrot.lane.b32.xlu0 %v979, 16
        %v3995 = vpop.permute.xlu0 %3994
        %3996 = vrot.lane.b32.xlu0 %v980, 16
        %v3997 = vpop.permute.xlu0 %3996
        %3998 = vrot.lane.b32.xlu0 %v981, 16
        %v3999 = vpop.permute.xlu0 %3998
        %4000 = vrot.lane.b32.xlu0 %v982, 16
        %v4001 = vpop.permute.xlu0 %4000
        %4002 = vrot.lane.b32.xlu0 %v983, 16
        %v4003 = vpop.permute.xlu0 %4002
        %4004 = vrot.lane.b32.xlu0 %v984, 16
        %v4005 = vpop.permute.xlu0 %4004
        %4006 = vrot.lane.b32.xlu0 %v985, 16
        %v4007 = vpop.permute.xlu0 %4006
        %4072 = vrot.lane.b32.xlu0 %v986, 20
        %v4073 = vpop.permute.xlu0 %4072
        %4074 = vrot.lane.b32.xlu0 %v987, 20
        %v4075 = vpop.permute.xlu0 %4074
        %4076 = vrot.lane.b32.xlu0 %v988, 20
        %v4077 = vpop.permute.xlu0 %4076
        %4078 = vrot.lane.b32.xlu0 %v989, 20
        %v4079 = vpop.permute.xlu0 %4078
        %4080 = vrot.lane.b32.xlu0 %v990, 20
        %v4081 = vpop.permute.xlu0 %4080
        %4082 = vrot.lane.b32.xlu0 %v991, 20
        %v4083 = vpop.permute.xlu0 %4082
        %4084 = vrot.lane.b32.xlu0 %v992, 20
        %v4085 = vpop.permute.xlu0 %4084
        %4086 = vrot.lane.b32.xlu0 %v993, 20
        %v4087 = vpop.permute.xlu0 %4086
        %4088 = vrot.lane.b32.xlu0 %v994, 20
        %v4089 = vpop.permute.xlu0 %4088
        %4090 = vrot.lane.b32.xlu0 %v995, 20
        %v4091 = vpop.permute.xlu0 %4090
        %4092 = vrot.lane.b32.xlu0 %v996, 20
        %v4093 = vpop.permute.xlu0 %4092
        %4094 = vrot.lane.b32.xlu0 %v997, 20
        %v4095 = vpop.permute.xlu0 %4094
        %4096 = vrot.lane.b32.xlu0 %v998, 20
        %v4097 = vpop.permute.xlu0 %4096
        %4098 = vrot.lane.b32.xlu0 %v999, 20
        %v4099 = vpop.permute.xlu0 %4098
        %4100 = vrot.lane.b32.xlu0 %v1000, 20
        %v4101 = vpop.permute.xlu0 %4100
        %4102 = vrot.lane.b32.xlu0 %v1001, 20
        %v4103 = vpop.permute.xlu0 %4102
        %4104 = vrot.lane.b32.xlu0 %v1002, 20
        %v4105 = vpop.permute.xlu0 %4104
        %4106 = vrot.lane.b32.xlu0 %v1003, 20
        %v4107 = vpop.permute.xlu0 %4106
        %4108 = vrot.lane.b32.xlu0 %v1004, 20
        %v4109 = vpop.permute.xlu0 %4108
        %4110 = vrot.lane.b32.xlu0 %v1005, 20
        %v4111 = vpop.permute.xlu0 %4110
        %4112 = vrot.lane.b32.xlu0 %v1006, 20
        %v4113 = vpop.permute.xlu0 %4112
        %4114 = vrot.lane.b32.xlu0 %v1007, 20
        %v4115 = vpop.permute.xlu0 %4114
        %4116 = vrot.lane.b32.xlu0 %v1008, 20
        %v4117 = vpop.permute.xlu0 %4116
        %4118 = vrot.lane.b32.xlu0 %v1009, 20
        %v4119 = vpop.permute.xlu0 %4118
        %4120 = vrot.lane.b32.xlu0 %v1010, 20
        %v4121 = vpop.permute.xlu0 %4120
        %4122 = vrot.lane.b32.xlu0 %v1011, 20
        %v4123 = vpop.permute.xlu0 %4122
        %4124 = vrot.lane.b32.xlu0 %v1012, 20
        %v4125 = vpop.permute.xlu0 %4124
        %4126 = vrot.lane.b32.xlu0 %v1013, 20
        %v4127 = vpop.permute.xlu0 %4126
        %4128 = vrot.lane.b32.xlu0 %v1014, 20
        %v4129 = vpop.permute.xlu0 %4128
        %4130 = vrot.lane.b32.xlu0 %v1015, 20
        %v4131 = vpop.permute.xlu0 %4130
        %4132 = vrot.lane.b32.xlu0 %v1016, 20
        %v4133 = vpop.permute.xlu0 %4132
        %4134 = vrot.lane.b32.xlu0 %v1017, 20
        %v4135 = vpop.permute.xlu0 %4134
        %4200 = vrot.lane.b32.xlu0 %v1018, 24
        %v4201 = vpop.permute.xlu0 %4200
        %4202 = vrot.lane.b32.xlu0 %v1019, 24
        %v4203 = vpop.permute.xlu0 %4202
        %4204 = vrot.lane.b32.xlu0 %v1020, 24
        %v4205 = vpop.permute.xlu0 %4204
        %4206 = vrot.lane.b32.xlu0 %v1021, 24
        %v4207 = vpop.permute.xlu0 %4206
        %4208 = vrot.lane.b32.xlu0 %v1022, 24
        %v4209 = vpop.permute.xlu0 %4208
        %4210 = vrot.lane.b32.xlu0 %v1023, 24
        %v4211 = vpop.permute.xlu0 %4210
        %4212 = vrot.lane.b32.xlu0 %v1024, 24
        %v4213 = vpop.permute.xlu0 %4212
        %4214 = vrot.lane.b32.xlu0 %v1025, 24
        %v4215 = vpop.permute.xlu0 %4214
        %4216 = vrot.lane.b32.xlu0 %v1026, 24
        %v4217 = vpop.permute.xlu0 %4216
        %4218 = vrot.lane.b32.xlu0 %v1027, 24
        %v4219 = vpop.permute.xlu0 %4218
        %4220 = vrot.lane.b32.xlu0 %v1028, 24
        %v4221 = vpop.permute.xlu0 %4220
        %4222 = vrot.lane.b32.xlu0 %v1029, 24
        %v4223 = vpop.permute.xlu0 %4222
        %4224 = vrot.lane.b32.xlu0 %v1030, 24
        %v4225 = vpop.permute.xlu0 %4224
        %4226 = vrot.lane.b32.xlu0 %v1031, 24
        %v4227 = vpop.permute.xlu0 %4226
        %4228 = vrot.lane.b32.xlu0 %v1032, 24
        %v4229 = vpop.permute.xlu0 %4228
        %4230 = vrot.lane.b32.xlu0 %v1033, 24
        %v4231 = vpop.permute.xlu0 %4230
        %4232 = vrot.lane.b32.xlu0 %v1034, 24
        %v4233 = vpop.permute.xlu0 %4232
        %4234 = vrot.lane.b32.xlu0 %v1035, 24
        %v4235 = vpop.permute.xlu0 %4234
        %4236 = vrot.lane.b32.xlu0 %v1036, 24
        %v4237 = vpop.permute.xlu0 %4236
        %4238 = vrot.lane.b32.xlu0 %v1037, 24
        %v4239 = vpop.permute.xlu0 %4238
        %4240 = vrot.lane.b32.xlu0 %v1038, 24
        %v4241 = vpop.permute.xlu0 %4240
        %4242 = vrot.lane.b32.xlu0 %v1039, 24
        %v4243 = vpop.permute.xlu0 %4242
        %4244 = vrot.lane.b32.xlu0 %v1040, 24
        %v4245 = vpop.permute.xlu0 %4244
        %4246 = vrot.lane.b32.xlu0 %v1041, 24
        %v4247 = vpop.permute.xlu0 %4246
        %4248 = vrot.lane.b32.xlu0 %v1042, 24
        %v4249 = vpop.permute.xlu0 %4248
        %4250 = vrot.lane.b32.xlu0 %v1043, 24
        %v4251 = vpop.permute.xlu0 %4250
        %4252 = vrot.lane.b32.xlu0 %v1044, 24
        %v4253 = vpop.permute.xlu0 %4252
        %4254 = vrot.lane.b32.xlu0 %v1045, 24
        %v4255 = vpop.permute.xlu0 %4254
        %4256 = vrot.lane.b32.xlu0 %v1046, 24
        %v4257 = vpop.permute.xlu0 %4256
        %4258 = vrot.lane.b32.xlu0 %v1047, 24
        %v4259 = vpop.permute.xlu0 %4258
        %4260 = vrot.lane.b32.xlu0 %v1048, 24
        %v4261 = vpop.permute.xlu0 %4260
        %4262 = vrot.lane.b32.xlu0 %v1049, 24
        %v4263 = vpop.permute.xlu0 %4262
        %4328 = vrot.lane.b32.xlu0 %v1050, 28
        %v4329 = vpop.permute.xlu0 %4328
        %4330 = vrot.lane.b32.xlu0 %v1051, 28
        %v4331 = vpop.permute.xlu0 %4330
        %4332 = vrot.lane.b32.xlu0 %v1052, 28
        %v4333 = vpop.permute.xlu0 %4332
        %4334 = vrot.lane.b32.xlu0 %v1053, 28
        %v4335 = vpop.permute.xlu0 %4334
        %4336 = vrot.lane.b32.xlu0 %v1054, 28
        %v4337 = vpop.permute.xlu0 %4336
        %4338 = vrot.lane.b32.xlu0 %v1055, 28
        %v4339 = vpop.permute.xlu0 %4338
        %4340 = vrot.lane.b32.xlu0 %v1056, 28
        %v4341 = vpop.permute.xlu0 %4340
        %4342 = vrot.lane.b32.xlu0 %v1057, 28
        %v4343 = vpop.permute.xlu0 %4342
        %4344 = vrot.lane.b32.xlu0 %v1058, 28
        %v4345 = vpop.permute.xlu0 %4344
        %4346 = vrot.lane.b32.xlu0 %v1059, 28
        %v4347 = vpop.permute.xlu0 %4346
        %4348 = vrot.lane.b32.xlu0 %v1060, 28
        %v4349 = vpop.permute.xlu0 %4348
        %4350 = vrot.lane.b32.xlu0 %v1061, 28
        %v4351 = vpop.permute.xlu0 %4350
        %4352 = vrot.lane.b32.xlu0 %v1062, 28
        %v4353 = vpop.permute.xlu0 %4352
        %4354 = vrot.lane.b32.xlu0 %v1063, 28
        %v4355 = vpop.permute.xlu0 %4354
        %4356 = vrot.lane.b32.xlu0 %v1064, 28
        %v4357 = vpop.permute.xlu0 %4356
        %4358 = vrot.lane.b32.xlu0 %v1065, 28
        %v4359 = vpop.permute.xlu0 %4358
        %4360 = vrot.lane.b32.xlu0 %v1066, 28
        %v4361 = vpop.permute.xlu0 %4360
        %4362 = vrot.lane.b32.xlu0 %v1067, 28
        %v4363 = vpop.permute.xlu0 %4362
        %4364 = vrot.lane.b32.xlu0 %v1068, 28
        %v4365 = vpop.permute.xlu0 %4364
        %4366 = vrot.lane.b32.xlu0 %v1069, 28
        %v4367 = vpop.permute.xlu0 %4366
        %4368 = vrot.lane.b32.xlu0 %v1070, 28
        %v4369 = vpop.permute.xlu0 %4368
        %4370 = vrot.lane.b32.xlu0 %v1071, 28
        %v4371 = vpop.permute.xlu0 %4370
        %4372 = vrot.lane.b32.xlu0 %v1072, 28
        %v4373 = vpop.permute.xlu0 %4372
        %4374 = vrot.lane.b32.xlu0 %v1073, 28
        %v4375 = vpop.permute.xlu0 %4374
        %4376 = vrot.lane.b32.xlu0 %v1074, 28
        %v4377 = vpop.permute.xlu0 %4376
        %4378 = vrot.lane.b32.xlu0 %v1075, 28
        %v4379 = vpop.permute.xlu0 %4378
        %4380 = vrot.lane.b32.xlu0 %v1076, 28
        %v4381 = vpop.permute.xlu0 %4380
        %4382 = vrot.lane.b32.xlu0 %v1077, 28
        %v4383 = vpop.permute.xlu0 %4382
        %4384 = vrot.lane.b32.xlu0 %v1078, 28
        %v4385 = vpop.permute.xlu0 %4384
        %4386 = vrot.lane.b32.xlu0 %v1079, 28
        %v4387 = vpop.permute.xlu0 %4386
        %4388 = vrot.lane.b32.xlu0 %v1080, 28
        %v4389 = vpop.permute.xlu0 %4388
        %4390 = vrot.lane.b32.xlu0 %v1081, 28
        %v4391 = vpop.permute.xlu0 %4390
        %4456 = vrot.lane.b32.xlu0 %v1082, 32
        %v4457 = vpop.permute.xlu0 %4456
        %4458 = vrot.lane.b32.xlu0 %v1083, 32
        %v4459 = vpop.permute.xlu0 %4458
        %4460 = vrot.lane.b32.xlu0 %v1084, 32
        %v4461 = vpop.permute.xlu0 %4460
        %4462 = vrot.lane.b32.xlu0 %v1085, 32
        %v4463 = vpop.permute.xlu0 %4462
        %4464 = vrot.lane.b32.xlu0 %v1086, 32
        %v4465 = vpop.permute.xlu0 %4464
        %4466 = vrot.lane.b32.xlu0 %v1087, 32
        %v4467 = vpop.permute.xlu0 %4466
        %4468 = vrot.lane.b32.xlu0 %v1088, 32
        %v4469 = vpop.permute.xlu0 %4468
        %4470 = vrot.lane.b32.xlu0 %v1089, 32
        %v4471 = vpop.permute.xlu0 %4470
        %4472 = vrot.lane.b32.xlu0 %v1090, 32
        %v4473 = vpop.permute.xlu0 %4472
        %4474 = vrot.lane.b32.xlu0 %v1091, 32
        %v4475 = vpop.permute.xlu0 %4474
        %4476 = vrot.lane.b32.xlu0 %v1092, 32
        %v4477 = vpop.permute.xlu0 %4476
        %4478 = vrot.lane.b32.xlu0 %v1093, 32
        %v4479 = vpop.permute.xlu0 %4478
        %4480 = vrot.lane.b32.xlu0 %v1094, 32
        %v4481 = vpop.permute.xlu0 %4480
        %4482 = vrot.lane.b32.xlu0 %v1095, 32
        %v4483 = vpop.permute.xlu0 %4482
        %4484 = vrot.lane.b32.xlu0 %v1096, 32
        %v4485 = vpop.permute.xlu0 %4484
        %4486 = vrot.lane.b32.xlu0 %v1097, 32
        %v4487 = vpop.permute.xlu0 %4486
        %4488 = vrot.lane.b32.xlu0 %v1098, 32
        %v4489 = vpop.permute.xlu0 %4488
        %4490 = vrot.lane.b32.xlu0 %v1099, 32
        %v4491 = vpop.permute.xlu0 %4490
        %4492 = vrot.lane.b32.xlu0 %v1100, 32
        %v4493 = vpop.permute.xlu0 %4492
        %4494 = vrot.lane.b32.xlu0 %v1101, 32
        %v4495 = vpop.permute.xlu0 %4494
        %4496 = vrot.lane.b32.xlu0 %v1102, 32
        %v4497 = vpop.permute.xlu0 %4496
        %4498 = vrot.lane.b32.xlu0 %v1103, 32
        %v4499 = vpop.permute.xlu0 %4498
        %4500 = vrot.lane.b32.xlu0 %v1104, 32
        %v4501 = vpop.permute.xlu0 %4500
        %4502 = vrot.lane.b32.xlu0 %v1105, 32
        %v4503 = vpop.permute.xlu0 %4502
        %4504 = vrot.lane.b32.xlu0 %v1106, 32
        %v4505 = vpop.permute.xlu0 %4504
        %4506 = vrot.lane.b32.xlu0 %v1107, 32
        %v4507 = vpop.permute.xlu0 %4506
        %4508 = vrot.lane.b32.xlu0 %v1108, 32
        %v4509 = vpop.permute.xlu0 %4508
        %4510 = vrot.lane.b32.xlu0 %v1109, 32
        %v4511 = vpop.permute.xlu0 %4510
        %4512 = vrot.lane.b32.xlu0 %v1110, 32
        %v4513 = vpop.permute.xlu0 %4512
        %4514 = vrot.lane.b32.xlu0 %v1111, 32
        %v4515 = vpop.permute.xlu0 %4514
        %4516 = vrot.lane.b32.xlu0 %v1112, 32
        %v4517 = vpop.permute.xlu0 %4516
        %4518 = vrot.lane.b32.xlu0 %v1113, 32
        %v4519 = vpop.permute.xlu0 %4518
        %v4552 = vsel %vm184, %v825, %v3561
        %v4553 = vsel %vm184, %v826, %v3563
        %v4554 = vsel %vm184, %v827, %v3565
        %v4555 = vsel %vm184, %v828, %v3567
        %v4556 = vsel %vm184, %v829, %v3569
        %v4557 = vsel %vm184, %v830, %v3571
        %v4558 = vsel %vm184, %v831, %v3573
        %v4559 = vsel %vm184, %v832, %v3575
        %v4560 = vsel %vm184, %v833, %v3577
        %v4561 = vsel %vm184, %v834, %v3579
        %v4562 = vsel %vm184, %v835, %v3581
        %v4563 = vsel %vm184, %v836, %v3583
        %v4564 = vsel %vm184, %v837, %v3585
        %v4565 = vsel %vm184, %v838, %v3587
        %v4566 = vsel %vm184, %v839, %v3589
        %v4567 = vsel %vm184, %v840, %v3591
        %v4568 = vsel %vm184, %v841, %v3593
        %v4569 = vsel %vm184, %v842, %v3595
        %v4570 = vsel %vm184, %v843, %v3597
        %v4571 = vsel %vm184, %v844, %v3599
        %v4572 = vsel %vm184, %v845, %v3601
        %v4573 = vsel %vm184, %v846, %v3603
        %v4574 = vsel %vm184, %v847, %v3605
        %v4575 = vsel %vm184, %v848, %v3607
        %v4576 = vsel %vm184, %v849, %v3609
        %v4577 = vsel %vm184, %v850, %v3611
        %v4578 = vsel %vm184, %v851, %v3613
        %v4579 = vsel %vm184, %v852, %v3615
        %v4580 = vsel %vm184, %v853, %v3617
        %v4581 = vsel %vm184, %v854, %v3619
        %v4582 = vsel %vm184, %v855, %v3621
        %v4583 = vsel %vm184, %v856, %v3623
        %v4584 = vsel %vm3066, %v4552, %v3689
        %v4585 = vsel %vm3066, %v4553, %v3691
        %v4586 = vsel %vm3066, %v4554, %v3693
        %v4587 = vsel %vm3066, %v4555, %v3695
        %v4588 = vsel %vm3066, %v4556, %v3697
        %v4589 = vsel %vm3066, %v4557, %v3699
        %v4590 = vsel %vm3066, %v4558, %v3701
        %v4591 = vsel %vm3066, %v4559, %v3703
        %v4592 = vsel %vm3066, %v4560, %v3705
        %v4593 = vsel %vm3066, %v4561, %v3707
        %v4594 = vsel %vm3066, %v4562, %v3709
        %v4595 = vsel %vm3066, %v4563, %v3711
        %v4596 = vsel %vm3066, %v4564, %v3713
        %v4597 = vsel %vm3066, %v4565, %v3715
        %v4598 = vsel %vm3066, %v4566, %v3717
        %v4599 = vsel %vm3066, %v4567, %v3719
        %v4600 = vsel %vm3066, %v4568, %v3721
        %v4601 = vsel %vm3066, %v4569, %v3723
        %v4602 = vsel %vm3066, %v4570, %v3725
        %v4603 = vsel %vm3066, %v4571, %v3727
        %v4604 = vsel %vm3066, %v4572, %v3729
        %v4605 = vsel %vm3066, %v4573, %v3731
        %v4606 = vsel %vm3066, %v4574, %v3733
        %v4607 = vsel %vm3066, %v4575, %v3735
        %v4608 = vsel %vm3066, %v4576, %v3737
        %v4609 = vsel %vm3066, %v4577, %v3739
        %v4610 = vsel %vm3066, %v4578, %v3741
        %v4611 = vsel %vm3066, %v4579, %v3743
        %v4612 = vsel %vm3066, %v4580, %v3745
        %v4613 = vsel %vm3066, %v4581, %v3747
        %v4614 = vsel %vm3066, %v4582, %v3749
        %v4615 = vsel %vm3066, %v4583, %v3751
        %v4616 = vsel %vm3099, %v4584, %v3817
        %v4617 = vsel %vm3099, %v4585, %v3819
        %v4618 = vsel %vm3099, %v4586, %v3821
        %v4619 = vsel %vm3099, %v4587, %v3823
        %v4620 = vsel %vm3099, %v4588, %v3825
        %v4621 = vsel %vm3099, %v4589, %v3827
        %v4622 = vsel %vm3099, %v4590, %v3829
        %v4623 = vsel %vm3099, %v4591, %v3831
        %v4624 = vsel %vm3099, %v4592, %v3833
        %v4625 = vsel %vm3099, %v4593, %v3835
        %v4626 = vsel %vm3099, %v4594, %v3837
        %v4627 = vsel %vm3099, %v4595, %v3839
        %v4628 = vsel %vm3099, %v4596, %v3841
        %v4629 = vsel %vm3099, %v4597, %v3843
        %v4630 = vsel %vm3099, %v4598, %v3845
        %v4631 = vsel %vm3099, %v4599, %v3847
        %v4632 = vsel %vm3099, %v4600, %v3849
        %v4633 = vsel %vm3099, %v4601, %v3851
        %v4634 = vsel %vm3099, %v4602, %v3853
        %v4635 = vsel %vm3099, %v4603, %v3855
        %v4636 = vsel %vm3099, %v4604, %v3857
        %v4637 = vsel %vm3099, %v4605, %v3859
        %v4638 = vsel %vm3099, %v4606, %v3861
        %v4639 = vsel %vm3099, %v4607, %v3863
        %v4640 = vsel %vm3099, %v4608, %v3865
        %v4641 = vsel %vm3099, %v4609, %v3867
        %v4642 = vsel %vm3099, %v4610, %v3869
        %v4643 = vsel %vm3099, %v4611, %v3871
        %v4644 = vsel %vm3099, %v4612, %v3873
        %v4645 = vsel %vm3099, %v4613, %v3875
        %v4646 = vsel %vm3099, %v4614, %v3877
        %v4647 = vsel %vm3099, %v4615, %v3879
        %v4648 = vsel %vm3132, %v4616, %v3945
        %v4649 = vsel %vm3132, %v4617, %v3947
        %v4650 = vsel %vm3132, %v4618, %v3949
        %v4651 = vsel %vm3132, %v4619, %v3951
        %v4652 = vsel %vm3132, %v4620, %v3953
        %v4653 = vsel %vm3132, %v4621, %v3955
        %v4654 = vsel %vm3132, %v4622, %v3957
        %v4655 = vsel %vm3132, %v4623, %v3959
        %v4656 = vsel %vm3132, %v4624, %v3961
        %v4657 = vsel %vm3132, %v4625, %v3963
        %v4658 = vsel %vm3132, %v4626, %v3965
        %v4659 = vsel %vm3132, %v4627, %v3967
        %v4660 = vsel %vm3132, %v4628, %v3969
        %v4661 = vsel %vm3132, %v4629, %v3971
        %v4662 = vsel %vm3132, %v4630, %v3973
        %v4663 = vsel %vm3132, %v4631, %v3975
        %v4664 = vsel %vm3132, %v4632, %v3977
        %v4665 = vsel %vm3132, %v4633, %v3979
        %v4666 = vsel %vm3132, %v4634, %v3981
        %v4667 = vsel %vm3132, %v4635, %v3983
        %v4668 = vsel %vm3132, %v4636, %v3985
        %v4669 = vsel %vm3132, %v4637, %v3987
        %v4670 = vsel %vm3132, %v4638, %v3989
        %v4671 = vsel %vm3132, %v4639, %v3991
        %v4672 = vsel %vm3132, %v4640, %v3993
        %v4673 = vsel %vm3132, %v4641, %v3995
        %v4674 = vsel %vm3132, %v4642, %v3997
        %v4675 = vsel %vm3132, %v4643, %v3999
        %v4676 = vsel %vm3132, %v4644, %v4001
        %v4677 = vsel %vm3132, %v4645, %v4003
        %v4678 = vsel %vm3132, %v4646, %v4005
        %v4679 = vsel %vm3132, %v4647, %v4007
        %v4680 = vsel %vm3165, %v4648, %v4073
        %v4681 = vsel %vm3165, %v4649, %v4075
        %v4682 = vsel %vm3165, %v4650, %v4077
        %v4683 = vsel %vm3165, %v4651, %v4079
        %v4684 = vsel %vm3165, %v4652, %v4081
        %v4685 = vsel %vm3165, %v4653, %v4083
        %v4686 = vsel %vm3165, %v4654, %v4085
        %v4687 = vsel %vm3165, %v4655, %v4087
        %v4688 = vsel %vm3165, %v4656, %v4089
        %v4689 = vsel %vm3165, %v4657, %v4091
        %v4690 = vsel %vm3165, %v4658, %v4093
        %v4691 = vsel %vm3165, %v4659, %v4095
        %v4692 = vsel %vm3165, %v4660, %v4097
        %v4693 = vsel %vm3165, %v4661, %v4099
        %v4694 = vsel %vm3165, %v4662, %v4101
        %v4695 = vsel %vm3165, %v4663, %v4103
        %v4696 = vsel %vm3165, %v4664, %v4105
        %v4697 = vsel %vm3165, %v4665, %v4107
        %v4698 = vsel %vm3165, %v4666, %v4109
        %v4699 = vsel %vm3165, %v4667, %v4111
        %v4700 = vsel %vm3165, %v4668, %v4113
        %v4701 = vsel %vm3165, %v4669, %v4115
        %v4702 = vsel %vm3165, %v4670, %v4117
        %v4703 = vsel %vm3165, %v4671, %v4119
        %v4704 = vsel %vm3165, %v4672, %v4121
        %v4705 = vsel %vm3165, %v4673, %v4123
        %v4706 = vsel %vm3165, %v4674, %v4125
        %v4707 = vsel %vm3165, %v4675, %v4127
        %v4708 = vsel %vm3165, %v4676, %v4129
        %v4709 = vsel %vm3165, %v4677, %v4131
        %v4710 = vsel %vm3165, %v4678, %v4133
        %v4711 = vsel %vm3165, %v4679, %v4135
        %v4712 = vsel %vm3198, %v4680, %v4201
        %v4713 = vsel %vm3198, %v4681, %v4203
        %v4714 = vsel %vm3198, %v4682, %v4205
        %v4715 = vsel %vm3198, %v4683, %v4207
        %v4716 = vsel %vm3198, %v4684, %v4209
        %v4717 = vsel %vm3198, %v4685, %v4211
        %v4718 = vsel %vm3198, %v4686, %v4213
        %v4719 = vsel %vm3198, %v4687, %v4215
        %v4720 = vsel %vm3198, %v4688, %v4217
        %v4721 = vsel %vm3198, %v4689, %v4219
        %v4722 = vsel %vm3198, %v4690, %v4221
        %v4723 = vsel %vm3198, %v4691, %v4223
        %v4724 = vsel %vm3198, %v4692, %v4225
        %v4725 = vsel %vm3198, %v4693, %v4227
        %v4726 = vsel %vm3198, %v4694, %v4229
        %v4727 = vsel %vm3198, %v4695, %v4231
        %v4728 = vsel %vm3198, %v4696, %v4233
        %v4729 = vsel %vm3198, %v4697, %v4235
        %v4730 = vsel %vm3198, %v4698, %v4237
        %v4731 = vsel %vm3198, %v4699, %v4239
        %v4732 = vsel %vm3198, %v4700, %v4241
        %v4733 = vsel %vm3198, %v4701, %v4243
        %v4734 = vsel %vm3198, %v4702, %v4245
        %v4735 = vsel %vm3198, %v4703, %v4247
        %v4736 = vsel %vm3198, %v4704, %v4249
        %v4737 = vsel %vm3198, %v4705, %v4251
        %v4738 = vsel %vm3198, %v4706, %v4253
        %v4739 = vsel %vm3198, %v4707, %v4255
        %v4740 = vsel %vm3198, %v4708, %v4257
        %v4741 = vsel %vm3198, %v4709, %v4259
        %v4742 = vsel %vm3198, %v4710, %v4261
        %v4743 = vsel %vm3198, %v4711, %v4263
        %v4744 = vsel %vm3231, %v4712, %v4329
        %v4745 = vsel %vm3231, %v4713, %v4331
        %v4746 = vsel %vm3231, %v4714, %v4333
        %v4747 = vsel %vm3231, %v4715, %v4335
        %v4748 = vsel %vm3231, %v4716, %v4337
        %v4749 = vsel %vm3231, %v4717, %v4339
        %v4750 = vsel %vm3231, %v4718, %v4341
        %v4751 = vsel %vm3231, %v4719, %v4343
        %v4752 = vsel %vm3231, %v4720, %v4345
        %v4753 = vsel %vm3231, %v4721, %v4347
        %v4754 = vsel %vm3231, %v4722, %v4349
        %v4755 = vsel %vm3231, %v4723, %v4351
        %v4756 = vsel %vm3231, %v4724, %v4353
        %v4757 = vsel %vm3231, %v4725, %v4355
        %v4758 = vsel %vm3231, %v4726, %v4357
        %v4759 = vsel %vm3231, %v4727, %v4359
        %v4760 = vsel %vm3231, %v4728, %v4361
        %v4761 = vsel %vm3231, %v4729, %v4363
        %v4762 = vsel %vm3231, %v4730, %v4365
        %v4763 = vsel %vm3231, %v4731, %v4367
        %v4764 = vsel %vm3231, %v4732, %v4369
        %v4765 = vsel %vm3231, %v4733, %v4371
        %v4766 = vsel %vm3231, %v4734, %v4373
        %v4767 = vsel %vm3231, %v4735, %v4375
        %v4768 = vsel %vm3231, %v4736, %v4377
        %v4769 = vsel %vm3231, %v4737, %v4379
        %v4770 = vsel %vm3231, %v4738, %v4381
        %v4771 = vsel %vm3231, %v4739, %v4383
        %v4772 = vsel %vm3231, %v4740, %v4385
        %v4773 = vsel %vm3231, %v4741, %v4387
        %v4774 = vsel %vm3231, %v4742, %v4389
        %v4775 = vsel %vm3231, %v4743, %v4391
        %v4776 = vsel %vm3264, %v4744, %v4457
        %v4777 = vsel %vm3264, %v4745, %v4459
        %v4778 = vsel %vm3264, %v4746, %v4461
        %v4779 = vsel %vm3264, %v4747, %v4463
        %v4780 = vsel %vm3264, %v4748, %v4465
        %v4781 = vsel %vm3264, %v4749, %v4467
        %v4782 = vsel %vm3264, %v4750, %v4469
        %v4783 = vsel %vm3264, %v4751, %v4471
        %v4784 = vsel %vm3264, %v4752, %v4473
        %v4785 = vsel %vm3264, %v4753, %v4475
        %v4786 = vsel %vm3264, %v4754, %v4477
        %v4787 = vsel %vm3264, %v4755, %v4479
        %v4788 = vsel %vm3264, %v4756, %v4481
        %v4789 = vsel %vm3264, %v4757, %v4483
        %v4790 = vsel %vm3264, %v4758, %v4485
        %v4791 = vsel %vm3264, %v4759, %v4487
        %v4792 = vsel %vm3264, %v4760, %v4489
        %v4793 = vsel %vm3264, %v4761, %v4491
        %v4794 = vsel %vm3264, %v4762, %v4493
        %v4795 = vsel %vm3264, %v4763, %v4495
        %v4796 = vsel %vm3264, %v4764, %v4497
        %v4797 = vsel %vm3264, %v4765, %v4499
        %v4798 = vsel %vm3264, %v4766, %v4501
        %v4799 = vsel %vm3264, %v4767, %v4503
        %v4800 = vsel %vm3264, %v4768, %v4505
        %v4801 = vsel %vm3264, %v4769, %v4507
        %v4802 = vsel %vm3264, %v4770, %v4509
        %v4803 = vsel %vm3264, %v4771, %v4511
        %v4804 = vsel %vm3264, %v4772, %v4513
        %v4805 = vsel %vm3264, %v4773, %v4515
        %v4806 = vsel %vm3264, %v4774, %v4517
        %v4807 = vsel %vm3264, %v4775, %v4519
        %4840 = vrot.lane.b32.xlu0 %v4776, 64
        %v4841 = vpop.permute.xlu0 %4840
        %4842 = vrot.lane.b32.xlu0 %v4777, 64
        %v4843 = vpop.permute.xlu0 %4842
        %4844 = vrot.lane.b32.xlu0 %v4778, 64
        %v4845 = vpop.permute.xlu0 %4844
        %4846 = vrot.lane.b32.xlu0 %v4779, 64
        %v4847 = vpop.permute.xlu0 %4846
        %4848 = vrot.lane.b32.xlu0 %v4780, 64
        %v4849 = vpop.permute.xlu0 %4848
        %4850 = vrot.lane.b32.xlu0 %v4781, 64
        %v4851 = vpop.permute.xlu0 %4850
        %4852 = vrot.lane.b32.xlu0 %v4782, 64
        %v4853 = vpop.permute.xlu0 %4852
        %4854 = vrot.lane.b32.xlu0 %v4783, 64
        %v4855 = vpop.permute.xlu0 %4854
        %4856 = vrot.lane.b32.xlu0 %v4784, 64
        %v4857 = vpop.permute.xlu0 %4856
        %4858 = vrot.lane.b32.xlu0 %v4785, 64
        %v4859 = vpop.permute.xlu0 %4858
        %4860 = vrot.lane.b32.xlu0 %v4786, 64
        %v4861 = vpop.permute.xlu0 %4860
        %4862 = vrot.lane.b32.xlu0 %v4787, 64
        %v4863 = vpop.permute.xlu0 %4862
        %4864 = vrot.lane.b32.xlu0 %v4788, 64
        %v4865 = vpop.permute.xlu0 %4864
        %4866 = vrot.lane.b32.xlu0 %v4789, 64
        %v4867 = vpop.permute.xlu0 %4866
        %4868 = vrot.lane.b32.xlu0 %v4790, 64
        %v4869 = vpop.permute.xlu0 %4868
        %4870 = vrot.lane.b32.xlu0 %v4791, 64
        %v4871 = vpop.permute.xlu0 %4870
        %4872 = vrot.lane.b32.xlu0 %v4792, 64
        %v4873 = vpop.permute.xlu0 %4872
        %4874 = vrot.lane.b32.xlu0 %v4793, 64
        %v4875 = vpop.permute.xlu0 %4874
        %4876 = vrot.lane.b32.xlu0 %v4794, 64
        %v4877 = vpop.permute.xlu0 %4876
        %4878 = vrot.lane.b32.xlu0 %v4795, 64
        %v4879 = vpop.permute.xlu0 %4878
        %4880 = vrot.lane.b32.xlu0 %v4796, 64
        %v4881 = vpop.permute.xlu0 %4880
        %4882 = vrot.lane.b32.xlu0 %v4797, 64
        %v4883 = vpop.permute.xlu0 %4882
        %4884 = vrot.lane.b32.xlu0 %v4798, 64
        %v4885 = vpop.permute.xlu0 %4884
        %4886 = vrot.lane.b32.xlu0 %v4799, 64
        %v4887 = vpop.permute.xlu0 %4886
        %4888 = vrot.lane.b32.xlu0 %v4800, 64
        %v4889 = vpop.permute.xlu0 %4888
        %4890 = vrot.lane.b32.xlu0 %v4801, 64
        %v4891 = vpop.permute.xlu0 %4890
        %4892 = vrot.lane.b32.xlu0 %v4802, 64
        %v4893 = vpop.permute.xlu0 %4892
        %4894 = vrot.lane.b32.xlu0 %v4803, 64
        %v4895 = vpop.permute.xlu0 %4894
        %4896 = vrot.lane.b32.xlu0 %v4804, 64
        %v4897 = vpop.permute.xlu0 %4896
        %4898 = vrot.lane.b32.xlu0 %v4805, 64
        %v4899 = vpop.permute.xlu0 %4898
        %4900 = vrot.lane.b32.xlu0 %v4806, 64
        %v4901 = vpop.permute.xlu0 %4900
        %4902 = vrot.lane.b32.xlu0 %v4807, 64
        %v4903 = vpop.permute.xlu0 %4902
        %vm4936 = vcmask 523264
        %v4937 = vsel %vm4936, %v3496, %v4841
        %v4938 = vsel %vm4936, %v3497, %v4843
        %v4939 = vsel %vm4936, %v3498, %v4845
        %v4940 = vsel %vm4936, %v3499, %v4847
        %v4941 = vsel %vm4936, %v3500, %v4849
        %v4942 = vsel %vm4936, %v3501, %v4851
        %v4943 = vsel %vm4936, %v3502, %v4853
        %v4944 = vsel %vm4936, %v3503, %v4855
        %v4945 = vsel %vm4936, %v3504, %v4857
        %v4946 = vsel %vm4936, %v3505, %v4859
        %v4947 = vsel %vm4936, %v3506, %v4861
        %v4948 = vsel %vm4936, %v3507, %v4863
        %v4949 = vsel %vm4936, %v3508, %v4865
        %v4950 = vsel %vm4936, %v3509, %v4867
        %v4951 = vsel %vm4936, %v3510, %v4869
        %v4952 = vsel %vm4936, %v3511, %v4871
        %v4953 = vsel %vm4936, %v3512, %v4873
        %v4954 = vsel %vm4936, %v3513, %v4875
        %v4955 = vsel %vm4936, %v3514, %v4877
        %v4956 = vsel %vm4936, %v3515, %v4879
        %v4957 = vsel %vm4936, %v3516, %v4881
        %v4958 = vsel %vm4936, %v3517, %v4883
        %v4959 = vsel %vm4936, %v3518, %v4885
        %v4960 = vsel %vm4936, %v3519, %v4887
        %v4961 = vsel %vm4936, %v3520, %v4889
        %v4962 = vsel %vm4936, %v3521, %v4891
        %v4963 = vsel %vm4936, %v3522, %v4893
        %v4964 = vsel %vm4936, %v3523, %v4895
        %v4965 = vsel %vm4936, %v3524, %v4897
        %v4966 = vsel %vm4936, %v3525, %v4899
        %v4967 = vsel %vm4936, %v3526, %v4901
        %v4968 = vsel %vm4936, %v3527, %v4903
        %v4969 = vld [vmem:[%s1] sm:$0xff]
        %v4970 = vld [vmem:[%s1 + $0x8] sm:$0xff]
        %v4971 = vld [vmem:[%s1 + $0x10] sm:$0xff]
        %v4972 = vld [vmem:[%s1 + $0x18] sm:$0xff]
        %v4973 = vld [vmem:[%s1 + $0x20] sm:$0xff]
        %v4974 = vld [vmem:[%s1 + $0x28] sm:$0xff]
        %v4975 = vld [vmem:[%s1 + $0x30] sm:$0xff]
        %v4976 = vld [vmem:[%s1 + $0x38] sm:$0xff]
        %v4977 = vld [vmem:[%s1 + $0x40] sm:$0xff]
        %v4978 = vld [vmem:[%s1 + $0x48] sm:$0xff]
        %v4979 = vld [vmem:[%s1 + $0x50] sm:$0xff]
        %v4980 = vld [vmem:[%s1 + $0x58] sm:$0xff]
        %v4981 = vld [vmem:[%s1 + $0x60] sm:$0xf]
        %v4982 = vld [vmem:[#allocation4] sm:$0x1]
        %v4984 = vlaneseq
        %v4985 = vshrl.u32 %v4984, 7
        %v4986 = vsub.s32 0, %v4985
        %v4987 = vrot.slane %v4982, %v4986
        %vm4989 = vcmask 818176
        %v4991 = vsel %vm4989, %v4937, 0
        %v4994 = vsel %vm4989, %v4938, 0
        %v4997 = vsel %vm4989, %v4939, 0
        %v5000 = vsel %vm4989, %v4940, 0
        %v5003 = vsel %vm4989, %v4941, 0
        %v5006 = vsel %vm4989, %v4942, 0
        %v5009 = vsel %vm4989, %v4943, 0
        %v5012 = vsel %vm4989, %v4944, 0
        %v5015 = vsel %vm4989, %v4945, 0
        %v5018 = vsel %vm4989, %v4946, 0
        %v5021 = vsel %vm4989, %v4947, 0
        %v5024 = vsel %vm4989, %v4948, 0
        %v5027 = vsel %vm4989, %v4949, 0
        %v5030 = vsel %vm4989, %v4950, 0
        %v5033 = vsel %vm4989, %v4951, 0
        %v5036 = vsel %vm4989, %v4952, 0
        %v5039 = vsel %vm4989, %v4953, 0
        %v5042 = vsel %vm4989, %v4954, 0
        %v5045 = vsel %vm4989, %v4955, 0
        %v5048 = vsel %vm4989, %v4956, 0
        %v5051 = vsel %vm4989, %v4957, 0
        %v5054 = vsel %vm4989, %v4958, 0
        %v5057 = vsel %vm4989, %v4959, 0
        %v5060 = vsel %vm4989, %v4960, 0
        %v5063 = vsel %vm4989, %v4961, 0
        %v5066 = vsel %vm4989, %v4962, 0
        %v5069 = vsel %vm4989, %v4963, 0
        %v5072 = vsel %vm4989, %v4964, 0
        %v5075 = vsel %vm4989, %v4965, 0
        %v5078 = vsel %vm4989, %v4966, 0
        %v5081 = vsel %vm4989, %v4967, 0
        %v5084 = vsel %vm4989, %v4968, 0
        %vm5086 = vcmask 1043456
        %v5088 = vsel %vm5086, %v4981, 0
        %5090 = vmatprep.subr.mxu0 0.0
        %5091 = vmatpush1.msra.mxu0 %v4969
        %5092 = vmatprep.subr.mxu0 0.0
        %5093 = vmatpush1.msra.mxu0 %v4970
        %5094 = vmatprep.subr.mxu0 0.0
        %5095 = vmatpush1.msra.mxu0 %v4971
        %5096 = vmatprep.subr.mxu0 0.0
        %5097 = vmatpush1.msra.mxu0 %v4972
        %5098 = vmatprep.subr.mxu0 0.0
        %5099 = vmatpush1.msra.mxu0 %v4973
        %5100 = vmatprep.subr.mxu0 0.0
        %5101 = vmatpush1.msra.mxu0 %v4974
        %5102 = vmatprep.subr.mxu0 0.0
        %5103 = vmatpush1.msra.mxu0 %v4975
        %5104 = vmatprep.subr.mxu0 0.0
        %5105 = vmatpush1.msra.mxu0 %v4976
        %5106 = vmatprep.subr.mxu0 0.0
        %5107 = vmatpush1.msra.mxu0 %v4977
        %5108 = vmatprep.subr.mxu0 0.0
        %5109 = vmatpush1.msra.mxu0 %v4978
        %5110 = vmatprep.subr.mxu0 0.0
        %5111 = vmatpush1.msra.mxu0 %v4979
        %5112 = vmatprep.subr.mxu0 0.0
        %5113 = vmatpush1.msra.mxu0 %v4980
        %5114 = vmatprep.subr.mxu0 0.0
        %5115 = vmatpush1.msra.mxu0 %v5088
        %5116 = vmatprep.subr.mxu0 0.0
        %5117 = vmatpush1.msra.mxu0 0.0
        %5118 = vmatprep.subr.mxu0 0.0
        %5119 = vmatpush1.msra.mxu0 0.0
        %5120 = vmatprep.subr.mxu0 0.0
        %5121 = vmatpush1.msra.mxu0 0.0
        %5122 = vmatprep.subr.mxu0 0.0
        %5123 = vmatpush1.msra.mxu0 0.0
        %5124 = vmatprep.subr.mxu0 0.0
        %5125 = vmatpush1.msra.mxu0 0.0
        %5126 = vmatprep.subr.mxu0 0.0
        %5127 = vmatpush1.msra.mxu0 0.0
        %5128 = vmatprep.subr.mxu0 0.0
        %5129 = vmatpush1.msra.mxu0 0.0
        %5130 = vmatprep.subr.mxu0 0.0
        %5131 = vmatpush1.msra.mxu0 0.0
        %5132 = vmatprep.subr.mxu0 0.0
        %5133 = vmatpush1.msra.mxu0 0.0
        %5134 = vmatprep.subr.mxu0 0.0
        %5135 = vmatpush1.msra.mxu0 0.0
        %5136 = vmatprep.subr.mxu0 0.0
        %5137 = vmatpush1.msra.mxu0 0.0
        %5138 = vmatprep.subr.mxu0 0.0
        %5139 = vmatpush1.msra.mxu0 0.0
        %5140 = vmatprep.subr.mxu0 0.0
        %5141 = vmatpush1.msra.mxu0 0.0
        %5142 = vmatprep.subr.mxu0 0.0
        %5143 = vmatpush1.msra.mxu0 0.0
        %5144 = vmatprep.subr.mxu0 0.0
        %5145 = vmatpush1.msra.mxu0 0.0
        %5146 = vmatprep.subr.mxu0 0.0
        %5147 = vmatpush1.msra.mxu0 0.0
        %5148 = vmatprep.subr.mxu0 0.0
        %5149 = vmatpush1.msra.mxu0 0.0
        %5150 = vmatprep.subr.mxu0 0.0
        %5151 = vmatpush1.msra.mxu0 0.0
        %5152 = vmatprep.subr.mxu0 0.0
        %5153 = vmatpush1.msra.mxu0 0.0
        %5154 = vmatprep.mubr.f32.mxu0 0.0
        %5155 = vmatmul.mubr.f32.gmra.mrb[0].mxu0 %v4991
        %v5156 = vpop.f32.mrb[0].mxu0
        %v5157 = vadd.f32 %v4987, %v5156
        %v5158 = vpop.f32.mrb[0].mxu0
        %5159 = vmatprep.mubr.f32.mxu0 0.0
        %5160 = vmatmul.mubr.f32.gmra.mrb[0].mxu0 %v4994
        %v5161 = vpop.f32.mrb[0].mxu0
        %v5162 = vadd.f32 %v4987, %v5161
        %v5163 = vpop.f32.mrb[0].mxu0
        %5164 = vmatprep.mubr.f32.mxu0 0.0
        %5165 = vmatmul.mubr.f32.gmra.mrb[0].mxu0 %v4997
        %v5166 = vpop.f32.mrb[0].mxu0
        %v5167 = vadd.f32 %v4987, %v5166
        %v5168 = vpop.f32.mrb[0].mxu0
        %5169 = vmatprep.mubr.f32.mxu0 0.0
        %5170 = vmatmul.mubr.f32.gmra.mrb[0].mxu0 %v5000
        %v5171 = vpop.f32.mrb[0].mxu0
        %v5172 = vadd.f32 %v4987, %v5171
        %v5173 = vpop.f32.mrb[0].mxu0
        %5174 = vmatprep.mubr.f32.mxu0 0.0
        %5175 = vmatmul.mubr.f32.gmra.mrb[0].mxu0 %v5003
        %v5176 = vpop.f32.mrb[0].mxu0
        %v5177 = vadd.f32 %v4987, %v5176
        %v5178 = vpop.f32.mrb[0].mxu0
        %5179 = vmatprep.mubr.f32.mxu0 0.0
        %5180 = vmatmul.mubr.f32.gmra.mrb[0].mxu0 %v5006
        %v5181 = vpop.f32.mrb[0].mxu0
        %v5182 = vadd.f32 %v4987, %v5181
        %v5183 = vpop.f32.mrb[0].mxu0
        %5184 = vmatprep.mubr.f32.mxu0 0.0
        %5185 = vmatmul.mubr.f32.gmra.mrb[0].mxu0 %v5009
        %v5186 = vpop.f32.mrb[0].mxu0
        %v5187 = vadd.f32 %v4987, %v5186
        %v5188 = vpop.f32.mrb[0].mxu0
        %5189 = vmatprep.mubr.f32.mxu0 0.0
        %5190 = vmatmul.mubr.f32.gmra.mrb[0].mxu0 %v5012
        %v5191 = vpop.f32.mrb[0].mxu0
        %v5192 = vadd.f32 %v4987, %v5191
        %v5193 = vpop.f32.mrb[0].mxu0
        %5194 = vmatprep.mubr.f32.mxu0 0.0
        %5195 = vmatmul.mubr.f32.gmra.mrb[0].mxu0 %v5015
        %v5196 = vpop.f32.mrb[0].mxu0
        %v5197 = vadd.f32 %v4987, %v5196
        %v5198 = vpop.f32.mrb[0].mxu0
        %5199 = vmatprep.mubr.f32.mxu0 0.0
        %5200 = vmatmul.mubr.f32.gmra.mrb[0].mxu0 %v5018
        %v5201 = vpop.f32.mrb[0].mxu0
        %v5202 = vadd.f32 %v4987, %v5201
        %v5203 = vpop.f32.mrb[0].mxu0
        %5204 = vmatprep.mubr.f32.mxu0 0.0
        %5205 = vmatmul.mubr.f32.gmra.mrb[0].mxu0 %v5021
        %v5206 = vpop.f32.mrb[0].mxu0
        %v5207 = vadd.f32 %v4987, %v5206
        %v5208 = vpop.f32.mrb[0].mxu0
        %5209 = vmatprep.mubr.f32.mxu0 0.0
        %5210 = vmatmul.mubr.f32.gmra.mrb[0].mxu0 %v5024
        %v5211 = vpop.f32.mrb[0].mxu0
        %v5212 = vadd.f32 %v4987, %v5211
        %v5213 = vpop.f32.mrb[0].mxu0
        %5214 = vmatprep.mubr.f32.mxu0 0.0
        %5215 = vmatmul.mubr.f32.gmra.mrb[0].mxu0 %v5027
        %v5216 = vpop.f32.mrb[0].mxu0
        %v5217 = vadd.f32 %v4987, %v5216
        %v5218 = vpop.f32.mrb[0].mxu0
        %5219 = vmatprep.mubr.f32.mxu0 0.0
        %5220 = vmatmul.mubr.f32.gmra.mrb[0].mxu0 %v5030
        %v5221 = vpop.f32.mrb[0].mxu0
        %v5222 = vadd.f32 %v4987, %v5221
        %v5223 = vpop.f32.mrb[0].mxu0
        %5224 = vmatprep.mubr.f32.mxu0 0.0
        %5225 = vmatmul.mubr.f32.gmra.mrb[0].mxu0 %v5033
        %v5226 = vpop.f32.mrb[0].mxu0
        %v5227 = vadd.f32 %v4987, %v5226
        %v5228 = vpop.f32.mrb[0].mxu0
        %5229 = vmatprep.mubr.f32.mxu0 0.0
        %5230 = vmatmul.mubr.f32.gmra.mrb[0].mxu0 %v5036
        %v5231 = vpop.f32.mrb[0].mxu0
        %v5232 = vadd.f32 %v4987, %v5231
        %v5233 = vpop.f32.mrb[0].mxu0
        %5234 = vmatprep.mubr.f32.mxu0 0.0
        %5235 = vmatmul.mubr.f32.gmra.mrb[0].mxu0 %v5039
        %v5236 = vpop.f32.mrb[0].mxu0
        %v5237 = vadd.f32 %v4987, %v5236
        %v5238 = vpop.f32.mrb[0].mxu0
        %5239 = vmatprep.mubr.f32.mxu0 0.0
        %5240 = vmatmul.mubr.f32.gmra.mrb[0].mxu0 %v5042
        %v5241 = vpop.f32.mrb[0].mxu0
        %v5242 = vadd.f32 %v4987, %v5241
        %v5243 = vpop.f32.mrb[0].mxu0
        %5244 = vmatprep.mubr.f32.mxu0 0.0
        %5245 = vmatmul.mubr.f32.gmra.mrb[0].mxu0 %v5045
        %v5246 = vpop.f32.mrb[0].mxu0
        %v5247 = vadd.f32 %v4987, %v5246
        %v5248 = vpop.f32.mrb[0].mxu0
        %5249 = vmatprep.mubr.f32.mxu0 0.0
        %5250 = vmatmul.mubr.f32.gmra.mrb[0].mxu0 %v5048
        %v5251 = vpop.f32.mrb[0].mxu0
        %v5252 = vadd.f32 %v4987, %v5251
        %v5253 = vpop.f32.mrb[0].mxu0
        %5254 = vmatprep.mubr.f32.mxu0 0.0
        %5255 = vmatmul.mubr.f32.gmra.mrb[0].mxu0 %v5051
        %v5256 = vpop.f32.mrb[0].mxu0
        %v5257 = vadd.f32 %v4987, %v5256
        %v5258 = vpop.f32.mrb[0].mxu0
        %5259 = vmatprep.mubr.f32.mxu0 0.0
        %5260 = vmatmul.mubr.f32.gmra.mrb[0].mxu0 %v5054
        %v5261 = vpop.f32.mrb[0].mxu0
        %v5262 = vadd.f32 %v4987, %v5261
        %v5263 = vpop.f32.mrb[0].mxu0
        %5264 = vmatprep.mubr.f32.mxu0 0.0
        %5265 = vmatmul.mubr.f32.gmra.mrb[0].mxu0 %v5057
        %v5266 = vpop.f32.mrb[0].mxu0
        %v5267 = vadd.f32 %v4987, %v5266
        %v5268 = vpop.f32.mrb[0].mxu0
        %5269 = vmatprep.mubr.f32.mxu0 0.0
        %5270 = vmatmul.mubr.f32.gmra.mrb[0].mxu0 %v5060
        %v5271 = vpop.f32.mrb[0].mxu0
        %v5272 = vadd.f32 %v4987, %v5271
        %v5273 = vpop.f32.mrb[0].mxu0
        %5274 = vmatprep.mubr.f32.mxu0 0.0
        %5275 = vmatmul.mubr.f32.gmra.mrb[0].mxu0 %v5063
        %v5276 = vpop.f32.mrb[0].mxu0
        %v5277 = vadd.f32 %v4987, %v5276
        %v5278 = vpop.f32.mrb[0].mxu0
        %5279 = vmatprep.mubr.f32.mxu0 0.0
        %5280 = vmatmul.mubr.f32.gmra.mrb[0].mxu0 %v5066
        %v5281 = vpop.f32.mrb[0].mxu0
        %v5282 = vadd.f32 %v4987, %v5281
        %v5283 = vpop.f32.mrb[0].mxu0
        %5284 = vmatprep.mubr.f32.mxu0 0.0
        %5285 = vmatmul.mubr.f32.gmra.mrb[0].mxu0 %v5069
        %v5286 = vpop.f32.mrb[0].mxu0
        %v5287 = vadd.f32 %v4987, %v5286
        %v5288 = vpop.f32.mrb[0].mxu0
        %5289 = vmatprep.mubr.f32.mxu0 0.0
        %5290 = vmatmul.mubr.f32.gmra.mrb[0].mxu0 %v5072
        %v5291 = vpop.f32.mrb[0].mxu0
        %v5292 = vadd.f32 %v4987, %v5291
        %v5293 = vpop.f32.mrb[0].mxu0
        %5294 = vmatprep.mubr.f32.mxu0 0.0
        %5295 = vmatmul.mubr.f32.gmra.mrb[0].mxu0 %v5075
        %v5296 = vpop.f32.mrb[0].mxu0
        %v5297 = vadd.f32 %v4987, %v5296
        %v5298 = vpop.f32.mrb[0].mxu0
        %5299 = vmatprep.mubr.f32.mxu0 0.0
        %5300 = vmatmul.mubr.f32.gmra.mrb[0].mxu0 %v5078
        %v5301 = vpop.f32.mrb[0].mxu0
        %v5302 = vadd.f32 %v4987, %v5301
        %v5303 = vpop.f32.mrb[0].mxu0
        %5304 = vmatprep.mubr.f32.mxu0 0.0
        %5305 = vmatmul.mubr.f32.gmra.mrb[0].mxu0 %v5081
        %v5306 = vpop.f32.mrb[0].mxu0
        %v5307 = vadd.f32 %v4987, %v5306
        %v5308 = vpop.f32.mrb[0].mxu0
        %5309 = vmatprep.mubr.f32.mxu0 0.0
        %5310 = vmatmul.mubr.f32.gmra.mrb[0].mxu0 %v5084
        %v5311 = vpop.f32.mrb[0].mxu0
        %v5312 = vadd.f32 %v4987, %v5311
        %v5313 = vpop.f32.mrb[0].mxu0
        %5314 = vdwg.mxu0
        %v5315 = vmax.f32 %v5157, 0.0
        %v5316 = vmax.f32 %v5162, 0.0
        %v5317 = vmax.f32 %v5167, 0.0
        %v5318 = vmax.f32 %v5172, 0.0
        %v5319 = vmax.f32 %v5177, 0.0
        %v5320 = vmax.f32 %v5182, 0.0
        %v5321 = vmax.f32 %v5187, 0.0
        %v5322 = vmax.f32 %v5192, 0.0
        %v5323 = vmax.f32 %v5197, 0.0
        %v5324 = vmax.f32 %v5202, 0.0
        %v5325 = vmax.f32 %v5207, 0.0
        %v5326 = vmax.f32 %v5212, 0.0
        %v5327 = vmax.f32 %v5217, 0.0
        %v5328 = vmax.f32 %v5222, 0.0
        %v5329 = vmax.f32 %v5227, 0.0
        %v5330 = vmax.f32 %v5232, 0.0
        %v5331 = vmax.f32 %v5237, 0.0
        %v5332 = vmax.f32 %v5242, 0.0
        %v5333 = vmax.f32 %v5247, 0.0
        %v5334 = vmax.f32 %v5252, 0.0
        %v5335 = vmax.f32 %v5257, 0.0
        %v5336 = vmax.f32 %v5262, 0.0
        %v5337 = vmax.f32 %v5267, 0.0
        %v5338 = vmax.f32 %v5272, 0.0
        %v5339 = vmax.f32 %v5277, 0.0
        %v5340 = vmax.f32 %v5282, 0.0
        %v5341 = vmax.f32 %v5287, 0.0
        %v5342 = vmax.f32 %v5292, 0.0
        %v5343 = vmax.f32 %v5297, 0.0
        %v5344 = vmax.f32 %v5302, 0.0
        %v5345 = vmax.f32 %v5307, 0.0
        %v5346 = vmax.f32 %v5312, 0.0
        %v5347 = vmax.f32 %v5315, %v5317
        %v5348 = vmax.f32 %v5316, %v5318
        %v5349 = vmax.f32 %v5319, %v5321
        %v5350 = vmax.f32 %v5320, %v5322
        %v5351 = vmax.f32 %v5323, %v5325
        %v5352 = vmax.f32 %v5324, %v5326
        %v5353 = vmax.f32 %v5327, %v5329
        %v5354 = vmax.f32 %v5328, %v5330
        %v5355 = vmax.f32 %v5331, %v5333
        %v5356 = vmax.f32 %v5332, %v5334
        %v5357 = vmax.f32 %v5335, %v5337
        %v5358 = vmax.f32 %v5336, %v5338
        %v5359 = vmax.f32 %v5339, %v5341
        %v5360 = vmax.f32 %v5340, %v5342
        %v5361 = vmax.f32 %v5343, %v5345
        %v5362 = vmax.f32 %v5344, %v5346
        %5363 = vst.msk [vmem:[#allocation3] sm:$0xff] %vm3066, %v5347
        %5364 = vst.msk [vmem:[#allocation3 + $0x8] sm:$0xff] %vm3066, %v5348
        %5365 = vst.msk [vmem:[#allocation3 + $0x10] sm:$0xff] %vm3066, %v5349
        %5366 = vst.msk [vmem:[#allocation3 + $0x18] sm:$0xff] %vm3066, %v5350
        %5367 = vst.msk [vmem:[#allocation3 + $0x20] sm:$0xff] %vm3066, %v5351
        %5368 = vst.msk [vmem:[#allocation3 + $0x28] sm:$0xff] %vm3066, %v5352
        %5369 = vst.msk [vmem:[#allocation3 + $0x30] sm:$0xff] %vm3066, %v5353
        %5370 = vst.msk [vmem:[#allocation3 + $0x38] sm:$0xff] %vm3066, %v5354
        %5371 = vst.msk [vmem:[#allocation3 + $0x40] sm:$0xff] %vm3066, %v5355
        %5372 = vst.msk [vmem:[#allocation3 + $0x48] sm:$0xff] %vm3066, %v5356
        %5373 = vst.msk [vmem:[#allocation3 + $0x50] sm:$0xff] %vm3066, %v5357
        %5374 = vst.msk [vmem:[#allocation3 + $0x58] sm:$0xff] %vm3066, %v5358
        %5375 = vst.msk [vmem:[#allocation3 + $0x60] sm:$0xff] %vm3066, %v5359
        %5376 = vst.msk [vmem:[#allocation3 + $0x68] sm:$0xff] %vm3066, %v5360
        %5377 = vst.msk [vmem:[#allocation3 + $0x70] sm:$0xff] %vm3066, %v5361
        %5378 = vst.msk [vmem:[#allocation3 + $0x78] sm:$0xff] %vm3066, %v5362
        %v5379 = vld [vmem:[#allocation3] ss:$2 sm:$0xff]
        %s5380 = scalar_lea.vmem [#allocation3], 16
        %v5381 = vld [vmem:[%s5380] ss:$2 sm:$0xff]
        %s5382 = scalar_lea.vmem [#allocation3], 32
        %v5383 = vld [vmem:[%s5382] ss:$2 sm:$0xff]
        %s5384 = scalar_lea.vmem [#allocation3], 48
        %v5385 = vld [vmem:[%s5384] ss:$2 sm:$0xff]
        %s5386 = scalar_lea.vmem [#allocation3], 64
        %v5387 = vld [vmem:[%s5386] ss:$2 sm:$0xff]
        %s5388 = scalar_lea.vmem [#allocation3], 80
        %v5389 = vld [vmem:[%s5388] ss:$2 sm:$0xff]
        %s5390 = scalar_lea.vmem [#allocation3], 96
        %v5391 = vld [vmem:[%s5390] ss:$2 sm:$0xff]
        %s5392 = scalar_lea.vmem [#allocation3], 112
        %v5393 = vld [vmem:[%s5392] ss:$2 sm:$0xff]
        %s5394 = scalar_lea.vmem [#allocation3], 1
        %v5395 = vld [vmem:[%s5394] ss:$2 sm:$0xff]
        %s5396 = scalar_lea.vmem [#allocation3], 17
        %v5397 = vld [vmem:[%s5396] ss:$2 sm:$0xff]
        %s5398 = scalar_lea.vmem [#allocation3], 33
        %v5399 = vld [vmem:[%s5398] ss:$2 sm:$0xff]
        %s5400 = scalar_lea.vmem [#allocation3], 49
        %v5401 = vld [vmem:[%s5400] ss:$2 sm:$0xff]
        %s5402 = scalar_lea.vmem [#allocation3], 65
        %v5403 = vld [vmem:[%s5402] ss:$2 sm:$0xff]
        %s5404 = scalar_lea.vmem [#allocation3], 81
        %v5405 = vld [vmem:[%s5404] ss:$2 sm:$0xff]
        %s5406 = scalar_lea.vmem [#allocation3], 97
        %v5407 = vld [vmem:[%s5406] ss:$2 sm:$0xff]
        %s5408 = scalar_lea.vmem [#allocation3], 113
        %v5409 = vld [vmem:[%s5408] ss:$2 sm:$0xff]
        %v5410 = vmax.f32 %v5379, %v5395
        %v5411 = vmax.f32 %v5381, %v5397
        %v5412 = vmax.f32 %v5383, %v5399
        %v5413 = vmax.f32 %v5385, %v5401
        %v5414 = vmax.f32 %v5387, %v5403
        %v5415 = vmax.f32 %v5389, %v5405
        %v5416 = vmax.f32 %v5391, %v5407
        %v5417 = vmax.f32 %v5393, %v5409
        %5418 = vst.msk [vmem:[%s183] sm:$0xff] %vm3066, %v5410
        %5419 = vst.msk [vmem:[%s183 + $0x8] sm:$0xff] %vm3066, %v5411
        %5420 = vst.msk [vmem:[%s183 + $0x10] sm:$0xff] %vm3066, %v5412
        %5421 = vst.msk [vmem:[%s183 + $0x18] sm:$0xff] %vm3066, %v5413
        %5422 = vst.msk [vmem:[%s183 + $0x20] sm:$0xff] %vm3066, %v5414
        %5423 = vst.msk [vmem:[%s183 + $0x28] sm:$0xff] %vm3066, %v5415
        %5424 = vst.msk [vmem:[%s183 + $0x30] sm:$0xff] %vm3066, %v5416
        %5425 = vst.msk [vmem:[%s183 + $0x38] sm:$0xff] %vm3066, %v5417
        %p5426 = scmp.lt.s32.totalorder %s15, 1
        %s5427 = scalar_select %p5426, %s15, 1
        %s5428 = smul.addr %s5427, 8
        %s5429 = smul.addr %s5428, 8
        %s5430 = scalar_lea.vmem %s3, %s5429
        // Predicated region
        $region37: #{cnn_forward.3} parent=31 // pred_check
          %p5431 = pneg %p101
        $region38: #{cnn_forward.3} parent=31 // pred_check_branch
          %5433 = sbr.rel (%p5431) target = $region40
        $region39: #{cnn_forward.3} parent=31 // pred_region
          _
        $region40: #{cnn_forward.3} parent=31 // pred_fallthru
          _
      $region32: #{cnn_forward.3} parent=5 // pred_fallthru
        _
      %p5434 = scmp.le.s32.totalorder 2, %s10
      // Predicated region
      $region41: #{cnn_forward.3} parent=5 // pred_check
        %p5435 = pneg %p5434
      $region42: #{cnn_forward.3} parent=5 // pred_check_branch
        %5437 = sbr.rel (%p5435) target = $region44
      $region43: #{cnn_forward.3} parent=5 // pred_region
        %s5438 = ssub.s32 %s10, 2
        // Predicated region
        $region45: #{cnn_forward.3} parent=43 // pred_check
          %p5439 = pneg %p107
        $region46: #{cnn_forward.3} parent=43 // pred_check_branch
          %5441 = sbr.rel (%p5439) target = $region48
        $region47: #{cnn_forward.3} parent=43 // pred_region
          %p5442 = scmp.lt.s32.totalorder %s16, 1
          %s5443 = scalar_select %p5442, %s16, 1
          %s5444 = smul.addr %s5443, 8
          %s5445 = smul.addr %s5444, 8
          %s5446 = scalar_lea.vmem %s3, %s5445
        $region48: #{cnn_forward.3} parent=43 // pred_fallthru
          _
      $region44: #{cnn_forward.3} parent=5 // pred_fallthru
        _
    $region6: #{cnn_forward.3} parent=1 // loop_footer
      %s14 = sadd.s32 1, %s10
    $region7: #{cnn_forward.3} parent=1 // loop_footer_branch
      %9 = sbr.rel target = $region3
    $region8: #{cnn_forward.3} parent=1 // loop_exit
      _
    %5447 = vsyncpa [#allocation5], 1
    %s5448 = scalar_lea.sflag [#allocation5], 1
    %5449 = vsyncpa %s5448, 1

</llo_original>
